<compile_context>
chip_gen: v6e
topology: v6e:2x2x1
jax: 0.10.0
libtpu: 0.0.40
codegen_flags: <defaults>
</compile_context>

<pallas_src>
import functools

import numpy as np
import jax
import jax.numpy as jnp
from jax import lax
from jax.experimental import pallas as pl
from jax.experimental.pallas import tpu as pltpu


def _round_up(x, m):
    return ((x + m - 1) // m) * m


def _default_tile_scan():
    """256 fills the v6e/v7x 256-wide MXU; v5e (and older) MXUs are 128-wide."""
    try:
        kind = jax.devices()[0].device_kind.lower()
    except Exception:
        return 256
    if any(v in kind for v in ("v2", "v3", "v4", "v5")):
        return 128
    return 256


def _softmax_err_kernel(logits_ref, labels_ref, key_ref, fg_ref):
    """Softmax over classes + Lovász errors, lane-dense (C, pixels) output."""
    x = logits_ref[0].astype(jnp.float32)                    # (C, T1)
    lab = labels_ref[0]                                      # (1, T1) int32
    m = jnp.max(x, axis=0, keepdims=True)                    # class reduce = sublanes
    e = jnp.exp(x - m)
    p = e / jnp.sum(e, axis=0, keepdims=True)
    cls = lax.broadcasted_iota(jnp.int32, x.shape, 0)        # class id on sublanes
    valid = lab >= 0                                         # (1, T1)
    fg = jnp.logical_and(lab == cls, valid)                  # one-hot, in-kernel
    fg_f = fg.astype(jnp.float32)
    # Store the negated error: ascending lax.sort == descending error sort,
    # with ignored / padded pixels (key 0) landing at the end.
    key_ref[...] = jnp.where(valid, -jnp.abs(fg_f - p), 0.0)
    fg_ref[...] = fg.astype(jnp.int8)                        # int8 sort payload


def _lovasz_scan_kernel(gts_ref, negerr_ref, fg_ref, loss_ref,
                        tri_ref, cum_ref, acc_ref, *, tile, inner):
    """R=inner consecutive T=tile sub-tiles of the Lovász scan per grid step."""
    i = pl.program_id(0)
    T = tile

    @pl.when(i == 0)
    def _init():
        row = lax.broadcasted_iota(jnp.int32, (T, T), 0)
        col = lax.broadcasted_iota(jnp.int32, (T, T), 1)
        tri_ref[...] = (row <= col).astype(jnp.bfloat16)     # upper-tri incl. diag
        cum_ref[...] = jnp.zeros_like(cum_ref)
        acc_ref[...] = jnp.zeros_like(acc_ref)

    gts = gts_ref[...]                                       # (C, 1) fg totals
    tri = tri_ref[...]
    block_base = i * (inner * T)

    for r in range(inner):                                   # statically unrolled
        fg_i8 = fg_ref[:, r * T:(r + 1) * T]                 # (C, T) int8, sorted
        fg = fg_i8.astype(jnp.float32)
        err = -negerr_ref[:, r * T:(r + 1) * T]              # undo the sort-key sign

        # In-block inclusive prefix sum along pixels: one (C,T)x(T,T) MXU matmul.
        cum_fg = cum_ref[...] + jnp.dot(fg_i8.astype(jnp.bfloat16), tri,
                                        preferred_element_type=jnp.float32)

        # cumsum(1 - fg) derived from the global (1-indexed) rank.
        rank = (block_base + r * T + 1
                + lax.broadcasted_iota(jnp.int32, (1, T), 1)).astype(jnp.float32)
        cum_bg = rank - cum_fg

        inter = gts - cum_fg
        union = gts + cum_bg                                 # >= 1 for real rows
        # Jaccard first difference; the previous-row counts are rebuilt exactly
        # from the shifted integers (tile boundaries handled by the carry) and
        # the two divides are fused into one.  grad[0] == jacc[0] globally.
        inter_prev = inter + fg
        union_prev = union - (1.0 - fg)
        num = inter_prev * union - inter * union_prev
        grad = num / jnp.maximum(union * union_prev, 1.0)

        acc_ref[...] += jnp.sum(err * grad, axis=1, keepdims=True)
        cum_ref[...] = cum_fg[:, T - 1:T]

    @pl.when(i == pl.num_programs(0) - 1)
    def _finalize():
        present = (gts > 0.0).astype(jnp.float32)            # classes='present'
        total = jnp.sum(acc_ref[...] * present, axis=0, keepdims=True)
        cnt = jnp.sum(present, axis=0, keepdims=True)
        loss_ref[...] = total / jnp.maximum(cnt, 1.0)        # 0 if nothing present


def lovasz_softmax_with_logit(logits, labels, ignore=None, *,
                              tile_scan=None, scan_inner=32,
                              vmem_budget_bytes=16 * 1024 * 1024):
    """Forward of the PyTorch module (classes='present', per_image=False)."""
    B, C, H, W = logits.shape
    HW = H * W

    T = _default_tile_scan() if tile_scan is None else tile_scan
    R = scan_inner
    block2 = R * T                                           # kernel-2 pixels / step

    # Kernel-1 pixel tile: as large as the double-buffered VMEM budget allows
    # (logits f32 + labels i32 in, err f32 + fg i8 out), capped so intermediates
    # stay comfortably inside the 32 MiB scoped limit on every generation.
    per_pixel_bytes = 9 * C + 4
    tile1 = (vmem_budget_bytes // (2 * per_pixel_bytes)) // 128 * 128
    tile1 = int(min(max(tile1, 128), 32768))
    if HW <= tile1:
        tile1 = _round_up(HW, 128)
        hwp = tile1
    else:
        hwp = _round_up(HW, tile1)
    nt = hwp // tile1
    P = B * hwp

    # NCHW stays put (pixels are already lane-dense); the (B,C,HW) -> (C, P)
    # layout change is folded into kernel 1's output index_map.
    logits3 = logits.reshape(B, C, HW)
    labels3 = labels.reshape(B, 1, HW).astype(jnp.int32)
    if ignore is not None:
        labels3 = jnp.where(labels3 == ignore, -1, labels3)
    if hwp != HW:
        logits3 = jnp.pad(logits3, ((0, 0), (0, 0), (0, hwp - HW)))
        labels3 = jnp.pad(labels3, ((0, 0), (0, 0), (0, hwp - HW)),
                          constant_values=-1)

    # Kernel 1: memory-bound softmax + errors, megacore-parallel, lane-dense out.
    key, fg = pl.pallas_call(
        _softmax_err_kernel,
        out_shape=(jax.ShapeDtypeStruct((C, P), jnp.float32),
                   jax.ShapeDtypeStruct((C, P), jnp.int8)),
        grid=(B, nt),
        in_specs=[pl.BlockSpec((1, C, tile1), lambda b, i: (b, 0, i)),
                  pl.BlockSpec((1, 1, tile1), lambda b, i: (b, 0, i))],
        out_specs=(pl.BlockSpec((C, tile1), lambda b, i: (0, b * nt + i)),
                   pl.BlockSpec((C, tile1), lambda b, i: (0, b * nt + i))),
        compiler_params=pltpu.CompilerParams(
            dimension_semantics=("parallel", "parallel"),
            vmem_limit_bytes=32 * 1024 * 1024),
    )(logits3, labels3)

    # Per-class descending sort along the minor (lane) axis with fg as payload:
    # a single variadic key/value sort, no gathers.  Ties are Lovász-invariant.
    key_sorted, fg_sorted = lax.sort((key, fg), dimension=1,
                                     is_stable=False, num_keys=1)

    # Per-class foreground totals over valid pixels.
    gts = jnp.sum(fg, axis=1, dtype=jnp.float32).reshape(C, 1)

    # Pad the sorted streams to a multiple of the scan block (err=0 / fg=0 rows
    # sit past every real pixel and contribute nothing).
    Pp = _round_up(P, block2)
    if Pp != P:
        key_sorted = jnp.pad(key_sorted, ((0, 0), (0, Pp - P)))
        fg_sorted = jnp.pad(fg_sorted, ((0, 0), (0, Pp - P)))

    # Kernel 2: coarsened sequential Lovász scan with carried (C, 1) state.
    kernel2 = functools.partial(_lovasz_scan_kernel, tile=T, inner=R)
    loss = pl.pallas_call(
        kernel2,
        out_shape=jax.ShapeDtypeStruct((1, 1), jnp.float32),
        grid=(Pp // block2,),
        in_specs=[pl.BlockSpec((C, 1), lambda i: (0, 0)),        # gts (resident)
                  pl.BlockSpec((C, block2), lambda i: (0, i)),   # sorted -errors
                  pl.BlockSpec((C, block2), lambda i: (0, i))],  # sorted fg (int8)
        out_specs=pl.BlockSpec((1, 1), lambda i: (0, 0)),
        scratch_shapes=[pltpu.VMEM((T, T), jnp.bfloat16),        # tri (built at i==0)
                        pltpu.VMEM((C, 1), jnp.float32),         # running cumsum(fg)
                        pltpu.VMEM((C, 1), jnp.float32)],        # per-class loss acc
        compiler_params=pltpu.CompilerParams(
            dimension_semantics=("arbitrary",)),
    )(gts, key_sorted, fg_sorted)
    return loss[0, 0]


def _reference(logits, labels):
    """Pure numpy re-implementation of the PyTorch forward for verification."""
    p = np.asarray(jax.nn.softmax(jnp.asarray(logits), axis=1))
    B, C, H, W = p.shape
    pf = np.transpose(p, (0, 2, 3, 1)).reshape(-1, C)
    lab = np.asarray(labels).reshape(-1)
    losses = []
    for c in range(C):
        fg = (lab == c).astype(np.float64)
        if fg.sum() == 0:
            continue
        errors = np.abs(fg - pf[:, c].astype(np.float64))
        perm = np.argsort(-errors, kind="stable")
        errors_sorted = errors[perm]
        fg_sorted = fg[perm]
        gts = fg_sorted.sum()
        inter = gts - np.cumsum(fg_sorted)
        union = gts + np.cumsum(1.0 - fg_sorted)
        jacc = 1.0 - inter / union
        jacc[1:] = jacc[1:] - jacc[:-1]
        losses.append(np.dot(errors_sorted, jacc))
    return float(np.mean(losses)) if losses else 0.0


if __name__ == "__main__":
    key = jax.random.PRNGKey(0)
    k1, k2 = jax.random.split(key)

    B, C, H, W = 2, 4, 16, 16
    logits = jax.random.normal(k1, (B, C, H, W), dtype=jnp.float32)
    labels = jax.random.randint(k2, (B, H, W), 0, C, dtype=jnp.int32)

    loss_fn = jax.jit(lovasz_softmax_with_logit)
    loss = jax.block_until_ready(loss_fn(logits, labels))

    ref = _reference(logits, labels)
    assert np.isfinite(float(loss)), "kernel produced non-finite loss"
    assert abs(float(loss) - ref) < 1e-4, f"mismatch: kernel={float(loss)} ref={ref}"
    print("KERNEL_OK")
</pallas_src>

<mosaic_0001>
module attributes {stable_mosaic.version = 11 : i64} {
  func.func @_softmax_err_kernel(%arg0: i32, %arg1: i32, %arg2: memref<1x4x256xf32, #tpu.memory_space<vmem>>, %arg3: memref<1x1x256xi32, #tpu.memory_space<vmem>>, %arg4: memref<4x256xf32, #tpu.memory_space<vmem>>, %arg5: memref<4x256xi8, #tpu.memory_space<vmem>>) attributes {dimension_semantics = [#tpu.dimension_semantics<parallel>, #tpu.dimension_semantics<parallel>], iteration_bounds = array<i64: 2, 1>, scalar_prefetch = 0 : i64, scratch_operands = 0 : i64, tpu.core_type = #tpu.core_type<tc>, window_params = [{transform_indices = @transform_0, window_bounds = array<i64: 1, 4, 256>}, {transform_indices = @transform_1, window_bounds = array<i64: 1, 1, 256>}, {transform_indices = @transform_2, window_bounds = array<i64: 4, 256>}, {transform_indices = @transform_3, window_bounds = array<i64: 4, 256>}]} {
    %c0 = arith.constant 0 : index
    %c0_0 = arith.constant 0 : index
    %c0_1 = arith.constant 0 : index
    %0 = vector.load %arg2[%c0, %c0_0, %c0_1] : memref<1x4x256xf32, #tpu.memory_space<vmem>>, vector<1x4x256xf32>
    %1 = vector.shape_cast %0 : vector<1x4x256xf32> to vector<4x256xf32>
    %c0_2 = arith.constant 0 : index
    %c0_3 = arith.constant 0 : index
    %c0_4 = arith.constant 0 : index
    %2 = vector.load %arg3[%c0_2, %c0_3, %c0_4] : memref<1x1x256xi32, #tpu.memory_space<vmem>>, vector<1x1x256xi32>
    %3 = vector.shape_cast %2 : vector<1x1x256xi32> to vector<1x256xi32>
    %cst = arith.constant dense<0xFF800000> : vector<256xf32>
    %4 = vector.multi_reduction <maximumf>, %1, %cst [0] : vector<4x256xf32> to vector<256xf32>
    %5 = vector.shape_cast %4 : vector<256xf32> to vector<1x256xf32>
    %6 = vector.broadcast %5 : vector<1x256xf32> to vector<4x256xf32>
    %7 = arith.subf %1, %6 : vector<4x256xf32>
    %8 = math.exp %7 : vector<4x256xf32>
    %cst_5 = arith.constant dense<0.000000e+00> : vector<256xf32>
    %9 = vector.multi_reduction <add>, %8, %cst_5 [0] : vector<4x256xf32> to vector<256xf32>
    %10 = vector.shape_cast %9 : vector<256xf32> to vector<1x256xf32>
    %11 = vector.broadcast %10 : vector<1x256xf32> to vector<4x256xf32>
    %12 = arith.divf %8, %11 : vector<4x256xf32>
    %13 = tpu.iota {dimensions = array<i32: 0>} : vector<4x256xi32>
    %c0_i32 = arith.constant 0 : i32
    %14 = vector.broadcast %c0_i32 : i32 to vector<1x256xi32>
    %15 = arith.cmpi sge, %3, %14 : vector<1x256xi32>
    %16 = vector.broadcast %3 : vector<1x256xi32> to vector<4x256xi32>
    %17 = arith.cmpi eq, %16, %13 : vector<4x256xi32>
    %18 = vector.broadcast %15 : vector<1x256xi1> to vector<4x256xi1>
    %19 = arith.andi %17, %18 : vector<4x256xi1>
    %20 = arith.extui %19 : vector<4x256xi1> to vector<4x256xi32>
    %21 = arith.sitofp %20 : vector<4x256xi32> to vector<4x256xf32>
    %22 = arith.subf %21, %12 : vector<4x256xf32>
    %23 = math.absf %22 : vector<4x256xf32>
    %cst_6 = arith.constant 0.000000e+00 : f32
    %24 = vector.broadcast %cst_6 : f32 to vector<4x256xf32>
    %25 = arith.subf %24, %23 : vector<4x256xf32>
    %cst_7 = arith.constant 0.000000e+00 : f32
    %26 = vector.shape_cast %15 : vector<1x256xi1> to vector<1x256xi1>
    %27 = vector.broadcast %26 : vector<1x256xi1> to vector<4x256xi1>
    %28 = vector.broadcast %cst_7 : f32 to vector<4x256xf32>
    %29 = arith.select %27, %25, %28 : vector<4x256xi1>, vector<4x256xf32>
    %c0_8 = arith.constant 0 : index
    %c0_9 = arith.constant 0 : index
    %30 = vector.load %arg4[%c0_8, %c0_9] : memref<4x256xf32, #tpu.memory_space<vmem>>, vector<4x256xf32>
    tpu.vector_store %arg4[%c0_8, %c0_9], %29 {strides = array<i32>} : memref<4x256xf32, #tpu.memory_space<vmem>>, vector<4x256xf32>,
    %31 = arith.extui %19 : vector<4x256xi1> to vector<4x256xi8>
    %c0_10 = arith.constant 0 : index
    %c0_11 = arith.constant 0 : index
    %32 = vector.load %arg5[%c0_10, %c0_11] : memref<4x256xi8, #tpu.memory_space<vmem>>, vector<4x256xi8>
    tpu.vector_store %arg5[%c0_10, %c0_11], %31 {strides = array<i32>} : memref<4x256xi8, #tpu.memory_space<vmem>>, vector<4x256xi8>,
    return
  }
  func.func @transform_0(%arg0: i32, %arg1: i32) -> (i32, i32, i32) {
    %c0_i32 = arith.constant 0 : i32
    %c0_i32_0 = arith.constant 0 : i32
    return %arg0, %c0_i32, %arg1 : i32, i32, i32
  }
  func.func @transform_1(%arg0: i32, %arg1: i32) -> (i32, i32, i32) {
    %c0_i32 = arith.constant 0 : i32
    %c0_i32_0 = arith.constant 0 : i32
    return %arg0, %c0_i32, %arg1 : i32, i32, i32
  }
  func.func @transform_2(%arg0: i32, %arg1: i32) -> (i32, i32) {
    %c1_i32 = arith.constant 1 : i32
    %0 = arith.muli %arg0, %c1_i32 : i32
    %1 = arith.addi %0, %arg1 : i32
    %c0_i32 = arith.constant 0 : i32
    %c0_i32_0 = arith.constant 0 : i32
    return %c0_i32, %1 : i32, i32
  }
  func.func @transform_3(%arg0: i32, %arg1: i32) -> (i32, i32) {
    %c1_i32 = arith.constant 1 : i32
    %0 = arith.muli %arg0, %c1_i32 : i32
    %1 = arith.addi %0, %arg1 : i32
    %c0_i32 = arith.constant 0 : i32
    %c0_i32_0 = arith.constant 0 : i32
    return %c0_i32, %1 : i32, i32
  }
}

module attributes {stable_mosaic.version = 11 : i64} {
  func.func @_lovasz_scan_kernel(%arg0: i32, %arg1: memref<4x1xf32, #tpu.memory_space<vmem>>, %arg2: memref<4x8192xf32, #tpu.memory_space<vmem>>, %arg3: memref<4x8192xi8, #tpu.memory_space<vmem>>, %arg4: memref<1x1xf32, #tpu.memory_space<vmem>>, %arg5: memref<256x256xbf16, #tpu.memory_space<vmem>>, %arg6: memref<4x1xf32, #tpu.memory_space<vmem>>, %arg7: memref<4x1xf32, #tpu.memory_space<vmem>>) attributes {dimension_semantics = [#tpu.dimension_semantics<arbitrary>], iteration_bounds = array<i64: 1>, scalar_prefetch = 0 : i64, scratch_operands = 3 : i64, tpu.core_type = #tpu.core_type<tc>, window_params = [{pipeline_mode = #tpu.pipeline_mode<synchronous>, transform_indices = @transform_0, window_bounds = array<i64: 4, 1>}, {transform_indices = @transform_1, window_bounds = array<i64: 4, 8192>}, {transform_indices = @transform_2, window_bounds = array<i64: 4, 8192>}, {pipeline_mode = #tpu.pipeline_mode<synchronous>, transform_indices = @transform_3, window_bounds = array<i64: 1, 1>}]} {
    %c0_i32 = arith.constant 0 : i32
    %0 = arith.cmpi eq, %arg0, %c0_i32 : i32
    %1 = arith.extui %0 : i1 to i32
    %c0_i32_0 = arith.constant 0 : i32
    %2 = arith.cmpi ne, %1, %c0_i32_0 : i32
    scf.if %2 {
      %1321 = tpu.iota {dimensions = array<i32: 0>} : vector<256x256xi32>
      %1322 = tpu.iota {dimensions = array<i32: 1>} : vector<256x256xi32>
      %1323 = arith.cmpi sle, %1321, %1322 : vector<256x256xi32>
      %1324 = arith.extui %1323 : vector<256x256xi1> to vector<256x256xi32>
      %1325 = arith.sitofp %1324 : vector<256x256xi32> to vector<256x256xf32>
      %1326 = arith.truncf %1325 : vector<256x256xf32> to vector<256x256xbf16>
      %c0_550 = arith.constant 0 : index
      %c0_551 = arith.constant 0 : index
      %1327 = vector.load %arg5[%c0_550, %c0_551] : memref<256x256xbf16, #tpu.memory_space<vmem>>, vector<256x256xbf16>
      tpu.vector_store %arg5[%c0_550, %c0_551], %1326 {strides = array<i32>} : memref<256x256xbf16, #tpu.memory_space<vmem>>, vector<256x256xbf16>,
      %cst_552 = arith.constant 0.000000e+00 : f32
      %1328 = vector.broadcast %cst_552 : f32 to vector<4x1xf32>
      %c0_553 = arith.constant 0 : index
      %c0_554 = arith.constant 0 : index
      %1329 = vector.load %arg6[%c0_553, %c0_554] : memref<4x1xf32, #tpu.memory_space<vmem>>, vector<4x1xf32>
      tpu.vector_store %arg6[%c0_553, %c0_554], %1328 {strides = array<i32>} : memref<4x1xf32, #tpu.memory_space<vmem>>, vector<4x1xf32>,
      %cst_555 = arith.constant 0.000000e+00 : f32
      %1330 = vector.broadcast %cst_555 : f32 to vector<4x1xf32>
      %c0_556 = arith.constant 0 : index
      %c0_557 = arith.constant 0 : index
      %1331 = vector.load %arg7[%c0_556, %c0_557] : memref<4x1xf32, #tpu.memory_space<vmem>>, vector<4x1xf32>
      tpu.vector_store %arg7[%c0_556, %c0_557], %1330 {strides = array<i32>} : memref<4x1xf32, #tpu.memory_space<vmem>>, vector<4x1xf32>,
    } else {
    }
    %c0 = arith.constant 0 : index
    %c0_1 = arith.constant 0 : index
    %3 = vector.load %arg1[%c0, %c0_1] : memref<4x1xf32, #tpu.memory_space<vmem>>, vector<4x1xf32>
    %c0_2 = arith.constant 0 : index
    %c0_3 = arith.constant 0 : index
    %4 = vector.load %arg5[%c0_2, %c0_3] : memref<256x256xbf16, #tpu.memory_space<vmem>>, vector<256x256xbf16>
    %c8192_i32 = arith.constant 8192 : i32
    %5 = arith.muli %arg0, %c8192_i32 : i32
    %c0_4 = arith.constant 0 : index
    %c0_5 = arith.constant 0 : index
    %6 = vector.load %arg3[%c0_4, %c0_5] : memref<4x8192xi8, #tpu.memory_space<vmem>>, vector<4x256xi8>
    %7 = arith.sitofp %6 : vector<4x256xi8> to vector<4x256xf32>
    %c0_6 = arith.constant 0 : index
    %c0_7 = arith.constant 0 : index
    %8 = vector.load %arg2[%c0_6, %c0_7] : memref<4x8192xf32, #tpu.memory_space<vmem>>, vector<4x256xf32>
    %cst = arith.constant 0.000000e+00 : f32
    %9 = vector.broadcast %cst : f32 to vector<4x256xf32>
    %10 = arith.subf %9, %8 : vector<4x256xf32>
    %c0_8 = arith.constant 0 : index
    %c0_9 = arith.constant 0 : index
    %11 = vector.load %arg6[%c0_8, %c0_9] : memref<4x1xf32, #tpu.memory_space<vmem>>, vector<4x1xf32>
    %12 = arith.sitofp %6 : vector<4x256xi8> to vector<4x256xbf16>
    %cst_10 = arith.constant dense<0.000000e+00> : vector<4x256xf32>
    %13 = tpu.matmul %12, %4, %cst_10 {dimension_numbers = #tpu.dot_dimension_numbers<[1], [0], [0], [1], [0, 0, 1, 1], [], []>} : vector<4x256xbf16>, vector<256x256xbf16>, vector<4x256xf32> -> vector<4x256xf32>
    %14 = vector.broadcast %11 : vector<4x1xf32> to vector<4x256xf32>
    %15 = arith.addf %14, %13 : vector<4x256xf32>
    %c0_i32_11 = arith.constant 0 : i32
    %16 = arith.addi %5, %c0_i32_11 : i32
    %c1_i32 = arith.constant 1 : i32
    %17 = arith.addi %16, %c1_i32 : i32
    %18 = tpu.iota {dimensions = array<i32: 1>} : vector<1x256xi32>
    %19 = vector.broadcast %17 : i32 to vector<1x256xi32>
    %20 = arith.addi %19, %18 : vector<1x256xi32>
    %21 = arith.sitofp %20 : vector<1x256xi32> to vector<1x256xf32>
    %22 = vector.broadcast %21 : vector<1x256xf32> to vector<4x256xf32>
    %23 = arith.subf %22, %15 : vector<4x256xf32>
    %24 = vector.broadcast %3 : vector<4x1xf32> to vector<4x256xf32>
    %25 = arith.subf %24, %15 : vector<4x256xf32>
    %26 = vector.broadcast %3 : vector<4x1xf32> to vector<4x256xf32>
    %27 = arith.addf %26, %23 : vector<4x256xf32>
    %28 = arith.addf %25, %7 : vector<4x256xf32>
    %cst_12 = arith.constant 1.000000e+00 : f32
    %29 = vector.broadcast %cst_12 : f32 to vector<4x256xf32>
    %30 = arith.subf %29, %7 : vector<4x256xf32>
    %31 = arith.subf %27, %30 : vector<4x256xf32>
    %32 = arith.mulf %28, %27 : vector<4x256xf32>
    %33 = arith.mulf %25, %31 : vector<4x256xf32>
    %34 = arith.subf %32, %33 : vector<4x256xf32>
    %35 = arith.mulf %27, %31 : vector<4x256xf32>
    %cst_13 = arith.constant 1.000000e+00 : f32
    %36 = vector.broadcast %cst_13 : f32 to vector<4x256xf32>
    %37 = arith.maximumf %35, %36 : vector<4x256xf32>
    %38 = arith.divf %34, %37 : vector<4x256xf32>
    %c0_14 = arith.constant 0 : index
    %c0_15 = arith.constant 0 : index
    %39 = vector.load %arg7[%c0_14, %c0_15] : memref<4x1xf32, #tpu.memory_space<vmem>>, vector<4x1xf32>
    %40 = arith.mulf %10, %38 : vector<4x256xf32>
    %cst_16 = arith.constant dense<0.000000e+00> : vector<4xf32>
    %41 = vector.multi_reduction <add>, %40, %cst_16 [1] : vector<4x256xf32> to vector<4xf32>
    %42 = vector.shape_cast %41 : vector<4xf32> to vector<4x1xf32>
    %43 = arith.addf %39, %42 : vector<4x1xf32>
    %c0_17 = arith.constant 0 : index
    %c0_18 = arith.constant 0 : index
    %44 = vector.load %arg7[%c0_17, %c0_18] : memref<4x1xf32, #tpu.memory_space<vmem>>, vector<4x1xf32>
    tpu.vector_store %arg7[%c0_17, %c0_18], %43 {strides = array<i32>} : memref<4x1xf32, #tpu.memory_space<vmem>>, vector<4x1xf32>,
    %45 = vector.extract_strided_slice %15 {offsets = [0, 255], sizes = [4, 1], strides = [1, 1]} : vector<4x256xf32> to vector<4x1xf32>
    %c0_19 = arith.constant 0 : index
    %c0_20 = arith.constant 0 : index
    %46 = vector.load %arg6[%c0_19, %c0_20] : memref<4x1xf32, #tpu.memory_space<vmem>>, vector<4x1xf32>
    tpu.vector_store %arg6[%c0_19, %c0_20], %45 {strides = array<i32>} : memref<4x1xf32, #tpu.memory_space<vmem>>, vector<4x1xf32>,
    %c0_21 = arith.constant 0 : index
    %c256 = arith.constant 256 : index
    %47 = vector.load %arg3[%c0_21, %c256] : memref<4x8192xi8, #tpu.memory_space<vmem>>, vector<4x256xi8>
    %48 = arith.sitofp %47 : vector<4x256xi8> to vector<4x256xf32>
    %c0_22 = arith.constant 0 : index
    %c256_23 = arith.constant 256 : index
    %49 = vector.load %arg2[%c0_22, %c256_23] : memref<4x8192xf32, #tpu.memory_space<vmem>>, vector<4x256xf32>
    %cst_24 = arith.constant 0.000000e+00 : f32
    %50 = vector.broadcast %cst_24 : f32 to vector<4x256xf32>
    %51 = arith.subf %50, %49 : vector<4x256xf32>
    %c0_25 = arith.constant 0 : index
    %c0_26 = arith.constant 0 : index
    %52 = vector.load %arg6[%c0_25, %c0_26] : memref<4x1xf32, #tpu.memory_space<vmem>>, vector<4x1xf32>
    %53 = arith.sitofp %47 : vector<4x256xi8> to vector<4x256xbf16>
    %cst_27 = arith.constant dense<0.000000e+00> : vector<4x256xf32>
    %54 = tpu.matmul %53, %4, %cst_27 {dimension_numbers = #tpu.dot_dimension_numbers<[1], [0], [0], [1], [0, 0, 1, 1], [], []>} : vector<4x256xbf16>, vector<256x256xbf16>, vector<4x256xf32> -> vector<4x256xf32>
    %55 = vector.broadcast %52 : vector<4x1xf32> to vector<4x256xf32>
    %56 = arith.addf %55, %54 : vector<4x256xf32>
    %c256_i32 = arith.constant 256 : i32
    %57 = arith.addi %5, %c256_i32 : i32
    %c1_i32_28 = arith.constant 1 : i32
    %58 = arith.addi %57, %c1_i32_28 : i32
    %59 = tpu.iota {dimensions = array<i32: 1>} : vector<1x256xi32>
    %60 = vector.broadcast %58 : i32 to vector<1x256xi32>
    %61 = arith.addi %60, %59 : vector<1x256xi32>
    %62 = arith.sitofp %61 : vector<1x256xi32> to vector<1x256xf32>
    %63 = vector.broadcast %62 : vector<1x256xf32> to vector<4x256xf32>
    %64 = arith.subf %63, %56 : vector<4x256xf32>
    %65 = vector.broadcast %3 : vector<4x1xf32> to vector<4x256xf32>
    %66 = arith.subf %65, %56 : vector<4x256xf32>
    %67 = vector.broadcast %3 : vector<4x1xf32> to vector<4x256xf32>
    %68 = arith.addf %67, %64 : vector<4x256xf32>
    %69 = arith.addf %66, %48 : vector<4x256xf32>
    %cst_29 = arith.constant 1.000000e+00 : f32
    %70 = vector.broadcast %cst_29 : f32 to vector<4x256xf32>
    %71 = arith.subf %70, %48 : vector<4x256xf32>
    %72 = arith.subf %68, %71 : vector<4x256xf32>
    %73 = arith.mulf %69, %68 : vector<4x256xf32>
    %74 = arith.mulf %66, %72 : vector<4x256xf32>
    %75 = arith.subf %73, %74 : vector<4x256xf32>
    %76 = arith.mulf %68, %72 : vector<4x256xf32>
    %cst_30 = arith.constant 1.000000e+00 : f32
    %77 = vector.broadcast %cst_30 : f32 to vector<4x256xf32>
    %78 = arith.maximumf %76, %77 : vector<4x256xf32>
    %79 = arith.divf %75, %78 : vector<4x256xf32>
    %c0_31 = arith.constant 0 : index
    %c0_32 = arith.constant 0 : index
    %80 = vector.load %arg7[%c0_31, %c0_32] : memref<4x1xf32, #tpu.memory_space<vmem>>, vector<4x1xf32>
    %81 = arith.mulf %51, %79 : vector<4x256xf32>
    %cst_33 = arith.constant dense<0.000000e+00> : vector<4xf32>
    %82 = vector.multi_reduction <add>, %81, %cst_33 [1] : vector<4x256xf32> to vector<4xf32>
    %83 = vector.shape_cast %82 : vector<4xf32> to vector<4x1xf32>
    %84 = arith.addf %80, %83 : vector<4x1xf32>
    %c0_34 = arith.constant 0 : index
    %c0_35 = arith.constant 0 : index
    %85 = vector.load %arg7[%c0_34, %c0_35] : memref<4x1xf32, #tpu.memory_space<vmem>>, vector<4x1xf32>
    tpu.vector_store %arg7[%c0_34, %c0_35], %84 {strides = array<i32>} : memref<4x1xf32, #tpu.memory_space<vmem>>, vector<4x1xf32>,
    %86 = vector.extract_strided_slice %56 {offsets = [0, 255], sizes = [4, 1], strides = [1, 1]} : vector<4x256xf32> to vector<4x1xf32>
    %c0_36 = arith.constant 0 : index
    %c0_37 = arith.constant 0 : index
    %87 = vector.load %arg6[%c0_36, %c0_37] : memref<4x1xf32, #tpu.memory_space<vmem>>, vector<4x1xf32>
    tpu.vector_store %arg6[%c0_36, %c0_37], %86 {strides = array<i32>} : memref<4x1xf32, #tpu.memory_space<vmem>>, vector<4x1xf32>,
    %c0_38 = arith.constant 0 : index
    %c512 = arith.constant 512 : index
    %88 = vector.load %arg3[%c0_38, %c512] : memref<4x8192xi8, #tpu.memory_space<vmem>>, vector<4x256xi8>
    %89 = arith.sitofp %88 : vector<4x256xi8> to vector<4x256xf32>
    %c0_39 = arith.constant 0 : index
    %c512_40 = arith.constant 512 : index
    %90 = vector.load %arg2[%c0_39, %c512_40] : memref<4x8192xf32, #tpu.memory_space<vmem>>, vector<4x256xf32>
    %cst_41 = arith.constant 0.000000e+00 : f32
    %91 = vector.broadcast %cst_41 : f32 to vector<4x256xf32>
    %92 = arith.subf %91, %90 : vector<4x256xf32>
    %c0_42 = arith.constant 0 : index
    %c0_43 = arith.constant 0 : index
    %93 = vector.load %arg6[%c0_42, %c0_43] : memref<4x1xf32, #tpu.memory_space<vmem>>, vector<4x1xf32>
    %94 = arith.sitofp %88 : vector<4x256xi8> to vector<4x256xbf16>
    %cst_44 = arith.constant dense<0.000000e+00> : vector<4x256xf32>
    %95 = tpu.matmul %94, %4, %cst_44 {dimension_numbers = #tpu.dot_dimension_numbers<[1], [0], [0], [1], [0, 0, 1, 1], [], []>} : vector<4x256xbf16>, vector<256x256xbf16>, vector<4x256xf32> -> vector<4x256xf32>
    %96 = vector.broadcast %93 : vector<4x1xf32> to vector<4x256xf32>
    %97 = arith.addf %96, %95 : vector<4x256xf32>
    %c512_i32 = arith.constant 512 : i32
    %98 = arith.addi %5, %c512_i32 : i32
    %c1_i32_45 = arith.constant 1 : i32
    %99 = arith.addi %98, %c1_i32_45 : i32
    %100 = tpu.iota {dimensions = array<i32: 1>} : vector<1x256xi32>
    %101 = vector.broadcast %99 : i32 to vector<1x256xi32>
    %102 = arith.addi %101, %100 : vector<1x256xi32>
    %103 = arith.sitofp %102 : vector<1x256xi32> to vector<1x256xf32>
    %104 = vector.broadcast %103 : vector<1x256xf32> to vector<4x256xf32>
    %105 = arith.subf %104, %97 : vector<4x256xf32>
    %106 = vector.broadcast %3 : vector<4x1xf32> to vector<4x256xf32>
    %107 = arith.subf %106, %97 : vector<4x256xf32>
    %108 = vector.broadcast %3 : vector<4x1xf32> to vector<4x256xf32>
    %109 = arith.addf %108, %105 : vector<4x256xf32>
    %110 = arith.addf %107, %89 : vector<4x256xf32>
    %cst_46 = arith.constant 1.000000e+00 : f32
    %111 = vector.broadcast %cst_46 : f32 to vector<4x256xf32>
    %112 = arith.subf %111, %89 : vector<4x256xf32>
    %113 = arith.subf %109, %112 : vector<4x256xf32>
    %114 = arith.mulf %110, %109 : vector<4x256xf32>
    %115 = arith.mulf %107, %113 : vector<4x256xf32>
    %116 = arith.subf %114, %115 : vector<4x256xf32>
    %117 = arith.mulf %109, %113 : vector<4x256xf32>
    %cst_47 = arith.constant 1.000000e+00 : f32
    %118 = vector.broadcast %cst_47 : f32 to vector<4x256xf32>
    %119 = arith.maximumf %117, %118 : vector<4x256xf32>
    %120 = arith.divf %116, %119 : vector<4x256xf32>
    %c0_48 = arith.constant 0 : index
    %c0_49 = arith.constant 0 : index
    %121 = vector.load %arg7[%c0_48, %c0_49] : memref<4x1xf32, #tpu.memory_space<vmem>>, vector<4x1xf32>
    %122 = arith.mulf %92, %120 : vector<4x256xf32>
    %cst_50 = arith.constant dense<0.000000e+00> : vector<4xf32>
    %123 = vector.multi_reduction <add>, %122, %cst_50 [1] : vector<4x256xf32> to vector<4xf32>
    %124 = vector.shape_cast %123 : vector<4xf32> to vector<4x1xf32>
    %125 = arith.addf %121, %124 : vector<4x1xf32>
    %c0_51 = arith.constant 0 : index
    %c0_52 = arith.constant 0 : index
    %126 = vector.load %arg7[%c0_51, %c0_52] : memref<4x1xf32, #tpu.memory_space<vmem>>, vector<4x1xf32>
    tpu.vector_store %arg7[%c0_51, %c0_52], %125 {strides = array<i32>} : memref<4x1xf32, #tpu.memory_space<vmem>>, vector<4x1xf32>,
    %127 = vector.extract_strided_slice %97 {offsets = [0, 255], sizes = [4, 1], strides = [1, 1]} : vector<4x256xf32> to vector<4x1xf32>
    %c0_53 = arith.constant 0 : index
    %c0_54 = arith.constant 0 : index
    %128 = vector.load %arg6[%c0_53, %c0_54] : memref<4x1xf32, #tpu.memory_space<vmem>>, vector<4x1xf32>
    tpu.vector_store %arg6[%c0_53, %c0_54], %127 {strides = array<i32>} : memref<4x1xf32, #tpu.memory_space<vmem>>, vector<4x1xf32>,
    %c0_55 = arith.constant 0 : index
    %c768 = arith.constant 768 : index
    %129 = vector.load %arg3[%c0_55, %c768] : memref<4x8192xi8, #tpu.memory_space<vmem>>, vector<4x256xi8>
    %130 = arith.sitofp %129 : vector<4x256xi8> to vector<4x256xf32>
    %c0_56 = arith.constant 0 : index
    %c768_57 = arith.constant 768 : index
    %131 = vector.load %arg2[%c0_56, %c768_57] : memref<4x8192xf32, #tpu.memory_space<vmem>>, vector<4x256xf32>
    %cst_58 = arith.constant 0.000000e+00 : f32
    %132 = vector.broadcast %cst_58 : f32 to vector<4x256xf32>
    %133 = arith.subf %132, %131 : vector<4x256xf32>
    %c0_59 = arith.constant 0 : index
    %c0_60 = arith.constant 0 : index
    %134 = vector.load %arg6[%c0_59, %c0_60] : memref<4x1xf32, #tpu.memory_space<vmem>>, vector<4x1xf32>
    %135 = arith.sitofp %129 : vector<4x256xi8> to vector<4x256xbf16>
    %cst_61 = arith.constant dense<0.000000e+00> : vector<4x256xf32>
    %136 = tpu.matmul %135, %4, %cst_61 {dimension_numbers = #tpu.dot_dimension_numbers<[1], [0], [0], [1], [0, 0, 1, 1], [], []>} : vector<4x256xbf16>, vector<256x256xbf16>, vector<4x256xf32> -> vector<4x256xf32>
    %137 = vector.broadcast %134 : vector<4x1xf32> to vector<4x256xf32>
    %138 = arith.addf %137, %136 : vector<4x256xf32>
    %c768_i32 = arith.constant 768 : i32
    %139 = arith.addi %5, %c768_i32 : i32
    %c1_i32_62 = arith.constant 1 : i32
    %140 = arith.addi %139, %c1_i32_62 : i32
    %141 = tpu.iota {dimensions = array<i32: 1>} : vector<1x256xi32>
    %142 = vector.broadcast %140 : i32 to vector<1x256xi32>
    %143 = arith.addi %142, %141 : vector<1x256xi32>
    %144 = arith.sitofp %143 : vector<1x256xi32> to vector<1x256xf32>
    %145 = vector.broadcast %144 : vector<1x256xf32> to vector<4x256xf32>
    %146 = arith.subf %145, %138 : vector<4x256xf32>
    %147 = vector.broadcast %3 : vector<4x1xf32> to vector<4x256xf32>
    %148 = arith.subf %147, %138 : vector<4x256xf32>
    %149 = vector.broadcast %3 : vector<4x1xf32> to vector<4x256xf32>
    %150 = arith.addf %149, %146 : vector<4x256xf32>
    %151 = arith.addf %148, %130 : vector<4x256xf32>
    %cst_63 = arith.constant 1.000000e+00 : f32
    %152 = vector.broadcast %cst_63 : f32 to vector<4x256xf32>
    %153 = arith.subf %152, %130 : vector<4x256xf32>
    %154 = arith.subf %150, %153 : vector<4x256xf32>
    %155 = arith.mulf %151, %150 : vector<4x256xf32>
    %156 = arith.mulf %148, %154 : vector<4x256xf32>
    %157 = arith.subf %155, %156 : vector<4x256xf32>
    %158 = arith.mulf %150, %154 : vector<4x256xf32>
    %cst_64 = arith.constant 1.000000e+00 : f32
    %159 = vector.broadcast %cst_64 : f32 to vector<4x256xf32>
    %160 = arith.maximumf %158, %159 : vector<4x256xf32>
    %161 = arith.divf %157, %160 : vector<4x256xf32>
    %c0_65 = arith.constant 0 : index
    %c0_66 = arith.constant 0 : index
    %162 = vector.load %arg7[%c0_65, %c0_66] : memref<4x1xf32, #tpu.memory_space<vmem>>, vector<4x1xf32>
    %163 = arith.mulf %133, %161 : vector<4x256xf32>
    %cst_67 = arith.constant dense<0.000000e+00> : vector<4xf32>
    %164 = vector.multi_reduction <add>, %163, %cst_67 [1] : vector<4x256xf32> to vector<4xf32>
    %165 = vector.shape_cast %164 : vector<4xf32> to vector<4x1xf32>
    %166 = arith.addf %162, %165 : vector<4x1xf32>
    %c0_68 = arith.constant 0 : index
    %c0_69 = arith.constant 0 : index
    %167 = vector.load %arg7[%c0_68, %c0_69] : memref<4x1xf32, #tpu.memory_space<vmem>>, vector<4x1xf32>
    tpu.vector_store %arg7[%c0_68, %c0_69], %166 {strides = array<i32>} : memref<4x1xf32, #tpu.memory_space<vmem>>, vector<4x1xf32>,
    %168 = vector.extract_strided_slice %138 {offsets = [0, 255], sizes = [4, 1], strides = [1, 1]} : vector<4x256xf32> to vector<4x1xf32>
    %c0_70 = arith.constant 0 : index
    %c0_71 = arith.constant 0 : index
    %169 = vector.load %arg6[%c0_70, %c0_71] : memref<4x1xf32, #tpu.memory_space<vmem>>, vector<4x1xf32>
    tpu.vector_store %arg6[%c0_70, %c0_71], %168 {strides = array<i32>} : memref<4x1xf32, #tpu.memory_space<vmem>>, vector<4x1xf32>,
    %c0_72 = arith.constant 0 : index
    %c1024 = arith.constant 1024 : index
    %170 = vector.load %arg3[%c0_72, %c1024] : memref<4x8192xi8, #tpu.memory_space<vmem>>, vector<4x256xi8>
    %171 = arith.sitofp %170 : vector<4x256xi8> to vector<4x256xf32>
    %c0_73 = arith.constant 0 : index
    %c1024_74 = arith.constant 1024 : index
    %172 = vector.load %arg2[%c0_73, %c1024_74] : memref<4x8192xf32, #tpu.memory_space<vmem>>, vector<4x256xf32>
    %cst_75 = arith.constant 0.000000e+00 : f32
    %173 = vector.broadcast %cst_75 : f32 to vector<4x256xf32>
    %174 = arith.subf %173, %172 : vector<4x256xf32>
    %c0_76 = arith.constant 0 : index
    %c0_77 = arith.constant 0 : index
    %175 = vector.load %arg6[%c0_76, %c0_77] : memref<4x1xf32, #tpu.memory_space<vmem>>, vector<4x1xf32>
    %176 = arith.sitofp %170 : vector<4x256xi8> to vector<4x256xbf16>
    %cst_78 = arith.constant dense<0.000000e+00> : vector<4x256xf32>
    %177 = tpu.matmul %176, %4, %cst_78 {dimension_numbers = #tpu.dot_dimension_numbers<[1], [0], [0], [1], [0, 0, 1, 1], [], []>} : vector<4x256xbf16>, vector<256x256xbf16>, vector<4x256xf32> -> vector<4x256xf32>
    %178 = vector.broadcast %175 : vector<4x1xf32> to vector<4x256xf32>
    %179 = arith.addf %178, %177 : vector<4x256xf32>
    %c1024_i32 = arith.constant 1024 : i32
    %180 = arith.addi %5, %c1024_i32 : i32
    %c1_i32_79 = arith.constant 1 : i32
    %181 = arith.addi %180, %c1_i32_79 : i32
    %182 = tpu.iota {dimensions = array<i32: 1>} : vector<1x256xi32>
    %183 = vector.broadcast %181 : i32 to vector<1x256xi32>
    %184 = arith.addi %183, %182 : vector<1x256xi32>
    %185 = arith.sitofp %184 : vector<1x256xi32> to vector<1x256xf32>
    %186 = vector.broadcast %185 : vector<1x256xf32> to vector<4x256xf32>
    %187 = arith.subf %186, %179 : vector<4x256xf32>
    %188 = vector.broadcast %3 : vector<4x1xf32> to vector<4x256xf32>
    %189 = arith.subf %188, %179 : vector<4x256xf32>
    %190 = vector.broadcast %3 : vector<4x1xf32> to vector<4x256xf32>
    %191 = arith.addf %190, %187 : vector<4x256xf32>
    %192 = arith.addf %189, %171 : vector<4x256xf32>
    %cst_80 = arith.constant 1.000000e+00 : f32
    %193 = vector.broadcast %cst_80 : f32 to vector<4x256xf32>
    %194 = arith.subf %193, %171 : vector<4x256xf32>
    %195 = arith.subf %191, %194 : vector<4x256xf32>
    %196 = arith.mulf %192, %191 : vector<4x256xf32>
    %197 = arith.mulf %189, %195 : vector<4x256xf32>
    %198 = arith.subf %196, %197 : vector<4x256xf32>
    %199 = arith.mulf %191, %195 : vector<4x256xf32>
    %cst_81 = arith.constant 1.000000e+00 : f32
    %200 = vector.broadcast %cst_81 : f32 to vector<4x256xf32>
    %201 = arith.maximumf %199, %200 : vector<4x256xf32>
    %202 = arith.divf %198, %201 : vector<4x256xf32>
    %c0_82 = arith.constant 0 : index
    %c0_83 = arith.constant 0 : index
    %203 = vector.load %arg7[%c0_82, %c0_83] : memref<4x1xf32, #tpu.memory_space<vmem>>, vector<4x1xf32>
    %204 = arith.mulf %174, %202 : vector<4x256xf32>
    %cst_84 = arith.constant dense<0.000000e+00> : vector<4xf32>
    %205 = vector.multi_reduction <add>, %204, %cst_84 [1] : vector<4x256xf32> to vector<4xf32>
    %206 = vector.shape_cast %205 : vector<4xf32> to vector<4x1xf32>
    %207 = arith.addf %203, %206 : vector<4x1xf32>
    %c0_85 = arith.constant 0 : index
    %c0_86 = arith.constant 0 : index
    %208 = vector.load %arg7[%c0_85, %c0_86] : memref<4x1xf32, #tpu.memory_space<vmem>>, vector<4x1xf32>
    tpu.vector_store %arg7[%c0_85, %c0_86], %207 {strides = array<i32>} : memref<4x1xf32, #tpu.memory_space<vmem>>, vector<4x1xf32>,
    %209 = vector.extract_strided_slice %179 {offsets = [0, 255], sizes = [4, 1], strides = [1, 1]} : vector<4x256xf32> to vector<4x1xf32>
    %c0_87 = arith.constant 0 : index
    %c0_88 = arith.constant 0 : index
    %210 = vector.load %arg6[%c0_87, %c0_88] : memref<4x1xf32, #tpu.memory_space<vmem>>, vector<4x1xf32>
    tpu.vector_store %arg6[%c0_87, %c0_88], %209 {strides = array<i32>} : memref<4x1xf32, #tpu.memory_space<vmem>>, vector<4x1xf32>,
    %c0_89 = arith.constant 0 : index
    %c1280 = arith.constant 1280 : index
    %211 = vector.load %arg3[%c0_89, %c1280] : memref<4x8192xi8, #tpu.memory_space<vmem>>, vector<4x256xi8>
    %212 = arith.sitofp %211 : vector<4x256xi8> to vector<4x256xf32>
    %c0_90 = arith.constant 0 : index
    %c1280_91 = arith.constant 1280 : index
    %213 = vector.load %arg2[%c0_90, %c1280_91] : memref<4x8192xf32, #tpu.memory_space<vmem>>, vector<4x256xf32>
    %cst_92 = arith.constant 0.000000e+00 : f32
    %214 = vector.broadcast %cst_92 : f32 to vector<4x256xf32>
    %215 = arith.subf %214, %213 : vector<4x256xf32>
    %c0_93 = arith.constant 0 : index
    %c0_94 = arith.constant 0 : index
    %216 = vector.load %arg6[%c0_93, %c0_94] : memref<4x1xf32, #tpu.memory_space<vmem>>, vector<4x1xf32>
    %217 = arith.sitofp %211 : vector<4x256xi8> to vector<4x256xbf16>
    %cst_95 = arith.constant dense<0.000000e+00> : vector<4x256xf32>
    %218 = tpu.matmul %217, %4, %cst_95 {dimension_numbers = #tpu.dot_dimension_numbers<[1], [0], [0], [1], [0, 0, 1, 1], [], []>} : vector<4x256xbf16>, vector<256x256xbf16>, vector<4x256xf32> -> vector<4x256xf32>
    %219 = vector.broadcast %216 : vector<4x1xf32> to vector<4x256xf32>
    %220 = arith.addf %219, %218 : vector<4x256xf32>
    %c1280_i32 = arith.constant 1280 : i32
    %221 = arith.addi %5, %c1280_i32 : i32
    %c1_i32_96 = arith.constant 1 : i32
    %222 = arith.addi %221, %c1_i32_96 : i32
    %223 = tpu.iota {dimensions = array<i32: 1>} : vector<1x256xi32>
    %224 = vector.broadcast %222 : i32 to vector<1x256xi32>
    %225 = arith.addi %224, %223 : vector<1x256xi32>
    %226 = arith.sitofp %225 : vector<1x256xi32> to vector<1x256xf32>
    %227 = vector.broadcast %226 : vector<1x256xf32> to vector<4x256xf32>
    %228 = arith.subf %227, %220 : vector<4x256xf32>
    %229 = vector.broadcast %3 : vector<4x1xf32> to vector<4x256xf32>
    %230 = arith.subf %229, %220 : vector<4x256xf32>
    %231 = vector.broadcast %3 : vector<4x1xf32> to vector<4x256xf32>
    %232 = arith.addf %231, %228 : vector<4x256xf32>
    %233 = arith.addf %230, %212 : vector<4x256xf32>
    %cst_97 = arith.constant 1.000000e+00 : f32
    %234 = vector.broadcast %cst_97 : f32 to vector<4x256xf32>
    %235 = arith.subf %234, %212 : vector<4x256xf32>
    %236 = arith.subf %232, %235 : vector<4x256xf32>
    %237 = arith.mulf %233, %232 : vector<4x256xf32>
    %238 = arith.mulf %230, %236 : vector<4x256xf32>
    %239 = arith.subf %237, %238 : vector<4x256xf32>
    %240 = arith.mulf %232, %236 : vector<4x256xf32>
    %cst_98 = arith.constant 1.000000e+00 : f32
    %241 = vector.broadcast %cst_98 : f32 to vector<4x256xf32>
    %242 = arith.maximumf %240, %241 : vector<4x256xf32>
    %243 = arith.divf %239, %242 : vector<4x256xf32>
    %c0_99 = arith.constant 0 : index
    %c0_100 = arith.constant 0 : index
    %244 = vector.load %arg7[%c0_99, %c0_100] : memref<4x1xf32, #tpu.memory_space<vmem>>, vector<4x1xf32>
    %245 = arith.mulf %215, %243 : vector<4x256xf32>
    %cst_101 = arith.constant dense<0.000000e+00> : vector<4xf32>
    %246 = vector.multi_reduction <add>, %245, %cst_101 [1] : vector<4x256xf32> to vector<4xf32>
    %247 = vector.shape_cast %246 : vector<4xf32> to vector<4x1xf32>
    %248 = arith.addf %244, %247 : vector<4x1xf32>
    %c0_102 = arith.constant 0 : index
    %c0_103 = arith.constant 0 : index
    %249 = vector.load %arg7[%c0_102, %c0_103] : memref<4x1xf32, #tpu.memory_space<vmem>>, vector<4x1xf32>
    tpu.vector_store %arg7[%c0_102, %c0_103], %248 {strides = array<i32>} : memref<4x1xf32, #tpu.memory_space<vmem>>, vector<4x1xf32>,
    %250 = vector.extract_strided_slice %220 {offsets = [0, 255], sizes = [4, 1], strides = [1, 1]} : vector<4x256xf32> to vector<4x1xf32>
    %c0_104 = arith.constant 0 : index
    %c0_105 = arith.constant 0 : index
    %251 = vector.load %arg6[%c0_104, %c0_105] : memref<4x1xf32, #tpu.memory_space<vmem>>, vector<4x1xf32>
    tpu.vector_store %arg6[%c0_104, %c0_105], %250 {strides = array<i32>} : memref<4x1xf32, #tpu.memory_space<vmem>>, vector<4x1xf32>,
    %c0_106 = arith.constant 0 : index
    %c1536 = arith.constant 1536 : index
    %252 = vector.load %arg3[%c0_106, %c1536] : memref<4x8192xi8, #tpu.memory_space<vmem>>, vector<4x256xi8>
    %253 = arith.sitofp %252 : vector<4x256xi8> to vector<4x256xf32>
    %c0_107 = arith.constant 0 : index
    %c1536_108 = arith.constant 1536 : index
    %254 = vector.load %arg2[%c0_107, %c1536_108] : memref<4x8192xf32, #tpu.memory_space<vmem>>, vector<4x256xf32>
    %cst_109 = arith.constant 0.000000e+00 : f32
    %255 = vector.broadcast %cst_109 : f32 to vector<4x256xf32>
    %256 = arith.subf %255, %254 : vector<4x256xf32>
    %c0_110 = arith.constant 0 : index
    %c0_111 = arith.constant 0 : index
    %257 = vector.load %arg6[%c0_110, %c0_111] : memref<4x1xf32, #tpu.memory_space<vmem>>, vector<4x1xf32>
    %258 = arith.sitofp %252 : vector<4x256xi8> to vector<4x256xbf16>
    %cst_112 = arith.constant dense<0.000000e+00> : vector<4x256xf32>
    %259 = tpu.matmul %258, %4, %cst_112 {dimension_numbers = #tpu.dot_dimension_numbers<[1], [0], [0], [1], [0, 0, 1, 1], [], []>} : vector<4x256xbf16>, vector<256x256xbf16>, vector<4x256xf32> -> vector<4x256xf32>
    %260 = vector.broadcast %257 : vector<4x1xf32> to vector<4x256xf32>
    %261 = arith.addf %260, %259 : vector<4x256xf32>
    %c1536_i32 = arith.constant 1536 : i32
    %262 = arith.addi %5, %c1536_i32 : i32
    %c1_i32_113 = arith.constant 1 : i32
    %263 = arith.addi %262, %c1_i32_113 : i32
    %264 = tpu.iota {dimensions = array<i32: 1>} : vector<1x256xi32>
    %265 = vector.broadcast %263 : i32 to vector<1x256xi32>
    %266 = arith.addi %265, %264 : vector<1x256xi32>
    %267 = arith.sitofp %266 : vector<1x256xi32> to vector<1x256xf32>
    %268 = vector.broadcast %267 : vector<1x256xf32> to vector<4x256xf32>
    %269 = arith.subf %268, %261 : vector<4x256xf32>
    %270 = vector.broadcast %3 : vector<4x1xf32> to vector<4x256xf32>
    %271 = arith.subf %270, %261 : vector<4x256xf32>
    %272 = vector.broadcast %3 : vector<4x1xf32> to vector<4x256xf32>
    %273 = arith.addf %272, %269 : vector<4x256xf32>
    %274 = arith.addf %271, %253 : vector<4x256xf32>
    %cst_114 = arith.constant 1.000000e+00 : f32
    %275 = vector.broadcast %cst_114 : f32 to vector<4x256xf32>
    %276 = arith.subf %275, %253 : vector<4x256xf32>
    %277 = arith.subf %273, %276 : vector<4x256xf32>
    %278 = arith.mulf %274, %273 : vector<4x256xf32>
    %279 = arith.mulf %271, %277 : vector<4x256xf32>
    %280 = arith.subf %278, %279 : vector<4x256xf32>
    %281 = arith.mulf %273, %277 : vector<4x256xf32>
    %cst_115 = arith.constant 1.000000e+00 : f32
    %282 = vector.broadcast %cst_115 : f32 to vector<4x256xf32>
    %283 = arith.maximumf %281, %282 : vector<4x256xf32>
    %284 = arith.divf %280, %283 : vector<4x256xf32>
    %c0_116 = arith.constant 0 : index
    %c0_117 = arith.constant 0 : index
    %285 = vector.load %arg7[%c0_116, %c0_117] : memref<4x1xf32, #tpu.memory_space<vmem>>, vector<4x1xf32>
    %286 = arith.mulf %256, %284 : vector<4x256xf32>
    %cst_118 = arith.constant dense<0.000000e+00> : vector<4xf32>
    %287 = vector.multi_reduction <add>, %286, %cst_118 [1] : vector<4x256xf32> to vector<4xf32>
    %288 = vector.shape_cast %287 : vector<4xf32> to vector<4x1xf32>
    %289 = arith.addf %285, %288 : vector<4x1xf32>
    %c0_119 = arith.constant 0 : index
    %c0_120 = arith.constant 0 : index
    %290 = vector.load %arg7[%c0_119, %c0_120] : memref<4x1xf32, #tpu.memory_space<vmem>>, vector<4x1xf32>
    tpu.vector_store %arg7[%c0_119, %c0_120], %289 {strides = array<i32>} : memref<4x1xf32, #tpu.memory_space<vmem>>, vector<4x1xf32>,
    %291 = vector.extract_strided_slice %261 {offsets = [0, 255], sizes = [4, 1], strides = [1, 1]} : vector<4x256xf32> to vector<4x1xf32>
    %c0_121 = arith.constant 0 : index
    %c0_122 = arith.constant 0 : index
    %292 = vector.load %arg6[%c0_121, %c0_122] : memref<4x1xf32, #tpu.memory_space<vmem>>, vector<4x1xf32>
    tpu.vector_store %arg6[%c0_121, %c0_122], %291 {strides = array<i32>} : memref<4x1xf32, #tpu.memory_space<vmem>>, vector<4x1xf32>,
    %c0_123 = arith.constant 0 : index
    %c1792 = arith.constant 1792 : index
    %293 = vector.load %arg3[%c0_123, %c1792] : memref<4x8192xi8, #tpu.memory_space<vmem>>, vector<4x256xi8>
    %294 = arith.sitofp %293 : vector<4x256xi8> to vector<4x256xf32>
    %c0_124 = arith.constant 0 : index
    %c1792_125 = arith.constant 1792 : index
    %295 = vector.load %arg2[%c0_124, %c1792_125] : memref<4x8192xf32, #tpu.memory_space<vmem>>, vector<4x256xf32>
    %cst_126 = arith.constant 0.000000e+00 : f32
    %296 = vector.broadcast %cst_126 : f32 to vector<4x256xf32>
    %297 = arith.subf %296, %295 : vector<4x256xf32>
    %c0_127 = arith.constant 0 : index
    %c0_128 = arith.constant 0 : index
    %298 = vector.load %arg6[%c0_127, %c0_128] : memref<4x1xf32, #tpu.memory_space<vmem>>, vector<4x1xf32>
    %299 = arith.sitofp %293 : vector<4x256xi8> to vector<4x256xbf16>
    %cst_129 = arith.constant dense<0.000000e+00> : vector<4x256xf32>
    %300 = tpu.matmul %299, %4, %cst_129 {dimension_numbers = #tpu.dot_dimension_numbers<[1], [0], [0], [1], [0, 0, 1, 1], [], []>} : vector<4x256xbf16>, vector<256x256xbf16>, vector<4x256xf32> -> vector<4x256xf32>
    %301 = vector.broadcast %298 : vector<4x1xf32> to vector<4x256xf32>
    %302 = arith.addf %301, %300 : vector<4x256xf32>
    %c1792_i32 = arith.constant 1792 : i32
    %303 = arith.addi %5, %c1792_i32 : i32
    %c1_i32_130 = arith.constant 1 : i32
    %304 = arith.addi %303, %c1_i32_130 : i32
    %305 = tpu.iota {dimensions = array<i32: 1>} : vector<1x256xi32>
    %306 = vector.broadcast %304 : i32 to vector<1x256xi32>
    %307 = arith.addi %306, %305 : vector<1x256xi32>
    %308 = arith.sitofp %307 : vector<1x256xi32> to vector<1x256xf32>
    %309 = vector.broadcast %308 : vector<1x256xf32> to vector<4x256xf32>
    %310 = arith.subf %309, %302 : vector<4x256xf32>
    %311 = vector.broadcast %3 : vector<4x1xf32> to vector<4x256xf32>
    %312 = arith.subf %311, %302 : vector<4x256xf32>
    %313 = vector.broadcast %3 : vector<4x1xf32> to vector<4x256xf32>
    %314 = arith.addf %313, %310 : vector<4x256xf32>
    %315 = arith.addf %312, %294 : vector<4x256xf32>
    %cst_131 = arith.constant 1.000000e+00 : f32
    %316 = vector.broadcast %cst_131 : f32 to vector<4x256xf32>
    %317 = arith.subf %316, %294 : vector<4x256xf32>
    %318 = arith.subf %314, %317 : vector<4x256xf32>
    %319 = arith.mulf %315, %314 : vector<4x256xf32>
    %320 = arith.mulf %312, %318 : vector<4x256xf32>
    %321 = arith.subf %319, %320 : vector<4x256xf32>
    %322 = arith.mulf %314, %318 : vector<4x256xf32>
    %cst_132 = arith.constant 1.000000e+00 : f32
    %323 = vector.broadcast %cst_132 : f32 to vector<4x256xf32>
    %324 = arith.maximumf %322, %323 : vector<4x256xf32>
    %325 = arith.divf %321, %324 : vector<4x256xf32>
    %c0_133 = arith.constant 0 : index
    %c0_134 = arith.constant 0 : index
    %326 = vector.load %arg7[%c0_133, %c0_134] : memref<4x1xf32, #tpu.memory_space<vmem>>, vector<4x1xf32>
    %327 = arith.mulf %297, %325 : vector<4x256xf32>
    %cst_135 = arith.constant dense<0.000000e+00> : vector<4xf32>
    %328 = vector.multi_reduction <add>, %327, %cst_135 [1] : vector<4x256xf32> to vector<4xf32>
    %329 = vector.shape_cast %328 : vector<4xf32> to vector<4x1xf32>
    %330 = arith.addf %326, %329 : vector<4x1xf32>
    %c0_136 = arith.constant 0 : index
    %c0_137 = arith.constant 0 : index
    %331 = vector.load %arg7[%c0_136, %c0_137] : memref<4x1xf32, #tpu.memory_space<vmem>>, vector<4x1xf32>
    tpu.vector_store %arg7[%c0_136, %c0_137], %330 {strides = array<i32>} : memref<4x1xf32, #tpu.memory_space<vmem>>, vector<4x1xf32>,
    %332 = vector.extract_strided_slice %302 {offsets = [0, 255], sizes = [4, 1], strides = [1, 1]} : vector<4x256xf32> to vector<4x1xf32>
    %c0_138 = arith.constant 0 : index
    %c0_139 = arith.constant 0 : index
    %333 = vector.load %arg6[%c0_138, %c0_139] : memref<4x1xf32, #tpu.memory_space<vmem>>, vector<4x1xf32>
    tpu.vector_store %arg6[%c0_138, %c0_139], %332 {strides = array<i32>} : memref<4x1xf32, #tpu.memory_space<vmem>>, vector<4x1xf32>,
    %c0_140 = arith.constant 0 : index
    %c2048 = arith.constant 2048 : index
    %334 = vector.load %arg3[%c0_140, %c2048] : memref<4x8192xi8, #tpu.memory_space<vmem>>, vector<4x256xi8>
    %335 = arith.sitofp %334 : vector<4x256xi8> to vector<4x256xf32>
    %c0_141 = arith.constant 0 : index
    %c2048_142 = arith.constant 2048 : index
    %336 = vector.load %arg2[%c0_141, %c2048_142] : memref<4x8192xf32, #tpu.memory_space<vmem>>, vector<4x256xf32>
    %cst_143 = arith.constant 0.000000e+00 : f32
    %337 = vector.broadcast %cst_143 : f32 to vector<4x256xf32>
    %338 = arith.subf %337, %336 : vector<4x256xf32>
    %c0_144 = arith.constant 0 : index
    %c0_145 = arith.constant 0 : index
    %339 = vector.load %arg6[%c0_144, %c0_145] : memref<4x1xf32, #tpu.memory_space<vmem>>, vector<4x1xf32>
    %340 = arith.sitofp %334 : vector<4x256xi8> to vector<4x256xbf16>
    %cst_146 = arith.constant dense<0.000000e+00> : vector<4x256xf32>
    %341 = tpu.matmul %340, %4, %cst_146 {dimension_numbers = #tpu.dot_dimension_numbers<[1], [0], [0], [1], [0, 0, 1, 1], [], []>} : vector<4x256xbf16>, vector<256x256xbf16>, vector<4x256xf32> -> vector<4x256xf32>
    %342 = vector.broadcast %339 : vector<4x1xf32> to vector<4x256xf32>
    %343 = arith.addf %342, %341 : vector<4x256xf32>
    %c2048_i32 = arith.constant 2048 : i32
    %344 = arith.addi %5, %c2048_i32 : i32
    %c1_i32_147 = arith.constant 1 : i32
    %345 = arith.addi %344, %c1_i32_147 : i32
    %346 = tpu.iota {dimensions = array<i32: 1>} : vector<1x256xi32>
    %347 = vector.broadcast %345 : i32 to vector<1x256xi32>
    %348 = arith.addi %347, %346 : vector<1x256xi32>
    %349 = arith.sitofp %348 : vector<1x256xi32> to vector<1x256xf32>
    %350 = vector.broadcast %349 : vector<1x256xf32> to vector<4x256xf32>
    %351 = arith.subf %350, %343 : vector<4x256xf32>
    %352 = vector.broadcast %3 : vector<4x1xf32> to vector<4x256xf32>
    %353 = arith.subf %352, %343 : vector<4x256xf32>
    %354 = vector.broadcast %3 : vector<4x1xf32> to vector<4x256xf32>
    %355 = arith.addf %354, %351 : vector<4x256xf32>
    %356 = arith.addf %353, %335 : vector<4x256xf32>
    %cst_148 = arith.constant 1.000000e+00 : f32
    %357 = vector.broadcast %cst_148 : f32 to vector<4x256xf32>
    %358 = arith.subf %357, %335 : vector<4x256xf32>
    %359 = arith.subf %355, %358 : vector<4x256xf32>
    %360 = arith.mulf %356, %355 : vector<4x256xf32>
    %361 = arith.mulf %353, %359 : vector<4x256xf32>
    %362 = arith.subf %360, %361 : vector<4x256xf32>
    %363 = arith.mulf %355, %359 : vector<4x256xf32>
    %cst_149 = arith.constant 1.000000e+00 : f32
    %364 = vector.broadcast %cst_149 : f32 to vector<4x256xf32>
    %365 = arith.maximumf %363, %364 : vector<4x256xf32>
    %366 = arith.divf %362, %365 : vector<4x256xf32>
    %c0_150 = arith.constant 0 : index
    %c0_151 = arith.constant 0 : index
    %367 = vector.load %arg7[%c0_150, %c0_151] : memref<4x1xf32, #tpu.memory_space<vmem>>, vector<4x1xf32>
    %368 = arith.mulf %338, %366 : vector<4x256xf32>
    %cst_152 = arith.constant dense<0.000000e+00> : vector<4xf32>
    %369 = vector.multi_reduction <add>, %368, %cst_152 [1] : vector<4x256xf32> to vector<4xf32>
    %370 = vector.shape_cast %369 : vector<4xf32> to vector<4x1xf32>
    %371 = arith.addf %367, %370 : vector<4x1xf32>
    %c0_153 = arith.constant 0 : index
    %c0_154 = arith.constant 0 : index
    %372 = vector.load %arg7[%c0_153, %c0_154] : memref<4x1xf32, #tpu.memory_space<vmem>>, vector<4x1xf32>
    tpu.vector_store %arg7[%c0_153, %c0_154], %371 {strides = array<i32>} : memref<4x1xf32, #tpu.memory_space<vmem>>, vector<4x1xf32>,
    %373 = vector.extract_strided_slice %343 {offsets = [0, 255], sizes = [4, 1], strides = [1, 1]} : vector<4x256xf32> to vector<4x1xf32>
    %c0_155 = arith.constant 0 : index
    %c0_156 = arith.constant 0 : index
    %374 = vector.load %arg6[%c0_155, %c0_156] : memref<4x1xf32, #tpu.memory_space<vmem>>, vector<4x1xf32>
    tpu.vector_store %arg6[%c0_155, %c0_156], %373 {strides = array<i32>} : memref<4x1xf32, #tpu.memory_space<vmem>>, vector<4x1xf32>,
    %c0_157 = arith.constant 0 : index
    %c2304 = arith.constant 2304 : index
    %375 = vector.load %arg3[%c0_157, %c2304] : memref<4x8192xi8, #tpu.memory_space<vmem>>, vector<4x256xi8>
    %376 = arith.sitofp %375 : vector<4x256xi8> to vector<4x256xf32>
    %c0_158 = arith.constant 0 : index
    %c2304_159 = arith.constant 2304 : index
    %377 = vector.load %arg2[%c0_158, %c2304_159] : memref<4x8192xf32, #tpu.memory_space<vmem>>, vector<4x256xf32>
    %cst_160 = arith.constant 0.000000e+00 : f32
    %378 = vector.broadcast %cst_160 : f32 to vector<4x256xf32>
    %379 = arith.subf %378, %377 : vector<4x256xf32>
    %c0_161 = arith.constant 0 : index
    %c0_162 = arith.constant 0 : index
    %380 = vector.load %arg6[%c0_161, %c0_162] : memref<4x1xf32, #tpu.memory_space<vmem>>, vector<4x1xf32>
    %381 = arith.sitofp %375 : vector<4x256xi8> to vector<4x256xbf16>
    %cst_163 = arith.constant dense<0.000000e+00> : vector<4x256xf32>
    %382 = tpu.matmul %381, %4, %cst_163 {dimension_numbers = #tpu.dot_dimension_numbers<[1], [0], [0], [1], [0, 0, 1, 1], [], []>} : vector<4x256xbf16>, vector<256x256xbf16>, vector<4x256xf32> -> vector<4x256xf32>
    %383 = vector.broadcast %380 : vector<4x1xf32> to vector<4x256xf32>
    %384 = arith.addf %383, %382 : vector<4x256xf32>
    %c2304_i32 = arith.constant 2304 : i32
    %385 = arith.addi %5, %c2304_i32 : i32
    %c1_i32_164 = arith.constant 1 : i32
    %386 = arith.addi %385, %c1_i32_164 : i32
    %387 = tpu.iota {dimensions = array<i32: 1>} : vector<1x256xi32>
    %388 = vector.broadcast %386 : i32 to vector<1x256xi32>
    %389 = arith.addi %388, %387 : vector<1x256xi32>
    %390 = arith.sitofp %389 : vector<1x256xi32> to vector<1x256xf32>
    %391 = vector.broadcast %390 : vector<1x256xf32> to vector<4x256xf32>
    %392 = arith.subf %391, %384 : vector<4x256xf32>
    %393 = vector.broadcast %3 : vector<4x1xf32> to vector<4x256xf32>
    %394 = arith.subf %393, %384 : vector<4x256xf32>
    %395 = vector.broadcast %3 : vector<4x1xf32> to vector<4x256xf32>
    %396 = arith.addf %395, %392 : vector<4x256xf32>
    %397 = arith.addf %394, %376 : vector<4x256xf32>
    %cst_165 = arith.constant 1.000000e+00 : f32
    %398 = vector.broadcast %cst_165 : f32 to vector<4x256xf32>
    %399 = arith.subf %398, %376 : vector<4x256xf32>
    %400 = arith.subf %396, %399 : vector<4x256xf32>
    %401 = arith.mulf %397, %396 : vector<4x256xf32>
    %402 = arith.mulf %394, %400 : vector<4x256xf32>
    %403 = arith.subf %401, %402 : vector<4x256xf32>
    %404 = arith.mulf %396, %400 : vector<4x256xf32>
    %cst_166 = arith.constant 1.000000e+00 : f32
    %405 = vector.broadcast %cst_166 : f32 to vector<4x256xf32>
    %406 = arith.maximumf %404, %405 : vector<4x256xf32>
    %407 = arith.divf %403, %406 : vector<4x256xf32>
    %c0_167 = arith.constant 0 : index
    %c0_168 = arith.constant 0 : index
    %408 = vector.load %arg7[%c0_167, %c0_168] : memref<4x1xf32, #tpu.memory_space<vmem>>, vector<4x1xf32>
    %409 = arith.mulf %379, %407 : vector<4x256xf32>
    %cst_169 = arith.constant dense<0.000000e+00> : vector<4xf32>
    %410 = vector.multi_reduction <add>, %409, %cst_169 [1] : vector<4x256xf32> to vector<4xf32>
    %411 = vector.shape_cast %410 : vector<4xf32> to vector<4x1xf32>
    %412 = arith.addf %408, %411 : vector<4x1xf32>
    %c0_170 = arith.constant 0 : index
    %c0_171 = arith.constant 0 : index
    %413 = vector.load %arg7[%c0_170, %c0_171] : memref<4x1xf32, #tpu.memory_space<vmem>>, vector<4x1xf32>
    tpu.vector_store %arg7[%c0_170, %c0_171], %412 {strides = array<i32>} : memref<4x1xf32, #tpu.memory_space<vmem>>, vector<4x1xf32>,
    %414 = vector.extract_strided_slice %384 {offsets = [0, 255], sizes = [4, 1], strides = [1, 1]} : vector<4x256xf32> to vector<4x1xf32>
    %c0_172 = arith.constant 0 : index
    %c0_173 = arith.constant 0 : index
    %415 = vector.load %arg6[%c0_172, %c0_173] : memref<4x1xf32, #tpu.memory_space<vmem>>, vector<4x1xf32>
    tpu.vector_store %arg6[%c0_172, %c0_173], %414 {strides = array<i32>} : memref<4x1xf32, #tpu.memory_space<vmem>>, vector<4x1xf32>,
    %c0_174 = arith.constant 0 : index
    %c2560 = arith.constant 2560 : index
    %416 = vector.load %arg3[%c0_174, %c2560] : memref<4x8192xi8, #tpu.memory_space<vmem>>, vector<4x256xi8>
    %417 = arith.sitofp %416 : vector<4x256xi8> to vector<4x256xf32>
    %c0_175 = arith.constant 0 : index
    %c2560_176 = arith.constant 2560 : index
    %418 = vector.load %arg2[%c0_175, %c2560_176] : memref<4x8192xf32, #tpu.memory_space<vmem>>, vector<4x256xf32>
    %cst_177 = arith.constant 0.000000e+00 : f32
    %419 = vector.broadcast %cst_177 : f32 to vector<4x256xf32>
    %420 = arith.subf %419, %418 : vector<4x256xf32>
    %c0_178 = arith.constant 0 : index
    %c0_179 = arith.constant 0 : index
    %421 = vector.load %arg6[%c0_178, %c0_179] : memref<4x1xf32, #tpu.memory_space<vmem>>, vector<4x1xf32>
    %422 = arith.sitofp %416 : vector<4x256xi8> to vector<4x256xbf16>
    %cst_180 = arith.constant dense<0.000000e+00> : vector<4x256xf32>
    %423 = tpu.matmul %422, %4, %cst_180 {dimension_numbers = #tpu.dot_dimension_numbers<[1], [0], [0], [1], [0, 0, 1, 1], [], []>} : vector<4x256xbf16>, vector<256x256xbf16>, vector<4x256xf32> -> vector<4x256xf32>
    %424 = vector.broadcast %421 : vector<4x1xf32> to vector<4x256xf32>
    %425 = arith.addf %424, %423 : vector<4x256xf32>
    %c2560_i32 = arith.constant 2560 : i32
    %426 = arith.addi %5, %c2560_i32 : i32
    %c1_i32_181 = arith.constant 1 : i32
    %427 = arith.addi %426, %c1_i32_181 : i32
    %428 = tpu.iota {dimensions = array<i32: 1>} : vector<1x256xi32>
    %429 = vector.broadcast %427 : i32 to vector<1x256xi32>
    %430 = arith.addi %429, %428 : vector<1x256xi32>
    %431 = arith.sitofp %430 : vector<1x256xi32> to vector<1x256xf32>
    %432 = vector.broadcast %431 : vector<1x256xf32> to vector<4x256xf32>
    %433 = arith.subf %432, %425 : vector<4x256xf32>
    %434 = vector.broadcast %3 : vector<4x1xf32> to vector<4x256xf32>
    %435 = arith.subf %434, %425 : vector<4x256xf32>
    %436 = vector.broadcast %3 : vector<4x1xf32> to vector<4x256xf32>
    %437 = arith.addf %436, %433 : vector<4x256xf32>
    %438 = arith.addf %435, %417 : vector<4x256xf32>
    %cst_182 = arith.constant 1.000000e+00 : f32
    %439 = vector.broadcast %cst_182 : f32 to vector<4x256xf32>
    %440 = arith.subf %439, %417 : vector<4x256xf32>
    %441 = arith.subf %437, %440 : vector<4x256xf32>
    %442 = arith.mulf %438, %437 : vector<4x256xf32>
    %443 = arith.mulf %435, %441 : vector<4x256xf32>
    %444 = arith.subf %442, %443 : vector<4x256xf32>
    %445 = arith.mulf %437, %441 : vector<4x256xf32>
    %cst_183 = arith.constant 1.000000e+00 : f32
    %446 = vector.broadcast %cst_183 : f32 to vector<4x256xf32>
    %447 = arith.maximumf %445, %446 : vector<4x256xf32>
    %448 = arith.divf %444, %447 : vector<4x256xf32>
    %c0_184 = arith.constant 0 : index
    %c0_185 = arith.constant 0 : index
    %449 = vector.load %arg7[%c0_184, %c0_185] : memref<4x1xf32, #tpu.memory_space<vmem>>, vector<4x1xf32>
    %450 = arith.mulf %420, %448 : vector<4x256xf32>
    %cst_186 = arith.constant dense<0.000000e+00> : vector<4xf32>
    %451 = vector.multi_reduction <add>, %450, %cst_186 [1] : vector<4x256xf32> to vector<4xf32>
    %452 = vector.shape_cast %451 : vector<4xf32> to vector<4x1xf32>
    %453 = arith.addf %449, %452 : vector<4x1xf32>
    %c0_187 = arith.constant 0 : index
    %c0_188 = arith.constant 0 : index
    %454 = vector.load %arg7[%c0_187, %c0_188] : memref<4x1xf32, #tpu.memory_space<vmem>>, vector<4x1xf32>
    tpu.vector_store %arg7[%c0_187, %c0_188], %453 {strides = array<i32>} : memref<4x1xf32, #tpu.memory_space<vmem>>, vector<4x1xf32>,
    %455 = vector.extract_strided_slice %425 {offsets = [0, 255], sizes = [4, 1], strides = [1, 1]} : vector<4x256xf32> to vector<4x1xf32>
    %c0_189 = arith.constant 0 : index
    %c0_190 = arith.constant 0 : index
    %456 = vector.load %arg6[%c0_189, %c0_190] : memref<4x1xf32, #tpu.memory_space<vmem>>, vector<4x1xf32>
    tpu.vector_store %arg6[%c0_189, %c0_190], %455 {strides = array<i32>} : memref<4x1xf32, #tpu.memory_space<vmem>>, vector<4x1xf32>,
    %c0_191 = arith.constant 0 : index
    %c2816 = arith.constant 2816 : index
    %457 = vector.load %arg3[%c0_191, %c2816] : memref<4x8192xi8, #tpu.memory_space<vmem>>, vector<4x256xi8>
    %458 = arith.sitofp %457 : vector<4x256xi8> to vector<4x256xf32>
    %c0_192 = arith.constant 0 : index
    %c2816_193 = arith.constant 2816 : index
    %459 = vector.load %arg2[%c0_192, %c2816_193] : memref<4x8192xf32, #tpu.memory_space<vmem>>, vector<4x256xf32>
    %cst_194 = arith.constant 0.000000e+00 : f32
    %460 = vector.broadcast %cst_194 : f32 to vector<4x256xf32>
    %461 = arith.subf %460, %459 : vector<4x256xf32>
    %c0_195 = arith.constant 0 : index
    %c0_196 = arith.constant 0 : index
    %462 = vector.load %arg6[%c0_195, %c0_196] : memref<4x1xf32, #tpu.memory_space<vmem>>, vector<4x1xf32>
    %463 = arith.sitofp %457 : vector<4x256xi8> to vector<4x256xbf16>
    %cst_197 = arith.constant dense<0.000000e+00> : vector<4x256xf32>
    %464 = tpu.matmul %463, %4, %cst_197 {dimension_numbers = #tpu.dot_dimension_numbers<[1], [0], [0], [1], [0, 0, 1, 1], [], []>} : vector<4x256xbf16>, vector<256x256xbf16>, vector<4x256xf32> -> vector<4x256xf32>
    %465 = vector.broadcast %462 : vector<4x1xf32> to vector<4x256xf32>
    %466 = arith.addf %465, %464 : vector<4x256xf32>
    %c2816_i32 = arith.constant 2816 : i32
    %467 = arith.addi %5, %c2816_i32 : i32
    %c1_i32_198 = arith.constant 1 : i32
    %468 = arith.addi %467, %c1_i32_198 : i32
    %469 = tpu.iota {dimensions = array<i32: 1>} : vector<1x256xi32>
    %470 = vector.broadcast %468 : i32 to vector<1x256xi32>
    %471 = arith.addi %470, %469 : vector<1x256xi32>
    %472 = arith.sitofp %471 : vector<1x256xi32> to vector<1x256xf32>
    %473 = vector.broadcast %472 : vector<1x256xf32> to vector<4x256xf32>
    %474 = arith.subf %473, %466 : vector<4x256xf32>
    %475 = vector.broadcast %3 : vector<4x1xf32> to vector<4x256xf32>
    %476 = arith.subf %475, %466 : vector<4x256xf32>
    %477 = vector.broadcast %3 : vector<4x1xf32> to vector<4x256xf32>
    %478 = arith.addf %477, %474 : vector<4x256xf32>
    %479 = arith.addf %476, %458 : vector<4x256xf32>
    %cst_199 = arith.constant 1.000000e+00 : f32
    %480 = vector.broadcast %cst_199 : f32 to vector<4x256xf32>
    %481 = arith.subf %480, %458 : vector<4x256xf32>
    %482 = arith.subf %478, %481 : vector<4x256xf32>
    %483 = arith.mulf %479, %478 : vector<4x256xf32>
    %484 = arith.mulf %476, %482 : vector<4x256xf32>
    %485 = arith.subf %483, %484 : vector<4x256xf32>
    %486 = arith.mulf %478, %482 : vector<4x256xf32>
    %cst_200 = arith.constant 1.000000e+00 : f32
    %487 = vector.broadcast %cst_200 : f32 to vector<4x256xf32>
    %488 = arith.maximumf %486, %487 : vector<4x256xf32>
    %489 = arith.divf %485, %488 : vector<4x256xf32>
    %c0_201 = arith.constant 0 : index
    %c0_202 = arith.constant 0 : index
    %490 = vector.load %arg7[%c0_201, %c0_202] : memref<4x1xf32, #tpu.memory_space<vmem>>, vector<4x1xf32>
    %491 = arith.mulf %461, %489 : vector<4x256xf32>
    %cst_203 = arith.constant dense<0.000000e+00> : vector<4xf32>
    %492 = vector.multi_reduction <add>, %491, %cst_203 [1] : vector<4x256xf32> to vector<4xf32>
    %493 = vector.shape_cast %492 : vector<4xf32> to vector<4x1xf32>
    %494 = arith.addf %490, %493 : vector<4x1xf32>
    %c0_204 = arith.constant 0 : index
    %c0_205 = arith.constant 0 : index
    %495 = vector.load %arg7[%c0_204, %c0_205] : memref<4x1xf32, #tpu.memory_space<vmem>>, vector<4x1xf32>
    tpu.vector_store %arg7[%c0_204, %c0_205], %494 {strides = array<i32>} : memref<4x1xf32, #tpu.memory_space<vmem>>, vector<4x1xf32>,
    %496 = vector.extract_strided_slice %466 {offsets = [0, 255], sizes = [4, 1], strides = [1, 1]} : vector<4x256xf32> to vector<4x1xf32>
    %c0_206 = arith.constant 0 : index
    %c0_207 = arith.constant 0 : index
    %497 = vector.load %arg6[%c0_206, %c0_207] : memref<4x1xf32, #tpu.memory_space<vmem>>, vector<4x1xf32>
    tpu.vector_store %arg6[%c0_206, %c0_207], %496 {strides = array<i32>} : memref<4x1xf32, #tpu.memory_space<vmem>>, vector<4x1xf32>,
    %c0_208 = arith.constant 0 : index
    %c3072 = arith.constant 3072 : index
    %498 = vector.load %arg3[%c0_208, %c3072] : memref<4x8192xi8, #tpu.memory_space<vmem>>, vector<4x256xi8>
    %499 = arith.sitofp %498 : vector<4x256xi8> to vector<4x256xf32>
    %c0_209 = arith.constant 0 : index
    %c3072_210 = arith.constant 3072 : index
    %500 = vector.load %arg2[%c0_209, %c3072_210] : memref<4x8192xf32, #tpu.memory_space<vmem>>, vector<4x256xf32>
    %cst_211 = arith.constant 0.000000e+00 : f32
    %501 = vector.broadcast %cst_211 : f32 to vector<4x256xf32>
    %502 = arith.subf %501, %500 : vector<4x256xf32>
    %c0_212 = arith.constant 0 : index
    %c0_213 = arith.constant 0 : index
    %503 = vector.load %arg6[%c0_212, %c0_213] : memref<4x1xf32, #tpu.memory_space<vmem>>, vector<4x1xf32>
    %504 = arith.sitofp %498 : vector<4x256xi8> to vector<4x256xbf16>
    %cst_214 = arith.constant dense<0.000000e+00> : vector<4x256xf32>
    %505 = tpu.matmul %504, %4, %cst_214 {dimension_numbers = #tpu.dot_dimension_numbers<[1], [0], [0], [1], [0, 0, 1, 1], [], []>} : vector<4x256xbf16>, vector<256x256xbf16>, vector<4x256xf32> -> vector<4x256xf32>
    %506 = vector.broadcast %503 : vector<4x1xf32> to vector<4x256xf32>
    %507 = arith.addf %506, %505 : vector<4x256xf32>
    %c3072_i32 = arith.constant 3072 : i32
    %508 = arith.addi %5, %c3072_i32 : i32
    %c1_i32_215 = arith.constant 1 : i32
    %509 = arith.addi %508, %c1_i32_215 : i32
    %510 = tpu.iota {dimensions = array<i32: 1>} : vector<1x256xi32>
    %511 = vector.broadcast %509 : i32 to vector<1x256xi32>
    %512 = arith.addi %511, %510 : vector<1x256xi32>
    %513 = arith.sitofp %512 : vector<1x256xi32> to vector<1x256xf32>
    %514 = vector.broadcast %513 : vector<1x256xf32> to vector<4x256xf32>
    %515 = arith.subf %514, %507 : vector<4x256xf32>
    %516 = vector.broadcast %3 : vector<4x1xf32> to vector<4x256xf32>
    %517 = arith.subf %516, %507 : vector<4x256xf32>
    %518 = vector.broadcast %3 : vector<4x1xf32> to vector<4x256xf32>
    %519 = arith.addf %518, %515 : vector<4x256xf32>
    %520 = arith.addf %517, %499 : vector<4x256xf32>
    %cst_216 = arith.constant 1.000000e+00 : f32
    %521 = vector.broadcast %cst_216 : f32 to vector<4x256xf32>
    %522 = arith.subf %521, %499 : vector<4x256xf32>
    %523 = arith.subf %519, %522 : vector<4x256xf32>
    %524 = arith.mulf %520, %519 : vector<4x256xf32>
    %525 = arith.mulf %517, %523 : vector<4x256xf32>
    %526 = arith.subf %524, %525 : vector<4x256xf32>
    %527 = arith.mulf %519, %523 : vector<4x256xf32>
    %cst_217 = arith.constant 1.000000e+00 : f32
    %528 = vector.broadcast %cst_217 : f32 to vector<4x256xf32>
    %529 = arith.maximumf %527, %528 : vector<4x256xf32>
    %530 = arith.divf %526, %529 : vector<4x256xf32>
    %c0_218 = arith.constant 0 : index
    %c0_219 = arith.constant 0 : index
    %531 = vector.load %arg7[%c0_218, %c0_219] : memref<4x1xf32, #tpu.memory_space<vmem>>, vector<4x1xf32>
    %532 = arith.mulf %502, %530 : vector<4x256xf32>
    %cst_220 = arith.constant dense<0.000000e+00> : vector<4xf32>
    %533 = vector.multi_reduction <add>, %532, %cst_220 [1] : vector<4x256xf32> to vector<4xf32>
    %534 = vector.shape_cast %533 : vector<4xf32> to vector<4x1xf32>
    %535 = arith.addf %531, %534 : vector<4x1xf32>
    %c0_221 = arith.constant 0 : index
    %c0_222 = arith.constant 0 : index
    %536 = vector.load %arg7[%c0_221, %c0_222] : memref<4x1xf32, #tpu.memory_space<vmem>>, vector<4x1xf32>
    tpu.vector_store %arg7[%c0_221, %c0_222], %535 {strides = array<i32>} : memref<4x1xf32, #tpu.memory_space<vmem>>, vector<4x1xf32>,
    %537 = vector.extract_strided_slice %507 {offsets = [0, 255], sizes = [4, 1], strides = [1, 1]} : vector<4x256xf32> to vector<4x1xf32>
    %c0_223 = arith.constant 0 : index
    %c0_224 = arith.constant 0 : index
    %538 = vector.load %arg6[%c0_223, %c0_224] : memref<4x1xf32, #tpu.memory_space<vmem>>, vector<4x1xf32>
    tpu.vector_store %arg6[%c0_223, %c0_224], %537 {strides = array<i32>} : memref<4x1xf32, #tpu.memory_space<vmem>>, vector<4x1xf32>,
    %c0_225 = arith.constant 0 : index
    %c3328 = arith.constant 3328 : index
    %539 = vector.load %arg3[%c0_225, %c3328] : memref<4x8192xi8, #tpu.memory_space<vmem>>, vector<4x256xi8>
    %540 = arith.sitofp %539 : vector<4x256xi8> to vector<4x256xf32>
    %c0_226 = arith.constant 0 : index
    %c3328_227 = arith.constant 3328 : index
    %541 = vector.load %arg2[%c0_226, %c3328_227] : memref<4x8192xf32, #tpu.memory_space<vmem>>, vector<4x256xf32>
    %cst_228 = arith.constant 0.000000e+00 : f32
    %542 = vector.broadcast %cst_228 : f32 to vector<4x256xf32>
    %543 = arith.subf %542, %541 : vector<4x256xf32>
    %c0_229 = arith.constant 0 : index
    %c0_230 = arith.constant 0 : index
    %544 = vector.load %arg6[%c0_229, %c0_230] : memref<4x1xf32, #tpu.memory_space<vmem>>, vector<4x1xf32>
    %545 = arith.sitofp %539 : vector<4x256xi8> to vector<4x256xbf16>
    %cst_231 = arith.constant dense<0.000000e+00> : vector<4x256xf32>
    %546 = tpu.matmul %545, %4, %cst_231 {dimension_numbers = #tpu.dot_dimension_numbers<[1], [0], [0], [1], [0, 0, 1, 1], [], []>} : vector<4x256xbf16>, vector<256x256xbf16>, vector<4x256xf32> -> vector<4x256xf32>
    %547 = vector.broadcast %544 : vector<4x1xf32> to vector<4x256xf32>
    %548 = arith.addf %547, %546 : vector<4x256xf32>
    %c3328_i32 = arith.constant 3328 : i32
    %549 = arith.addi %5, %c3328_i32 : i32
    %c1_i32_232 = arith.constant 1 : i32
    %550 = arith.addi %549, %c1_i32_232 : i32
    %551 = tpu.iota {dimensions = array<i32: 1>} : vector<1x256xi32>
    %552 = vector.broadcast %550 : i32 to vector<1x256xi32>
    %553 = arith.addi %552, %551 : vector<1x256xi32>
    %554 = arith.sitofp %553 : vector<1x256xi32> to vector<1x256xf32>
    %555 = vector.broadcast %554 : vector<1x256xf32> to vector<4x256xf32>
    %556 = arith.subf %555, %548 : vector<4x256xf32>
    %557 = vector.broadcast %3 : vector<4x1xf32> to vector<4x256xf32>
    %558 = arith.subf %557, %548 : vector<4x256xf32>
    %559 = vector.broadcast %3 : vector<4x1xf32> to vector<4x256xf32>
    %560 = arith.addf %559, %556 : vector<4x256xf32>
    %561 = arith.addf %558, %540 : vector<4x256xf32>
    %cst_233 = arith.constant 1.000000e+00 : f32
    %562 = vector.broadcast %cst_233 : f32 to vector<4x256xf32>
    %563 = arith.subf %562, %540 : vector<4x256xf32>
    %564 = arith.subf %560, %563 : vector<4x256xf32>
    %565 = arith.mulf %561, %560 : vector<4x256xf32>
    %566 = arith.mulf %558, %564 : vector<4x256xf32>
    %567 = arith.subf %565, %566 : vector<4x256xf32>
    %568 = arith.mulf %560, %564 : vector<4x256xf32>
    %cst_234 = arith.constant 1.000000e+00 : f32
    %569 = vector.broadcast %cst_234 : f32 to vector<4x256xf32>
    %570 = arith.maximumf %568, %569 : vector<4x256xf32>
    %571 = arith.divf %567, %570 : vector<4x256xf32>
    %c0_235 = arith.constant 0 : index
    %c0_236 = arith.constant 0 : index
    %572 = vector.load %arg7[%c0_235, %c0_236] : memref<4x1xf32, #tpu.memory_space<vmem>>, vector<4x1xf32>
    %573 = arith.mulf %543, %571 : vector<4x256xf32>
    %cst_237 = arith.constant dense<0.000000e+00> : vector<4xf32>
    %574 = vector.multi_reduction <add>, %573, %cst_237 [1] : vector<4x256xf32> to vector<4xf32>
    %575 = vector.shape_cast %574 : vector<4xf32> to vector<4x1xf32>
    %576 = arith.addf %572, %575 : vector<4x1xf32>
    %c0_238 = arith.constant 0 : index
    %c0_239 = arith.constant 0 : index
    %577 = vector.load %arg7[%c0_238, %c0_239] : memref<4x1xf32, #tpu.memory_space<vmem>>, vector<4x1xf32>
    tpu.vector_store %arg7[%c0_238, %c0_239], %576 {strides = array<i32>} : memref<4x1xf32, #tpu.memory_space<vmem>>, vector<4x1xf32>,
    %578 = vector.extract_strided_slice %548 {offsets = [0, 255], sizes = [4, 1], strides = [1, 1]} : vector<4x256xf32> to vector<4x1xf32>
    %c0_240 = arith.constant 0 : index
    %c0_241 = arith.constant 0 : index
    %579 = vector.load %arg6[%c0_240, %c0_241] : memref<4x1xf32, #tpu.memory_space<vmem>>, vector<4x1xf32>
    tpu.vector_store %arg6[%c0_240, %c0_241], %578 {strides = array<i32>} : memref<4x1xf32, #tpu.memory_space<vmem>>, vector<4x1xf32>,
    %c0_242 = arith.constant 0 : index
    %c3584 = arith.constant 3584 : index
    %580 = vector.load %arg3[%c0_242, %c3584] : memref<4x8192xi8, #tpu.memory_space<vmem>>, vector<4x256xi8>
    %581 = arith.sitofp %580 : vector<4x256xi8> to vector<4x256xf32>
    %c0_243 = arith.constant 0 : index
    %c3584_244 = arith.constant 3584 : index
    %582 = vector.load %arg2[%c0_243, %c3584_244] : memref<4x8192xf32, #tpu.memory_space<vmem>>, vector<4x256xf32>
    %cst_245 = arith.constant 0.000000e+00 : f32
    %583 = vector.broadcast %cst_245 : f32 to vector<4x256xf32>
    %584 = arith.subf %583, %582 : vector<4x256xf32>
    %c0_246 = arith.constant 0 : index
    %c0_247 = arith.constant 0 : index
    %585 = vector.load %arg6[%c0_246, %c0_247] : memref<4x1xf32, #tpu.memory_space<vmem>>, vector<4x1xf32>
    %586 = arith.sitofp %580 : vector<4x256xi8> to vector<4x256xbf16>
    %cst_248 = arith.constant dense<0.000000e+00> : vector<4x256xf32>
    %587 = tpu.matmul %586, %4, %cst_248 {dimension_numbers = #tpu.dot_dimension_numbers<[1], [0], [0], [1], [0, 0, 1, 1], [], []>} : vector<4x256xbf16>, vector<256x256xbf16>, vector<4x256xf32> -> vector<4x256xf32>
    %588 = vector.broadcast %585 : vector<4x1xf32> to vector<4x256xf32>
    %589 = arith.addf %588, %587 : vector<4x256xf32>
    %c3584_i32 = arith.constant 3584 : i32
    %590 = arith.addi %5, %c3584_i32 : i32
    %c1_i32_249 = arith.constant 1 : i32
    %591 = arith.addi %590, %c1_i32_249 : i32
    %592 = tpu.iota {dimensions = array<i32: 1>} : vector<1x256xi32>
    %593 = vector.broadcast %591 : i32 to vector<1x256xi32>
    %594 = arith.addi %593, %592 : vector<1x256xi32>
    %595 = arith.sitofp %594 : vector<1x256xi32> to vector<1x256xf32>
    %596 = vector.broadcast %595 : vector<1x256xf32> to vector<4x256xf32>
    %597 = arith.subf %596, %589 : vector<4x256xf32>
    %598 = vector.broadcast %3 : vector<4x1xf32> to vector<4x256xf32>
    %599 = arith.subf %598, %589 : vector<4x256xf32>
    %600 = vector.broadcast %3 : vector<4x1xf32> to vector<4x256xf32>
    %601 = arith.addf %600, %597 : vector<4x256xf32>
    %602 = arith.addf %599, %581 : vector<4x256xf32>
    %cst_250 = arith.constant 1.000000e+00 : f32
    %603 = vector.broadcast %cst_250 : f32 to vector<4x256xf32>
    %604 = arith.subf %603, %581 : vector<4x256xf32>
    %605 = arith.subf %601, %604 : vector<4x256xf32>
    %606 = arith.mulf %602, %601 : vector<4x256xf32>
    %607 = arith.mulf %599, %605 : vector<4x256xf32>
    %608 = arith.subf %606, %607 : vector<4x256xf32>
    %609 = arith.mulf %601, %605 : vector<4x256xf32>
    %cst_251 = arith.constant 1.000000e+00 : f32
    %610 = vector.broadcast %cst_251 : f32 to vector<4x256xf32>
    %611 = arith.maximumf %609, %610 : vector<4x256xf32>
    %612 = arith.divf %608, %611 : vector<4x256xf32>
    %c0_252 = arith.constant 0 : index
    %c0_253 = arith.constant 0 : index
    %613 = vector.load %arg7[%c0_252, %c0_253] : memref<4x1xf32, #tpu.memory_space<vmem>>, vector<4x1xf32>
    %614 = arith.mulf %584, %612 : vector<4x256xf32>
    %cst_254 = arith.constant dense<0.000000e+00> : vector<4xf32>
    %615 = vector.multi_reduction <add>, %614, %cst_254 [1] : vector<4x256xf32> to vector<4xf32>
    %616 = vector.shape_cast %615 : vector<4xf32> to vector<4x1xf32>
    %617 = arith.addf %613, %616 : vector<4x1xf32>
    %c0_255 = arith.constant 0 : index
    %c0_256 = arith.constant 0 : index
    %618 = vector.load %arg7[%c0_255, %c0_256] : memref<4x1xf32, #tpu.memory_space<vmem>>, vector<4x1xf32>
    tpu.vector_store %arg7[%c0_255, %c0_256], %617 {strides = array<i32>} : memref<4x1xf32, #tpu.memory_space<vmem>>, vector<4x1xf32>,
    %619 = vector.extract_strided_slice %589 {offsets = [0, 255], sizes = [4, 1], strides = [1, 1]} : vector<4x256xf32> to vector<4x1xf32>
    %c0_257 = arith.constant 0 : index
    %c0_258 = arith.constant 0 : index
    %620 = vector.load %arg6[%c0_257, %c0_258] : memref<4x1xf32, #tpu.memory_space<vmem>>, vector<4x1xf32>
    tpu.vector_store %arg6[%c0_257, %c0_258], %619 {strides = array<i32>} : memref<4x1xf32, #tpu.memory_space<vmem>>, vector<4x1xf32>,
    %c0_259 = arith.constant 0 : index
    %c3840 = arith.constant 3840 : index
    %621 = vector.load %arg3[%c0_259, %c3840] : memref<4x8192xi8, #tpu.memory_space<vmem>>, vector<4x256xi8>
    %622 = arith.sitofp %621 : vector<4x256xi8> to vector<4x256xf32>
    %c0_260 = arith.constant 0 : index
    %c3840_261 = arith.constant 3840 : index
    %623 = vector.load %arg2[%c0_260, %c3840_261] : memref<4x8192xf32, #tpu.memory_space<vmem>>, vector<4x256xf32>
    %cst_262 = arith.constant 0.000000e+00 : f32
    %624 = vector.broadcast %cst_262 : f32 to vector<4x256xf32>
    %625 = arith.subf %624, %623 : vector<4x256xf32>
    %c0_263 = arith.constant 0 : index
    %c0_264 = arith.constant 0 : index
    %626 = vector.load %arg6[%c0_263, %c0_264] : memref<4x1xf32, #tpu.memory_space<vmem>>, vector<4x1xf32>
    %627 = arith.sitofp %621 : vector<4x256xi8> to vector<4x256xbf16>
    %cst_265 = arith.constant dense<0.000000e+00> : vector<4x256xf32>
    %628 = tpu.matmul %627, %4, %cst_265 {dimension_numbers = #tpu.dot_dimension_numbers<[1], [0], [0], [1], [0, 0, 1, 1], [], []>} : vector<4x256xbf16>, vector<256x256xbf16>, vector<4x256xf32> -> vector<4x256xf32>
    %629 = vector.broadcast %626 : vector<4x1xf32> to vector<4x256xf32>
    %630 = arith.addf %629, %628 : vector<4x256xf32>
    %c3840_i32 = arith.constant 3840 : i32
    %631 = arith.addi %5, %c3840_i32 : i32
    %c1_i32_266 = arith.constant 1 : i32
    %632 = arith.addi %631, %c1_i32_266 : i32
    %633 = tpu.iota {dimensions = array<i32: 1>} : vector<1x256xi32>
    %634 = vector.broadcast %632 : i32 to vector<1x256xi32>
    %635 = arith.addi %634, %633 : vector<1x256xi32>
    %636 = arith.sitofp %635 : vector<1x256xi32> to vector<1x256xf32>
    %637 = vector.broadcast %636 : vector<1x256xf32> to vector<4x256xf32>
    %638 = arith.subf %637, %630 : vector<4x256xf32>
    %639 = vector.broadcast %3 : vector<4x1xf32> to vector<4x256xf32>
    %640 = arith.subf %639, %630 : vector<4x256xf32>
    %641 = vector.broadcast %3 : vector<4x1xf32> to vector<4x256xf32>
    %642 = arith.addf %641, %638 : vector<4x256xf32>
    %643 = arith.addf %640, %622 : vector<4x256xf32>
    %cst_267 = arith.constant 1.000000e+00 : f32
    %644 = vector.broadcast %cst_267 : f32 to vector<4x256xf32>
    %645 = arith.subf %644, %622 : vector<4x256xf32>
    %646 = arith.subf %642, %645 : vector<4x256xf32>
    %647 = arith.mulf %643, %642 : vector<4x256xf32>
    %648 = arith.mulf %640, %646 : vector<4x256xf32>
    %649 = arith.subf %647, %648 : vector<4x256xf32>
    %650 = arith.mulf %642, %646 : vector<4x256xf32>
    %cst_268 = arith.constant 1.000000e+00 : f32
    %651 = vector.broadcast %cst_268 : f32 to vector<4x256xf32>
    %652 = arith.maximumf %650, %651 : vector<4x256xf32>
    %653 = arith.divf %649, %652 : vector<4x256xf32>
    %c0_269 = arith.constant 0 : index
    %c0_270 = arith.constant 0 : index
    %654 = vector.load %arg7[%c0_269, %c0_270] : memref<4x1xf32, #tpu.memory_space<vmem>>, vector<4x1xf32>
    %655 = arith.mulf %625, %653 : vector<4x256xf32>
    %cst_271 = arith.constant dense<0.000000e+00> : vector<4xf32>
    %656 = vector.multi_reduction <add>, %655, %cst_271 [1] : vector<4x256xf32> to vector<4xf32>
    %657 = vector.shape_cast %656 : vector<4xf32> to vector<4x1xf32>
    %658 = arith.addf %654, %657 : vector<4x1xf32>
    %c0_272 = arith.constant 0 : index
    %c0_273 = arith.constant 0 : index
    %659 = vector.load %arg7[%c0_272, %c0_273] : memref<4x1xf32, #tpu.memory_space<vmem>>, vector<4x1xf32>
    tpu.vector_store %arg7[%c0_272, %c0_273], %658 {strides = array<i32>} : memref<4x1xf32, #tpu.memory_space<vmem>>, vector<4x1xf32>,
    %660 = vector.extract_strided_slice %630 {offsets = [0, 255], sizes = [4, 1], strides = [1, 1]} : vector<4x256xf32> to vector<4x1xf32>
    %c0_274 = arith.constant 0 : index
    %c0_275 = arith.constant 0 : index
    %661 = vector.load %arg6[%c0_274, %c0_275] : memref<4x1xf32, #tpu.memory_space<vmem>>, vector<4x1xf32>
    tpu.vector_store %arg6[%c0_274, %c0_275], %660 {strides = array<i32>} : memref<4x1xf32, #tpu.memory_space<vmem>>, vector<4x1xf32>,
    %c0_276 = arith.constant 0 : index
    %c4096 = arith.constant 4096 : index
    %662 = vector.load %arg3[%c0_276, %c4096] : memref<4x8192xi8, #tpu.memory_space<vmem>>, vector<4x256xi8>
    %663 = arith.sitofp %662 : vector<4x256xi8> to vector<4x256xf32>
    %c0_277 = arith.constant 0 : index
    %c4096_278 = arith.constant 4096 : index
    %664 = vector.load %arg2[%c0_277, %c4096_278] : memref<4x8192xf32, #tpu.memory_space<vmem>>, vector<4x256xf32>
    %cst_279 = arith.constant 0.000000e+00 : f32
    %665 = vector.broadcast %cst_279 : f32 to vector<4x256xf32>
    %666 = arith.subf %665, %664 : vector<4x256xf32>
    %c0_280 = arith.constant 0 : index
    %c0_281 = arith.constant 0 : index
    %667 = vector.load %arg6[%c0_280, %c0_281] : memref<4x1xf32, #tpu.memory_space<vmem>>, vector<4x1xf32>
    %668 = arith.sitofp %662 : vector<4x256xi8> to vector<4x256xbf16>
    %cst_282 = arith.constant dense<0.000000e+00> : vector<4x256xf32>
    %669 = tpu.matmul %668, %4, %cst_282 {dimension_numbers = #tpu.dot_dimension_numbers<[1], [0], [0], [1], [0, 0, 1, 1], [], []>} : vector<4x256xbf16>, vector<256x256xbf16>, vector<4x256xf32> -> vector<4x256xf32>
    %670 = vector.broadcast %667 : vector<4x1xf32> to vector<4x256xf32>
    %671 = arith.addf %670, %669 : vector<4x256xf32>
    %c4096_i32 = arith.constant 4096 : i32
    %672 = arith.addi %5, %c4096_i32 : i32
    %c1_i32_283 = arith.constant 1 : i32
    %673 = arith.addi %672, %c1_i32_283 : i32
    %674 = tpu.iota {dimensions = array<i32: 1>} : vector<1x256xi32>
    %675 = vector.broadcast %673 : i32 to vector<1x256xi32>
    %676 = arith.addi %675, %674 : vector<1x256xi32>
    %677 = arith.sitofp %676 : vector<1x256xi32> to vector<1x256xf32>
    %678 = vector.broadcast %677 : vector<1x256xf32> to vector<4x256xf32>
    %679 = arith.subf %678, %671 : vector<4x256xf32>
    %680 = vector.broadcast %3 : vector<4x1xf32> to vector<4x256xf32>
    %681 = arith.subf %680, %671 : vector<4x256xf32>
    %682 = vector.broadcast %3 : vector<4x1xf32> to vector<4x256xf32>
    %683 = arith.addf %682, %679 : vector<4x256xf32>
    %684 = arith.addf %681, %663 : vector<4x256xf32>
    %cst_284 = arith.constant 1.000000e+00 : f32
    %685 = vector.broadcast %cst_284 : f32 to vector<4x256xf32>
    %686 = arith.subf %685, %663 : vector<4x256xf32>
    %687 = arith.subf %683, %686 : vector<4x256xf32>
    %688 = arith.mulf %684, %683 : vector<4x256xf32>
    %689 = arith.mulf %681, %687 : vector<4x256xf32>
    %690 = arith.subf %688, %689 : vector<4x256xf32>
    %691 = arith.mulf %683, %687 : vector<4x256xf32>
    %cst_285 = arith.constant 1.000000e+00 : f32
    %692 = vector.broadcast %cst_285 : f32 to vector<4x256xf32>
    %693 = arith.maximumf %691, %692 : vector<4x256xf32>
    %694 = arith.divf %690, %693 : vector<4x256xf32>
    %c0_286 = arith.constant 0 : index
    %c0_287 = arith.constant 0 : index
    %695 = vector.load %arg7[%c0_286, %c0_287] : memref<4x1xf32, #tpu.memory_space<vmem>>, vector<4x1xf32>
    %696 = arith.mulf %666, %694 : vector<4x256xf32>
    %cst_288 = arith.constant dense<0.000000e+00> : vector<4xf32>
    %697 = vector.multi_reduction <add>, %696, %cst_288 [1] : vector<4x256xf32> to vector<4xf32>
    %698 = vector.shape_cast %697 : vector<4xf32> to vector<4x1xf32>
    %699 = arith.addf %695, %698 : vector<4x1xf32>
    %c0_289 = arith.constant 0 : index
    %c0_290 = arith.constant 0 : index
    %700 = vector.load %arg7[%c0_289, %c0_290] : memref<4x1xf32, #tpu.memory_space<vmem>>, vector<4x1xf32>
    tpu.vector_store %arg7[%c0_289, %c0_290], %699 {strides = array<i32>} : memref<4x1xf32, #tpu.memory_space<vmem>>, vector<4x1xf32>,
    %701 = vector.extract_strided_slice %671 {offsets = [0, 255], sizes = [4, 1], strides = [1, 1]} : vector<4x256xf32> to vector<4x1xf32>
    %c0_291 = arith.constant 0 : index
    %c0_292 = arith.constant 0 : index
    %702 = vector.load %arg6[%c0_291, %c0_292] : memref<4x1xf32, #tpu.memory_space<vmem>>, vector<4x1xf32>
    tpu.vector_store %arg6[%c0_291, %c0_292], %701 {strides = array<i32>} : memref<4x1xf32, #tpu.memory_space<vmem>>, vector<4x1xf32>,
    %c0_293 = arith.constant 0 : index
    %c4352 = arith.constant 4352 : index
    %703 = vector.load %arg3[%c0_293, %c4352] : memref<4x8192xi8, #tpu.memory_space<vmem>>, vector<4x256xi8>
    %704 = arith.sitofp %703 : vector<4x256xi8> to vector<4x256xf32>
    %c0_294 = arith.constant 0 : index
    %c4352_295 = arith.constant 4352 : index
    %705 = vector.load %arg2[%c0_294, %c4352_295] : memref<4x8192xf32, #tpu.memory_space<vmem>>, vector<4x256xf32>
    %cst_296 = arith.constant 0.000000e+00 : f32
    %706 = vector.broadcast %cst_296 : f32 to vector<4x256xf32>
    %707 = arith.subf %706, %705 : vector<4x256xf32>
    %c0_297 = arith.constant 0 : index
    %c0_298 = arith.constant 0 : index
    %708 = vector.load %arg6[%c0_297, %c0_298] : memref<4x1xf32, #tpu.memory_space<vmem>>, vector<4x1xf32>
    %709 = arith.sitofp %703 : vector<4x256xi8> to vector<4x256xbf16>
    %cst_299 = arith.constant dense<0.000000e+00> : vector<4x256xf32>
    %710 = tpu.matmul %709, %4, %cst_299 {dimension_numbers = #tpu.dot_dimension_numbers<[1], [0], [0], [1], [0, 0, 1, 1], [], []>} : vector<4x256xbf16>, vector<256x256xbf16>, vector<4x256xf32> -> vector<4x256xf32>
    %711 = vector.broadcast %708 : vector<4x1xf32> to vector<4x256xf32>
    %712 = arith.addf %711, %710 : vector<4x256xf32>
    %c4352_i32 = arith.constant 4352 : i32
    %713 = arith.addi %5, %c4352_i32 : i32
    %c1_i32_300 = arith.constant 1 : i32
    %714 = arith.addi %713, %c1_i32_300 : i32
    %715 = tpu.iota {dimensions = array<i32: 1>} : vector<1x256xi32>
    %716 = vector.broadcast %714 : i32 to vector<1x256xi32>
    %717 = arith.addi %716, %715 : vector<1x256xi32>
    %718 = arith.sitofp %717 : vector<1x256xi32> to vector<1x256xf32>
    %719 = vector.broadcast %718 : vector<1x256xf32> to vector<4x256xf32>
    %720 = arith.subf %719, %712 : vector<4x256xf32>
    %721 = vector.broadcast %3 : vector<4x1xf32> to vector<4x256xf32>
    %722 = arith.subf %721, %712 : vector<4x256xf32>
    %723 = vector.broadcast %3 : vector<4x1xf32> to vector<4x256xf32>
    %724 = arith.addf %723, %720 : vector<4x256xf32>
    %725 = arith.addf %722, %704 : vector<4x256xf32>
    %cst_301 = arith.constant 1.000000e+00 : f32
    %726 = vector.broadcast %cst_301 : f32 to vector<4x256xf32>
    %727 = arith.subf %726, %704 : vector<4x256xf32>
    %728 = arith.subf %724, %727 : vector<4x256xf32>
    %729 = arith.mulf %725, %724 : vector<4x256xf32>
    %730 = arith.mulf %722, %728 : vector<4x256xf32>
    %731 = arith.subf %729, %730 : vector<4x256xf32>
    %732 = arith.mulf %724, %728 : vector<4x256xf32>
    %cst_302 = arith.constant 1.000000e+00 : f32
    %733 = vector.broadcast %cst_302 : f32 to vector<4x256xf32>
    %734 = arith.maximumf %732, %733 : vector<4x256xf32>
    %735 = arith.divf %731, %734 : vector<4x256xf32>
    %c0_303 = arith.constant 0 : index
    %c0_304 = arith.constant 0 : index
    %736 = vector.load %arg7[%c0_303, %c0_304] : memref<4x1xf32, #tpu.memory_space<vmem>>, vector<4x1xf32>
    %737 = arith.mulf %707, %735 : vector<4x256xf32>
    %cst_305 = arith.constant dense<0.000000e+00> : vector<4xf32>
    %738 = vector.multi_reduction <add>, %737, %cst_305 [1] : vector<4x256xf32> to vector<4xf32>
    %739 = vector.shape_cast %738 : vector<4xf32> to vector<4x1xf32>
    %740 = arith.addf %736, %739 : vector<4x1xf32>
    %c0_306 = arith.constant 0 : index
    %c0_307 = arith.constant 0 : index
    %741 = vector.load %arg7[%c0_306, %c0_307] : memref<4x1xf32, #tpu.memory_space<vmem>>, vector<4x1xf32>
    tpu.vector_store %arg7[%c0_306, %c0_307], %740 {strides = array<i32>} : memref<4x1xf32, #tpu.memory_space<vmem>>, vector<4x1xf32>,
    %742 = vector.extract_strided_slice %712 {offsets = [0, 255], sizes = [4, 1], strides = [1, 1]} : vector<4x256xf32> to vector<4x1xf32>
    %c0_308 = arith.constant 0 : index
    %c0_309 = arith.constant 0 : index
    %743 = vector.load %arg6[%c0_308, %c0_309] : memref<4x1xf32, #tpu.memory_space<vmem>>, vector<4x1xf32>
    tpu.vector_store %arg6[%c0_308, %c0_309], %742 {strides = array<i32>} : memref<4x1xf32, #tpu.memory_space<vmem>>, vector<4x1xf32>,
    %c0_310 = arith.constant 0 : index
    %c4608 = arith.constant 4608 : index
    %744 = vector.load %arg3[%c0_310, %c4608] : memref<4x8192xi8, #tpu.memory_space<vmem>>, vector<4x256xi8>
    %745 = arith.sitofp %744 : vector<4x256xi8> to vector<4x256xf32>
    %c0_311 = arith.constant 0 : index
    %c4608_312 = arith.constant 4608 : index
    %746 = vector.load %arg2[%c0_311, %c4608_312] : memref<4x8192xf32, #tpu.memory_space<vmem>>, vector<4x256xf32>
    %cst_313 = arith.constant 0.000000e+00 : f32
    %747 = vector.broadcast %cst_313 : f32 to vector<4x256xf32>
    %748 = arith.subf %747, %746 : vector<4x256xf32>
    %c0_314 = arith.constant 0 : index
    %c0_315 = arith.constant 0 : index
    %749 = vector.load %arg6[%c0_314, %c0_315] : memref<4x1xf32, #tpu.memory_space<vmem>>, vector<4x1xf32>
    %750 = arith.sitofp %744 : vector<4x256xi8> to vector<4x256xbf16>
    %cst_316 = arith.constant dense<0.000000e+00> : vector<4x256xf32>
    %751 = tpu.matmul %750, %4, %cst_316 {dimension_numbers = #tpu.dot_dimension_numbers<[1], [0], [0], [1], [0, 0, 1, 1], [], []>} : vector<4x256xbf16>, vector<256x256xbf16>, vector<4x256xf32> -> vector<4x256xf32>
    %752 = vector.broadcast %749 : vector<4x1xf32> to vector<4x256xf32>
    %753 = arith.addf %752, %751 : vector<4x256xf32>
    %c4608_i32 = arith.constant 4608 : i32
    %754 = arith.addi %5, %c4608_i32 : i32
    %c1_i32_317 = arith.constant 1 : i32
    %755 = arith.addi %754, %c1_i32_317 : i32
    %756 = tpu.iota {dimensions = array<i32: 1>} : vector<1x256xi32>
    %757 = vector.broadcast %755 : i32 to vector<1x256xi32>
    %758 = arith.addi %757, %756 : vector<1x256xi32>
    %759 = arith.sitofp %758 : vector<1x256xi32> to vector<1x256xf32>
    %760 = vector.broadcast %759 : vector<1x256xf32> to vector<4x256xf32>
    %761 = arith.subf %760, %753 : vector<4x256xf32>
    %762 = vector.broadcast %3 : vector<4x1xf32> to vector<4x256xf32>
    %763 = arith.subf %762, %753 : vector<4x256xf32>
    %764 = vector.broadcast %3 : vector<4x1xf32> to vector<4x256xf32>
    %765 = arith.addf %764, %761 : vector<4x256xf32>
    %766 = arith.addf %763, %745 : vector<4x256xf32>
    %cst_318 = arith.constant 1.000000e+00 : f32
    %767 = vector.broadcast %cst_318 : f32 to vector<4x256xf32>
    %768 = arith.subf %767, %745 : vector<4x256xf32>
    %769 = arith.subf %765, %768 : vector<4x256xf32>
    %770 = arith.mulf %766, %765 : vector<4x256xf32>
    %771 = arith.mulf %763, %769 : vector<4x256xf32>
    %772 = arith.subf %770, %771 : vector<4x256xf32>
    %773 = arith.mulf %765, %769 : vector<4x256xf32>
    %cst_319 = arith.constant 1.000000e+00 : f32
    %774 = vector.broadcast %cst_319 : f32 to vector<4x256xf32>
    %775 = arith.maximumf %773, %774 : vector<4x256xf32>
    %776 = arith.divf %772, %775 : vector<4x256xf32>
    %c0_320 = arith.constant 0 : index
    %c0_321 = arith.constant 0 : index
    %777 = vector.load %arg7[%c0_320, %c0_321] : memref<4x1xf32, #tpu.memory_space<vmem>>, vector<4x1xf32>
    %778 = arith.mulf %748, %776 : vector<4x256xf32>
    %cst_322 = arith.constant dense<0.000000e+00> : vector<4xf32>
    %779 = vector.multi_reduction <add>, %778, %cst_322 [1] : vector<4x256xf32> to vector<4xf32>
    %780 = vector.shape_cast %779 : vector<4xf32> to vector<4x1xf32>
    %781 = arith.addf %777, %780 : vector<4x1xf32>
    %c0_323 = arith.constant 0 : index
    %c0_324 = arith.constant 0 : index
    %782 = vector.load %arg7[%c0_323, %c0_324] : memref<4x1xf32, #tpu.memory_space<vmem>>, vector<4x1xf32>
    tpu.vector_store %arg7[%c0_323, %c0_324], %781 {strides = array<i32>} : memref<4x1xf32, #tpu.memory_space<vmem>>, vector<4x1xf32>,
    %783 = vector.extract_strided_slice %753 {offsets = [0, 255], sizes = [4, 1], strides = [1, 1]} : vector<4x256xf32> to vector<4x1xf32>
    %c0_325 = arith.constant 0 : index
    %c0_326 = arith.constant 0 : index
    %784 = vector.load %arg6[%c0_325, %c0_326] : memref<4x1xf32, #tpu.memory_space<vmem>>, vector<4x1xf32>
    tpu.vector_store %arg6[%c0_325, %c0_326], %783 {strides = array<i32>} : memref<4x1xf32, #tpu.memory_space<vmem>>, vector<4x1xf32>,
    %c0_327 = arith.constant 0 : index
    %c4864 = arith.constant 4864 : index
    %785 = vector.load %arg3[%c0_327, %c4864] : memref<4x8192xi8, #tpu.memory_space<vmem>>, vector<4x256xi8>
    %786 = arith.sitofp %785 : vector<4x256xi8> to vector<4x256xf32>
    %c0_328 = arith.constant 0 : index
    %c4864_329 = arith.constant 4864 : index
    %787 = vector.load %arg2[%c0_328, %c4864_329] : memref<4x8192xf32, #tpu.memory_space<vmem>>, vector<4x256xf32>
    %cst_330 = arith.constant 0.000000e+00 : f32
    %788 = vector.broadcast %cst_330 : f32 to vector<4x256xf32>
    %789 = arith.subf %788, %787 : vector<4x256xf32>
    %c0_331 = arith.constant 0 : index
    %c0_332 = arith.constant 0 : index
    %790 = vector.load %arg6[%c0_331, %c0_332] : memref<4x1xf32, #tpu.memory_space<vmem>>, vector<4x1xf32>
    %791 = arith.sitofp %785 : vector<4x256xi8> to vector<4x256xbf16>
    %cst_333 = arith.constant dense<0.000000e+00> : vector<4x256xf32>
    %792 = tpu.matmul %791, %4, %cst_333 {dimension_numbers = #tpu.dot_dimension_numbers<[1], [0], [0], [1], [0, 0, 1, 1], [], []>} : vector<4x256xbf16>, vector<256x256xbf16>, vector<4x256xf32> -> vector<4x256xf32>
    %793 = vector.broadcast %790 : vector<4x1xf32> to vector<4x256xf32>
    %794 = arith.addf %793, %792 : vector<4x256xf32>
    %c4864_i32 = arith.constant 4864 : i32
    %795 = arith.addi %5, %c4864_i32 : i32
    %c1_i32_334 = arith.constant 1 : i32
    %796 = arith.addi %795, %c1_i32_334 : i32
    %797 = tpu.iota {dimensions = array<i32: 1>} : vector<1x256xi32>
    %798 = vector.broadcast %796 : i32 to vector<1x256xi32>
    %799 = arith.addi %798, %797 : vector<1x256xi32>
    %800 = arith.sitofp %799 : vector<1x256xi32> to vector<1x256xf32>
    %801 = vector.broadcast %800 : vector<1x256xf32> to vector<4x256xf32>
    %802 = arith.subf %801, %794 : vector<4x256xf32>
    %803 = vector.broadcast %3 : vector<4x1xf32> to vector<4x256xf32>
    %804 = arith.subf %803, %794 : vector<4x256xf32>
    %805 = vector.broadcast %3 : vector<4x1xf32> to vector<4x256xf32>
    %806 = arith.addf %805, %802 : vector<4x256xf32>
    %807 = arith.addf %804, %786 : vector<4x256xf32>
    %cst_335 = arith.constant 1.000000e+00 : f32
    %808 = vector.broadcast %cst_335 : f32 to vector<4x256xf32>
    %809 = arith.subf %808, %786 : vector<4x256xf32>
    %810 = arith.subf %806, %809 : vector<4x256xf32>
    %811 = arith.mulf %807, %806 : vector<4x256xf32>
    %812 = arith.mulf %804, %810 : vector<4x256xf32>
    %813 = arith.subf %811, %812 : vector<4x256xf32>
    %814 = arith.mulf %806, %810 : vector<4x256xf32>
    %cst_336 = arith.constant 1.000000e+00 : f32
    %815 = vector.broadcast %cst_336 : f32 to vector<4x256xf32>
    %816 = arith.maximumf %814, %815 : vector<4x256xf32>
    %817 = arith.divf %813, %816 : vector<4x256xf32>
    %c0_337 = arith.constant 0 : index
    %c0_338 = arith.constant 0 : index
    %818 = vector.load %arg7[%c0_337, %c0_338] : memref<4x1xf32, #tpu.memory_space<vmem>>, vector<4x1xf32>
    %819 = arith.mulf %789, %817 : vector<4x256xf32>
    %cst_339 = arith.constant dense<0.000000e+00> : vector<4xf32>
    %820 = vector.multi_reduction <add>, %819, %cst_339 [1] : vector<4x256xf32> to vector<4xf32>
    %821 = vector.shape_cast %820 : vector<4xf32> to vector<4x1xf32>
    %822 = arith.addf %818, %821 : vector<4x1xf32>
    %c0_340 = arith.constant 0 : index
    %c0_341 = arith.constant 0 : index
    %823 = vector.load %arg7[%c0_340, %c0_341] : memref<4x1xf32, #tpu.memory_space<vmem>>, vector<4x1xf32>
    tpu.vector_store %arg7[%c0_340, %c0_341], %822 {strides = array<i32>} : memref<4x1xf32, #tpu.memory_space<vmem>>, vector<4x1xf32>,
    %824 = vector.extract_strided_slice %794 {offsets = [0, 255], sizes = [4, 1], strides = [1, 1]} : vector<4x256xf32> to vector<4x1xf32>
    %c0_342 = arith.constant 0 : index
    %c0_343 = arith.constant 0 : index
    %825 = vector.load %arg6[%c0_342, %c0_343] : memref<4x1xf32, #tpu.memory_space<vmem>>, vector<4x1xf32>
    tpu.vector_store %arg6[%c0_342, %c0_343], %824 {strides = array<i32>} : memref<4x1xf32, #tpu.memory_space<vmem>>, vector<4x1xf32>,
    %c0_344 = arith.constant 0 : index
    %c5120 = arith.constant 5120 : index
    %826 = vector.load %arg3[%c0_344, %c5120] : memref<4x8192xi8, #tpu.memory_space<vmem>>, vector<4x256xi8>
    %827 = arith.sitofp %826 : vector<4x256xi8> to vector<4x256xf32>
    %c0_345 = arith.constant 0 : index
    %c5120_346 = arith.constant 5120 : index
    %828 = vector.load %arg2[%c0_345, %c5120_346] : memref<4x8192xf32, #tpu.memory_space<vmem>>, vector<4x256xf32>
    %cst_347 = arith.constant 0.000000e+00 : f32
    %829 = vector.broadcast %cst_347 : f32 to vector<4x256xf32>
    %830 = arith.subf %829, %828 : vector<4x256xf32>
    %c0_348 = arith.constant 0 : index
    %c0_349 = arith.constant 0 : index
    %831 = vector.load %arg6[%c0_348, %c0_349] : memref<4x1xf32, #tpu.memory_space<vmem>>, vector<4x1xf32>
    %832 = arith.sitofp %826 : vector<4x256xi8> to vector<4x256xbf16>
    %cst_350 = arith.constant dense<0.000000e+00> : vector<4x256xf32>
    %833 = tpu.matmul %832, %4, %cst_350 {dimension_numbers = #tpu.dot_dimension_numbers<[1], [0], [0], [1], [0, 0, 1, 1], [], []>} : vector<4x256xbf16>, vector<256x256xbf16>, vector<4x256xf32> -> vector<4x256xf32>
    %834 = vector.broadcast %831 : vector<4x1xf32> to vector<4x256xf32>
    %835 = arith.addf %834, %833 : vector<4x256xf32>
    %c5120_i32 = arith.constant 5120 : i32
    %836 = arith.addi %5, %c5120_i32 : i32
    %c1_i32_351 = arith.constant 1 : i32
    %837 = arith.addi %836, %c1_i32_351 : i32
    %838 = tpu.iota {dimensions = array<i32: 1>} : vector<1x256xi32>
    %839 = vector.broadcast %837 : i32 to vector<1x256xi32>
    %840 = arith.addi %839, %838 : vector<1x256xi32>
    %841 = arith.sitofp %840 : vector<1x256xi32> to vector<1x256xf32>
    %842 = vector.broadcast %841 : vector<1x256xf32> to vector<4x256xf32>
    %843 = arith.subf %842, %835 : vector<4x256xf32>
    %844 = vector.broadcast %3 : vector<4x1xf32> to vector<4x256xf32>
    %845 = arith.subf %844, %835 : vector<4x256xf32>
    %846 = vector.broadcast %3 : vector<4x1xf32> to vector<4x256xf32>
    %847 = arith.addf %846, %843 : vector<4x256xf32>
    %848 = arith.addf %845, %827 : vector<4x256xf32>
    %cst_352 = arith.constant 1.000000e+00 : f32
    %849 = vector.broadcast %cst_352 : f32 to vector<4x256xf32>
    %850 = arith.subf %849, %827 : vector<4x256xf32>
    %851 = arith.subf %847, %850 : vector<4x256xf32>
    %852 = arith.mulf %848, %847 : vector<4x256xf32>
    %853 = arith.mulf %845, %851 : vector<4x256xf32>
    %854 = arith.subf %852, %853 : vector<4x256xf32>
    %855 = arith.mulf %847, %851 : vector<4x256xf32>
    %cst_353 = arith.constant 1.000000e+00 : f32
    %856 = vector.broadcast %cst_353 : f32 to vector<4x256xf32>
    %857 = arith.maximumf %855, %856 : vector<4x256xf32>
    %858 = arith.divf %854, %857 : vector<4x256xf32>
    %c0_354 = arith.constant 0 : index
    %c0_355 = arith.constant 0 : index
    %859 = vector.load %arg7[%c0_354, %c0_355] : memref<4x1xf32, #tpu.memory_space<vmem>>, vector<4x1xf32>
    %860 = arith.mulf %830, %858 : vector<4x256xf32>
    %cst_356 = arith.constant dense<0.000000e+00> : vector<4xf32>
    %861 = vector.multi_reduction <add>, %860, %cst_356 [1] : vector<4x256xf32> to vector<4xf32>
    %862 = vector.shape_cast %861 : vector<4xf32> to vector<4x1xf32>
    %863 = arith.addf %859, %862 : vector<4x1xf32>
    %c0_357 = arith.constant 0 : index
    %c0_358 = arith.constant 0 : index
    %864 = vector.load %arg7[%c0_357, %c0_358] : memref<4x1xf32, #tpu.memory_space<vmem>>, vector<4x1xf32>
    tpu.vector_store %arg7[%c0_357, %c0_358], %863 {strides = array<i32>} : memref<4x1xf32, #tpu.memory_space<vmem>>, vector<4x1xf32>,
    %865 = vector.extract_strided_slice %835 {offsets = [0, 255], sizes = [4, 1], strides = [1, 1]} : vector<4x256xf32> to vector<4x1xf32>
    %c0_359 = arith.constant 0 : index
    %c0_360 = arith.constant 0 : index
    %866 = vector.load %arg6[%c0_359, %c0_360] : memref<4x1xf32, #tpu.memory_space<vmem>>, vector<4x1xf32>
    tpu.vector_store %arg6[%c0_359, %c0_360], %865 {strides = array<i32>} : memref<4x1xf32, #tpu.memory_space<vmem>>, vector<4x1xf32>,
    %c0_361 = arith.constant 0 : index
    %c5376 = arith.constant 5376 : index
    %867 = vector.load %arg3[%c0_361, %c5376] : memref<4x8192xi8, #tpu.memory_space<vmem>>, vector<4x256xi8>
    %868 = arith.sitofp %867 : vector<4x256xi8> to vector<4x256xf32>
    %c0_362 = arith.constant 0 : index
    %c5376_363 = arith.constant 5376 : index
    %869 = vector.load %arg2[%c0_362, %c5376_363] : memref<4x8192xf32, #tpu.memory_space<vmem>>, vector<4x256xf32>
    %cst_364 = arith.constant 0.000000e+00 : f32
    %870 = vector.broadcast %cst_364 : f32 to vector<4x256xf32>
    %871 = arith.subf %870, %869 : vector<4x256xf32>
    %c0_365 = arith.constant 0 : index
    %c0_366 = arith.constant 0 : index
    %872 = vector.load %arg6[%c0_365, %c0_366] : memref<4x1xf32, #tpu.memory_space<vmem>>, vector<4x1xf32>
    %873 = arith.sitofp %867 : vector<4x256xi8> to vector<4x256xbf16>
    %cst_367 = arith.constant dense<0.000000e+00> : vector<4x256xf32>
    %874 = tpu.matmul %873, %4, %cst_367 {dimension_numbers = #tpu.dot_dimension_numbers<[1], [0], [0], [1], [0, 0, 1, 1], [], []>} : vector<4x256xbf16>, vector<256x256xbf16>, vector<4x256xf32> -> vector<4x256xf32>
    %875 = vector.broadcast %872 : vector<4x1xf32> to vector<4x256xf32>
    %876 = arith.addf %875, %874 : vector<4x256xf32>
    %c5376_i32 = arith.constant 5376 : i32
    %877 = arith.addi %5, %c5376_i32 : i32
    %c1_i32_368 = arith.constant 1 : i32
    %878 = arith.addi %877, %c1_i32_368 : i32
    %879 = tpu.iota {dimensions = array<i32: 1>} : vector<1x256xi32>
    %880 = vector.broadcast %878 : i32 to vector<1x256xi32>
    %881 = arith.addi %880, %879 : vector<1x256xi32>
    %882 = arith.sitofp %881 : vector<1x256xi32> to vector<1x256xf32>
    %883 = vector.broadcast %882 : vector<1x256xf32> to vector<4x256xf32>
    %884 = arith.subf %883, %876 : vector<4x256xf32>
    %885 = vector.broadcast %3 : vector<4x1xf32> to vector<4x256xf32>
    %886 = arith.subf %885, %876 : vector<4x256xf32>
    %887 = vector.broadcast %3 : vector<4x1xf32> to vector<4x256xf32>
    %888 = arith.addf %887, %884 : vector<4x256xf32>
    %889 = arith.addf %886, %868 : vector<4x256xf32>
    %cst_369 = arith.constant 1.000000e+00 : f32
    %890 = vector.broadcast %cst_369 : f32 to vector<4x256xf32>
    %891 = arith.subf %890, %868 : vector<4x256xf32>
    %892 = arith.subf %888, %891 : vector<4x256xf32>
    %893 = arith.mulf %889, %888 : vector<4x256xf32>
    %894 = arith.mulf %886, %892 : vector<4x256xf32>
    %895 = arith.subf %893, %894 : vector<4x256xf32>
    %896 = arith.mulf %888, %892 : vector<4x256xf32>
    %cst_370 = arith.constant 1.000000e+00 : f32
    %897 = vector.broadcast %cst_370 : f32 to vector<4x256xf32>
    %898 = arith.maximumf %896, %897 : vector<4x256xf32>
    %899 = arith.divf %895, %898 : vector<4x256xf32>
    %c0_371 = arith.constant 0 : index
    %c0_372 = arith.constant 0 : index
    %900 = vector.load %arg7[%c0_371, %c0_372] : memref<4x1xf32, #tpu.memory_space<vmem>>, vector<4x1xf32>
    %901 = arith.mulf %871, %899 : vector<4x256xf32>
    %cst_373 = arith.constant dense<0.000000e+00> : vector<4xf32>
    %902 = vector.multi_reduction <add>, %901, %cst_373 [1] : vector<4x256xf32> to vector<4xf32>
    %903 = vector.shape_cast %902 : vector<4xf32> to vector<4x1xf32>
    %904 = arith.addf %900, %903 : vector<4x1xf32>
    %c0_374 = arith.constant 0 : index
    %c0_375 = arith.constant 0 : index
    %905 = vector.load %arg7[%c0_374, %c0_375] : memref<4x1xf32, #tpu.memory_space<vmem>>, vector<4x1xf32>
    tpu.vector_store %arg7[%c0_374, %c0_375], %904 {strides = array<i32>} : memref<4x1xf32, #tpu.memory_space<vmem>>, vector<4x1xf32>,
    %906 = vector.extract_strided_slice %876 {offsets = [0, 255], sizes = [4, 1], strides = [1, 1]} : vector<4x256xf32> to vector<4x1xf32>
    %c0_376 = arith.constant 0 : index
    %c0_377 = arith.constant 0 : index
    %907 = vector.load %arg6[%c0_376, %c0_377] : memref<4x1xf32, #tpu.memory_space<vmem>>, vector<4x1xf32>
    tpu.vector_store %arg6[%c0_376, %c0_377], %906 {strides = array<i32>} : memref<4x1xf32, #tpu.memory_space<vmem>>, vector<4x1xf32>,
    %c0_378 = arith.constant 0 : index
    %c5632 = arith.constant 5632 : index
    %908 = vector.load %arg3[%c0_378, %c5632] : memref<4x8192xi8, #tpu.memory_space<vmem>>, vector<4x256xi8>
    %909 = arith.sitofp %908 : vector<4x256xi8> to vector<4x256xf32>
    %c0_379 = arith.constant 0 : index
    %c5632_380 = arith.constant 5632 : index
    %910 = vector.load %arg2[%c0_379, %c5632_380] : memref<4x8192xf32, #tpu.memory_space<vmem>>, vector<4x256xf32>
    %cst_381 = arith.constant 0.000000e+00 : f32
    %911 = vector.broadcast %cst_381 : f32 to vector<4x256xf32>
    %912 = arith.subf %911, %910 : vector<4x256xf32>
    %c0_382 = arith.constant 0 : index
    %c0_383 = arith.constant 0 : index
    %913 = vector.load %arg6[%c0_382, %c0_383] : memref<4x1xf32, #tpu.memory_space<vmem>>, vector<4x1xf32>
    %914 = arith.sitofp %908 : vector<4x256xi8> to vector<4x256xbf16>
    %cst_384 = arith.constant dense<0.000000e+00> : vector<4x256xf32>
    %915 = tpu.matmul %914, %4, %cst_384 {dimension_numbers = #tpu.dot_dimension_numbers<[1], [0], [0], [1], [0, 0, 1, 1], [], []>} : vector<4x256xbf16>, vector<256x256xbf16>, vector<4x256xf32> -> vector<4x256xf32>
    %916 = vector.broadcast %913 : vector<4x1xf32> to vector<4x256xf32>
    %917 = arith.addf %916, %915 : vector<4x256xf32>
    %c5632_i32 = arith.constant 5632 : i32
    %918 = arith.addi %5, %c5632_i32 : i32
    %c1_i32_385 = arith.constant 1 : i32
    %919 = arith.addi %918, %c1_i32_385 : i32
    %920 = tpu.iota {dimensions = array<i32: 1>} : vector<1x256xi32>
    %921 = vector.broadcast %919 : i32 to vector<1x256xi32>
    %922 = arith.addi %921, %920 : vector<1x256xi32>
    %923 = arith.sitofp %922 : vector<1x256xi32> to vector<1x256xf32>
    %924 = vector.broadcast %923 : vector<1x256xf32> to vector<4x256xf32>
    %925 = arith.subf %924, %917 : vector<4x256xf32>
    %926 = vector.broadcast %3 : vector<4x1xf32> to vector<4x256xf32>
    %927 = arith.subf %926, %917 : vector<4x256xf32>
    %928 = vector.broadcast %3 : vector<4x1xf32> to vector<4x256xf32>
    %929 = arith.addf %928, %925 : vector<4x256xf32>
    %930 = arith.addf %927, %909 : vector<4x256xf32>
    %cst_386 = arith.constant 1.000000e+00 : f32
    %931 = vector.broadcast %cst_386 : f32 to vector<4x256xf32>
    %932 = arith.subf %931, %909 : vector<4x256xf32>
    %933 = arith.subf %929, %932 : vector<4x256xf32>
    %934 = arith.mulf %930, %929 : vector<4x256xf32>
    %935 = arith.mulf %927, %933 : vector<4x256xf32>
    %936 = arith.subf %934, %935 : vector<4x256xf32>
    %937 = arith.mulf %929, %933 : vector<4x256xf32>
    %cst_387 = arith.constant 1.000000e+00 : f32
    %938 = vector.broadcast %cst_387 : f32 to vector<4x256xf32>
    %939 = arith.maximumf %937, %938 : vector<4x256xf32>
    %940 = arith.divf %936, %939 : vector<4x256xf32>
    %c0_388 = arith.constant 0 : index
    %c0_389 = arith.constant 0 : index
    %941 = vector.load %arg7[%c0_388, %c0_389] : memref<4x1xf32, #tpu.memory_space<vmem>>, vector<4x1xf32>
    %942 = arith.mulf %912, %940 : vector<4x256xf32>
    %cst_390 = arith.constant dense<0.000000e+00> : vector<4xf32>
    %943 = vector.multi_reduction <add>, %942, %cst_390 [1] : vector<4x256xf32> to vector<4xf32>
    %944 = vector.shape_cast %943 : vector<4xf32> to vector<4x1xf32>
    %945 = arith.addf %941, %944 : vector<4x1xf32>
    %c0_391 = arith.constant 0 : index
    %c0_392 = arith.constant 0 : index
    %946 = vector.load %arg7[%c0_391, %c0_392] : memref<4x1xf32, #tpu.memory_space<vmem>>, vector<4x1xf32>
    tpu.vector_store %arg7[%c0_391, %c0_392], %945 {strides = array<i32>} : memref<4x1xf32, #tpu.memory_space<vmem>>, vector<4x1xf32>,
    %947 = vector.extract_strided_slice %917 {offsets = [0, 255], sizes = [4, 1], strides = [1, 1]} : vector<4x256xf32> to vector<4x1xf32>
    %c0_393 = arith.constant 0 : index
    %c0_394 = arith.constant 0 : index
    %948 = vector.load %arg6[%c0_393, %c0_394] : memref<4x1xf32, #tpu.memory_space<vmem>>, vector<4x1xf32>
    tpu.vector_store %arg6[%c0_393, %c0_394], %947 {strides = array<i32>} : memref<4x1xf32, #tpu.memory_space<vmem>>, vector<4x1xf32>,
    %c0_395 = arith.constant 0 : index
    %c5888 = arith.constant 5888 : index
    %949 = vector.load %arg3[%c0_395, %c5888] : memref<4x8192xi8, #tpu.memory_space<vmem>>, vector<4x256xi8>
    %950 = arith.sitofp %949 : vector<4x256xi8> to vector<4x256xf32>
    %c0_396 = arith.constant 0 : index
    %c5888_397 = arith.constant 5888 : index
    %951 = vector.load %arg2[%c0_396, %c5888_397] : memref<4x8192xf32, #tpu.memory_space<vmem>>, vector<4x256xf32>
    %cst_398 = arith.constant 0.000000e+00 : f32
    %952 = vector.broadcast %cst_398 : f32 to vector<4x256xf32>
    %953 = arith.subf %952, %951 : vector<4x256xf32>
    %c0_399 = arith.constant 0 : index
    %c0_400 = arith.constant 0 : index
    %954 = vector.load %arg6[%c0_399, %c0_400] : memref<4x1xf32, #tpu.memory_space<vmem>>, vector<4x1xf32>
    %955 = arith.sitofp %949 : vector<4x256xi8> to vector<4x256xbf16>
    %cst_401 = arith.constant dense<0.000000e+00> : vector<4x256xf32>
    %956 = tpu.matmul %955, %4, %cst_401 {dimension_numbers = #tpu.dot_dimension_numbers<[1], [0], [0], [1], [0, 0, 1, 1], [], []>} : vector<4x256xbf16>, vector<256x256xbf16>, vector<4x256xf32> -> vector<4x256xf32>
    %957 = vector.broadcast %954 : vector<4x1xf32> to vector<4x256xf32>
    %958 = arith.addf %957, %956 : vector<4x256xf32>
    %c5888_i32 = arith.constant 5888 : i32
    %959 = arith.addi %5, %c5888_i32 : i32
    %c1_i32_402 = arith.constant 1 : i32
    %960 = arith.addi %959, %c1_i32_402 : i32
    %961 = tpu.iota {dimensions = array<i32: 1>} : vector<1x256xi32>
    %962 = vector.broadcast %960 : i32 to vector<1x256xi32>
    %963 = arith.addi %962, %961 : vector<1x256xi32>
    %964 = arith.sitofp %963 : vector<1x256xi32> to vector<1x256xf32>
    %965 = vector.broadcast %964 : vector<1x256xf32> to vector<4x256xf32>
    %966 = arith.subf %965, %958 : vector<4x256xf32>
    %967 = vector.broadcast %3 : vector<4x1xf32> to vector<4x256xf32>
    %968 = arith.subf %967, %958 : vector<4x256xf32>
    %969 = vector.broadcast %3 : vector<4x1xf32> to vector<4x256xf32>
    %970 = arith.addf %969, %966 : vector<4x256xf32>
    %971 = arith.addf %968, %950 : vector<4x256xf32>
    %cst_403 = arith.constant 1.000000e+00 : f32
    %972 = vector.broadcast %cst_403 : f32 to vector<4x256xf32>
    %973 = arith.subf %972, %950 : vector<4x256xf32>
    %974 = arith.subf %970, %973 : vector<4x256xf32>
    %975 = arith.mulf %971, %970 : vector<4x256xf32>
    %976 = arith.mulf %968, %974 : vector<4x256xf32>
    %977 = arith.subf %975, %976 : vector<4x256xf32>
    %978 = arith.mulf %970, %974 : vector<4x256xf32>
    %cst_404 = arith.constant 1.000000e+00 : f32
    %979 = vector.broadcast %cst_404 : f32 to vector<4x256xf32>
    %980 = arith.maximumf %978, %979 : vector<4x256xf32>
    %981 = arith.divf %977, %980 : vector<4x256xf32>
    %c0_405 = arith.constant 0 : index
    %c0_406 = arith.constant 0 : index
    %982 = vector.load %arg7[%c0_405, %c0_406] : memref<4x1xf32, #tpu.memory_space<vmem>>, vector<4x1xf32>
    %983 = arith.mulf %953, %981 : vector<4x256xf32>
    %cst_407 = arith.constant dense<0.000000e+00> : vector<4xf32>
    %984 = vector.multi_reduction <add>, %983, %cst_407 [1] : vector<4x256xf32> to vector<4xf32>
    %985 = vector.shape_cast %984 : vector<4xf32> to vector<4x1xf32>
    %986 = arith.addf %982, %985 : vector<4x1xf32>
    %c0_408 = arith.constant 0 : index
    %c0_409 = arith.constant 0 : index
    %987 = vector.load %arg7[%c0_408, %c0_409] : memref<4x1xf32, #tpu.memory_space<vmem>>, vector<4x1xf32>
    tpu.vector_store %arg7[%c0_408, %c0_409], %986 {strides = array<i32>} : memref<4x1xf32, #tpu.memory_space<vmem>>, vector<4x1xf32>,
    %988 = vector.extract_strided_slice %958 {offsets = [0, 255], sizes = [4, 1], strides = [1, 1]} : vector<4x256xf32> to vector<4x1xf32>
    %c0_410 = arith.constant 0 : index
    %c0_411 = arith.constant 0 : index
    %989 = vector.load %arg6[%c0_410, %c0_411] : memref<4x1xf32, #tpu.memory_space<vmem>>, vector<4x1xf32>
    tpu.vector_store %arg6[%c0_410, %c0_411], %988 {strides = array<i32>} : memref<4x1xf32, #tpu.memory_space<vmem>>, vector<4x1xf32>,
    %c0_412 = arith.constant 0 : index
    %c6144 = arith.constant 6144 : index
    %990 = vector.load %arg3[%c0_412, %c6144] : memref<4x8192xi8, #tpu.memory_space<vmem>>, vector<4x256xi8>
    %991 = arith.sitofp %990 : vector<4x256xi8> to vector<4x256xf32>
    %c0_413 = arith.constant 0 : index
    %c6144_414 = arith.constant 6144 : index
    %992 = vector.load %arg2[%c0_413, %c6144_414] : memref<4x8192xf32, #tpu.memory_space<vmem>>, vector<4x256xf32>
    %cst_415 = arith.constant 0.000000e+00 : f32
    %993 = vector.broadcast %cst_415 : f32 to vector<4x256xf32>
    %994 = arith.subf %993, %992 : vector<4x256xf32>
    %c0_416 = arith.constant 0 : index
    %c0_417 = arith.constant 0 : index
    %995 = vector.load %arg6[%c0_416, %c0_417] : memref<4x1xf32, #tpu.memory_space<vmem>>, vector<4x1xf32>
    %996 = arith.sitofp %990 : vector<4x256xi8> to vector<4x256xbf16>
    %cst_418 = arith.constant dense<0.000000e+00> : vector<4x256xf32>
    %997 = tpu.matmul %996, %4, %cst_418 {dimension_numbers = #tpu.dot_dimension_numbers<[1], [0], [0], [1], [0, 0, 1, 1], [], []>} : vector<4x256xbf16>, vector<256x256xbf16>, vector<4x256xf32> -> vector<4x256xf32>
    %998 = vector.broadcast %995 : vector<4x1xf32> to vector<4x256xf32>
    %999 = arith.addf %998, %997 : vector<4x256xf32>
    %c6144_i32 = arith.constant 6144 : i32
    %1000 = arith.addi %5, %c6144_i32 : i32
    %c1_i32_419 = arith.constant 1 : i32
    %1001 = arith.addi %1000, %c1_i32_419 : i32
    %1002 = tpu.iota {dimensions = array<i32: 1>} : vector<1x256xi32>
    %1003 = vector.broadcast %1001 : i32 to vector<1x256xi32>
    %1004 = arith.addi %1003, %1002 : vector<1x256xi32>
    %1005 = arith.sitofp %1004 : vector<1x256xi32> to vector<1x256xf32>
    %1006 = vector.broadcast %1005 : vector<1x256xf32> to vector<4x256xf32>
    %1007 = arith.subf %1006, %999 : vector<4x256xf32>
    %1008 = vector.broadcast %3 : vector<4x1xf32> to vector<4x256xf32>
    %1009 = arith.subf %1008, %999 : vector<4x256xf32>
    %1010 = vector.broadcast %3 : vector<4x1xf32> to vector<4x256xf32>
    %1011 = arith.addf %1010, %1007 : vector<4x256xf32>
    %1012 = arith.addf %1009, %991 : vector<4x256xf32>
    %cst_420 = arith.constant 1.000000e+00 : f32
    %1013 = vector.broadcast %cst_420 : f32 to vector<4x256xf32>
    %1014 = arith.subf %1013, %991 : vector<4x256xf32>
    %1015 = arith.subf %1011, %1014 : vector<4x256xf32>
    %1016 = arith.mulf %1012, %1011 : vector<4x256xf32>
    %1017 = arith.mulf %1009, %1015 : vector<4x256xf32>
    %1018 = arith.subf %1016, %1017 : vector<4x256xf32>
    %1019 = arith.mulf %1011, %1015 : vector<4x256xf32>
    %cst_421 = arith.constant 1.000000e+00 : f32
    %1020 = vector.broadcast %cst_421 : f32 to vector<4x256xf32>
    %1021 = arith.maximumf %1019, %1020 : vector<4x256xf32>
    %1022 = arith.divf %1018, %1021 : vector<4x256xf32>
    %c0_422 = arith.constant 0 : index
    %c0_423 = arith.constant 0 : index
    %1023 = vector.load %arg7[%c0_422, %c0_423] : memref<4x1xf32, #tpu.memory_space<vmem>>, vector<4x1xf32>
    %1024 = arith.mulf %994, %1022 : vector<4x256xf32>
    %cst_424 = arith.constant dense<0.000000e+00> : vector<4xf32>
    %1025 = vector.multi_reduction <add>, %1024, %cst_424 [1] : vector<4x256xf32> to vector<4xf32>
    %1026 = vector.shape_cast %1025 : vector<4xf32> to vector<4x1xf32>
    %1027 = arith.addf %1023, %1026 : vector<4x1xf32>
    %c0_425 = arith.constant 0 : index
    %c0_426 = arith.constant 0 : index
    %1028 = vector.load %arg7[%c0_425, %c0_426] : memref<4x1xf32, #tpu.memory_space<vmem>>, vector<4x1xf32>
    tpu.vector_store %arg7[%c0_425, %c0_426], %1027 {strides = array<i32>} : memref<4x1xf32, #tpu.memory_space<vmem>>, vector<4x1xf32>,
    %1029 = vector.extract_strided_slice %999 {offsets = [0, 255], sizes = [4, 1], strides = [1, 1]} : vector<4x256xf32> to vector<4x1xf32>
    %c0_427 = arith.constant 0 : index
    %c0_428 = arith.constant 0 : index
    %1030 = vector.load %arg6[%c0_427, %c0_428] : memref<4x1xf32, #tpu.memory_space<vmem>>, vector<4x1xf32>
    tpu.vector_store %arg6[%c0_427, %c0_428], %1029 {strides = array<i32>} : memref<4x1xf32, #tpu.memory_space<vmem>>, vector<4x1xf32>,
    %c0_429 = arith.constant 0 : index
    %c6400 = arith.constant 6400 : index
    %1031 = vector.load %arg3[%c0_429, %c6400] : memref<4x8192xi8, #tpu.memory_space<vmem>>, vector<4x256xi8>
    %1032 = arith.sitofp %1031 : vector<4x256xi8> to vector<4x256xf32>
    %c0_430 = arith.constant 0 : index
    %c6400_431 = arith.constant 6400 : index
    %1033 = vector.load %arg2[%c0_430, %c6400_431] : memref<4x8192xf32, #tpu.memory_space<vmem>>, vector<4x256xf32>
    %cst_432 = arith.constant 0.000000e+00 : f32
    %1034 = vector.broadcast %cst_432 : f32 to vector<4x256xf32>
    %1035 = arith.subf %1034, %1033 : vector<4x256xf32>
    %c0_433 = arith.constant 0 : index
    %c0_434 = arith.constant 0 : index
    %1036 = vector.load %arg6[%c0_433, %c0_434] : memref<4x1xf32, #tpu.memory_space<vmem>>, vector<4x1xf32>
    %1037 = arith.sitofp %1031 : vector<4x256xi8> to vector<4x256xbf16>
    %cst_435 = arith.constant dense<0.000000e+00> : vector<4x256xf32>
    %1038 = tpu.matmul %1037, %4, %cst_435 {dimension_numbers = #tpu.dot_dimension_numbers<[1], [0], [0], [1], [0, 0, 1, 1], [], []>} : vector<4x256xbf16>, vector<256x256xbf16>, vector<4x256xf32> -> vector<4x256xf32>
    %1039 = vector.broadcast %1036 : vector<4x1xf32> to vector<4x256xf32>
    %1040 = arith.addf %1039, %1038 : vector<4x256xf32>
    %c6400_i32 = arith.constant 6400 : i32
    %1041 = arith.addi %5, %c6400_i32 : i32
    %c1_i32_436 = arith.constant 1 : i32
    %1042 = arith.addi %1041, %c1_i32_436 : i32
    %1043 = tpu.iota {dimensions = array<i32: 1>} : vector<1x256xi32>
    %1044 = vector.broadcast %1042 : i32 to vector<1x256xi32>
    %1045 = arith.addi %1044, %1043 : vector<1x256xi32>
    %1046 = arith.sitofp %1045 : vector<1x256xi32> to vector<1x256xf32>
    %1047 = vector.broadcast %1046 : vector<1x256xf32> to vector<4x256xf32>
    %1048 = arith.subf %1047, %1040 : vector<4x256xf32>
    %1049 = vector.broadcast %3 : vector<4x1xf32> to vector<4x256xf32>
    %1050 = arith.subf %1049, %1040 : vector<4x256xf32>
    %1051 = vector.broadcast %3 : vector<4x1xf32> to vector<4x256xf32>
    %1052 = arith.addf %1051, %1048 : vector<4x256xf32>
    %1053 = arith.addf %1050, %1032 : vector<4x256xf32>
    %cst_437 = arith.constant 1.000000e+00 : f32
    %1054 = vector.broadcast %cst_437 : f32 to vector<4x256xf32>
    %1055 = arith.subf %1054, %1032 : vector<4x256xf32>
    %1056 = arith.subf %1052, %1055 : vector<4x256xf32>
    %1057 = arith.mulf %1053, %1052 : vector<4x256xf32>
    %1058 = arith.mulf %1050, %1056 : vector<4x256xf32>
    %1059 = arith.subf %1057, %1058 : vector<4x256xf32>
    %1060 = arith.mulf %1052, %1056 : vector<4x256xf32>
    %cst_438 = arith.constant 1.000000e+00 : f32
    %1061 = vector.broadcast %cst_438 : f32 to vector<4x256xf32>
    %1062 = arith.maximumf %1060, %1061 : vector<4x256xf32>
    %1063 = arith.divf %1059, %1062 : vector<4x256xf32>
    %c0_439 = arith.constant 0 : index
    %c0_440 = arith.constant 0 : index
    %1064 = vector.load %arg7[%c0_439, %c0_440] : memref<4x1xf32, #tpu.memory_space<vmem>>, vector<4x1xf32>
    %1065 = arith.mulf %1035, %1063 : vector<4x256xf32>
    %cst_441 = arith.constant dense<0.000000e+00> : vector<4xf32>
    %1066 = vector.multi_reduction <add>, %1065, %cst_441 [1] : vector<4x256xf32> to vector<4xf32>
    %1067 = vector.shape_cast %1066 : vector<4xf32> to vector<4x1xf32>
    %1068 = arith.addf %1064, %1067 : vector<4x1xf32>
    %c0_442 = arith.constant 0 : index
    %c0_443 = arith.constant 0 : index
    %1069 = vector.load %arg7[%c0_442, %c0_443] : memref<4x1xf32, #tpu.memory_space<vmem>>, vector<4x1xf32>
    tpu.vector_store %arg7[%c0_442, %c0_443], %1068 {strides = array<i32>} : memref<4x1xf32, #tpu.memory_space<vmem>>, vector<4x1xf32>,
    %1070 = vector.extract_strided_slice %1040 {offsets = [0, 255], sizes = [4, 1], strides = [1, 1]} : vector<4x256xf32> to vector<4x1xf32>
    %c0_444 = arith.constant 0 : index
    %c0_445 = arith.constant 0 : index
    %1071 = vector.load %arg6[%c0_444, %c0_445] : memref<4x1xf32, #tpu.memory_space<vmem>>, vector<4x1xf32>
    tpu.vector_store %arg6[%c0_444, %c0_445], %1070 {strides = array<i32>} : memref<4x1xf32, #tpu.memory_space<vmem>>, vector<4x1xf32>,
    %c0_446 = arith.constant 0 : index
    %c6656 = arith.constant 6656 : index
    %1072 = vector.load %arg3[%c0_446, %c6656] : memref<4x8192xi8, #tpu.memory_space<vmem>>, vector<4x256xi8>
    %1073 = arith.sitofp %1072 : vector<4x256xi8> to vector<4x256xf32>
    %c0_447 = arith.constant 0 : index
    %c6656_448 = arith.constant 6656 : index
    %1074 = vector.load %arg2[%c0_447, %c6656_448] : memref<4x8192xf32, #tpu.memory_space<vmem>>, vector<4x256xf32>
    %cst_449 = arith.constant 0.000000e+00 : f32
    %1075 = vector.broadcast %cst_449 : f32 to vector<4x256xf32>
    %1076 = arith.subf %1075, %1074 : vector<4x256xf32>
    %c0_450 = arith.constant 0 : index
    %c0_451 = arith.constant 0 : index
    %1077 = vector.load %arg6[%c0_450, %c0_451] : memref<4x1xf32, #tpu.memory_space<vmem>>, vector<4x1xf32>
    %1078 = arith.sitofp %1072 : vector<4x256xi8> to vector<4x256xbf16>
    %cst_452 = arith.constant dense<0.000000e+00> : vector<4x256xf32>
    %1079 = tpu.matmul %1078, %4, %cst_452 {dimension_numbers = #tpu.dot_dimension_numbers<[1], [0], [0], [1], [0, 0, 1, 1], [], []>} : vector<4x256xbf16>, vector<256x256xbf16>, vector<4x256xf32> -> vector<4x256xf32>
    %1080 = vector.broadcast %1077 : vector<4x1xf32> to vector<4x256xf32>
    %1081 = arith.addf %1080, %1079 : vector<4x256xf32>
    %c6656_i32 = arith.constant 6656 : i32
    %1082 = arith.addi %5, %c6656_i32 : i32
    %c1_i32_453 = arith.constant 1 : i32
    %1083 = arith.addi %1082, %c1_i32_453 : i32
    %1084 = tpu.iota {dimensions = array<i32: 1>} : vector<1x256xi32>
    %1085 = vector.broadcast %1083 : i32 to vector<1x256xi32>
    %1086 = arith.addi %1085, %1084 : vector<1x256xi32>
    %1087 = arith.sitofp %1086 : vector<1x256xi32> to vector<1x256xf32>
    %1088 = vector.broadcast %1087 : vector<1x256xf32> to vector<4x256xf32>
    %1089 = arith.subf %1088, %1081 : vector<4x256xf32>
    %1090 = vector.broadcast %3 : vector<4x1xf32> to vector<4x256xf32>
    %1091 = arith.subf %1090, %1081 : vector<4x256xf32>
    %1092 = vector.broadcast %3 : vector<4x1xf32> to vector<4x256xf32>
    %1093 = arith.addf %1092, %1089 : vector<4x256xf32>
    %1094 = arith.addf %1091, %1073 : vector<4x256xf32>
    %cst_454 = arith.constant 1.000000e+00 : f32
    %1095 = vector.broadcast %cst_454 : f32 to vector<4x256xf32>
    %1096 = arith.subf %1095, %1073 : vector<4x256xf32>
    %1097 = arith.subf %1093, %1096 : vector<4x256xf32>
    %1098 = arith.mulf %1094, %1093 : vector<4x256xf32>
    %1099 = arith.mulf %1091, %1097 : vector<4x256xf32>
    %1100 = arith.subf %1098, %1099 : vector<4x256xf32>
    %1101 = arith.mulf %1093, %1097 : vector<4x256xf32>
    %cst_455 = arith.constant 1.000000e+00 : f32
    %1102 = vector.broadcast %cst_455 : f32 to vector<4x256xf32>
    %1103 = arith.maximumf %1101, %1102 : vector<4x256xf32>
    %1104 = arith.divf %1100, %1103 : vector<4x256xf32>
    %c0_456 = arith.constant 0 : index
    %c0_457 = arith.constant 0 : index
    %1105 = vector.load %arg7[%c0_456, %c0_457] : memref<4x1xf32, #tpu.memory_space<vmem>>, vector<4x1xf32>
    %1106 = arith.mulf %1076, %1104 : vector<4x256xf32>
    %cst_458 = arith.constant dense<0.000000e+00> : vector<4xf32>
    %1107 = vector.multi_reduction <add>, %1106, %cst_458 [1] : vector<4x256xf32> to vector<4xf32>
    %1108 = vector.shape_cast %1107 : vector<4xf32> to vector<4x1xf32>
    %1109 = arith.addf %1105, %1108 : vector<4x1xf32>
    %c0_459 = arith.constant 0 : index
    %c0_460 = arith.constant 0 : index
    %1110 = vector.load %arg7[%c0_459, %c0_460] : memref<4x1xf32, #tpu.memory_space<vmem>>, vector<4x1xf32>
    tpu.vector_store %arg7[%c0_459, %c0_460], %1109 {strides = array<i32>} : memref<4x1xf32, #tpu.memory_space<vmem>>, vector<4x1xf32>,
    %1111 = vector.extract_strided_slice %1081 {offsets = [0, 255], sizes = [4, 1], strides = [1, 1]} : vector<4x256xf32> to vector<4x1xf32>
    %c0_461 = arith.constant 0 : index
    %c0_462 = arith.constant 0 : index
    %1112 = vector.load %arg6[%c0_461, %c0_462] : memref<4x1xf32, #tpu.memory_space<vmem>>, vector<4x1xf32>
    tpu.vector_store %arg6[%c0_461, %c0_462], %1111 {strides = array<i32>} : memref<4x1xf32, #tpu.memory_space<vmem>>, vector<4x1xf32>,
    %c0_463 = arith.constant 0 : index
    %c6912 = arith.constant 6912 : index
    %1113 = vector.load %arg3[%c0_463, %c6912] : memref<4x8192xi8, #tpu.memory_space<vmem>>, vector<4x256xi8>
    %1114 = arith.sitofp %1113 : vector<4x256xi8> to vector<4x256xf32>
    %c0_464 = arith.constant 0 : index
    %c6912_465 = arith.constant 6912 : index
    %1115 = vector.load %arg2[%c0_464, %c6912_465] : memref<4x8192xf32, #tpu.memory_space<vmem>>, vector<4x256xf32>
    %cst_466 = arith.constant 0.000000e+00 : f32
    %1116 = vector.broadcast %cst_466 : f32 to vector<4x256xf32>
    %1117 = arith.subf %1116, %1115 : vector<4x256xf32>
    %c0_467 = arith.constant 0 : index
    %c0_468 = arith.constant 0 : index
    %1118 = vector.load %arg6[%c0_467, %c0_468] : memref<4x1xf32, #tpu.memory_space<vmem>>, vector<4x1xf32>
    %1119 = arith.sitofp %1113 : vector<4x256xi8> to vector<4x256xbf16>
    %cst_469 = arith.constant dense<0.000000e+00> : vector<4x256xf32>
    %1120 = tpu.matmul %1119, %4, %cst_469 {dimension_numbers = #tpu.dot_dimension_numbers<[1], [0], [0], [1], [0, 0, 1, 1], [], []>} : vector<4x256xbf16>, vector<256x256xbf16>, vector<4x256xf32> -> vector<4x256xf32>
    %1121 = vector.broadcast %1118 : vector<4x1xf32> to vector<4x256xf32>
    %1122 = arith.addf %1121, %1120 : vector<4x256xf32>
    %c6912_i32 = arith.constant 6912 : i32
    %1123 = arith.addi %5, %c6912_i32 : i32
    %c1_i32_470 = arith.constant 1 : i32
    %1124 = arith.addi %1123, %c1_i32_470 : i32
    %1125 = tpu.iota {dimensions = array<i32: 1>} : vector<1x256xi32>
    %1126 = vector.broadcast %1124 : i32 to vector<1x256xi32>
    %1127 = arith.addi %1126, %1125 : vector<1x256xi32>
    %1128 = arith.sitofp %1127 : vector<1x256xi32> to vector<1x256xf32>
    %1129 = vector.broadcast %1128 : vector<1x256xf32> to vector<4x256xf32>
    %1130 = arith.subf %1129, %1122 : vector<4x256xf32>
    %1131 = vector.broadcast %3 : vector<4x1xf32> to vector<4x256xf32>
    %1132 = arith.subf %1131, %1122 : vector<4x256xf32>
    %1133 = vector.broadcast %3 : vector<4x1xf32> to vector<4x256xf32>
    %1134 = arith.addf %1133, %1130 : vector<4x256xf32>
    %1135 = arith.addf %1132, %1114 : vector<4x256xf32>
    %cst_471 = arith.constant 1.000000e+00 : f32
    %1136 = vector.broadcast %cst_471 : f32 to vector<4x256xf32>
    %1137 = arith.subf %1136, %1114 : vector<4x256xf32>
    %1138 = arith.subf %1134, %1137 : vector<4x256xf32>
    %1139 = arith.mulf %1135, %1134 : vector<4x256xf32>
    %1140 = arith.mulf %1132, %1138 : vector<4x256xf32>
    %1141 = arith.subf %1139, %1140 : vector<4x256xf32>
    %1142 = arith.mulf %1134, %1138 : vector<4x256xf32>
    %cst_472 = arith.constant 1.000000e+00 : f32
    %1143 = vector.broadcast %cst_472 : f32 to vector<4x256xf32>
    %1144 = arith.maximumf %1142, %1143 : vector<4x256xf32>
    %1145 = arith.divf %1141, %1144 : vector<4x256xf32>
    %c0_473 = arith.constant 0 : index
    %c0_474 = arith.constant 0 : index
    %1146 = vector.load %arg7[%c0_473, %c0_474] : memref<4x1xf32, #tpu.memory_space<vmem>>, vector<4x1xf32>
    %1147 = arith.mulf %1117, %1145 : vector<4x256xf32>
    %cst_475 = arith.constant dense<0.000000e+00> : vector<4xf32>
    %1148 = vector.multi_reduction <add>, %1147, %cst_475 [1] : vector<4x256xf32> to vector<4xf32>
    %1149 = vector.shape_cast %1148 : vector<4xf32> to vector<4x1xf32>
    %1150 = arith.addf %1146, %1149 : vector<4x1xf32>
    %c0_476 = arith.constant 0 : index
    %c0_477 = arith.constant 0 : index
    %1151 = vector.load %arg7[%c0_476, %c0_477] : memref<4x1xf32, #tpu.memory_space<vmem>>, vector<4x1xf32>
    tpu.vector_store %arg7[%c0_476, %c0_477], %1150 {strides = array<i32>} : memref<4x1xf32, #tpu.memory_space<vmem>>, vector<4x1xf32>,
    %1152 = vector.extract_strided_slice %1122 {offsets = [0, 255], sizes = [4, 1], strides = [1, 1]} : vector<4x256xf32> to vector<4x1xf32>
    %c0_478 = arith.constant 0 : index
    %c0_479 = arith.constant 0 : index
    %1153 = vector.load %arg6[%c0_478, %c0_479] : memref<4x1xf32, #tpu.memory_space<vmem>>, vector<4x1xf32>
    tpu.vector_store %arg6[%c0_478, %c0_479], %1152 {strides = array<i32>} : memref<4x1xf32, #tpu.memory_space<vmem>>, vector<4x1xf32>,
    %c0_480 = arith.constant 0 : index
    %c7168 = arith.constant 7168 : index
    %1154 = vector.load %arg3[%c0_480, %c7168] : memref<4x8192xi8, #tpu.memory_space<vmem>>, vector<4x256xi8>
    %1155 = arith.sitofp %1154 : vector<4x256xi8> to vector<4x256xf32>
    %c0_481 = arith.constant 0 : index
    %c7168_482 = arith.constant 7168 : index
    %1156 = vector.load %arg2[%c0_481, %c7168_482] : memref<4x8192xf32, #tpu.memory_space<vmem>>, vector<4x256xf32>
    %cst_483 = arith.constant 0.000000e+00 : f32
    %1157 = vector.broadcast %cst_483 : f32 to vector<4x256xf32>
    %1158 = arith.subf %1157, %1156 : vector<4x256xf32>
    %c0_484 = arith.constant 0 : index
    %c0_485 = arith.constant 0 : index
    %1159 = vector.load %arg6[%c0_484, %c0_485] : memref<4x1xf32, #tpu.memory_space<vmem>>, vector<4x1xf32>
    %1160 = arith.sitofp %1154 : vector<4x256xi8> to vector<4x256xbf16>
    %cst_486 = arith.constant dense<0.000000e+00> : vector<4x256xf32>
    %1161 = tpu.matmul %1160, %4, %cst_486 {dimension_numbers = #tpu.dot_dimension_numbers<[1], [0], [0], [1], [0, 0, 1, 1], [], []>} : vector<4x256xbf16>, vector<256x256xbf16>, vector<4x256xf32> -> vector<4x256xf32>
    %1162 = vector.broadcast %1159 : vector<4x1xf32> to vector<4x256xf32>
    %1163 = arith.addf %1162, %1161 : vector<4x256xf32>
    %c7168_i32 = arith.constant 7168 : i32
    %1164 = arith.addi %5, %c7168_i32 : i32
    %c1_i32_487 = arith.constant 1 : i32
    %1165 = arith.addi %1164, %c1_i32_487 : i32
    %1166 = tpu.iota {dimensions = array<i32: 1>} : vector<1x256xi32>
    %1167 = vector.broadcast %1165 : i32 to vector<1x256xi32>
    %1168 = arith.addi %1167, %1166 : vector<1x256xi32>
    %1169 = arith.sitofp %1168 : vector<1x256xi32> to vector<1x256xf32>
    %1170 = vector.broadcast %1169 : vector<1x256xf32> to vector<4x256xf32>
    %1171 = arith.subf %1170, %1163 : vector<4x256xf32>
    %1172 = vector.broadcast %3 : vector<4x1xf32> to vector<4x256xf32>
    %1173 = arith.subf %1172, %1163 : vector<4x256xf32>
    %1174 = vector.broadcast %3 : vector<4x1xf32> to vector<4x256xf32>
    %1175 = arith.addf %1174, %1171 : vector<4x256xf32>
    %1176 = arith.addf %1173, %1155 : vector<4x256xf32>
    %cst_488 = arith.constant 1.000000e+00 : f32
    %1177 = vector.broadcast %cst_488 : f32 to vector<4x256xf32>
    %1178 = arith.subf %1177, %1155 : vector<4x256xf32>
    %1179 = arith.subf %1175, %1178 : vector<4x256xf32>
    %1180 = arith.mulf %1176, %1175 : vector<4x256xf32>
    %1181 = arith.mulf %1173, %1179 : vector<4x256xf32>
    %1182 = arith.subf %1180, %1181 : vector<4x256xf32>
    %1183 = arith.mulf %1175, %1179 : vector<4x256xf32>
    %cst_489 = arith.constant 1.000000e+00 : f32
    %1184 = vector.broadcast %cst_489 : f32 to vector<4x256xf32>
    %1185 = arith.maximumf %1183, %1184 : vector<4x256xf32>
    %1186 = arith.divf %1182, %1185 : vector<4x256xf32>
    %c0_490 = arith.constant 0 : index
    %c0_491 = arith.constant 0 : index
    %1187 = vector.load %arg7[%c0_490, %c0_491] : memref<4x1xf32, #tpu.memory_space<vmem>>, vector<4x1xf32>
    %1188 = arith.mulf %1158, %1186 : vector<4x256xf32>
    %cst_492 = arith.constant dense<0.000000e+00> : vector<4xf32>
    %1189 = vector.multi_reduction <add>, %1188, %cst_492 [1] : vector<4x256xf32> to vector<4xf32>
    %1190 = vector.shape_cast %1189 : vector<4xf32> to vector<4x1xf32>
    %1191 = arith.addf %1187, %1190 : vector<4x1xf32>
    %c0_493 = arith.constant 0 : index
    %c0_494 = arith.constant 0 : index
    %1192 = vector.load %arg7[%c0_493, %c0_494] : memref<4x1xf32, #tpu.memory_space<vmem>>, vector<4x1xf32>
    tpu.vector_store %arg7[%c0_493, %c0_494], %1191 {strides = array<i32>} : memref<4x1xf32, #tpu.memory_space<vmem>>, vector<4x1xf32>,
    %1193 = vector.extract_strided_slice %1163 {offsets = [0, 255], sizes = [4, 1], strides = [1, 1]} : vector<4x256xf32> to vector<4x1xf32>
    %c0_495 = arith.constant 0 : index
    %c0_496 = arith.constant 0 : index
    %1194 = vector.load %arg6[%c0_495, %c0_496] : memref<4x1xf32, #tpu.memory_space<vmem>>, vector<4x1xf32>
    tpu.vector_store %arg6[%c0_495, %c0_496], %1193 {strides = array<i32>} : memref<4x1xf32, #tpu.memory_space<vmem>>, vector<4x1xf32>,
    %c0_497 = arith.constant 0 : index
    %c7424 = arith.constant 7424 : index
    %1195 = vector.load %arg3[%c0_497, %c7424] : memref<4x8192xi8, #tpu.memory_space<vmem>>, vector<4x256xi8>
    %1196 = arith.sitofp %1195 : vector<4x256xi8> to vector<4x256xf32>
    %c0_498 = arith.constant 0 : index
    %c7424_499 = arith.constant 7424 : index
    %1197 = vector.load %arg2[%c0_498, %c7424_499] : memref<4x8192xf32, #tpu.memory_space<vmem>>, vector<4x256xf32>
    %cst_500 = arith.constant 0.000000e+00 : f32
    %1198 = vector.broadcast %cst_500 : f32 to vector<4x256xf32>
    %1199 = arith.subf %1198, %1197 : vector<4x256xf32>
    %c0_501 = arith.constant 0 : index
    %c0_502 = arith.constant 0 : index
    %1200 = vector.load %arg6[%c0_501, %c0_502] : memref<4x1xf32, #tpu.memory_space<vmem>>, vector<4x1xf32>
    %1201 = arith.sitofp %1195 : vector<4x256xi8> to vector<4x256xbf16>
    %cst_503 = arith.constant dense<0.000000e+00> : vector<4x256xf32>
    %1202 = tpu.matmul %1201, %4, %cst_503 {dimension_numbers = #tpu.dot_dimension_numbers<[1], [0], [0], [1], [0, 0, 1, 1], [], []>} : vector<4x256xbf16>, vector<256x256xbf16>, vector<4x256xf32> -> vector<4x256xf32>
    %1203 = vector.broadcast %1200 : vector<4x1xf32> to vector<4x256xf32>
    %1204 = arith.addf %1203, %1202 : vector<4x256xf32>
    %c7424_i32 = arith.constant 7424 : i32
    %1205 = arith.addi %5, %c7424_i32 : i32
    %c1_i32_504 = arith.constant 1 : i32
    %1206 = arith.addi %1205, %c1_i32_504 : i32
    %1207 = tpu.iota {dimensions = array<i32: 1>} : vector<1x256xi32>
    %1208 = vector.broadcast %1206 : i32 to vector<1x256xi32>
    %1209 = arith.addi %1208, %1207 : vector<1x256xi32>
    %1210 = arith.sitofp %1209 : vector<1x256xi32> to vector<1x256xf32>
    %1211 = vector.broadcast %1210 : vector<1x256xf32> to vector<4x256xf32>
    %1212 = arith.subf %1211, %1204 : vector<4x256xf32>
    %1213 = vector.broadcast %3 : vector<4x1xf32> to vector<4x256xf32>
    %1214 = arith.subf %1213, %1204 : vector<4x256xf32>
    %1215 = vector.broadcast %3 : vector<4x1xf32> to vector<4x256xf32>
    %1216 = arith.addf %1215, %1212 : vector<4x256xf32>
    %1217 = arith.addf %1214, %1196 : vector<4x256xf32>
    %cst_505 = arith.constant 1.000000e+00 : f32
    %1218 = vector.broadcast %cst_505 : f32 to vector<4x256xf32>
    %1219 = arith.subf %1218, %1196 : vector<4x256xf32>
    %1220 = arith.subf %1216, %1219 : vector<4x256xf32>
    %1221 = arith.mulf %1217, %1216 : vector<4x256xf32>
    %1222 = arith.mulf %1214, %1220 : vector<4x256xf32>
    %1223 = arith.subf %1221, %1222 : vector<4x256xf32>
    %1224 = arith.mulf %1216, %1220 : vector<4x256xf32>
    %cst_506 = arith.constant 1.000000e+00 : f32
    %1225 = vector.broadcast %cst_506 : f32 to vector<4x256xf32>
    %1226 = arith.maximumf %1224, %1225 : vector<4x256xf32>
    %1227 = arith.divf %1223, %1226 : vector<4x256xf32>
    %c0_507 = arith.constant 0 : index
    %c0_508 = arith.constant 0 : index
    %1228 = vector.load %arg7[%c0_507, %c0_508] : memref<4x1xf32, #tpu.memory_space<vmem>>, vector<4x1xf32>
    %1229 = arith.mulf %1199, %1227 : vector<4x256xf32>
    %cst_509 = arith.constant dense<0.000000e+00> : vector<4xf32>
    %1230 = vector.multi_reduction <add>, %1229, %cst_509 [1] : vector<4x256xf32> to vector<4xf32>
    %1231 = vector.shape_cast %1230 : vector<4xf32> to vector<4x1xf32>
    %1232 = arith.addf %1228, %1231 : vector<4x1xf32>
    %c0_510 = arith.constant 0 : index
    %c0_511 = arith.constant 0 : index
    %1233 = vector.load %arg7[%c0_510, %c0_511] : memref<4x1xf32, #tpu.memory_space<vmem>>, vector<4x1xf32>
    tpu.vector_store %arg7[%c0_510, %c0_511], %1232 {strides = array<i32>} : memref<4x1xf32, #tpu.memory_space<vmem>>, vector<4x1xf32>,
    %1234 = vector.extract_strided_slice %1204 {offsets = [0, 255], sizes = [4, 1], strides = [1, 1]} : vector<4x256xf32> to vector<4x1xf32>
    %c0_512 = arith.constant 0 : index
    %c0_513 = arith.constant 0 : index
    %1235 = vector.load %arg6[%c0_512, %c0_513] : memref<4x1xf32, #tpu.memory_space<vmem>>, vector<4x1xf32>
    tpu.vector_store %arg6[%c0_512, %c0_513], %1234 {strides = array<i32>} : memref<4x1xf32, #tpu.memory_space<vmem>>, vector<4x1xf32>,
    %c0_514 = arith.constant 0 : index
    %c7680 = arith.constant 7680 : index
    %1236 = vector.load %arg3[%c0_514, %c7680] : memref<4x8192xi8, #tpu.memory_space<vmem>>, vector<4x256xi8>
    %1237 = arith.sitofp %1236 : vector<4x256xi8> to vector<4x256xf32>
    %c0_515 = arith.constant 0 : index
    %c7680_516 = arith.constant 7680 : index
    %1238 = vector.load %arg2[%c0_515, %c7680_516] : memref<4x8192xf32, #tpu.memory_space<vmem>>, vector<4x256xf32>
    %cst_517 = arith.constant 0.000000e+00 : f32
    %1239 = vector.broadcast %cst_517 : f32 to vector<4x256xf32>
    %1240 = arith.subf %1239, %1238 : vector<4x256xf32>
    %c0_518 = arith.constant 0 : index
    %c0_519 = arith.constant 0 : index
    %1241 = vector.load %arg6[%c0_518, %c0_519] : memref<4x1xf32, #tpu.memory_space<vmem>>, vector<4x1xf32>
    %1242 = arith.sitofp %1236 : vector<4x256xi8> to vector<4x256xbf16>
    %cst_520 = arith.constant dense<0.000000e+00> : vector<4x256xf32>
    %1243 = tpu.matmul %1242, %4, %cst_520 {dimension_numbers = #tpu.dot_dimension_numbers<[1], [0], [0], [1], [0, 0, 1, 1], [], []>} : vector<4x256xbf16>, vector<256x256xbf16>, vector<4x256xf32> -> vector<4x256xf32>
    %1244 = vector.broadcast %1241 : vector<4x1xf32> to vector<4x256xf32>
    %1245 = arith.addf %1244, %1243 : vector<4x256xf32>
    %c7680_i32 = arith.constant 7680 : i32
    %1246 = arith.addi %5, %c7680_i32 : i32
    %c1_i32_521 = arith.constant 1 : i32
    %1247 = arith.addi %1246, %c1_i32_521 : i32
    %1248 = tpu.iota {dimensions = array<i32: 1>} : vector<1x256xi32>
    %1249 = vector.broadcast %1247 : i32 to vector<1x256xi32>
    %1250 = arith.addi %1249, %1248 : vector<1x256xi32>
    %1251 = arith.sitofp %1250 : vector<1x256xi32> to vector<1x256xf32>
    %1252 = vector.broadcast %1251 : vector<1x256xf32> to vector<4x256xf32>
    %1253 = arith.subf %1252, %1245 : vector<4x256xf32>
    %1254 = vector.broadcast %3 : vector<4x1xf32> to vector<4x256xf32>
    %1255 = arith.subf %1254, %1245 : vector<4x256xf32>
    %1256 = vector.broadcast %3 : vector<4x1xf32> to vector<4x256xf32>
    %1257 = arith.addf %1256, %1253 : vector<4x256xf32>
    %1258 = arith.addf %1255, %1237 : vector<4x256xf32>
    %cst_522 = arith.constant 1.000000e+00 : f32
    %1259 = vector.broadcast %cst_522 : f32 to vector<4x256xf32>
    %1260 = arith.subf %1259, %1237 : vector<4x256xf32>
    %1261 = arith.subf %1257, %1260 : vector<4x256xf32>
    %1262 = arith.mulf %1258, %1257 : vector<4x256xf32>
    %1263 = arith.mulf %1255, %1261 : vector<4x256xf32>
    %1264 = arith.subf %1262, %1263 : vector<4x256xf32>
    %1265 = arith.mulf %1257, %1261 : vector<4x256xf32>
    %cst_523 = arith.constant 1.000000e+00 : f32
    %1266 = vector.broadcast %cst_523 : f32 to vector<4x256xf32>
    %1267 = arith.maximumf %1265, %1266 : vector<4x256xf32>
    %1268 = arith.divf %1264, %1267 : vector<4x256xf32>
    %c0_524 = arith.constant 0 : index
    %c0_525 = arith.constant 0 : index
    %1269 = vector.load %arg7[%c0_524, %c0_525] : memref<4x1xf32, #tpu.memory_space<vmem>>, vector<4x1xf32>
    %1270 = arith.mulf %1240, %1268 : vector<4x256xf32>
    %cst_526 = arith.constant dense<0.000000e+00> : vector<4xf32>
    %1271 = vector.multi_reduction <add>, %1270, %cst_526 [1] : vector<4x256xf32> to vector<4xf32>
    %1272 = vector.shape_cast %1271 : vector<4xf32> to vector<4x1xf32>
    %1273 = arith.addf %1269, %1272 : vector<4x1xf32>
    %c0_527 = arith.constant 0 : index
    %c0_528 = arith.constant 0 : index
    %1274 = vector.load %arg7[%c0_527, %c0_528] : memref<4x1xf32, #tpu.memory_space<vmem>>, vector<4x1xf32>
    tpu.vector_store %arg7[%c0_527, %c0_528], %1273 {strides = array<i32>} : memref<4x1xf32, #tpu.memory_space<vmem>>, vector<4x1xf32>,
    %1275 = vector.extract_strided_slice %1245 {offsets = [0, 255], sizes = [4, 1], strides = [1, 1]} : vector<4x256xf32> to vector<4x1xf32>
    %c0_529 = arith.constant 0 : index
    %c0_530 = arith.constant 0 : index
    %1276 = vector.load %arg6[%c0_529, %c0_530] : memref<4x1xf32, #tpu.memory_space<vmem>>, vector<4x1xf32>
    tpu.vector_store %arg6[%c0_529, %c0_530], %1275 {strides = array<i32>} : memref<4x1xf32, #tpu.memory_space<vmem>>, vector<4x1xf32>,
    %c0_531 = arith.constant 0 : index
    %c7936 = arith.constant 7936 : index
    %1277 = vector.load %arg3[%c0_531, %c7936] : memref<4x8192xi8, #tpu.memory_space<vmem>>, vector<4x256xi8>
    %1278 = arith.sitofp %1277 : vector<4x256xi8> to vector<4x256xf32>
    %c0_532 = arith.constant 0 : index
    %c7936_533 = arith.constant 7936 : index
    %1279 = vector.load %arg2[%c0_532, %c7936_533] : memref<4x8192xf32, #tpu.memory_space<vmem>>, vector<4x256xf32>
    %cst_534 = arith.constant 0.000000e+00 : f32
    %1280 = vector.broadcast %cst_534 : f32 to vector<4x256xf32>
    %1281 = arith.subf %1280, %1279 : vector<4x256xf32>
    %c0_535 = arith.constant 0 : index
    %c0_536 = arith.constant 0 : index
    %1282 = vector.load %arg6[%c0_535, %c0_536] : memref<4x1xf32, #tpu.memory_space<vmem>>, vector<4x1xf32>
    %1283 = arith.sitofp %1277 : vector<4x256xi8> to vector<4x256xbf16>
    %cst_537 = arith.constant dense<0.000000e+00> : vector<4x256xf32>
    %1284 = tpu.matmul %1283, %4, %cst_537 {dimension_numbers = #tpu.dot_dimension_numbers<[1], [0], [0], [1], [0, 0, 1, 1], [], []>} : vector<4x256xbf16>, vector<256x256xbf16>, vector<4x256xf32> -> vector<4x256xf32>
    %1285 = vector.broadcast %1282 : vector<4x1xf32> to vector<4x256xf32>
    %1286 = arith.addf %1285, %1284 : vector<4x256xf32>
    %c7936_i32 = arith.constant 7936 : i32
    %1287 = arith.addi %5, %c7936_i32 : i32
    %c1_i32_538 = arith.constant 1 : i32
    %1288 = arith.addi %1287, %c1_i32_538 : i32
    %1289 = tpu.iota {dimensions = array<i32: 1>} : vector<1x256xi32>
    %1290 = vector.broadcast %1288 : i32 to vector<1x256xi32>
    %1291 = arith.addi %1290, %1289 : vector<1x256xi32>
    %1292 = arith.sitofp %1291 : vector<1x256xi32> to vector<1x256xf32>
    %1293 = vector.broadcast %1292 : vector<1x256xf32> to vector<4x256xf32>
    %1294 = arith.subf %1293, %1286 : vector<4x256xf32>
    %1295 = vector.broadcast %3 : vector<4x1xf32> to vector<4x256xf32>
    %1296 = arith.subf %1295, %1286 : vector<4x256xf32>
    %1297 = vector.broadcast %3 : vector<4x1xf32> to vector<4x256xf32>
    %1298 = arith.addf %1297, %1294 : vector<4x256xf32>
    %1299 = arith.addf %1296, %1278 : vector<4x256xf32>
    %cst_539 = arith.constant 1.000000e+00 : f32
    %1300 = vector.broadcast %cst_539 : f32 to vector<4x256xf32>
    %1301 = arith.subf %1300, %1278 : vector<4x256xf32>
    %1302 = arith.subf %1298, %1301 : vector<4x256xf32>
    %1303 = arith.mulf %1299, %1298 : vector<4x256xf32>
    %1304 = arith.mulf %1296, %1302 : vector<4x256xf32>
    %1305 = arith.subf %1303, %1304 : vector<4x256xf32>
    %1306 = arith.mulf %1298, %1302 : vector<4x256xf32>
    %cst_540 = arith.constant 1.000000e+00 : f32
    %1307 = vector.broadcast %cst_540 : f32 to vector<4x256xf32>
    %1308 = arith.maximumf %1306, %1307 : vector<4x256xf32>
    %1309 = arith.divf %1305, %1308 : vector<4x256xf32>
    %c0_541 = arith.constant 0 : index
    %c0_542 = arith.constant 0 : index
    %1310 = vector.load %arg7[%c0_541, %c0_542] : memref<4x1xf32, #tpu.memory_space<vmem>>, vector<4x1xf32>
    %1311 = arith.mulf %1281, %1309 : vector<4x256xf32>
    %cst_543 = arith.constant dense<0.000000e+00> : vector<4xf32>
    %1312 = vector.multi_reduction <add>, %1311, %cst_543 [1] : vector<4x256xf32> to vector<4xf32>
    %1313 = vector.shape_cast %1312 : vector<4xf32> to vector<4x1xf32>
    %1314 = arith.addf %1310, %1313 : vector<4x1xf32>
    %c0_544 = arith.constant 0 : index
    %c0_545 = arith.constant 0 : index
    %1315 = vector.load %arg7[%c0_544, %c0_545] : memref<4x1xf32, #tpu.memory_space<vmem>>, vector<4x1xf32>
    tpu.vector_store %arg7[%c0_544, %c0_545], %1314 {strides = array<i32>} : memref<4x1xf32, #tpu.memory_space<vmem>>, vector<4x1xf32>,
    %1316 = vector.extract_strided_slice %1286 {offsets = [0, 255], sizes = [4, 1], strides = [1, 1]} : vector<4x256xf32> to vector<4x1xf32>
    %c0_546 = arith.constant 0 : index
    %c0_547 = arith.constant 0 : index
    %1317 = vector.load %arg6[%c0_546, %c0_547] : memref<4x1xf32, #tpu.memory_space<vmem>>, vector<4x1xf32>
    tpu.vector_store %arg6[%c0_546, %c0_547], %1316 {strides = array<i32>} : memref<4x1xf32, #tpu.memory_space<vmem>>, vector<4x1xf32>,
    %c0_i32_548 = arith.constant 0 : i32
    %1318 = arith.cmpi eq, %arg0, %c0_i32_548 : i32
    %1319 = arith.extui %1318 : i1 to i32
    %c0_i32_549 = arith.constant 0 : i32
    %1320 = arith.cmpi ne, %1319, %c0_i32_549 : i32
    scf.if %1320 {
      %cst_550 = arith.constant 0.000000e+00 : f32
      %1321 = vector.broadcast %cst_550 : f32 to vector<4x1xf32>
      %1322 = arith.cmpf ogt, %3, %1321 : vector<4x1xf32>
      %1323 = arith.extui %1322 : vector<4x1xi1> to vector<4x1xi32>
      %1324 = arith.sitofp %1323 : vector<4x1xi32> to vector<4x1xf32>
      %c0_551 = arith.constant 0 : index
      %c0_552 = arith.constant 0 : index
      %1325 = vector.load %arg7[%c0_551, %c0_552] : memref<4x1xf32, #tpu.memory_space<vmem>>, vector<4x1xf32>
      %1326 = arith.mulf %1325, %1324 : vector<4x1xf32>
      %cst_553 = arith.constant dense<0.000000e+00> : vector<1xf32>
      %1327 = vector.multi_reduction <add>, %1326, %cst_553 [0] : vector<4x1xf32> to vector<1xf32>
      %1328 = vector.shape_cast %1327 : vector<1xf32> to vector<1x1xf32>
      %cst_554 = arith.constant dense<0.000000e+00> : vector<1xf32>
      %1329 = vector.multi_reduction <add>, %1324, %cst_554 [0] : vector<4x1xf32> to vector<1xf32>
      %1330 = vector.shape_cast %1329 : vector<1xf32> to vector<1x1xf32>
      %cst_555 = arith.constant 1.000000e+00 : f32
      %1331 = vector.broadcast %cst_555 : f32 to vector<1x1xf32>
      %1332 = arith.maximumf %1330, %1331 : vector<1x1xf32>
      %1333 = arith.divf %1328, %1332 : vector<1x1xf32>
      %c0_556 = arith.constant 0 : index
      %c0_557 = arith.constant 0 : index
      %1334 = vector.load %arg4[%c0_556, %c0_557] : memref<1x1xf32, #tpu.memory_space<vmem>>, vector<1x1xf32>
      tpu.vector_store %arg4[%c0_556, %c0_557], %1333 {strides = array<i32>} : memref<1x1xf32, #tpu.memory_space<vmem>>, vector<1x1xf32>,
    } else {
    }
    return
  }
  func.func @transform_0(%arg0: i32) -> (i32, i32) {
    %c0_i32 = arith.constant 0 : i32
    %c0_i32_0 = arith.constant 0 : i32
    %c0_i32_1 = arith.constant 0 : i32
    return %c0_i32, %c0_i32_0 : i32, i32
  }
  func.func @transform_1(%arg0: i32) -> (i32, i32) {
    %c0_i32 = arith.constant 0 : i32
    %c0_i32_0 = arith.constant 0 : i32
    return %c0_i32, %arg0 : i32, i32
  }
  func.func @transform_2(%arg0: i32) -> (i32, i32) {
    %c0_i32 = arith.constant 0 : i32
    %c0_i32_0 = arith.constant 0 : i32
    return %c0_i32, %arg0 : i32, i32
  }
  func.func @transform_3(%arg0: i32) -> (i32, i32) {
    %c0_i32 = arith.constant 0 : i32
    %c0_i32_0 = arith.constant 0 : i32
    %c0_i32_1 = arith.constant 0 : i32
    return %c0_i32, %c0_i32_0 : i32, i32
  }
}

</mosaic_0001>

<llo_original>
// kernel: lovasz_softmax_with_logit.2
$region0: #{lovasz_softmax_with_logit.2}
  #allocation0 [shape = 'u32[]', space=smem, size = 0x4, offset = 0x4, fixed_abs, tag = 'smem constant byte address 0x4 - core index']
  #allocation1 [shape = 'u32[144,128]{1,0:T(1,128)}', space=vmem, size = 0x12000, scoped, tag = 'internal scratch']
  %s0 = inlined_call_operand.vmem [shape: f32[2,4,256], index: 0, kind: input, shape index: {}]
  %s1 = inlined_call_operand.vmem [shape: s32[2,1,256], index: 1, kind: input, shape index: {}]
  %s2 = inlined_call_operand.vmem [shape: f32[4,512], index: 2, kind: output, shape index: {0}]
  %s3 = inlined_call_operand.vmem [shape: s8[4,512], index: 3, kind: output, shape index: {1}]
  %4 = xla_tuple %s2, %s3
  %s5 = sld [smem:[#allocation0]]
  $region49: #{lovasz_softmax_with_logit.2} parent=0
    _
  %s7 = ssub.s32 1, %s5
  %s8 = scalar_select 0, %s7, %s5
  loop: start=0, step=1, limit=4
  $region2: #{lovasz_softmax_with_logit.2} parent=0 // loop_pre_header
    _
  $region3: #{lovasz_softmax_with_logit.2} parent=0 // loop_header
    %s10 = sphi 0, %s14
    %p11 = scmp.ge.s32.totalorder %s10, 4
    %s17 = sphi 0, %s29
    %s18 = sphi 0, %s25
    %s19 = sphi 0, %s17
    %s20 = sphi 0, %s18
    %s21 = sphi 0, %s19
    %s22 = sphi 0, %s20
    %s34 = sphi 0, %s36
    %s37 = sphi 0, %s34
    %s38 = sphi 0, %s37
    %s54 = sphi 0, %s38
    %s62 = sphi 0, %s64
    %s65 = sphi 0, %s62
    %s66 = sphi 0, %s65
    %s82 = sphi 0, %s66
    %s90 = sphi 0, %s92
    %s93 = sphi 0, %s90
    %s94 = sphi 0, %s93
    %s110 = sphi 0, %s94
    %s118 = sphi 0, %s120
    %s121 = sphi 0, %s118
    %s122 = sphi 0, %s121
    %s138 = sphi 0, %s122
  $region4: #{lovasz_softmax_with_logit.2} parent=0 // loop_header_branch
    %13 = sbr.rel (%p11) target = $region8
  $region5: #{lovasz_softmax_with_logit.2} parent=0 // loop_body
    %s15 = ssub.s32 %s10, 1
    %s16 = ssub.s32 %s10, 2
    %s23 = sadd.s32 1, %s18
    %p24 = scmp.ge.s32.totalorder %s23, 1
    %s25 = scalar_select %p24, 0, %s23
    %s26 = sadd.s32 1, %s17
    %s27 = scalar_select %p24, %s26, %s17
    %p28 = scmp.ge.s32.totalorder %s27, 2
    %s29 = scalar_select %p28, 0, %s27
    %s30 = ssub.s32 %s17, %s29
    %s31 = ssub.s32 %s18, %s25
    %s32 = sor.u32 %s30, %s31
    %p33 = scmp.eq.s32.totalorder %s32, 0
    %s35 = sadd.s32 %s34, 1
    %s36 = scalar_select %p33, %s34, %s35
    %p39 = pneg %p33
    %p40 = scmp.eq.s32.totalorder %s10, 1
    %p41 = por %p39, %p40
    %p42 = scmp.ne.s32.totalorder %s34, %s37
    %p43 = scmp.eq.s32.totalorder %s10, 0
    %p44 = por %p42, %p43
    %p45 = scmp.ne.s32.totalorder %s34, %s37
    %p46 = scmp.eq.s32.totalorder %s15, 1
    %p47 = por %p45, %p46
    %p48 = scmp.ne.s32.totalorder %s37, %s38
    %p49 = scmp.eq.s32.totalorder %s15, 0
    %p50 = por %p48, %p49
    %p51 = scmp.ne.s32.totalorder %s37, %s38
    %p52 = scmp.eq.s32.totalorder %s16, 1
    %p53 = por %p51, %p52
    %p55 = scmp.ne.s32.totalorder %s38, %s54
    %p56 = scmp.eq.s32.totalorder %s16, 0
    %p57 = por %p55, %p56
    %s58 = ssub.s32 %s17, %s29
    %s59 = ssub.s32 %s18, %s25
    %s60 = sor.u32 %s58, %s59
    %p61 = scmp.eq.s32.totalorder %s60, 0
    %s63 = sadd.s32 %s62, 1
    %s64 = scalar_select %p61, %s62, %s63
    %p67 = pneg %p61
    %p68 = scmp.eq.s32.totalorder %s10, 1
    %p69 = por %p67, %p68
    %p70 = scmp.ne.s32.totalorder %s62, %s65
    %p71 = scmp.eq.s32.totalorder %s10, 0
    %p72 = por %p70, %p71
    %p73 = scmp.ne.s32.totalorder %s62, %s65
    %p74 = scmp.eq.s32.totalorder %s15, 1
    %p75 = por %p73, %p74
    %p76 = scmp.ne.s32.totalorder %s65, %s66
    %p77 = scmp.eq.s32.totalorder %s15, 0
    %p78 = por %p76, %p77
    %p79 = scmp.ne.s32.totalorder %s65, %s66
    %p80 = scmp.eq.s32.totalorder %s16, 1
    %p81 = por %p79, %p80
    %p83 = scmp.ne.s32.totalorder %s66, %s82
    %p84 = scmp.eq.s32.totalorder %s16, 0
    %p85 = por %p83, %p84
    %s86 = sadd.s32 %s17, %s18
    %s87 = sadd.s32 %s29, %s25
    %s88 = ssub.s32 %s86, %s87
    %p89 = scmp.eq.s32.totalorder %s88, 0
    %s91 = sadd.s32 %s90, 1
    %s92 = scalar_select %p89, %s90, %s91
    %p95 = pneg %p89
    %p96 = scmp.eq.s32.totalorder %s10, 1
    %p97 = por %p95, %p96
    %p98 = scmp.ne.s32.totalorder %s90, %s93
    %p99 = scmp.eq.s32.totalorder %s10, 0
    %p100 = por %p98, %p99
    %p101 = scmp.ne.s32.totalorder %s90, %s93
    %p102 = scmp.eq.s32.totalorder %s15, 1
    %p103 = por %p101, %p102
    %p104 = scmp.ne.s32.totalorder %s93, %s94
    %p105 = scmp.eq.s32.totalorder %s15, 0
    %p106 = por %p104, %p105
    %p107 = scmp.ne.s32.totalorder %s93, %s94
    %p108 = scmp.eq.s32.totalorder %s16, 1
    %p109 = por %p107, %p108
    %p111 = scmp.ne.s32.totalorder %s94, %s110
    %p112 = scmp.eq.s32.totalorder %s16, 0
    %p113 = por %p111, %p112
    %s114 = sadd.s32 %s17, %s18
    %s115 = sadd.s32 %s29, %s25
    %s116 = ssub.s32 %s114, %s115
    %p117 = scmp.eq.s32.totalorder %s116, 0
    %s119 = sadd.s32 %s118, 1
    %s120 = scalar_select %p117, %s118, %s119
    %p123 = pneg %p117
    %p124 = scmp.eq.s32.totalorder %s10, 1
    %p125 = por %p123, %p124
    %p126 = scmp.ne.s32.totalorder %s118, %s121
    %p127 = scmp.eq.s32.totalorder %s10, 0
    %p128 = por %p126, %p127
    %p129 = scmp.ne.s32.totalorder %s118, %s121
    %p130 = scmp.eq.s32.totalorder %s15, 1
    %p131 = por %p129, %p130
    %p132 = scmp.ne.s32.totalorder %s121, %s122
    %p133 = scmp.eq.s32.totalorder %s15, 0
    %p134 = por %p132, %p133
    %p135 = scmp.ne.s32.totalorder %s121, %s122
    %p136 = scmp.eq.s32.totalorder %s16, 1
    %p137 = por %p135, %p136
    %p139 = scmp.ne.s32.totalorder %s122, %s138
    %p140 = scmp.eq.s32.totalorder %s16, 0
    %p141 = por %p139, %p140
    %p142 = scmp.le.s32.totalorder 1, %s10
    %p143 = scmp.lt.s32.totalorder %s10, 3
    %p144 = pnand %p142, %p143
    %p145 = pneg %p144
    // Predicated region
    $region9: #{lovasz_softmax_with_logit.2} parent=5 // pred_check
      _
    $region10: #{lovasz_softmax_with_logit.2} parent=5 // pred_check_branch
      %147 = sbr.rel (%p144) target = $region12
    $region11: #{lovasz_softmax_with_logit.2} parent=5 // pred_region
      %s148 = ssub.s32 %s10, 1
    $region12: #{lovasz_softmax_with_logit.2} parent=5 // pred_fallthru
      _
    %p149 = scmp.lt.s32.totalorder %s10, 2
    // Predicated region
    $region13: #{lovasz_softmax_with_logit.2} parent=5 // pred_check
      %p150 = pneg %p149
    $region14: #{lovasz_softmax_with_logit.2} parent=5 // pred_check_branch
      %152 = sbr.rel (%p150) target = $region16
    $region15: #{lovasz_softmax_with_logit.2} parent=5 // pred_region
      // Predicated region
      $region17: #{lovasz_softmax_with_logit.2} parent=15 // pred_check
        %p153 = pneg %p44
      $region18: #{lovasz_softmax_with_logit.2} parent=15 // pred_check_branch
        %155 = sbr.rel (%p153) target = $region20
      $region19: #{lovasz_softmax_with_logit.2} parent=15 // pred_region
        %s156 = smul.u32 2, %s18
        %p157 = scmp.lt.s32.totalorder %s17, 1
        %s158 = scalar_select %p157, %s17, 1
        %p159 = scmp.lt.s32.totalorder %s156, 1
        %s160 = scalar_select %p159, %s156, 1
        %s161 = smul.addr %s158, 2
        %s162 = sadd.s32 %s160, %s161
        %s163 = smul.addr %s162, 4
        %s164 = scalar_lea.vmem %s0, %s163
        %s165 = smul.u32 2, %s18
      $region20: #{lovasz_softmax_with_logit.2} parent=15 // pred_fallthru
        _
      // Predicated region
      $region21: #{lovasz_softmax_with_logit.2} parent=15 // pred_check
        %p166 = pneg %p72
      $region22: #{lovasz_softmax_with_logit.2} parent=15 // pred_check_branch
        %168 = sbr.rel (%p166) target = $region24
      $region23: #{lovasz_softmax_with_logit.2} parent=15 // pred_region
        %s169 = smul.u32 2, %s18
        %p170 = scmp.lt.s32.totalorder %s17, 1
        %s171 = scalar_select %p170, %s17, 1
        %p172 = scmp.lt.s32.totalorder %s169, 1
        %s173 = scalar_select %p172, %s169, 1
        %s174 = smul.addr %s171, 2
        %s175 = sadd.s32 %s173, %s174
        %s176 = scalar_lea.vmem %s1, %s175
        %s177 = smul.u32 2, %s18
      $region24: #{lovasz_softmax_with_logit.2} parent=15 // pred_fallthru
        _
    $region16: #{lovasz_softmax_with_logit.2} parent=5 // pred_fallthru
      _
    %p178 = scmp.le.s32.totalorder 1, %s10
    %p179 = scmp.lt.s32.totalorder %s10, 3
    %p180 = pnand %p178, %p179
    %p181 = pneg %p180
    // Predicated region
    $region25: #{lovasz_softmax_with_logit.2} parent=5 // pred_check
      _
    $region26: #{lovasz_softmax_with_logit.2} parent=5 // pred_check_branch
      %183 = sbr.rel (%p180) target = $region28
    $region27: #{lovasz_softmax_with_logit.2} parent=5 // pred_region
      %s184 = ssub.s32 %s10, 1
      %s185 = smul.u32 2, %s20
      %p186 = scmp.lt.s32.totalorder %s19, 1
      %s187 = scalar_select %p186, %s19, 1
      %p188 = scmp.lt.s32.totalorder %s185, 1
      %s189 = scalar_select %p188, %s185, 1
      %s190 = smul.addr %s187, 2
      %s191 = sadd.s32 %s189, %s190
      %s192 = smul.addr %s191, 4
      %s193 = scalar_lea.vmem %s0, %s192
      %p194 = pneg %p50
      %p195 = pneg %p47
      %s196 = smul.u32 2, %s20
      %p197 = scmp.lt.s32.totalorder %s19, 1
      %s198 = scalar_select %p197, %s19, 1
      %p199 = scmp.lt.s32.totalorder %s196, 1
      %s200 = scalar_select %p199, %s196, 1
      %s201 = smul.addr %s198, 2
      %s202 = sadd.s32 %s200, %s201
      %s203 = scalar_lea.vmem %s1, %s202
      %p204 = pneg %p78
      %p205 = pneg %p75
      %p206 = pneg %p106
      %p207 = pneg %p103
      %s208 = sadd.s32 %s19, %s20
      %s209 = smul.u32 2, %s208
      %p210 = scmp.lt.s32.totalorder %s209, 3
      %s211 = scalar_select %p210, %s209, 3
      %s212 = smul.addr %s211, 4
      %s213 = scalar_lea.vmem %s2, %s212
      %p214 = pneg %p134
      %p215 = pneg %p131
      %s216 = sadd.s32 %s19, %s20
      %s217 = smul.u32 2, %s216
      %p218 = scmp.lt.s32.totalorder %s217, 3
      %s219 = scalar_select %p218, %s217, 3
      %s220 = scalar_lea.vmem %s3, %s219
      %s221 = smul.u32 2, %s20
      %p222 = scmp.lt.s32.totalorder %s19, 1
      %s223 = scalar_select %p222, %s19, 1
      %p224 = scmp.lt.s32.totalorder %s221, 1
      %s225 = scalar_select %p224, %s221, 1
      %s226 = smul.addr %s223, 2
      %s227 = sadd.s32 %s225, %s226
      %s228 = smul.addr %s227, 4
      %s229 = scalar_lea.vmem %s0, %s228
      %s230 = smul.u32 2, %s20
      %s231 = smul.u32 2, %s20
      %p232 = scmp.lt.s32.totalorder %s19, 1
      %s233 = scalar_select %p232, %s19, 1
      %p234 = scmp.lt.s32.totalorder %s231, 1
      %s235 = scalar_select %p234, %s231, 1
      %s236 = smul.addr %s233, 2
      %s237 = sadd.s32 %s235, %s236
      %s238 = scalar_lea.vmem %s1, %s237
      %s239 = smul.u32 2, %s20
      %s240 = sadd.s32 %s19, %s20
      %s241 = smul.u32 2, %s240
      %p242 = scmp.lt.s32.totalorder %s241, 3
      %s243 = scalar_select %p242, %s241, 3
      %s244 = smul.addr %s243, 4
      %s245 = scalar_lea.vmem %s2, %s244
      %s246 = sadd.s32 %s19, %s20
      %s247 = smul.u32 2, %s246
      %s248 = sadd.s32 %s19, %s20
      %s249 = smul.u32 2, %s248
      %p250 = scmp.lt.s32.totalorder %s249, 3
      %s251 = scalar_select %p250, %s249, 3
      %s252 = scalar_lea.vmem %s3, %s251
      %s253 = sadd.s32 %s19, %s20
      %s254 = smul.u32 2, %s253
      %v257 = vld [vmem:[%s229] sm:$0xff]
      %v258 = vld [vmem:[%s238] sm:$0x3]
      %v260 = vcombine.high %v257, %v257
      %vm262 = vcmask 1043456
      %v263 = vsel %vm262, %v257, -inf
      %v264 = vrot.slane %v263, 4
      %v265 = vmax.f32 %v263, %v264
      %v266 = vrot.slane %v265, 2
      %v267 = vmax.f32 %v265, %v266
      %v268 = vrot.slane %v267, 1
      %v269 = vmax.f32 %v267, %v268
      %v270 = vsel %vm262, %v260, -inf
      %v271 = vrot.slane %v270, 4
      %v272 = vmax.f32 %v270, %v271
      %v273 = vrot.slane %v272, 2
      %v274 = vmax.f32 %v272, %v273
      %v275 = vrot.slane %v274, 1
      %v276 = vmax.f32 %v274, %v275
      %v279 = vcombine.low %v269, %v276
      %v281 = vsub.f32 %v257, %v279
      %v282 = vmul.f32 %v281, 1.442695
      %v283 = vpow.pop %v282
      %v285 = vcombine.high %v283, %v283
      %v287 = vsel %vm262, %v283, 0.0
      %v288 = vrot.slane %v287, 4
      %v289 = vadd.f32 %v287, %v288
      %v290 = vrot.slane %v289, 2
      %v291 = vadd.f32 %v289, %v290
      %v292 = vrot.slane %v291, 1
      %v293 = vadd.f32 %v291, %v292
      %v294 = vsel %vm262, %v285, 0.0
      %v295 = vrot.slane %v294, 4
      %v296 = vadd.f32 %v294, %v295
      %v297 = vrot.slane %v296, 2
      %v298 = vadd.f32 %v296, %v297
      %v299 = vrot.slane %v298, 1
      %v300 = vadd.f32 %v298, %v299
      %v303 = vcombine.low %v293, %v300
      %v305 = vrcp.pop %v303
      %v306 = vmul.f32 %v283, %v305
      %v307 = vlaneseq
      %v308 = vshrl.u32 %v307, 7
      %vm309 = vcmp.ge.s32.totalorder %v258, 0
      %v310 = vlaneseq
      %v311 = vshrl.u32 %v310, 7
      %v312 = vsub.s32 0, %v311
      %v313 = vrot.slane %v258, %v312
      %v314 = vlaneseq
      %v315 = vshrl.u32 %v314, 7
      %v316 = vsub.s32 1, %v315
      %v317 = vrot.slane %v258, %v316
      %vm318 = vcmp.eq.s32.totalorder %v313, %v308
      %vm319 = vcmp.eq.s32.totalorder %v317, %v308
      %v320 = vsel %vm309, 1, 0
      %v321 = vlaneseq
      %v322 = vshrl.u32 %v321, 7
      %v323 = vsub.s32 0, %v322
      %v324 = vrot.slane %v320, %v323
      %v325 = vlaneseq
      %v326 = vshrl.u32 %v325, 7
      %v327 = vsub.s32 1, %v326
      %v328 = vrot.slane %v320, %v327
      %vm329 = vcmp.eq.s32.totalorder %v324, 1
      %vm330 = vcmp.eq.s32.totalorder %v328, 1
      %vm331 = vmand %vm318, %vm329
      %vm332 = vmand %vm319, %vm330
      %v333 = vsel %vm331, 1, 0
      %v334 = vsel %vm332, 1, 0
      %v335 = vcvt.s32.f32 %v333
      %v336 = vcvt.s32.f32 %v334
      %v338 = vcombine.high %v306, %v306
      %v340 = vsub.f32 %v335, %v306
      %v341 = vsub.f32 %v336, %v338
      %v342 = vand.u32 2147483647, %v340
      %v343 = vand.u32 2147483647, %v341
      %v344 = vsub.f32 0.0, %v342
      %v345 = vsub.f32 0.0, %v343
      %v346 = vsel %vm329, %v344, 0.0
      %v347 = vsel %vm330, %v345, 0.0
      %v350 = vcombine.low %v346, %v347
      %352 = vst [vmem:[%s245] sm:$0xff] %v350
      %vm353 = vmpackc.low %vm331, %vm331
      %vm354 = vmpackc.even %vm353, %vm353
      %vm355 = vmpackc.low %vm332, %vm332
      %vm356 = vmpackc.even %vm355, %vm355
      %v357 = vsel %vm354, 16843009, 0
      %v358 = vsel %vm356, 16843009, 0
      %v359 = vcombine.low %v357, %v358
      %v361 = vunpack.c.l.s4 1966171168
      %v362 = vunpack.c.0.s8 %v361
      %v363 = vlaneseq
      %v364 = vshrl.u32 %v363, 7
      %v365 = vsub.s32 %v362, %v364
      %v366 = vrot.slane %v359, %v365
      %v368 = vunpack.c.l.s4 1966171168
      %v369 = vunpack.c.0.s8 %v368
      %v370 = vlaneseq
      %v371 = vshrl.u32 %v370, 7
      %v372 = vsub.s32 %v369, %v371
      %v373 = vrot.slane %v366, %v372
      %374 = vst [vmem:[%s252] sm:$0x3] %v373
      %s375 = sadd.s32 %s19, %s20
      %s376 = smul.u32 2, %s375
      %p377 = scmp.lt.s32.totalorder %s376, 3
      %s378 = scalar_select %p377, %s376, 3
      %s379 = smul.addr %s378, 4
      %s380 = scalar_lea.vmem %s2, %s379
      %s381 = sadd.s32 %s19, %s20
      %s382 = smul.u32 2, %s381
      %p383 = scmp.lt.s32.totalorder %s382, 3
      %s384 = scalar_select %p383, %s382, 3
      %s385 = scalar_lea.vmem %s3, %s384
      // Predicated region
      $region29: #{lovasz_softmax_with_logit.2} parent=27 // pred_check
        %p386 = pneg %p103
      $region30: #{lovasz_softmax_with_logit.2} parent=27 // pred_check_branch
        %388 = sbr.rel (%p386) target = $region32
      $region31: #{lovasz_softmax_with_logit.2} parent=27 // pred_region
        %s389 = sadd.s32 %s19, %s20
        %s390 = smul.u32 2, %s389
      $region32: #{lovasz_softmax_with_logit.2} parent=27 // pred_fallthru
        _
      // Predicated region
      $region33: #{lovasz_softmax_with_logit.2} parent=27 // pred_check
        %p391 = pneg %p131
      $region34: #{lovasz_softmax_with_logit.2} parent=27 // pred_check_branch
        %393 = sbr.rel (%p391) target = $region36
      $region35: #{lovasz_softmax_with_logit.2} parent=27 // pred_region
        %s394 = sadd.s32 %s19, %s20
        %s395 = smul.u32 2, %s394
      $region36: #{lovasz_softmax_with_logit.2} parent=27 // pred_fallthru
        _
    $region28: #{lovasz_softmax_with_logit.2} parent=5 // pred_fallthru
      _
    %p396 = scmp.le.s32.totalorder 2, %s10
    // Predicated region
    $region37: #{lovasz_softmax_with_logit.2} parent=5 // pred_check
      %p397 = pneg %p396
    $region38: #{lovasz_softmax_with_logit.2} parent=5 // pred_check_branch
      %399 = sbr.rel (%p397) target = $region40
    $region39: #{lovasz_softmax_with_logit.2} parent=5 // pred_region
      %s400 = ssub.s32 %s10, 2
      // Predicated region
      $region41: #{lovasz_softmax_with_logit.2} parent=39 // pred_check
        %p401 = pneg %p109
      $region42: #{lovasz_softmax_with_logit.2} parent=39 // pred_check_branch
        %403 = sbr.rel (%p401) target = $region44
      $region43: #{lovasz_softmax_with_logit.2} parent=39 // pred_region
        %s404 = sadd.s32 %s21, %s22
        %s405 = smul.u32 2, %s404
        %p406 = scmp.lt.s32.totalorder %s405, 3
        %s407 = scalar_select %p406, %s405, 3
        %s408 = smul.addr %s407, 4
        %s409 = scalar_lea.vmem %s2, %s408
      $region44: #{lovasz_softmax_with_logit.2} parent=39 // pred_fallthru
        _
      // Predicated region
      $region45: #{lovasz_softmax_with_logit.2} parent=39 // pred_check
        %p410 = pneg %p137
      $region46: #{lovasz_softmax_with_logit.2} parent=39 // pred_check_branch
        %412 = sbr.rel (%p410) target = $region48
      $region47: #{lovasz_softmax_with_logit.2} parent=39 // pred_region
        %s413 = sadd.s32 %s21, %s22
        %s414 = smul.u32 2, %s413
        %p415 = scmp.lt.s32.totalorder %s414, 3
        %s416 = scalar_select %p415, %s414, 3
        %s417 = scalar_lea.vmem %s3, %s416
      $region48: #{lovasz_softmax_with_logit.2} parent=39 // pred_fallthru
        _
    $region40: #{lovasz_softmax_with_logit.2} parent=5 // pred_fallthru
      _
  $region6: #{lovasz_softmax_with_logit.2} parent=0 // loop_footer
    %s14 = sadd.s32 1, %s10
  $region7: #{lovasz_softmax_with_logit.2} parent=0 // loop_footer_branch
    %9 = sbr.rel target = $region3
  $region8: #{lovasz_softmax_with_logit.2} parent=0 // loop_exit
    _

// kernel: lovasz_softmax_with_logit.3
$region0: #{lovasz_softmax_with_logit.3}
  #allocation0 [shape = 'u32[]', space=smem, size = 0x4, offset = 0x4, fixed_abs, tag = 'smem constant byte address 0x4 - core index']
  #allocation1 [shape = 'u32[144,128]{1,0:T(1,128)}', space=vmem, size = 0x12000, scoped, tag = 'internal scratch']
  #allocation2 [shape = 'bf16[256,256]{1,0:T(8,128)(2,1)}', space=vmem, size = 0x20000, scoped, tag = 'scratch operand']
  #allocation3 [shape = 'f32[4,1]{1,0:T(4,128)}', space=vmem, size = 0x800, scoped, tag = 'scratch operand']
  #allocation4 [shape = 'f32[4,1]{1,0:T(4,128)}', space=vmem, size = 0x800, scoped, tag = 'scratch operand']
  %s0 = inlined_call_operand.vmem [shape: f32[4,1], index: 0, kind: input, shape index: {}]
  %s1 = inlined_call_operand.vmem [shape: f32[4,8192], index: 1, kind: input, shape index: {}]
  %s2 = inlined_call_operand.vmem [shape: s8[4,8192], index: 2, kind: input, shape index: {}]
  %s3 = inlined_call_operand.hbm [shape: f32[1,1], index: 3, kind: output, shape index: {}]
  %s4 = sld [smem:[#allocation0]]
  $region30: #{lovasz_softmax_with_logit.3} parent=0
    _
  %s6 = ssub.s32 1, %s4
  %s7 = scalar_select 0, %s6, %s4
  $region1: #{lovasz_softmax_with_logit.3} parent=0
    #allocation5 [shape = 'u8[512]{0}', space=vmem, size = 0x400, scoped, tag = 'output window, operand 0, single buffered']
    #allocation6 [shape = 's32[1]{0}', space=sflag, size = 0x4, scoped, tag = 'scoped memory for lovasz_softmax_with_logit.3']
    %8 = vsyncpa [#allocation6], 0
    // Predicated region
    $region2: #{lovasz_softmax_with_logit.3} parent=1 // pred_check
      _
    $region3: #{lovasz_softmax_with_logit.3} parent=1 // pred_check_branch
      %10 = sbr.rel (0) target = $region5
    $region4: #{lovasz_softmax_with_logit.3} parent=1 // pred_region
      _
    $region5: #{lovasz_softmax_with_logit.3} parent=1 // pred_fallthru
      _
    // Predicated region
    $region6: #{lovasz_softmax_with_logit.3} parent=1 // pred_check
      _
    $region7: #{lovasz_softmax_with_logit.3} parent=1 // pred_check_branch
      %12 = sbr.rel (0) target = $region9
    $region8: #{lovasz_softmax_with_logit.3} parent=1 // pred_region
      _
    $region9: #{lovasz_softmax_with_logit.3} parent=1 // pred_fallthru
      _
    // Predicated region
    $region10: #{lovasz_softmax_with_logit.3} parent=1 // pred_check
      _
    $region11: #{lovasz_softmax_with_logit.3} parent=1 // pred_check_branch
      %14 = sbr.rel (0) target = $region13
    $region12: #{lovasz_softmax_with_logit.3} parent=1 // pred_region
      _
    $region13: #{lovasz_softmax_with_logit.3} parent=1 // pred_fallthru
      _
    %p15 = scmp.eq.s32.totalorder 0, 0
    // Predicated region
    $region14: #{lovasz_softmax_with_logit.3} parent=1 // pred_check
      %p16 = pneg %p15
    $region15: #{lovasz_softmax_with_logit.3} parent=1 // pred_check_branch
      %18 = sbr.rel (%p16) target = $region17
    $region16: #{lovasz_softmax_with_logit.3} parent=1 // pred_region
      %v19 = vlaneseq
      %v20 = vshrl.u32 %v19, 7
      %v21 = vadd.s32 %v20, 8
      %v22 = vadd.s32 %v20, 16
      %v23 = vadd.s32 %v20, 24
      %v24 = vadd.s32 %v20, 32
      %v25 = vadd.s32 %v20, 40
      %v26 = vadd.s32 %v20, 48
      %v27 = vadd.s32 %v20, 56
      %v28 = vadd.s32 %v20, 64
      %v29 = vadd.s32 %v20, 72
      %v30 = vadd.s32 %v20, 80
      %v31 = vadd.s32 %v20, 88
      %v32 = vadd.s32 %v20, 96
      %v33 = vadd.s32 %v20, 104
      %v34 = vadd.s32 %v20, 112
      %v35 = vadd.s32 %v20, 120
      %v36 = vadd.s32 %v20, 128
      %v37 = vadd.s32 %v20, 136
      %v38 = vadd.s32 %v20, 144
      %v39 = vadd.s32 %v20, 152
      %v40 = vadd.s32 %v20, 160
      %v41 = vadd.s32 %v20, 168
      %v42 = vadd.s32 %v20, 176
      %v43 = vadd.s32 %v20, 184
      %v44 = vadd.s32 %v20, 192
      %v45 = vadd.s32 %v20, 200
      %v46 = vadd.s32 %v20, 208
      %v47 = vadd.s32 %v20, 216
      %v48 = vadd.s32 %v20, 224
      %v49 = vadd.s32 %v20, 232
      %v50 = vadd.s32 %v20, 240
      %v51 = vadd.s32 %v20, 248
      %v52 = vlaneseq
      %v53 = vand.u32 %v52, 127
      %v54 = vadd.s32 %v53, 128
      %vm55 = vcmp.le.s32.totalorder %v20, %v53
      %vm56 = vcmp.le.s32.totalorder %v20, %v54
      %vm57 = vcmp.le.s32.totalorder %v21, %v53
      %vm58 = vcmp.le.s32.totalorder %v21, %v54
      %vm59 = vcmp.le.s32.totalorder %v22, %v53
      %vm60 = vcmp.le.s32.totalorder %v22, %v54
      %vm61 = vcmp.le.s32.totalorder %v23, %v53
      %vm62 = vcmp.le.s32.totalorder %v23, %v54
      %vm63 = vcmp.le.s32.totalorder %v24, %v53
      %vm64 = vcmp.le.s32.totalorder %v24, %v54
      %vm65 = vcmp.le.s32.totalorder %v25, %v53
      %vm66 = vcmp.le.s32.totalorder %v25, %v54
      %vm67 = vcmp.le.s32.totalorder %v26, %v53
      %vm68 = vcmp.le.s32.totalorder %v26, %v54
      %vm69 = vcmp.le.s32.totalorder %v27, %v53
      %vm70 = vcmp.le.s32.totalorder %v27, %v54
      %vm71 = vcmp.le.s32.totalorder %v28, %v53
      %vm72 = vcmp.le.s32.totalorder %v28, %v54
      %vm73 = vcmp.le.s32.totalorder %v29, %v53
      %vm74 = vcmp.le.s32.totalorder %v29, %v54
      %vm75 = vcmp.le.s32.totalorder %v30, %v53
      %vm76 = vcmp.le.s32.totalorder %v30, %v54
      %vm77 = vcmp.le.s32.totalorder %v31, %v53
      %vm78 = vcmp.le.s32.totalorder %v31, %v54
      %vm79 = vcmp.le.s32.totalorder %v32, %v53
      %vm80 = vcmp.le.s32.totalorder %v32, %v54
      %vm81 = vcmp.le.s32.totalorder %v33, %v53
      %vm82 = vcmp.le.s32.totalorder %v33, %v54
      %vm83 = vcmp.le.s32.totalorder %v34, %v53
      %vm84 = vcmp.le.s32.totalorder %v34, %v54
      %vm85 = vcmp.le.s32.totalorder %v35, %v53
      %vm86 = vcmp.le.s32.totalorder %v35, %v54
      %vm87 = vcmp.le.s32.totalorder %v36, %v53
      %vm88 = vcmp.le.s32.totalorder %v36, %v54
      %vm89 = vcmp.le.s32.totalorder %v37, %v53
      %vm90 = vcmp.le.s32.totalorder %v37, %v54
      %vm91 = vcmp.le.s32.totalorder %v38, %v53
      %vm92 = vcmp.le.s32.totalorder %v38, %v54
      %vm93 = vcmp.le.s32.totalorder %v39, %v53
      %vm94 = vcmp.le.s32.totalorder %v39, %v54
      %vm95 = vcmp.le.s32.totalorder %v40, %v53
      %vm96 = vcmp.le.s32.totalorder %v40, %v54
      %vm97 = vcmp.le.s32.totalorder %v41, %v53
      %vm98 = vcmp.le.s32.totalorder %v41, %v54
      %vm99 = vcmp.le.s32.totalorder %v42, %v53
      %vm100 = vcmp.le.s32.totalorder %v42, %v54
      %vm101 = vcmp.le.s32.totalorder %v43, %v53
      %vm102 = vcmp.le.s32.totalorder %v43, %v54
      %vm103 = vcmp.le.s32.totalorder %v44, %v53
      %vm104 = vcmp.le.s32.totalorder %v44, %v54
      %vm105 = vcmp.le.s32.totalorder %v45, %v53
      %vm106 = vcmp.le.s32.totalorder %v45, %v54
      %vm107 = vcmp.le.s32.totalorder %v46, %v53
      %vm108 = vcmp.le.s32.totalorder %v46, %v54
      %vm109 = vcmp.le.s32.totalorder %v47, %v53
      %vm110 = vcmp.le.s32.totalorder %v47, %v54
      %vm111 = vcmp.le.s32.totalorder %v48, %v53
      %vm112 = vcmp.le.s32.totalorder %v48, %v54
      %vm113 = vcmp.le.s32.totalorder %v49, %v53
      %vm114 = vcmp.le.s32.totalorder %v49, %v54
      %vm115 = vcmp.le.s32.totalorder %v50, %v53
      %vm116 = vcmp.le.s32.totalorder %v50, %v54
      %vm117 = vcmp.le.s32.totalorder %v51, %v53
      %vm118 = vcmp.le.s32.totalorder %v51, %v54
      %v119 = vsel %vm55, 1, 0
      %v120 = vsel %vm56, 1, 0
      %v121 = vsel %vm57, 1, 0
      %v122 = vsel %vm58, 1, 0
      %v123 = vsel %vm59, 1, 0
      %v124 = vsel %vm60, 1, 0
      %v125 = vsel %vm61, 1, 0
      %v126 = vsel %vm62, 1, 0
      %v127 = vsel %vm63, 1, 0
      %v128 = vsel %vm64, 1, 0
      %v129 = vsel %vm65, 1, 0
      %v130 = vsel %vm66, 1, 0
      %v131 = vsel %vm67, 1, 0
      %v132 = vsel %vm68, 1, 0
      %v133 = vsel %vm69, 1, 0
      %v134 = vsel %vm70, 1, 0
      %v135 = vsel %vm71, 1, 0
      %v136 = vsel %vm72, 1, 0
      %v137 = vsel %vm73, 1, 0
      %v138 = vsel %vm74, 1, 0
      %v139 = vsel %vm75, 1, 0
      %v140 = vsel %vm76, 1, 0
      %v141 = vsel %vm77, 1, 0
      %v142 = vsel %vm78, 1, 0
      %v143 = vsel %vm79, 1, 0
      %v144 = vsel %vm80, 1, 0
      %v145 = vsel %vm81, 1, 0
      %v146 = vsel %vm82, 1, 0
      %v147 = vsel %vm83, 1, 0
      %v148 = vsel %vm84, 1, 0
      %v149 = vsel %vm85, 1, 0
      %v150 = vsel %vm86, 1, 0
      %v151 = vsel %vm87, 1, 0
      %v152 = vsel %vm88, 1, 0
      %v153 = vsel %vm89, 1, 0
      %v154 = vsel %vm90, 1, 0
      %v155 = vsel %vm91, 1, 0
      %v156 = vsel %vm92, 1, 0
      %v157 = vsel %vm93, 1, 0
      %v158 = vsel %vm94, 1, 0
      %v159 = vsel %vm95, 1, 0
      %v160 = vsel %vm96, 1, 0
      %v161 = vsel %vm97, 1, 0
      %v162 = vsel %vm98, 1, 0
      %v163 = vsel %vm99, 1, 0
      %v164 = vsel %vm100, 1, 0
      %v165 = vsel %vm101, 1, 0
      %v166 = vsel %vm102, 1, 0
      %v167 = vsel %vm103, 1, 0
      %v168 = vsel %vm104, 1, 0
      %v169 = vsel %vm105, 1, 0
      %v170 = vsel %vm106, 1, 0
      %v171 = vsel %vm107, 1, 0
      %v172 = vsel %vm108, 1, 0
      %v173 = vsel %vm109, 1, 0
      %v174 = vsel %vm110, 1, 0
      %v175 = vsel %vm111, 1, 0
      %v176 = vsel %vm112, 1, 0
      %v177 = vsel %vm113, 1, 0
      %v178 = vsel %vm114, 1, 0
      %v179 = vsel %vm115, 1, 0
      %v180 = vsel %vm116, 1, 0
      %v181 = vsel %vm117, 1, 0
      %v182 = vsel %vm118, 1, 0
      %v183 = vcvt.s32.f32 %v119
      %v184 = vcvt.s32.f32 %v120
      %v185 = vcvt.s32.f32 %v121
      %v186 = vcvt.s32.f32 %v122
      %v187 = vcvt.s32.f32 %v123
      %v188 = vcvt.s32.f32 %v124
      %v189 = vcvt.s32.f32 %v125
      %v190 = vcvt.s32.f32 %v126
      %v191 = vcvt.s32.f32 %v127
      %v192 = vcvt.s32.f32 %v128
      %v193 = vcvt.s32.f32 %v129
      %v194 = vcvt.s32.f32 %v130
      %v195 = vcvt.s32.f32 %v131
      %v196 = vcvt.s32.f32 %v132
      %v197 = vcvt.s32.f32 %v133
      %v198 = vcvt.s32.f32 %v134
      %v199 = vcvt.s32.f32 %v135
      %v200 = vcvt.s32.f32 %v136
      %v201 = vcvt.s32.f32 %v137
      %v202 = vcvt.s32.f32 %v138
      %v203 = vcvt.s32.f32 %v139
      %v204 = vcvt.s32.f32 %v140
      %v205 = vcvt.s32.f32 %v141
      %v206 = vcvt.s32.f32 %v142
      %v207 = vcvt.s32.f32 %v143
      %v208 = vcvt.s32.f32 %v144
      %v209 = vcvt.s32.f32 %v145
      %v210 = vcvt.s32.f32 %v146
      %v211 = vcvt.s32.f32 %v147
      %v212 = vcvt.s32.f32 %v148
      %v213 = vcvt.s32.f32 %v149
      %v214 = vcvt.s32.f32 %v150
      %v215 = vcvt.s32.f32 %v151
      %v216 = vcvt.s32.f32 %v152
      %v217 = vcvt.s32.f32 %v153
      %v218 = vcvt.s32.f32 %v154
      %v219 = vcvt.s32.f32 %v155
      %v220 = vcvt.s32.f32 %v156
      %v221 = vcvt.s32.f32 %v157
      %v222 = vcvt.s32.f32 %v158
      %v223 = vcvt.s32.f32 %v159
      %v224 = vcvt.s32.f32 %v160
      %v225 = vcvt.s32.f32 %v161
      %v226 = vcvt.s32.f32 %v162
      %v227 = vcvt.s32.f32 %v163
      %v228 = vcvt.s32.f32 %v164
      %v229 = vcvt.s32.f32 %v165
      %v230 = vcvt.s32.f32 %v166
      %v231 = vcvt.s32.f32 %v167
      %v232 = vcvt.s32.f32 %v168
      %v233 = vcvt.s32.f32 %v169
      %v234 = vcvt.s32.f32 %v170
      %v235 = vcvt.s32.f32 %v171
      %v236 = vcvt.s32.f32 %v172
      %v237 = vcvt.s32.f32 %v173
      %v238 = vcvt.s32.f32 %v174
      %v239 = vcvt.s32.f32 %v175
      %v240 = vcvt.s32.f32 %v176
      %v241 = vcvt.s32.f32 %v177
      %v242 = vcvt.s32.f32 %v178
      %v243 = vcvt.s32.f32 %v179
      %v244 = vcvt.s32.f32 %v180
      %v245 = vcvt.s32.f32 %v181
      %v246 = vcvt.s32.f32 %v182
      %v247 = vpack.c.bf16 %v185, %v183
      %v248 = vpack.c.bf16 %v186, %v184
      %v249 = vpack.c.bf16 %v189, %v187
      %v250 = vpack.c.bf16 %v190, %v188
      %v251 = vpack.c.bf16 %v193, %v191
      %v252 = vpack.c.bf16 %v194, %v192
      %v253 = vpack.c.bf16 %v197, %v195
      %v254 = vpack.c.bf16 %v198, %v196
      %v255 = vpack.c.bf16 %v201, %v199
      %v256 = vpack.c.bf16 %v202, %v200
      %v257 = vpack.c.bf16 %v205, %v203
      %v258 = vpack.c.bf16 %v206, %v204
      %v259 = vpack.c.bf16 %v209, %v207
      %v260 = vpack.c.bf16 %v210, %v208
      %v261 = vpack.c.bf16 %v213, %v211
      %v262 = vpack.c.bf16 %v214, %v212
      %v263 = vpack.c.bf16 %v217, %v215
      %v264 = vpack.c.bf16 %v218, %v216
      %v265 = vpack.c.bf16 %v221, %v219
      %v266 = vpack.c.bf16 %v222, %v220
      %v267 = vpack.c.bf16 %v225, %v223
      %v268 = vpack.c.bf16 %v226, %v224
      %v269 = vpack.c.bf16 %v229, %v227
      %v270 = vpack.c.bf16 %v230, %v228
      %v271 = vpack.c.bf16 %v233, %v231
      %v272 = vpack.c.bf16 %v234, %v232
      %v273 = vpack.c.bf16 %v237, %v235
      %v274 = vpack.c.bf16 %v238, %v236
      %v275 = vpack.c.bf16 %v241, %v239
      %v276 = vpack.c.bf16 %v242, %v240
      %v277 = vpack.c.bf16 %v245, %v243
      %v278 = vpack.c.bf16 %v246, %v244
      %v311 = vunpack.c.l.b16 %v247
      %v312 = vunpack.c.l.b16 %v248
      %v313 = vunpack.c.h.b16 %v247
      %v314 = vunpack.c.h.b16 %v248
      %v315 = vunpack.c.l.b16 %v249
      %v316 = vunpack.c.l.b16 %v250
      %v317 = vunpack.c.h.b16 %v249
      %v318 = vunpack.c.h.b16 %v250
      %v319 = vunpack.c.l.b16 %v251
      %v320 = vunpack.c.l.b16 %v252
      %v321 = vunpack.c.h.b16 %v251
      %v322 = vunpack.c.h.b16 %v252
      %v323 = vunpack.c.l.b16 %v253
      %v324 = vunpack.c.l.b16 %v254
      %v325 = vunpack.c.h.b16 %v253
      %v326 = vunpack.c.h.b16 %v254
      %v327 = vunpack.c.l.b16 %v255
      %v328 = vunpack.c.l.b16 %v256
      %v329 = vunpack.c.h.b16 %v255
      %v330 = vunpack.c.h.b16 %v256
      %v331 = vunpack.c.l.b16 %v257
      %v332 = vunpack.c.l.b16 %v258
      %v333 = vunpack.c.h.b16 %v257
      %v334 = vunpack.c.h.b16 %v258
      %v335 = vunpack.c.l.b16 %v259
      %v336 = vunpack.c.l.b16 %v260
      %v337 = vunpack.c.h.b16 %v259
      %v338 = vunpack.c.h.b16 %v260
      %v339 = vunpack.c.l.b16 %v261
      %v340 = vunpack.c.l.b16 %v262
      %v341 = vunpack.c.h.b16 %v261
      %v342 = vunpack.c.h.b16 %v262
      %v343 = vunpack.c.l.b16 %v263
      %v344 = vunpack.c.l.b16 %v264
      %v345 = vunpack.c.h.b16 %v263
      %v346 = vunpack.c.h.b16 %v264
      %v347 = vunpack.c.l.b16 %v265
      %v348 = vunpack.c.l.b16 %v266
      %v349 = vunpack.c.h.b16 %v265
      %v350 = vunpack.c.h.b16 %v266
      %v351 = vunpack.c.l.b16 %v267
      %v352 = vunpack.c.l.b16 %v268
      %v353 = vunpack.c.h.b16 %v267
      %v354 = vunpack.c.h.b16 %v268
      %v355 = vunpack.c.l.b16 %v269
      %v356 = vunpack.c.l.b16 %v270
      %v357 = vunpack.c.h.b16 %v269
      %v358 = vunpack.c.h.b16 %v270
      %v359 = vunpack.c.l.b16 %v271
      %v360 = vunpack.c.l.b16 %v272
      %v361 = vunpack.c.h.b16 %v271
      %v362 = vunpack.c.h.b16 %v272
      %v363 = vunpack.c.l.b16 %v273
      %v364 = vunpack.c.l.b16 %v274
      %v365 = vunpack.c.h.b16 %v273
      %v366 = vunpack.c.h.b16 %v274
      %v367 = vunpack.c.l.b16 %v275
      %v368 = vunpack.c.l.b16 %v276
      %v369 = vunpack.c.h.b16 %v275
      %v370 = vunpack.c.h.b16 %v276
      %v371 = vunpack.c.l.b16 %v277
      %v372 = vunpack.c.l.b16 %v278
      %v373 = vunpack.c.h.b16 %v277
      %v374 = vunpack.c.h.b16 %v278
      %v375 = vpack.c.b16 %v312, %v311
      %v376 = vpack.c.b16 %v314, %v313
      %v377 = vpack.c.b16 %v316, %v315
      %v378 = vpack.c.b16 %v318, %v317
      %v379 = vpack.c.b16 %v320, %v319
      %v380 = vpack.c.b16 %v322, %v321
      %v381 = vpack.c.b16 %v324, %v323
      %v382 = vpack.c.b16 %v326, %v325
      %v383 = vpack.c.b16 %v328, %v327
      %v384 = vpack.c.b16 %v330, %v329
      %v385 = vpack.c.b16 %v332, %v331
      %v386 = vpack.c.b16 %v334, %v333
      %v387 = vpack.c.b16 %v336, %v335
      %v388 = vpack.c.b16 %v338, %v337
      %v389 = vpack.c.b16 %v340, %v339
      %v390 = vpack.c.b16 %v342, %v341
      %v391 = vpack.c.b16 %v344, %v343
      %v392 = vpack.c.b16 %v346, %v345
      %v393 = vpack.c.b16 %v348, %v347
      %v394 = vpack.c.b16 %v350, %v349
      %v395 = vpack.c.b16 %v352, %v351
      %v396 = vpack.c.b16 %v354, %v353
      %v397 = vpack.c.b16 %v356, %v355
      %v398 = vpack.c.b16 %v358, %v357
      %v399 = vpack.c.b16 %v360, %v359
      %v400 = vpack.c.b16 %v362, %v361
      %v401 = vpack.c.b16 %v364, %v363
      %v402 = vpack.c.b16 %v366, %v365
      %v403 = vpack.c.b16 %v368, %v367
      %v404 = vpack.c.b16 %v370, %v369
      %v405 = vpack.c.b16 %v372, %v371
      %v406 = vpack.c.b16 %v374, %v373
      %439 = vst [vmem:[#allocation2] sm:$0xff] %v375
      %440 = vst [vmem:[#allocation2 + $0x8] sm:$0xff] %v376
      %441 = vst [vmem:[#allocation2 + $0x10] sm:$0xff] %v377
      %442 = vst [vmem:[#allocation2 + $0x18] sm:$0xff] %v378
      %443 = vst [vmem:[#allocation2 + $0x20] sm:$0xff] %v379
      %444 = vst [vmem:[#allocation2 + $0x28] sm:$0xff] %v380
      %445 = vst [vmem:[#allocation2 + $0x30] sm:$0xff] %v381
      %446 = vst [vmem:[#allocation2 + $0x38] sm:$0xff] %v382
      %447 = vst [vmem:[#allocation2 + $0x40] sm:$0xff] %v383
      %448 = vst [vmem:[#allocation2 + $0x48] sm:$0xff] %v384
      %449 = vst [vmem:[#allocation2 + $0x50] sm:$0xff] %v385
      %450 = vst [vmem:[#allocation2 + $0x58] sm:$0xff] %v386
      %451 = vst [vmem:[#allocation2 + $0x60] sm:$0xff] %v387
      %452 = vst [vmem:[#allocation2 + $0x68] sm:$0xff] %v388
      %453 = vst [vmem:[#allocation2 + $0x70] sm:$0xff] %v389
      %454 = vst [vmem:[#allocation2 + $0x78] sm:$0xff] %v390
      %455 = vst [vmem:[#allocation2 + $0x80] sm:$0xff] %v391
      %456 = vst [vmem:[#allocation2 + $0x88] sm:$0xff] %v392
      %457 = vst [vmem:[#allocation2 + $0x90] sm:$0xff] %v393
      %458 = vst [vmem:[#allocation2 + $0x98] sm:$0xff] %v394
      %459 = vst [vmem:[#allocation2 + $0xa0] sm:$0xff] %v395
      %460 = vst [vmem:[#allocation2 + $0xa8] sm:$0xff] %v396
      %461 = vst [vmem:[#allocation2 + $0xb0] sm:$0xff] %v397
      %462 = vst [vmem:[#allocation2 + $0xb8] sm:$0xff] %v398
      %463 = vst [vmem:[#allocation2 + $0xc0] sm:$0xff] %v399
      %464 = vst [vmem:[#allocation2 + $0xc8] sm:$0xff] %v400
      %465 = vst [vmem:[#allocation2 + $0xd0] sm:$0xff] %v401
      %466 = vst [vmem:[#allocation2 + $0xd8] sm:$0xff] %v402
      %467 = vst [vmem:[#allocation2 + $0xe0] sm:$0xff] %v403
      %468 = vst [vmem:[#allocation2 + $0xe8] sm:$0xff] %v404
      %469 = vst [vmem:[#allocation2 + $0xf0] sm:$0xff] %v405
      %470 = vst [vmem:[#allocation2 + $0xf8] sm:$0xff] %v406
      %vm471 = vcmask 3072
      %472 = vst.msk [vmem:[#allocation3] sm:$0xf] %vm471, 0.0
      %473 = vst.msk [vmem:[#allocation4] sm:$0xf] %vm471, 0.0
    $region17: #{lovasz_softmax_with_logit.3} parent=1 // pred_fallthru
      _
    %v474 = vld [vmem:[%s0] sm:$0xf]
    %v475 = vld [vmem:[#allocation2] sm:$0xff]
    %v476 = vld [vmem:[#allocation2 + $0x8] sm:$0xff]
    %v477 = vld [vmem:[#allocation2 + $0x10] sm:$0xff]
    %v478 = vld [vmem:[#allocation2 + $0x18] sm:$0xff]
    %v479 = vld [vmem:[#allocation2 + $0x20] sm:$0xff]
    %v480 = vld [vmem:[#allocation2 + $0x28] sm:$0xff]
    %v481 = vld [vmem:[#allocation2 + $0x30] sm:$0xff]
    %v482 = vld [vmem:[#allocation2 + $0x38] sm:$0xff]
    %v483 = vld [vmem:[#allocation2 + $0x40] sm:$0xff]
    %v484 = vld [vmem:[#allocation2 + $0x48] sm:$0xff]
    %v485 = vld [vmem:[#allocation2 + $0x50] sm:$0xff]
    %v486 = vld [vmem:[#allocation2 + $0x58] sm:$0xff]
    %v487 = vld [vmem:[#allocation2 + $0x60] sm:$0xff]
    %v488 = vld [vmem:[#allocation2 + $0x68] sm:$0xff]
    %v489 = vld [vmem:[#allocation2 + $0x70] sm:$0xff]
    %v490 = vld [vmem:[#allocation2 + $0x78] sm:$0xff]
    %v491 = vld [vmem:[#allocation2 + $0x80] sm:$0xff]
    %v492 = vld [vmem:[#allocation2 + $0x88] sm:$0xff]
    %v493 = vld [vmem:[#allocation2 + $0x90] sm:$0xff]
    %v494 = vld [vmem:[#allocation2 + $0x98] sm:$0xff]
    %v495 = vld [vmem:[#allocation2 + $0xa0] sm:$0xff]
    %v496 = vld [vmem:[#allocation2 + $0xa8] sm:$0xff]
    %v497 = vld [vmem:[#allocation2 + $0xb0] sm:$0xff]
    %v498 = vld [vmem:[#allocation2 + $0xb8] sm:$0xff]
    %v499 = vld [vmem:[#allocation2 + $0xc0] sm:$0xff]
    %v500 = vld [vmem:[#allocation2 + $0xc8] sm:$0xff]
    %v501 = vld [vmem:[#allocation2 + $0xd0] sm:$0xff]
    %v502 = vld [vmem:[#allocation2 + $0xd8] sm:$0xff]
    %v503 = vld [vmem:[#allocation2 + $0xe0] sm:$0xff]
    %v504 = vld [vmem:[#allocation2 + $0xe8] sm:$0xff]
    %v505 = vld [vmem:[#allocation2 + $0xf0] sm:$0xff]
    %v506 = vld [vmem:[#allocation2 + $0xf8] sm:$0xff]
    %s507 = smul.u32 0, 8192
    %v508 = vld [vmem:[%s2] sm:$0x3]
    %v509 = vunpack.c.0.s8 %v508
    %v510 = vcvt.s32.f32 %v509
    %v511 = vld [vmem:[%s1] sm:$0xff]
    %v512 = vsub.f32 0.0, %v511
    %v513 = vld [vmem:[#allocation3] sm:$0xf]
    %v515 = vunpack.c.l.s4 1935823168
    %v516 = vunpack.c.0.s8 %v515
    %v517 = vlaneseq
    %v518 = vshrl.u32 %v517, 7
    %v519 = vsub.s32 %v516, %v518
    %v520 = vrot.slane %v508, %v519
    %v521 = vunpack.c.l.s8.bf16 %v520
    %v523 = vunpack.c.l.b16 %v521
    %v524 = vunpack.c.h.b16 %v521
    %v525 = vpack.c.b16 %v523, %v523
    %v526 = vpack.c.b16 %v524, %v524
    %v561 = vunpack.c.l.b16 %v475
    %v562 = vunpack.c.h.b16 %v475
    %v563 = vunpack.c.l.b16 %v476
    %v564 = vunpack.c.h.b16 %v476
    %v565 = vunpack.c.l.b16 %v477
    %v566 = vunpack.c.h.b16 %v477
    %v567 = vunpack.c.l.b16 %v478
    %v568 = vunpack.c.h.b16 %v478
    %v569 = vunpack.c.l.b16 %v479
    %v570 = vunpack.c.h.b16 %v479
    %v571 = vunpack.c.l.b16 %v480
    %v572 = vunpack.c.h.b16 %v480
    %v573 = vunpack.c.l.b16 %v481
    %v574 = vunpack.c.h.b16 %v481
    %v575 = vunpack.c.l.b16 %v482
    %v576 = vunpack.c.h.b16 %v482
    %v577 = vunpack.c.l.b16 %v483
    %v578 = vunpack.c.h.b16 %v483
    %v579 = vunpack.c.l.b16 %v484
    %v580 = vunpack.c.h.b16 %v484
    %v581 = vunpack.c.l.b16 %v485
    %v582 = vunpack.c.h.b16 %v485
    %v583 = vunpack.c.l.b16 %v486
    %v584 = vunpack.c.h.b16 %v486
    %v585 = vunpack.c.l.b16 %v487
    %v586 = vunpack.c.h.b16 %v487
    %v587 = vunpack.c.l.b16 %v488
    %v588 = vunpack.c.h.b16 %v488
    %v589 = vunpack.c.l.b16 %v489
    %v590 = vunpack.c.h.b16 %v489
    %v591 = vunpack.c.l.b16 %v490
    %v592 = vunpack.c.h.b16 %v490
    %v593 = vunpack.c.l.b16 %v491
    %v594 = vunpack.c.h.b16 %v491
    %v595 = vunpack.c.l.b16 %v492
    %v596 = vunpack.c.h.b16 %v492
    %v597 = vunpack.c.l.b16 %v493
    %v598 = vunpack.c.h.b16 %v493
    %v599 = vunpack.c.l.b16 %v494
    %v600 = vunpack.c.h.b16 %v494
    %v601 = vunpack.c.l.b16 %v495
    %v602 = vunpack.c.h.b16 %v495
    %v603 = vunpack.c.l.b16 %v496
    %v604 = vunpack.c.h.b16 %v496
    %v605 = vunpack.c.l.b16 %v497
    %v606 = vunpack.c.h.b16 %v497
    %v607 = vunpack.c.l.b16 %v498
    %v608 = vunpack.c.h.b16 %v498
    %v609 = vunpack.c.l.b16 %v499
    %v610 = vunpack.c.h.b16 %v499
    %v611 = vunpack.c.l.b16 %v500
    %v612 = vunpack.c.h.b16 %v500
    %v613 = vunpack.c.l.b16 %v501
    %v614 = vunpack.c.h.b16 %v501
    %v615 = vunpack.c.l.b16 %v502
    %v616 = vunpack.c.h.b16 %v502
    %v617 = vunpack.c.l.b16 %v503
    %v618 = vunpack.c.h.b16 %v503
    %v619 = vunpack.c.l.b16 %v504
    %v620 = vunpack.c.h.b16 %v504
    %v621 = vunpack.c.l.b16 %v505
    %v622 = vunpack.c.h.b16 %v505
    %v623 = vunpack.c.l.b16 %v506
    %v624 = vunpack.c.h.b16 %v506
    %v625 = vpack.c.b16 %v563, %v561
    %v626 = vpack.c.b16 %v564, %v562
    %v627 = vpack.c.b16 %v567, %v565
    %v628 = vpack.c.b16 %v568, %v566
    %v629 = vpack.c.b16 %v571, %v569
    %v630 = vpack.c.b16 %v572, %v570
    %v631 = vpack.c.b16 %v575, %v573
    %v632 = vpack.c.b16 %v576, %v574
    %v633 = vpack.c.b16 %v579, %v577
    %v634 = vpack.c.b16 %v580, %v578
    %v635 = vpack.c.b16 %v583, %v581
    %v636 = vpack.c.b16 %v584, %v582
    %v637 = vpack.c.b16 %v587, %v585
    %v638 = vpack.c.b16 %v588, %v586
    %v639 = vpack.c.b16 %v591, %v589
    %v640 = vpack.c.b16 %v592, %v590
    %v641 = vpack.c.b16 %v595, %v593
    %v642 = vpack.c.b16 %v596, %v594
    %v643 = vpack.c.b16 %v599, %v597
    %v644 = vpack.c.b16 %v600, %v598
    %v645 = vpack.c.b16 %v603, %v601
    %v646 = vpack.c.b16 %v604, %v602
    %v647 = vpack.c.b16 %v607, %v605
    %v648 = vpack.c.b16 %v608, %v606
    %v649 = vpack.c.b16 %v611, %v609
    %v650 = vpack.c.b16 %v612, %v610
    %v651 = vpack.c.b16 %v615, %v613
    %v652 = vpack.c.b16 %v616, %v614
    %v653 = vpack.c.b16 %v619, %v617
    %v654 = vpack.c.b16 %v620, %v618
    %v655 = vpack.c.b16 %v623, %v621
    %v656 = vpack.c.b16 %v624, %v622
    %689 = vmatprep.subr.bf16.mxu0 %v640
    %690 = vmatpush1.bf16.msra.mxu0 %v639
    %691 = vmatprep.subr.bf16.mxu0 %v638
    %692 = vmatpush1.bf16.msra.mxu0 %v637
    %693 = vmatprep.subr.bf16.mxu0 %v636
    %694 = vmatpush1.bf16.msra.mxu0 %v635
    %695 = vmatprep.subr.bf16.mxu0 %v634
    %696 = vmatpush1.bf16.msra.mxu0 %v633
    %697 = vmatprep.subr.bf16.mxu0 %v632
    %698 = vmatpush1.bf16.msra.mxu0 %v631
    %699 = vmatprep.subr.bf16.mxu0 %v630
    %700 = vmatpush1.bf16.msra.mxu0 %v629
    %701 = vmatprep.subr.bf16.mxu0 %v628
    %702 = vmatpush1.bf16.msra.mxu0 %v627
    %703 = vmatprep.subr.bf16.mxu0 %v626
    %704 = vmatpush1.bf16.msra.mxu0 %v625
    %705 = vmatprep.subr.bf16.mxu0 %v656
    %706 = vmatpush2.bf16.msra.mxu0 %v655
    %707 = vmatprep.subr.bf16.mxu0 %v654
    %708 = vmatpush2.bf16.msra.mxu0 %v653
    %709 = vmatprep.subr.bf16.mxu0 %v652
    %710 = vmatpush2.bf16.msra.mxu0 %v651
    %711 = vmatprep.subr.bf16.mxu0 %v650
    %712 = vmatpush2.bf16.msra.mxu0 %v649
    %713 = vmatprep.subr.bf16.mxu0 %v648
    %714 = vmatpush2.bf16.msra.mxu0 %v647
    %715 = vmatprep.subr.bf16.mxu0 %v646
    %716 = vmatpush2.bf16.msra.mxu0 %v645
    %717 = vmatprep.subr.bf16.mxu0 %v644
    %718 = vmatpush2.bf16.msra.mxu0 %v643
    %719 = vmatprep.subr.bf16.mxu0 %v642
    %720 = vmatpush2.bf16.msra.mxu0 %v641
    %721 = vmatprep.mubr.bf16.mxu0 %v526
    %722 = vmatmul.mubr.bf16.gmra.mxu0 %v525
    %v723 = vpop.f32.mrf.mxu0
    %v724 = vadd.f32 0.0, %v723
    %v725 = vpop.f32.mrf.mxu0
    %v726 = vadd.f32 0.0, %v725
    %v727 = vpop.f32.mrf.mxu0
    %v728 = vpop.f32.mrf.mxu0
    %729 = vdwg.mxu0
    %731 = vset.pattern.permute.xlu0 0
    %732 = vperm.xlu0 %731, %v513
    %v733 = vpop.permute.xlu0 %732
    %v735 = vadd.f32 %v733, %v724
    %v736 = vadd.f32 %v733, %v726
    %s737 = sadd.s32 %s507, 1
    %v738 = vlaneseq
    %v739 = vand.u32 %v738, 127
    %v740 = vadd.s32 %v739, 128
    %v741 = vstv %s737
    %v742 = vadd.s32 %v741, %v739
    %v743 = vadd.s32 %v741, %v740
    %v744 = vcvt.s32.f32 %v742
    %v745 = vcvt.s32.f32 %v743
    %v746 = vsub.f32 %v744, %v735
    %v747 = vsub.f32 %v745, %v736
    %749 = vset.pattern.permute.xlu0 0
    %750 = vperm.xlu0 %749, %v474
    %v751 = vpop.permute.xlu0 %750
    %v753 = vsub.f32 %v751, %v735
    %v754 = vsub.f32 %v751, %v736
    %v755 = vadd.f32 %v751, %v746
    %v756 = vadd.f32 %v751, %v747
    %v758 = vcombine.high %v510, %v510
    %v760 = vadd.f32 %v753, %v510
    %v761 = vadd.f32 %v754, %v758
    %v762 = vsub.f32 1.0, %v510
    %v764 = vcombine.high %v762, %v762
    %v766 = vsub.f32 %v755, %v762
    %v767 = vsub.f32 %v756, %v764
    %v768 = vmul.f32 %v760, %v755
    %v769 = vmul.f32 %v761, %v756
    %v770 = vmul.f32 %v753, %v766
    %v771 = vmul.f32 %v754, %v767
    %v772 = vsub.f32 %v768, %v770
    %v773 = vsub.f32 %v769, %v771
    %v774 = vmul.f32 %v755, %v766
    %v775 = vmul.f32 %v756, %v767
    %v776 = vmax.f32 %v774, 1.0
    %v777 = vmax.f32 %v775, 1.0
    %v778 = vrcp.pop %v776
    %v779 = vmul.f32 %v772, %v778
    %v780 = vrcp.pop %v777
    %v781 = vmul.f32 %v773, %v780
    %v782 = vld [vmem:[#allocation4] sm:$0xf]
    %v785 = vcombine.low %v779, %v781
    %v787 = vmul.f32 %v512, %v785
    %v789 = vcombine.high %v787, %v787
    %vm791 = vcmask 1043456
    %v792 = vsel %vm791, %v787, 0.0
    %v793 = vsel %vm791, %v789, 0.0
    %v794 = vadd.f32 %v792, %v793
    %795 = vadd.xlane.f32.xlu0 %v794
    %v796 = vpop.xlane.xlu0 %795
    %v797 = vadd.f32 %v782, %v796
    %vm798 = vcmask 3072
    %799 = vst.msk [vmem:[#allocation4] sm:$0xf] %vm798, %v797
    %801 = vrot.lane.b32.xlu0 %v736, 1
    %v802 = vpop.permute.xlu0 %801
    %804 = vst.msk [vmem:[#allocation3] sm:$0xf] %vm798, %v802
    %v805 = vld [vmem:[%s2 + $0x2] sm:$0x3]
    %v806 = vunpack.c.0.s8 %v805
    %v807 = vcvt.s32.f32 %v806
    %v808 = vld [vmem:[%s1 + $0x8] sm:$0xff]
    %v809 = vsub.f32 0.0, %v808
    %v810 = vld [vmem:[#allocation3] sm:$0xf]
    %v812 = vunpack.c.l.s4 1935823168
    %v813 = vunpack.c.0.s8 %v812
    %v814 = vlaneseq
    %v815 = vshrl.u32 %v814, 7
    %v816 = vsub.s32 %v813, %v815
    %v817 = vrot.slane %v805, %v816
    %v818 = vunpack.c.l.s8.bf16 %v817
    %v820 = vunpack.c.l.b16 %v818
    %v821 = vunpack.c.h.b16 %v818
    %v822 = vpack.c.b16 %v820, %v820
    %v823 = vpack.c.b16 %v821, %v821
    %826 = vmatprep.subr.bf16.mxu0 %v640
    %827 = vmatpush1.bf16.msra.mxu0 %v639
    %828 = vmatprep.subr.bf16.mxu0 %v638
    %829 = vmatpush1.bf16.msra.mxu0 %v637
    %830 = vmatprep.subr.bf16.mxu0 %v636
    %831 = vmatpush1.bf16.msra.mxu0 %v635
    %832 = vmatprep.subr.bf16.mxu0 %v634
    %833 = vmatpush1.bf16.msra.mxu0 %v633
    %834 = vmatprep.subr.bf16.mxu0 %v632
    %835 = vmatpush1.bf16.msra.mxu0 %v631
    %836 = vmatprep.subr.bf16.mxu0 %v630
    %837 = vmatpush1.bf16.msra.mxu0 %v629
    %838 = vmatprep.subr.bf16.mxu0 %v628
    %839 = vmatpush1.bf16.msra.mxu0 %v627
    %840 = vmatprep.subr.bf16.mxu0 %v626
    %841 = vmatpush1.bf16.msra.mxu0 %v625
    %842 = vmatprep.subr.bf16.mxu0 %v656
    %843 = vmatpush2.bf16.msra.mxu0 %v655
    %844 = vmatprep.subr.bf16.mxu0 %v654
    %845 = vmatpush2.bf16.msra.mxu0 %v653
    %846 = vmatprep.subr.bf16.mxu0 %v652
    %847 = vmatpush2.bf16.msra.mxu0 %v651
    %848 = vmatprep.subr.bf16.mxu0 %v650
    %849 = vmatpush2.bf16.msra.mxu0 %v649
    %850 = vmatprep.subr.bf16.mxu0 %v648
    %851 = vmatpush2.bf16.msra.mxu0 %v647
    %852 = vmatprep.subr.bf16.mxu0 %v646
    %853 = vmatpush2.bf16.msra.mxu0 %v645
    %854 = vmatprep.subr.bf16.mxu0 %v644
    %855 = vmatpush2.bf16.msra.mxu0 %v643
    %856 = vmatprep.subr.bf16.mxu0 %v642
    %857 = vmatpush2.bf16.msra.mxu0 %v641
    %858 = vmatprep.mubr.bf16.mxu0 %v823
    %859 = vmatmul.mubr.bf16.gmra.mxu0 %v822
    %v860 = vpop.f32.mrf.mxu0
    %v861 = vadd.f32 0.0, %v860
    %v862 = vpop.f32.mrf.mxu0
    %v863 = vadd.f32 0.0, %v862
    %v864 = vpop.f32.mrf.mxu0
    %v865 = vpop.f32.mrf.mxu0
    %866 = vdwg.mxu0
    %868 = vset.pattern.permute.xlu0 0
    %869 = vperm.xlu0 %868, %v810
    %v870 = vpop.permute.xlu0 %869
    %v872 = vadd.f32 %v870, %v861
    %v873 = vadd.f32 %v870, %v863
    %s874 = sadd.s32 %s507, 257
    %v875 = vstv %s874
    %v876 = vadd.s32 %v875, %v739
    %v877 = vadd.s32 %v875, %v740
    %v878 = vcvt.s32.f32 %v876
    %v879 = vcvt.s32.f32 %v877
    %v880 = vsub.f32 %v878, %v872
    %v881 = vsub.f32 %v879, %v873
    %v882 = vsub.f32 %v751, %v872
    %v883 = vsub.f32 %v751, %v873
    %v884 = vadd.f32 %v751, %v880
    %v885 = vadd.f32 %v751, %v881
    %v887 = vcombine.high %v807, %v807
    %v889 = vadd.f32 %v882, %v807
    %v890 = vadd.f32 %v883, %v887
    %v891 = vsub.f32 1.0, %v807
    %v893 = vcombine.high %v891, %v891
    %v895 = vsub.f32 %v884, %v891
    %v896 = vsub.f32 %v885, %v893
    %v897 = vmul.f32 %v889, %v884
    %v898 = vmul.f32 %v890, %v885
    %v899 = vmul.f32 %v882, %v895
    %v900 = vmul.f32 %v883, %v896
    %v901 = vsub.f32 %v897, %v899
    %v902 = vsub.f32 %v898, %v900
    %v903 = vmul.f32 %v884, %v895
    %v904 = vmul.f32 %v885, %v896
    %v905 = vmax.f32 %v903, 1.0
    %v906 = vmax.f32 %v904, 1.0
    %v907 = vrcp.pop %v905
    %v908 = vmul.f32 %v901, %v907
    %v909 = vrcp.pop %v906
    %v910 = vmul.f32 %v902, %v909
    %v911 = vld [vmem:[#allocation4] sm:$0xf]
    %v914 = vcombine.low %v908, %v910
    %v916 = vmul.f32 %v809, %v914
    %v918 = vcombine.high %v916, %v916
    %v920 = vsel %vm791, %v916, 0.0
    %v921 = vsel %vm791, %v918, 0.0
    %v922 = vadd.f32 %v920, %v921
    %923 = vadd.xlane.f32.xlu0 %v922
    %v924 = vpop.xlane.xlu0 %923
    %v925 = vadd.f32 %v911, %v924
    %926 = vst.msk [vmem:[#allocation4] sm:$0xf] %vm798, %v925
    %928 = vrot.lane.b32.xlu0 %v873, 1
    %v929 = vpop.permute.xlu0 %928
    %931 = vst.msk [vmem:[#allocation3] sm:$0xf] %vm798, %v929
    %v932 = vld [vmem:[%s2 + $0x4] sm:$0x3]
    %v933 = vunpack.c.0.s8 %v932
    %v934 = vcvt.s32.f32 %v933
    %v935 = vld [vmem:[%s1 + $0x10] sm:$0xff]
    %v936 = vsub.f32 0.0, %v935
    %v937 = vld [vmem:[#allocation3] sm:$0xf]
    %v939 = vunpack.c.l.s4 1935823168
    %v940 = vunpack.c.0.s8 %v939
    %v941 = vlaneseq
    %v942 = vshrl.u32 %v941, 7
    %v943 = vsub.s32 %v940, %v942
    %v944 = vrot.slane %v932, %v943
    %v945 = vunpack.c.l.s8.bf16 %v944
    %v947 = vunpack.c.l.b16 %v945
    %v948 = vunpack.c.h.b16 %v945
    %v949 = vpack.c.b16 %v947, %v947
    %v950 = vpack.c.b16 %v948, %v948
    %953 = vmatprep.subr.bf16.mxu0 %v640
    %954 = vmatpush1.bf16.msra.mxu0 %v639
    %955 = vmatprep.subr.bf16.mxu0 %v638
    %956 = vmatpush1.bf16.msra.mxu0 %v637
    %957 = vmatprep.subr.bf16.mxu0 %v636
    %958 = vmatpush1.bf16.msra.mxu0 %v635
    %959 = vmatprep.subr.bf16.mxu0 %v634
    %960 = vmatpush1.bf16.msra.mxu0 %v633
    %961 = vmatprep.subr.bf16.mxu0 %v632
    %962 = vmatpush1.bf16.msra.mxu0 %v631
    %963 = vmatprep.subr.bf16.mxu0 %v630
    %964 = vmatpush1.bf16.msra.mxu0 %v629
    %965 = vmatprep.subr.bf16.mxu0 %v628
    %966 = vmatpush1.bf16.msra.mxu0 %v627
    %967 = vmatprep.subr.bf16.mxu0 %v626
    %968 = vmatpush1.bf16.msra.mxu0 %v625
    %969 = vmatprep.subr.bf16.mxu0 %v656
    %970 = vmatpush2.bf16.msra.mxu0 %v655
    %971 = vmatprep.subr.bf16.mxu0 %v654
    %972 = vmatpush2.bf16.msra.mxu0 %v653
    %973 = vmatprep.subr.bf16.mxu0 %v652
    %974 = vmatpush2.bf16.msra.mxu0 %v651
    %975 = vmatprep.subr.bf16.mxu0 %v650
    %976 = vmatpush2.bf16.msra.mxu0 %v649
    %977 = vmatprep.subr.bf16.mxu0 %v648
    %978 = vmatpush2.bf16.msra.mxu0 %v647
    %979 = vmatprep.subr.bf16.mxu0 %v646
    %980 = vmatpush2.bf16.msra.mxu0 %v645
    %981 = vmatprep.subr.bf16.mxu0 %v644
    %982 = vmatpush2.bf16.msra.mxu0 %v643
    %983 = vmatprep.subr.bf16.mxu0 %v642
    %984 = vmatpush2.bf16.msra.mxu0 %v641
    %985 = vmatprep.mubr.bf16.mxu0 %v950
    %986 = vmatmul.mubr.bf16.gmra.mxu0 %v949
    %v987 = vpop.f32.mrf.mxu0
    %v988 = vadd.f32 0.0, %v987
    %v989 = vpop.f32.mrf.mxu0
    %v990 = vadd.f32 0.0, %v989
    %v991 = vpop.f32.mrf.mxu0
    %v992 = vpop.f32.mrf.mxu0
    %993 = vdwg.mxu0
    %995 = vset.pattern.permute.xlu0 0
    %996 = vperm.xlu0 %995, %v937
    %v997 = vpop.permute.xlu0 %996
    %v999 = vadd.f32 %v997, %v988
    %v1000 = vadd.f32 %v997, %v990
    %s1001 = sadd.s32 %s507, 513
    %v1002 = vstv %s1001
    %v1003 = vadd.s32 %v1002, %v739
    %v1004 = vadd.s32 %v1002, %v740
    %v1005 = vcvt.s32.f32 %v1003
    %v1006 = vcvt.s32.f32 %v1004
    %v1007 = vsub.f32 %v1005, %v999
    %v1008 = vsub.f32 %v1006, %v1000
    %v1009 = vsub.f32 %v751, %v999
    %v1010 = vsub.f32 %v751, %v1000
    %v1011 = vadd.f32 %v751, %v1007
    %v1012 = vadd.f32 %v751, %v1008
    %v1014 = vcombine.high %v934, %v934
    %v1016 = vadd.f32 %v1009, %v934
    %v1017 = vadd.f32 %v1010, %v1014
    %v1018 = vsub.f32 1.0, %v934
    %v1020 = vcombine.high %v1018, %v1018
    %v1022 = vsub.f32 %v1011, %v1018
    %v1023 = vsub.f32 %v1012, %v1020
    %v1024 = vmul.f32 %v1016, %v1011
    %v1025 = vmul.f32 %v1017, %v1012
    %v1026 = vmul.f32 %v1009, %v1022
    %v1027 = vmul.f32 %v1010, %v1023
    %v1028 = vsub.f32 %v1024, %v1026
    %v1029 = vsub.f32 %v1025, %v1027
    %v1030 = vmul.f32 %v1011, %v1022
    %v1031 = vmul.f32 %v1012, %v1023
    %v1032 = vmax.f32 %v1030, 1.0
    %v1033 = vmax.f32 %v1031, 1.0
    %v1034 = vrcp.pop %v1032
    %v1035 = vmul.f32 %v1028, %v1034
    %v1036 = vrcp.pop %v1033
    %v1037 = vmul.f32 %v1029, %v1036
    %v1038 = vld [vmem:[#allocation4] sm:$0xf]
    %v1041 = vcombine.low %v1035, %v1037
    %v1043 = vmul.f32 %v936, %v1041
    %v1045 = vcombine.high %v1043, %v1043
    %v1047 = vsel %vm791, %v1043, 0.0
    %v1048 = vsel %vm791, %v1045, 0.0
    %v1049 = vadd.f32 %v1047, %v1048
    %1050 = vadd.xlane.f32.xlu0 %v1049
    %v1051 = vpop.xlane.xlu0 %1050
    %v1052 = vadd.f32 %v1038, %v1051
    %1053 = vst.msk [vmem:[#allocation4] sm:$0xf] %vm798, %v1052
    %1055 = vrot.lane.b32.xlu0 %v1000, 1
    %v1056 = vpop.permute.xlu0 %1055
    %1058 = vst.msk [vmem:[#allocation3] sm:$0xf] %vm798, %v1056
    %v1059 = vld [vmem:[%s2 + $0x6] sm:$0x3]
    %v1060 = vunpack.c.0.s8 %v1059
    %v1061 = vcvt.s32.f32 %v1060
    %v1062 = vld [vmem:[%s1 + $0x18] sm:$0xff]
    %v1063 = vsub.f32 0.0, %v1062
    %v1064 = vld [vmem:[#allocation3] sm:$0xf]
    %v1066 = vunpack.c.l.s4 1935823168
    %v1067 = vunpack.c.0.s8 %v1066
    %v1068 = vlaneseq
    %v1069 = vshrl.u32 %v1068, 7
    %v1070 = vsub.s32 %v1067, %v1069
    %v1071 = vrot.slane %v1059, %v1070
    %v1072 = vunpack.c.l.s8.bf16 %v1071
    %v1074 = vunpack.c.l.b16 %v1072
    %v1075 = vunpack.c.h.b16 %v1072
    %v1076 = vpack.c.b16 %v1074, %v1074
    %v1077 = vpack.c.b16 %v1075, %v1075
    %1080 = vmatprep.subr.bf16.mxu0 %v640
    %1081 = vmatpush1.bf16.msra.mxu0 %v639
    %1082 = vmatprep.subr.bf16.mxu0 %v638
    %1083 = vmatpush1.bf16.msra.mxu0 %v637
    %1084 = vmatprep.subr.bf16.mxu0 %v636
    %1085 = vmatpush1.bf16.msra.mxu0 %v635
    %1086 = vmatprep.subr.bf16.mxu0 %v634
    %1087 = vmatpush1.bf16.msra.mxu0 %v633
    %1088 = vmatprep.subr.bf16.mxu0 %v632
    %1089 = vmatpush1.bf16.msra.mxu0 %v631
    %1090 = vmatprep.subr.bf16.mxu0 %v630
    %1091 = vmatpush1.bf16.msra.mxu0 %v629
    %1092 = vmatprep.subr.bf16.mxu0 %v628
    %1093 = vmatpush1.bf16.msra.mxu0 %v627
    %1094 = vmatprep.subr.bf16.mxu0 %v626
    %1095 = vmatpush1.bf16.msra.mxu0 %v625
    %1096 = vmatprep.subr.bf16.mxu0 %v656
    %1097 = vmatpush2.bf16.msra.mxu0 %v655
    %1098 = vmatprep.subr.bf16.mxu0 %v654
    %1099 = vmatpush2.bf16.msra.mxu0 %v653
    %1100 = vmatprep.subr.bf16.mxu0 %v652
    %1101 = vmatpush2.bf16.msra.mxu0 %v651
    %1102 = vmatprep.subr.bf16.mxu0 %v650
    %1103 = vmatpush2.bf16.msra.mxu0 %v649
    %1104 = vmatprep.subr.bf16.mxu0 %v648
    %1105 = vmatpush2.bf16.msra.mxu0 %v647
    %1106 = vmatprep.subr.bf16.mxu0 %v646
    %1107 = vmatpush2.bf16.msra.mxu0 %v645
    %1108 = vmatprep.subr.bf16.mxu0 %v644
    %1109 = vmatpush2.bf16.msra.mxu0 %v643
    %1110 = vmatprep.subr.bf16.mxu0 %v642
    %1111 = vmatpush2.bf16.msra.mxu0 %v641
    %1112 = vmatprep.mubr.bf16.mxu0 %v1077
    %1113 = vmatmul.mubr.bf16.gmra.mxu0 %v1076
    %v1114 = vpop.f32.mrf.mxu0
    %v1115 = vadd.f32 0.0, %v1114
    %v1116 = vpop.f32.mrf.mxu0
    %v1117 = vadd.f32 0.0, %v1116
    %v1118 = vpop.f32.mrf.mxu0
    %v1119 = vpop.f32.mrf.mxu0
    %1120 = vdwg.mxu0
    %1122 = vset.pattern.permute.xlu0 0
    %1123 = vperm.xlu0 %1122, %v1064
    %v1124 = vpop.permute.xlu0 %1123
    %v1126 = vadd.f32 %v1124, %v1115
    %v1127 = vadd.f32 %v1124, %v1117
    %s1128 = sadd.s32 %s507, 769
    %v1129 = vstv %s1128
    %v1130 = vadd.s32 %v1129, %v739
    %v1131 = vadd.s32 %v1129, %v740
    %v1132 = vcvt.s32.f32 %v1130
    %v1133 = vcvt.s32.f32 %v1131
    %v1134 = vsub.f32 %v1132, %v1126
    %v1135 = vsub.f32 %v1133, %v1127
    %v1136 = vsub.f32 %v751, %v1126
    %v1137 = vsub.f32 %v751, %v1127
    %v1138 = vadd.f32 %v751, %v1134
    %v1139 = vadd.f32 %v751, %v1135
    %v1141 = vcombine.high %v1061, %v1061
    %v1143 = vadd.f32 %v1136, %v1061
    %v1144 = vadd.f32 %v1137, %v1141
    %v1145 = vsub.f32 1.0, %v1061
    %v1147 = vcombine.high %v1145, %v1145
    %v1149 = vsub.f32 %v1138, %v1145
    %v1150 = vsub.f32 %v1139, %v1147
    %v1151 = vmul.f32 %v1143, %v1138
    %v1152 = vmul.f32 %v1144, %v1139
    %v1153 = vmul.f32 %v1136, %v1149
    %v1154 = vmul.f32 %v1137, %v1150
    %v1155 = vsub.f32 %v1151, %v1153
    %v1156 = vsub.f32 %v1152, %v1154
    %v1157 = vmul.f32 %v1138, %v1149
    %v1158 = vmul.f32 %v1139, %v1150
    %v1159 = vmax.f32 %v1157, 1.0
    %v1160 = vmax.f32 %v1158, 1.0
    %v1161 = vrcp.pop %v1159
    %v1162 = vmul.f32 %v1155, %v1161
    %v1163 = vrcp.pop %v1160
    %v1164 = vmul.f32 %v1156, %v1163
    %v1165 = vld [vmem:[#allocation4] sm:$0xf]
    %v1168 = vcombine.low %v1162, %v1164
    %v1170 = vmul.f32 %v1063, %v1168
    %v1172 = vcombine.high %v1170, %v1170
    %v1174 = vsel %vm791, %v1170, 0.0
    %v1175 = vsel %vm791, %v1172, 0.0
    %v1176 = vadd.f32 %v1174, %v1175
    %1177 = vadd.xlane.f32.xlu0 %v1176
    %v1178 = vpop.xlane.xlu0 %1177
    %v1179 = vadd.f32 %v1165, %v1178
    %1180 = vst.msk [vmem:[#allocation4] sm:$0xf] %vm798, %v1179
    %1182 = vrot.lane.b32.xlu0 %v1127, 1
    %v1183 = vpop.permute.xlu0 %1182
    %1185 = vst.msk [vmem:[#allocation3] sm:$0xf] %vm798, %v1183
    %v1186 = vld [vmem:[%s2 + $0x8] sm:$0x3]
    %v1187 = vunpack.c.0.s8 %v1186
    %v1188 = vcvt.s32.f32 %v1187
    %v1189 = vld [vmem:[%s1 + $0x20] sm:$0xff]
    %v1190 = vsub.f32 0.0, %v1189
    %v1191 = vld [vmem:[#allocation3] sm:$0xf]
    %v1193 = vunpack.c.l.s4 1935823168
    %v1194 = vunpack.c.0.s8 %v1193
    %v1195 = vlaneseq
    %v1196 = vshrl.u32 %v1195, 7
    %v1197 = vsub.s32 %v1194, %v1196
    %v1198 = vrot.slane %v1186, %v1197
    %v1199 = vunpack.c.l.s8.bf16 %v1198
    %v1201 = vunpack.c.l.b16 %v1199
    %v1202 = vunpack.c.h.b16 %v1199
    %v1203 = vpack.c.b16 %v1201, %v1201
    %v1204 = vpack.c.b16 %v1202, %v1202
    %1207 = vmatprep.subr.bf16.mxu0 %v640
    %1208 = vmatpush1.bf16.msra.mxu0 %v639
    %1209 = vmatprep.subr.bf16.mxu0 %v638
    %1210 = vmatpush1.bf16.msra.mxu0 %v637
    %1211 = vmatprep.subr.bf16.mxu0 %v636
    %1212 = vmatpush1.bf16.msra.mxu0 %v635
    %1213 = vmatprep.subr.bf16.mxu0 %v634
    %1214 = vmatpush1.bf16.msra.mxu0 %v633
    %1215 = vmatprep.subr.bf16.mxu0 %v632
    %1216 = vmatpush1.bf16.msra.mxu0 %v631
    %1217 = vmatprep.subr.bf16.mxu0 %v630
    %1218 = vmatpush1.bf16.msra.mxu0 %v629
    %1219 = vmatprep.subr.bf16.mxu0 %v628
    %1220 = vmatpush1.bf16.msra.mxu0 %v627
    %1221 = vmatprep.subr.bf16.mxu0 %v626
    %1222 = vmatpush1.bf16.msra.mxu0 %v625
    %1223 = vmatprep.subr.bf16.mxu0 %v656
    %1224 = vmatpush2.bf16.msra.mxu0 %v655
    %1225 = vmatprep.subr.bf16.mxu0 %v654
    %1226 = vmatpush2.bf16.msra.mxu0 %v653
    %1227 = vmatprep.subr.bf16.mxu0 %v652
    %1228 = vmatpush2.bf16.msra.mxu0 %v651
    %1229 = vmatprep.subr.bf16.mxu0 %v650
    %1230 = vmatpush2.bf16.msra.mxu0 %v649
    %1231 = vmatprep.subr.bf16.mxu0 %v648
    %1232 = vmatpush2.bf16.msra.mxu0 %v647
    %1233 = vmatprep.subr.bf16.mxu0 %v646
    %1234 = vmatpush2.bf16.msra.mxu0 %v645
    %1235 = vmatprep.subr.bf16.mxu0 %v644
    %1236 = vmatpush2.bf16.msra.mxu0 %v643
    %1237 = vmatprep.subr.bf16.mxu0 %v642
    %1238 = vmatpush2.bf16.msra.mxu0 %v641
    %1239 = vmatprep.mubr.bf16.mxu0 %v1204
    %1240 = vmatmul.mubr.bf16.gmra.mxu0 %v1203
    %v1241 = vpop.f32.mrf.mxu0
    %v1242 = vadd.f32 0.0, %v1241
    %v1243 = vpop.f32.mrf.mxu0
    %v1244 = vadd.f32 0.0, %v1243
    %v1245 = vpop.f32.mrf.mxu0
    %v1246 = vpop.f32.mrf.mxu0
    %1247 = vdwg.mxu0
    %1249 = vset.pattern.permute.xlu0 0
    %1250 = vperm.xlu0 %1249, %v1191
    %v1251 = vpop.permute.xlu0 %1250
    %v1253 = vadd.f32 %v1251, %v1242
    %v1254 = vadd.f32 %v1251, %v1244
    %s1255 = sadd.s32 %s507, 1025
    %v1256 = vstv %s1255
    %v1257 = vadd.s32 %v1256, %v739
    %v1258 = vadd.s32 %v1256, %v740
    %v1259 = vcvt.s32.f32 %v1257
    %v1260 = vcvt.s32.f32 %v1258
    %v1261 = vsub.f32 %v1259, %v1253
    %v1262 = vsub.f32 %v1260, %v1254
    %v1263 = vsub.f32 %v751, %v1253
    %v1264 = vsub.f32 %v751, %v1254
    %v1265 = vadd.f32 %v751, %v1261
    %v1266 = vadd.f32 %v751, %v1262
    %v1268 = vcombine.high %v1188, %v1188
    %v1270 = vadd.f32 %v1263, %v1188
    %v1271 = vadd.f32 %v1264, %v1268
    %v1272 = vsub.f32 1.0, %v1188
    %v1274 = vcombine.high %v1272, %v1272
    %v1276 = vsub.f32 %v1265, %v1272
    %v1277 = vsub.f32 %v1266, %v1274
    %v1278 = vmul.f32 %v1270, %v1265
    %v1279 = vmul.f32 %v1271, %v1266
    %v1280 = vmul.f32 %v1263, %v1276
    %v1281 = vmul.f32 %v1264, %v1277
    %v1282 = vsub.f32 %v1278, %v1280
    %v1283 = vsub.f32 %v1279, %v1281
    %v1284 = vmul.f32 %v1265, %v1276
    %v1285 = vmul.f32 %v1266, %v1277
    %v1286 = vmax.f32 %v1284, 1.0
    %v1287 = vmax.f32 %v1285, 1.0
    %v1288 = vrcp.pop %v1286
    %v1289 = vmul.f32 %v1282, %v1288
    %v1290 = vrcp.pop %v1287
    %v1291 = vmul.f32 %v1283, %v1290
    %v1292 = vld [vmem:[#allocation4] sm:$0xf]
    %v1295 = vcombine.low %v1289, %v1291
    %v1297 = vmul.f32 %v1190, %v1295
    %v1299 = vcombine.high %v1297, %v1297
    %v1301 = vsel %vm791, %v1297, 0.0
    %v1302 = vsel %vm791, %v1299, 0.0
    %v1303 = vadd.f32 %v1301, %v1302
    %1304 = vadd.xlane.f32.xlu0 %v1303
    %v1305 = vpop.xlane.xlu0 %1304
    %v1306 = vadd.f32 %v1292, %v1305
    %1307 = vst.msk [vmem:[#allocation4] sm:$0xf] %vm798, %v1306
    %1309 = vrot.lane.b32.xlu0 %v1254, 1
    %v1310 = vpop.permute.xlu0 %1309
    %1312 = vst.msk [vmem:[#allocation3] sm:$0xf] %vm798, %v1310
    %v1313 = vld [vmem:[%s2 + $0xa] sm:$0x3]
    %v1314 = vunpack.c.0.s8 %v1313
    %v1315 = vcvt.s32.f32 %v1314
    %v1316 = vld [vmem:[%s1 + $0x28] sm:$0xff]
    %v1317 = vsub.f32 0.0, %v1316
    %v1318 = vld [vmem:[#allocation3] sm:$0xf]
    %v1320 = vunpack.c.l.s4 1935823168
    %v1321 = vunpack.c.0.s8 %v1320
    %v1322 = vlaneseq
    %v1323 = vshrl.u32 %v1322, 7
    %v1324 = vsub.s32 %v1321, %v1323
    %v1325 = vrot.slane %v1313, %v1324
    %v1326 = vunpack.c.l.s8.bf16 %v1325
    %v1328 = vunpack.c.l.b16 %v1326
    %v1329 = vunpack.c.h.b16 %v1326
    %v1330 = vpack.c.b16 %v1328, %v1328
    %v1331 = vpack.c.b16 %v1329, %v1329
    %1334 = vmatprep.subr.bf16.mxu0 %v640
    %1335 = vmatpush1.bf16.msra.mxu0 %v639
    %1336 = vmatprep.subr.bf16.mxu0 %v638
    %1337 = vmatpush1.bf16.msra.mxu0 %v637
    %1338 = vmatprep.subr.bf16.mxu0 %v636
    %1339 = vmatpush1.bf16.msra.mxu0 %v635
    %1340 = vmatprep.subr.bf16.mxu0 %v634
    %1341 = vmatpush1.bf16.msra.mxu0 %v633
    %1342 = vmatprep.subr.bf16.mxu0 %v632
    %1343 = vmatpush1.bf16.msra.mxu0 %v631
    %1344 = vmatprep.subr.bf16.mxu0 %v630
    %1345 = vmatpush1.bf16.msra.mxu0 %v629
    %1346 = vmatprep.subr.bf16.mxu0 %v628
    %1347 = vmatpush1.bf16.msra.mxu0 %v627
    %1348 = vmatprep.subr.bf16.mxu0 %v626
    %1349 = vmatpush1.bf16.msra.mxu0 %v625
    %1350 = vmatprep.subr.bf16.mxu0 %v656
    %1351 = vmatpush2.bf16.msra.mxu0 %v655
    %1352 = vmatprep.subr.bf16.mxu0 %v654
    %1353 = vmatpush2.bf16.msra.mxu0 %v653
    %1354 = vmatprep.subr.bf16.mxu0 %v652
    %1355 = vmatpush2.bf16.msra.mxu0 %v651
    %1356 = vmatprep.subr.bf16.mxu0 %v650
    %1357 = vmatpush2.bf16.msra.mxu0 %v649
    %1358 = vmatprep.subr.bf16.mxu0 %v648
    %1359 = vmatpush2.bf16.msra.mxu0 %v647
    %1360 = vmatprep.subr.bf16.mxu0 %v646
    %1361 = vmatpush2.bf16.msra.mxu0 %v645
    %1362 = vmatprep.subr.bf16.mxu0 %v644
    %1363 = vmatpush2.bf16.msra.mxu0 %v643
    %1364 = vmatprep.subr.bf16.mxu0 %v642
    %1365 = vmatpush2.bf16.msra.mxu0 %v641
    %1366 = vmatprep.mubr.bf16.mxu0 %v1331
    %1367 = vmatmul.mubr.bf16.gmra.mxu0 %v1330
    %v1368 = vpop.f32.mrf.mxu0
    %v1369 = vadd.f32 0.0, %v1368
    %v1370 = vpop.f32.mrf.mxu0
    %v1371 = vadd.f32 0.0, %v1370
    %v1372 = vpop.f32.mrf.mxu0
    %v1373 = vpop.f32.mrf.mxu0
    %1374 = vdwg.mxu0
    %1376 = vset.pattern.permute.xlu0 0
    %1377 = vperm.xlu0 %1376, %v1318
    %v1378 = vpop.permute.xlu0 %1377
    %v1380 = vadd.f32 %v1378, %v1369
    %v1381 = vadd.f32 %v1378, %v1371
    %s1382 = sadd.s32 %s507, 1281
    %v1383 = vstv %s1382
    %v1384 = vadd.s32 %v1383, %v739
    %v1385 = vadd.s32 %v1383, %v740
    %v1386 = vcvt.s32.f32 %v1384
    %v1387 = vcvt.s32.f32 %v1385
    %v1388 = vsub.f32 %v1386, %v1380
    %v1389 = vsub.f32 %v1387, %v1381
    %v1390 = vsub.f32 %v751, %v1380
    %v1391 = vsub.f32 %v751, %v1381
    %v1392 = vadd.f32 %v751, %v1388
    %v1393 = vadd.f32 %v751, %v1389
    %v1395 = vcombine.high %v1315, %v1315
    %v1397 = vadd.f32 %v1390, %v1315
    %v1398 = vadd.f32 %v1391, %v1395
    %v1399 = vsub.f32 1.0, %v1315
    %v1401 = vcombine.high %v1399, %v1399
    %v1403 = vsub.f32 %v1392, %v1399
    %v1404 = vsub.f32 %v1393, %v1401
    %v1405 = vmul.f32 %v1397, %v1392
    %v1406 = vmul.f32 %v1398, %v1393
    %v1407 = vmul.f32 %v1390, %v1403
    %v1408 = vmul.f32 %v1391, %v1404
    %v1409 = vsub.f32 %v1405, %v1407
    %v1410 = vsub.f32 %v1406, %v1408
    %v1411 = vmul.f32 %v1392, %v1403
    %v1412 = vmul.f32 %v1393, %v1404
    %v1413 = vmax.f32 %v1411, 1.0
    %v1414 = vmax.f32 %v1412, 1.0
    %v1415 = vrcp.pop %v1413
    %v1416 = vmul.f32 %v1409, %v1415
    %v1417 = vrcp.pop %v1414
    %v1418 = vmul.f32 %v1410, %v1417
    %v1419 = vld [vmem:[#allocation4] sm:$0xf]
    %v1422 = vcombine.low %v1416, %v1418
    %v1424 = vmul.f32 %v1317, %v1422
    %v1426 = vcombine.high %v1424, %v1424
    %v1428 = vsel %vm791, %v1424, 0.0
    %v1429 = vsel %vm791, %v1426, 0.0
    %v1430 = vadd.f32 %v1428, %v1429
    %1431 = vadd.xlane.f32.xlu0 %v1430
    %v1432 = vpop.xlane.xlu0 %1431
    %v1433 = vadd.f32 %v1419, %v1432
    %1434 = vst.msk [vmem:[#allocation4] sm:$0xf] %vm798, %v1433
    %1436 = vrot.lane.b32.xlu0 %v1381, 1
    %v1437 = vpop.permute.xlu0 %1436
    %1439 = vst.msk [vmem:[#allocation3] sm:$0xf] %vm798, %v1437
    %v1440 = vld [vmem:[%s2 + $0xc] sm:$0x3]
    %v1441 = vunpack.c.0.s8 %v1440
    %v1442 = vcvt.s32.f32 %v1441
    %v1443 = vld [vmem:[%s1 + $0x30] sm:$0xff]
    %v1444 = vsub.f32 0.0, %v1443
    %v1445 = vld [vmem:[#allocation3] sm:$0xf]
    %v1447 = vunpack.c.l.s4 1935823168
    %v1448 = vunpack.c.0.s8 %v1447
    %v1449 = vlaneseq
    %v1450 = vshrl.u32 %v1449, 7
    %v1451 = vsub.s32 %v1448, %v1450
    %v1452 = vrot.slane %v1440, %v1451
    %v1453 = vunpack.c.l.s8.bf16 %v1452
    %v1455 = vunpack.c.l.b16 %v1453
    %v1456 = vunpack.c.h.b16 %v1453
    %v1457 = vpack.c.b16 %v1455, %v1455
    %v1458 = vpack.c.b16 %v1456, %v1456
    %1461 = vmatprep.subr.bf16.mxu0 %v640
    %1462 = vmatpush1.bf16.msra.mxu0 %v639
    %1463 = vmatprep.subr.bf16.mxu0 %v638
    %1464 = vmatpush1.bf16.msra.mxu0 %v637
    %1465 = vmatprep.subr.bf16.mxu0 %v636
    %1466 = vmatpush1.bf16.msra.mxu0 %v635
    %1467 = vmatprep.subr.bf16.mxu0 %v634
    %1468 = vmatpush1.bf16.msra.mxu0 %v633
    %1469 = vmatprep.subr.bf16.mxu0 %v632
    %1470 = vmatpush1.bf16.msra.mxu0 %v631
    %1471 = vmatprep.subr.bf16.mxu0 %v630
    %1472 = vmatpush1.bf16.msra.mxu0 %v629
    %1473 = vmatprep.subr.bf16.mxu0 %v628
    %1474 = vmatpush1.bf16.msra.mxu0 %v627
    %1475 = vmatprep.subr.bf16.mxu0 %v626
    %1476 = vmatpush1.bf16.msra.mxu0 %v625
    %1477 = vmatprep.subr.bf16.mxu0 %v656
    %1478 = vmatpush2.bf16.msra.mxu0 %v655
    %1479 = vmatprep.subr.bf16.mxu0 %v654
    %1480 = vmatpush2.bf16.msra.mxu0 %v653
    %1481 = vmatprep.subr.bf16.mxu0 %v652
    %1482 = vmatpush2.bf16.msra.mxu0 %v651
    %1483 = vmatprep.subr.bf16.mxu0 %v650
    %1484 = vmatpush2.bf16.msra.mxu0 %v649
    %1485 = vmatprep.subr.bf16.mxu0 %v648
    %1486 = vmatpush2.bf16.msra.mxu0 %v647
    %1487 = vmatprep.subr.bf16.mxu0 %v646
    %1488 = vmatpush2.bf16.msra.mxu0 %v645
    %1489 = vmatprep.subr.bf16.mxu0 %v644
    %1490 = vmatpush2.bf16.msra.mxu0 %v643
    %1491 = vmatprep.subr.bf16.mxu0 %v642
    %1492 = vmatpush2.bf16.msra.mxu0 %v641
    %1493 = vmatprep.mubr.bf16.mxu0 %v1458
    %1494 = vmatmul.mubr.bf16.gmra.mxu0 %v1457
    %v1495 = vpop.f32.mrf.mxu0
    %v1496 = vadd.f32 0.0, %v1495
    %v1497 = vpop.f32.mrf.mxu0
    %v1498 = vadd.f32 0.0, %v1497
    %v1499 = vpop.f32.mrf.mxu0
    %v1500 = vpop.f32.mrf.mxu0
    %1501 = vdwg.mxu0
    %1503 = vset.pattern.permute.xlu0 0
    %1504 = vperm.xlu0 %1503, %v1445
    %v1505 = vpop.permute.xlu0 %1504
    %v1507 = vadd.f32 %v1505, %v1496
    %v1508 = vadd.f32 %v1505, %v1498
    %s1509 = sadd.s32 %s507, 1537
    %v1510 = vstv %s1509
    %v1511 = vadd.s32 %v1510, %v739
    %v1512 = vadd.s32 %v1510, %v740
    %v1513 = vcvt.s32.f32 %v1511
    %v1514 = vcvt.s32.f32 %v1512
    %v1515 = vsub.f32 %v1513, %v1507
    %v1516 = vsub.f32 %v1514, %v1508
    %v1517 = vsub.f32 %v751, %v1507
    %v1518 = vsub.f32 %v751, %v1508
    %v1519 = vadd.f32 %v751, %v1515
    %v1520 = vadd.f32 %v751, %v1516
    %v1522 = vcombine.high %v1442, %v1442
    %v1524 = vadd.f32 %v1517, %v1442
    %v1525 = vadd.f32 %v1518, %v1522
    %v1526 = vsub.f32 1.0, %v1442
    %v1528 = vcombine.high %v1526, %v1526
    %v1530 = vsub.f32 %v1519, %v1526
    %v1531 = vsub.f32 %v1520, %v1528
    %v1532 = vmul.f32 %v1524, %v1519
    %v1533 = vmul.f32 %v1525, %v1520
    %v1534 = vmul.f32 %v1517, %v1530
    %v1535 = vmul.f32 %v1518, %v1531
    %v1536 = vsub.f32 %v1532, %v1534
    %v1537 = vsub.f32 %v1533, %v1535
    %v1538 = vmul.f32 %v1519, %v1530
    %v1539 = vmul.f32 %v1520, %v1531
    %v1540 = vmax.f32 %v1538, 1.0
    %v1541 = vmax.f32 %v1539, 1.0
    %v1542 = vrcp.pop %v1540
    %v1543 = vmul.f32 %v1536, %v1542
    %v1544 = vrcp.pop %v1541
    %v1545 = vmul.f32 %v1537, %v1544
    %v1546 = vld [vmem:[#allocation4] sm:$0xf]
    %v1549 = vcombine.low %v1543, %v1545
    %v1551 = vmul.f32 %v1444, %v1549
    %v1553 = vcombine.high %v1551, %v1551
    %v1555 = vsel %vm791, %v1551, 0.0
    %v1556 = vsel %vm791, %v1553, 0.0
    %v1557 = vadd.f32 %v1555, %v1556
    %1558 = vadd.xlane.f32.xlu0 %v1557
    %v1559 = vpop.xlane.xlu0 %1558
    %v1560 = vadd.f32 %v1546, %v1559
    %1561 = vst.msk [vmem:[#allocation4] sm:$0xf] %vm798, %v1560
    %1563 = vrot.lane.b32.xlu0 %v1508, 1
    %v1564 = vpop.permute.xlu0 %1563
    %1566 = vst.msk [vmem:[#allocation3] sm:$0xf] %vm798, %v1564
    %v1567 = vld [vmem:[%s2 + $0xe] sm:$0x3]
    %v1568 = vunpack.c.0.s8 %v1567
    %v1569 = vcvt.s32.f32 %v1568
    %v1570 = vld [vmem:[%s1 + $0x38] sm:$0xff]
    %v1571 = vsub.f32 0.0, %v1570
    %v1572 = vld [vmem:[#allocation3] sm:$0xf]
    %v1574 = vunpack.c.l.s4 1935823168
    %v1575 = vunpack.c.0.s8 %v1574
    %v1576 = vlaneseq
    %v1577 = vshrl.u32 %v1576, 7
    %v1578 = vsub.s32 %v1575, %v1577
    %v1579 = vrot.slane %v1567, %v1578
    %v1580 = vunpack.c.l.s8.bf16 %v1579
    %v1582 = vunpack.c.l.b16 %v1580
    %v1583 = vunpack.c.h.b16 %v1580
    %v1584 = vpack.c.b16 %v1582, %v1582
    %v1585 = vpack.c.b16 %v1583, %v1583
    %1588 = vmatprep.subr.bf16.mxu0 %v640
    %1589 = vmatpush1.bf16.msra.mxu0 %v639
    %1590 = vmatprep.subr.bf16.mxu0 %v638
    %1591 = vmatpush1.bf16.msra.mxu0 %v637
    %1592 = vmatprep.subr.bf16.mxu0 %v636
    %1593 = vmatpush1.bf16.msra.mxu0 %v635
    %1594 = vmatprep.subr.bf16.mxu0 %v634
    %1595 = vmatpush1.bf16.msra.mxu0 %v633
    %1596 = vmatprep.subr.bf16.mxu0 %v632
    %1597 = vmatpush1.bf16.msra.mxu0 %v631
    %1598 = vmatprep.subr.bf16.mxu0 %v630
    %1599 = vmatpush1.bf16.msra.mxu0 %v629
    %1600 = vmatprep.subr.bf16.mxu0 %v628
    %1601 = vmatpush1.bf16.msra.mxu0 %v627
    %1602 = vmatprep.subr.bf16.mxu0 %v626
    %1603 = vmatpush1.bf16.msra.mxu0 %v625
    %1604 = vmatprep.subr.bf16.mxu0 %v656
    %1605 = vmatpush2.bf16.msra.mxu0 %v655
    %1606 = vmatprep.subr.bf16.mxu0 %v654
    %1607 = vmatpush2.bf16.msra.mxu0 %v653
    %1608 = vmatprep.subr.bf16.mxu0 %v652
    %1609 = vmatpush2.bf16.msra.mxu0 %v651
    %1610 = vmatprep.subr.bf16.mxu0 %v650
    %1611 = vmatpush2.bf16.msra.mxu0 %v649
    %1612 = vmatprep.subr.bf16.mxu0 %v648
    %1613 = vmatpush2.bf16.msra.mxu0 %v647
    %1614 = vmatprep.subr.bf16.mxu0 %v646
    %1615 = vmatpush2.bf16.msra.mxu0 %v645
    %1616 = vmatprep.subr.bf16.mxu0 %v644
    %1617 = vmatpush2.bf16.msra.mxu0 %v643
    %1618 = vmatprep.subr.bf16.mxu0 %v642
    %1619 = vmatpush2.bf16.msra.mxu0 %v641
    %1620 = vmatprep.mubr.bf16.mxu0 %v1585
    %1621 = vmatmul.mubr.bf16.gmra.mxu0 %v1584
    %v1622 = vpop.f32.mrf.mxu0
    %v1623 = vadd.f32 0.0, %v1622
    %v1624 = vpop.f32.mrf.mxu0
    %v1625 = vadd.f32 0.0, %v1624
    %v1626 = vpop.f32.mrf.mxu0
    %v1627 = vpop.f32.mrf.mxu0
    %1628 = vdwg.mxu0
    %1630 = vset.pattern.permute.xlu0 0
    %1631 = vperm.xlu0 %1630, %v1572
    %v1632 = vpop.permute.xlu0 %1631
    %v1634 = vadd.f32 %v1632, %v1623
    %v1635 = vadd.f32 %v1632, %v1625
    %s1636 = sadd.s32 %s507, 1793
    %v1637 = vstv %s1636
    %v1638 = vadd.s32 %v1637, %v739
    %v1639 = vadd.s32 %v1637, %v740
    %v1640 = vcvt.s32.f32 %v1638
    %v1641 = vcvt.s32.f32 %v1639
    %v1642 = vsub.f32 %v1640, %v1634
    %v1643 = vsub.f32 %v1641, %v1635
    %v1644 = vsub.f32 %v751, %v1634
    %v1645 = vsub.f32 %v751, %v1635
    %v1646 = vadd.f32 %v751, %v1642
    %v1647 = vadd.f32 %v751, %v1643
    %v1649 = vcombine.high %v1569, %v1569
    %v1651 = vadd.f32 %v1644, %v1569
    %v1652 = vadd.f32 %v1645, %v1649
    %v1653 = vsub.f32 1.0, %v1569
    %v1655 = vcombine.high %v1653, %v1653
    %v1657 = vsub.f32 %v1646, %v1653
    %v1658 = vsub.f32 %v1647, %v1655
    %v1659 = vmul.f32 %v1651, %v1646
    %v1660 = vmul.f32 %v1652, %v1647
    %v1661 = vmul.f32 %v1644, %v1657
    %v1662 = vmul.f32 %v1645, %v1658
    %v1663 = vsub.f32 %v1659, %v1661
    %v1664 = vsub.f32 %v1660, %v1662
    %v1665 = vmul.f32 %v1646, %v1657
    %v1666 = vmul.f32 %v1647, %v1658
    %v1667 = vmax.f32 %v1665, 1.0
    %v1668 = vmax.f32 %v1666, 1.0
    %v1669 = vrcp.pop %v1667
    %v1670 = vmul.f32 %v1663, %v1669
    %v1671 = vrcp.pop %v1668
    %v1672 = vmul.f32 %v1664, %v1671
    %v1673 = vld [vmem:[#allocation4] sm:$0xf]
    %v1676 = vcombine.low %v1670, %v1672
    %v1678 = vmul.f32 %v1571, %v1676
    %v1680 = vcombine.high %v1678, %v1678
    %v1682 = vsel %vm791, %v1678, 0.0
    %v1683 = vsel %vm791, %v1680, 0.0
    %v1684 = vadd.f32 %v1682, %v1683
    %1685 = vadd.xlane.f32.xlu0 %v1684
    %v1686 = vpop.xlane.xlu0 %1685
    %v1687 = vadd.f32 %v1673, %v1686
    %1688 = vst.msk [vmem:[#allocation4] sm:$0xf] %vm798, %v1687
    %1690 = vrot.lane.b32.xlu0 %v1635, 1
    %v1691 = vpop.permute.xlu0 %1690
    %1693 = vst.msk [vmem:[#allocation3] sm:$0xf] %vm798, %v1691
    %v1694 = vld [vmem:[%s2 + $0x10] sm:$0x3]
    %v1695 = vunpack.c.0.s8 %v1694
    %v1696 = vcvt.s32.f32 %v1695
    %v1697 = vld [vmem:[%s1 + $0x40] sm:$0xff]
    %v1698 = vsub.f32 0.0, %v1697
    %v1699 = vld [vmem:[#allocation3] sm:$0xf]
    %v1701 = vunpack.c.l.s4 1935823168
    %v1702 = vunpack.c.0.s8 %v1701
    %v1703 = vlaneseq
    %v1704 = vshrl.u32 %v1703, 7
    %v1705 = vsub.s32 %v1702, %v1704
    %v1706 = vrot.slane %v1694, %v1705
    %v1707 = vunpack.c.l.s8.bf16 %v1706
    %v1709 = vunpack.c.l.b16 %v1707
    %v1710 = vunpack.c.h.b16 %v1707
    %v1711 = vpack.c.b16 %v1709, %v1709
    %v1712 = vpack.c.b16 %v1710, %v1710
    %1715 = vmatprep.subr.bf16.mxu0 %v640
    %1716 = vmatpush1.bf16.msra.mxu0 %v639
    %1717 = vmatprep.subr.bf16.mxu0 %v638
    %1718 = vmatpush1.bf16.msra.mxu0 %v637
    %1719 = vmatprep.subr.bf16.mxu0 %v636
    %1720 = vmatpush1.bf16.msra.mxu0 %v635
    %1721 = vmatprep.subr.bf16.mxu0 %v634
    %1722 = vmatpush1.bf16.msra.mxu0 %v633
    %1723 = vmatprep.subr.bf16.mxu0 %v632
    %1724 = vmatpush1.bf16.msra.mxu0 %v631
    %1725 = vmatprep.subr.bf16.mxu0 %v630
    %1726 = vmatpush1.bf16.msra.mxu0 %v629
    %1727 = vmatprep.subr.bf16.mxu0 %v628
    %1728 = vmatpush1.bf16.msra.mxu0 %v627
    %1729 = vmatprep.subr.bf16.mxu0 %v626
    %1730 = vmatpush1.bf16.msra.mxu0 %v625
    %1731 = vmatprep.subr.bf16.mxu0 %v656
    %1732 = vmatpush2.bf16.msra.mxu0 %v655
    %1733 = vmatprep.subr.bf16.mxu0 %v654
    %1734 = vmatpush2.bf16.msra.mxu0 %v653
    %1735 = vmatprep.subr.bf16.mxu0 %v652
    %1736 = vmatpush2.bf16.msra.mxu0 %v651
    %1737 = vmatprep.subr.bf16.mxu0 %v650
    %1738 = vmatpush2.bf16.msra.mxu0 %v649
    %1739 = vmatprep.subr.bf16.mxu0 %v648
    %1740 = vmatpush2.bf16.msra.mxu0 %v647
    %1741 = vmatprep.subr.bf16.mxu0 %v646
    %1742 = vmatpush2.bf16.msra.mxu0 %v645
    %1743 = vmatprep.subr.bf16.mxu0 %v644
    %1744 = vmatpush2.bf16.msra.mxu0 %v643
    %1745 = vmatprep.subr.bf16.mxu0 %v642
    %1746 = vmatpush2.bf16.msra.mxu0 %v641
    %1747 = vmatprep.mubr.bf16.mxu0 %v1712
    %1748 = vmatmul.mubr.bf16.gmra.mxu0 %v1711
    %v1749 = vpop.f32.mrf.mxu0
    %v1750 = vadd.f32 0.0, %v1749
    %v1751 = vpop.f32.mrf.mxu0
    %v1752 = vadd.f32 0.0, %v1751
    %v1753 = vpop.f32.mrf.mxu0
    %v1754 = vpop.f32.mrf.mxu0
    %1755 = vdwg.mxu0
    %1757 = vset.pattern.permute.xlu0 0
    %1758 = vperm.xlu0 %1757, %v1699
    %v1759 = vpop.permute.xlu0 %1758
    %v1761 = vadd.f32 %v1759, %v1750
    %v1762 = vadd.f32 %v1759, %v1752
    %s1763 = sadd.s32 %s507, 2049
    %v1764 = vstv %s1763
    %v1765 = vadd.s32 %v1764, %v739
    %v1766 = vadd.s32 %v1764, %v740
    %v1767 = vcvt.s32.f32 %v1765
    %v1768 = vcvt.s32.f32 %v1766
    %v1769 = vsub.f32 %v1767, %v1761
    %v1770 = vsub.f32 %v1768, %v1762
    %v1771 = vsub.f32 %v751, %v1761
    %v1772 = vsub.f32 %v751, %v1762
    %v1773 = vadd.f32 %v751, %v1769
    %v1774 = vadd.f32 %v751, %v1770
    %v1776 = vcombine.high %v1696, %v1696
    %v1778 = vadd.f32 %v1771, %v1696
    %v1779 = vadd.f32 %v1772, %v1776
    %v1780 = vsub.f32 1.0, %v1696
    %v1782 = vcombine.high %v1780, %v1780
    %v1784 = vsub.f32 %v1773, %v1780
    %v1785 = vsub.f32 %v1774, %v1782
    %v1786 = vmul.f32 %v1778, %v1773
    %v1787 = vmul.f32 %v1779, %v1774
    %v1788 = vmul.f32 %v1771, %v1784
    %v1789 = vmul.f32 %v1772, %v1785
    %v1790 = vsub.f32 %v1786, %v1788
    %v1791 = vsub.f32 %v1787, %v1789
    %v1792 = vmul.f32 %v1773, %v1784
    %v1793 = vmul.f32 %v1774, %v1785
    %v1794 = vmax.f32 %v1792, 1.0
    %v1795 = vmax.f32 %v1793, 1.0
    %v1796 = vrcp.pop %v1794
    %v1797 = vmul.f32 %v1790, %v1796
    %v1798 = vrcp.pop %v1795
    %v1799 = vmul.f32 %v1791, %v1798
    %v1800 = vld [vmem:[#allocation4] sm:$0xf]
    %v1803 = vcombine.low %v1797, %v1799
    %v1805 = vmul.f32 %v1698, %v1803
    %v1807 = vcombine.high %v1805, %v1805
    %v1809 = vsel %vm791, %v1805, 0.0
    %v1810 = vsel %vm791, %v1807, 0.0
    %v1811 = vadd.f32 %v1809, %v1810
    %1812 = vadd.xlane.f32.xlu0 %v1811
    %v1813 = vpop.xlane.xlu0 %1812
    %v1814 = vadd.f32 %v1800, %v1813
    %1815 = vst.msk [vmem:[#allocation4] sm:$0xf] %vm798, %v1814
    %1817 = vrot.lane.b32.xlu0 %v1762, 1
    %v1818 = vpop.permute.xlu0 %1817
    %1820 = vst.msk [vmem:[#allocation3] sm:$0xf] %vm798, %v1818
    %v1821 = vld [vmem:[%s2 + $0x12] sm:$0x3]
    %v1822 = vunpack.c.0.s8 %v1821
    %v1823 = vcvt.s32.f32 %v1822
    %v1824 = vld [vmem:[%s1 + $0x48] sm:$0xff]
    %v1825 = vsub.f32 0.0, %v1824
    %v1826 = vld [vmem:[#allocation3] sm:$0xf]
    %v1828 = vunpack.c.l.s4 1935823168
    %v1829 = vunpack.c.0.s8 %v1828
    %v1830 = vlaneseq
    %v1831 = vshrl.u32 %v1830, 7
    %v1832 = vsub.s32 %v1829, %v1831
    %v1833 = vrot.slane %v1821, %v1832
    %v1834 = vunpack.c.l.s8.bf16 %v1833
    %v1836 = vunpack.c.l.b16 %v1834
    %v1837 = vunpack.c.h.b16 %v1834
    %v1838 = vpack.c.b16 %v1836, %v1836
    %v1839 = vpack.c.b16 %v1837, %v1837
    %1842 = vmatprep.subr.bf16.mxu0 %v640
    %1843 = vmatpush1.bf16.msra.mxu0 %v639
    %1844 = vmatprep.subr.bf16.mxu0 %v638
    %1845 = vmatpush1.bf16.msra.mxu0 %v637
    %1846 = vmatprep.subr.bf16.mxu0 %v636
    %1847 = vmatpush1.bf16.msra.mxu0 %v635
    %1848 = vmatprep.subr.bf16.mxu0 %v634
    %1849 = vmatpush1.bf16.msra.mxu0 %v633
    %1850 = vmatprep.subr.bf16.mxu0 %v632
    %1851 = vmatpush1.bf16.msra.mxu0 %v631
    %1852 = vmatprep.subr.bf16.mxu0 %v630
    %1853 = vmatpush1.bf16.msra.mxu0 %v629
    %1854 = vmatprep.subr.bf16.mxu0 %v628
    %1855 = vmatpush1.bf16.msra.mxu0 %v627
    %1856 = vmatprep.subr.bf16.mxu0 %v626
    %1857 = vmatpush1.bf16.msra.mxu0 %v625
    %1858 = vmatprep.subr.bf16.mxu0 %v656
    %1859 = vmatpush2.bf16.msra.mxu0 %v655
    %1860 = vmatprep.subr.bf16.mxu0 %v654
    %1861 = vmatpush2.bf16.msra.mxu0 %v653
    %1862 = vmatprep.subr.bf16.mxu0 %v652
    %1863 = vmatpush2.bf16.msra.mxu0 %v651
    %1864 = vmatprep.subr.bf16.mxu0 %v650
    %1865 = vmatpush2.bf16.msra.mxu0 %v649
    %1866 = vmatprep.subr.bf16.mxu0 %v648
    %1867 = vmatpush2.bf16.msra.mxu0 %v647
    %1868 = vmatprep.subr.bf16.mxu0 %v646
    %1869 = vmatpush2.bf16.msra.mxu0 %v645
    %1870 = vmatprep.subr.bf16.mxu0 %v644
    %1871 = vmatpush2.bf16.msra.mxu0 %v643
    %1872 = vmatprep.subr.bf16.mxu0 %v642
    %1873 = vmatpush2.bf16.msra.mxu0 %v641
    %1874 = vmatprep.mubr.bf16.mxu0 %v1839
    %1875 = vmatmul.mubr.bf16.gmra.mxu0 %v1838
    %v1876 = vpop.f32.mrf.mxu0
    %v1877 = vadd.f32 0.0, %v1876
    %v1878 = vpop.f32.mrf.mxu0
    %v1879 = vadd.f32 0.0, %v1878
    %v1880 = vpop.f32.mrf.mxu0
    %v1881 = vpop.f32.mrf.mxu0
    %1882 = vdwg.mxu0
    %1884 = vset.pattern.permute.xlu0 0
    %1885 = vperm.xlu0 %1884, %v1826
    %v1886 = vpop.permute.xlu0 %1885
    %v1888 = vadd.f32 %v1886, %v1877
    %v1889 = vadd.f32 %v1886, %v1879
    %s1890 = sadd.s32 %s507, 2305
    %v1891 = vstv %s1890
    %v1892 = vadd.s32 %v1891, %v739
    %v1893 = vadd.s32 %v1891, %v740
    %v1894 = vcvt.s32.f32 %v1892
    %v1895 = vcvt.s32.f32 %v1893
    %v1896 = vsub.f32 %v1894, %v1888
    %v1897 = vsub.f32 %v1895, %v1889
    %v1898 = vsub.f32 %v751, %v1888
    %v1899 = vsub.f32 %v751, %v1889
    %v1900 = vadd.f32 %v751, %v1896
    %v1901 = vadd.f32 %v751, %v1897
    %v1903 = vcombine.high %v1823, %v1823
    %v1905 = vadd.f32 %v1898, %v1823
    %v1906 = vadd.f32 %v1899, %v1903
    %v1907 = vsub.f32 1.0, %v1823
    %v1909 = vcombine.high %v1907, %v1907
    %v1911 = vsub.f32 %v1900, %v1907
    %v1912 = vsub.f32 %v1901, %v1909
    %v1913 = vmul.f32 %v1905, %v1900
    %v1914 = vmul.f32 %v1906, %v1901
    %v1915 = vmul.f32 %v1898, %v1911
    %v1916 = vmul.f32 %v1899, %v1912
    %v1917 = vsub.f32 %v1913, %v1915
    %v1918 = vsub.f32 %v1914, %v1916
    %v1919 = vmul.f32 %v1900, %v1911
    %v1920 = vmul.f32 %v1901, %v1912
    %v1921 = vmax.f32 %v1919, 1.0
    %v1922 = vmax.f32 %v1920, 1.0
    %v1923 = vrcp.pop %v1921
    %v1924 = vmul.f32 %v1917, %v1923
    %v1925 = vrcp.pop %v1922
    %v1926 = vmul.f32 %v1918, %v1925
    %v1927 = vld [vmem:[#allocation4] sm:$0xf]
    %v1930 = vcombine.low %v1924, %v1926
    %v1932 = vmul.f32 %v1825, %v1930
    %v1934 = vcombine.high %v1932, %v1932
    %v1936 = vsel %vm791, %v1932, 0.0
    %v1937 = vsel %vm791, %v1934, 0.0
    %v1938 = vadd.f32 %v1936, %v1937
    %1939 = vadd.xlane.f32.xlu0 %v1938
    %v1940 = vpop.xlane.xlu0 %1939
    %v1941 = vadd.f32 %v1927, %v1940
    %1942 = vst.msk [vmem:[#allocation4] sm:$0xf] %vm798, %v1941
    %1944 = vrot.lane.b32.xlu0 %v1889, 1
    %v1945 = vpop.permute.xlu0 %1944
    %1947 = vst.msk [vmem:[#allocation3] sm:$0xf] %vm798, %v1945
    %v1948 = vld [vmem:[%s2 + $0x14] sm:$0x3]
    %v1949 = vunpack.c.0.s8 %v1948
    %v1950 = vcvt.s32.f32 %v1949
    %v1951 = vld [vmem:[%s1 + $0x50] sm:$0xff]
    %v1952 = vsub.f32 0.0, %v1951
    %v1953 = vld [vmem:[#allocation3] sm:$0xf]
    %v1955 = vunpack.c.l.s4 1935823168
    %v1956 = vunpack.c.0.s8 %v1955
    %v1957 = vlaneseq
    %v1958 = vshrl.u32 %v1957, 7
    %v1959 = vsub.s32 %v1956, %v1958
    %v1960 = vrot.slane %v1948, %v1959
    %v1961 = vunpack.c.l.s8.bf16 %v1960
    %v1963 = vunpack.c.l.b16 %v1961
    %v1964 = vunpack.c.h.b16 %v1961
    %v1965 = vpack.c.b16 %v1963, %v1963
    %v1966 = vpack.c.b16 %v1964, %v1964
    %1969 = vmatprep.subr.bf16.mxu0 %v640
    %1970 = vmatpush1.bf16.msra.mxu0 %v639
    %1971 = vmatprep.subr.bf16.mxu0 %v638
    %1972 = vmatpush1.bf16.msra.mxu0 %v637
    %1973 = vmatprep.subr.bf16.mxu0 %v636
    %1974 = vmatpush1.bf16.msra.mxu0 %v635
    %1975 = vmatprep.subr.bf16.mxu0 %v634
    %1976 = vmatpush1.bf16.msra.mxu0 %v633
    %1977 = vmatprep.subr.bf16.mxu0 %v632
    %1978 = vmatpush1.bf16.msra.mxu0 %v631
    %1979 = vmatprep.subr.bf16.mxu0 %v630
    %1980 = vmatpush1.bf16.msra.mxu0 %v629
    %1981 = vmatprep.subr.bf16.mxu0 %v628
    %1982 = vmatpush1.bf16.msra.mxu0 %v627
    %1983 = vmatprep.subr.bf16.mxu0 %v626
    %1984 = vmatpush1.bf16.msra.mxu0 %v625
    %1985 = vmatprep.subr.bf16.mxu0 %v656
    %1986 = vmatpush2.bf16.msra.mxu0 %v655
    %1987 = vmatprep.subr.bf16.mxu0 %v654
    %1988 = vmatpush2.bf16.msra.mxu0 %v653
    %1989 = vmatprep.subr.bf16.mxu0 %v652
    %1990 = vmatpush2.bf16.msra.mxu0 %v651
    %1991 = vmatprep.subr.bf16.mxu0 %v650
    %1992 = vmatpush2.bf16.msra.mxu0 %v649
    %1993 = vmatprep.subr.bf16.mxu0 %v648
    %1994 = vmatpush2.bf16.msra.mxu0 %v647
    %1995 = vmatprep.subr.bf16.mxu0 %v646
    %1996 = vmatpush2.bf16.msra.mxu0 %v645
    %1997 = vmatprep.subr.bf16.mxu0 %v644
    %1998 = vmatpush2.bf16.msra.mxu0 %v643
    %1999 = vmatprep.subr.bf16.mxu0 %v642
    %2000 = vmatpush2.bf16.msra.mxu0 %v641
    %2001 = vmatprep.mubr.bf16.mxu0 %v1966
    %2002 = vmatmul.mubr.bf16.gmra.mxu0 %v1965
    %v2003 = vpop.f32.mrf.mxu0
    %v2004 = vadd.f32 0.0, %v2003
    %v2005 = vpop.f32.mrf.mxu0
    %v2006 = vadd.f32 0.0, %v2005
    %v2007 = vpop.f32.mrf.mxu0
    %v2008 = vpop.f32.mrf.mxu0
    %2009 = vdwg.mxu0
    %2011 = vset.pattern.permute.xlu0 0
    %2012 = vperm.xlu0 %2011, %v1953
    %v2013 = vpop.permute.xlu0 %2012
    %v2015 = vadd.f32 %v2013, %v2004
    %v2016 = vadd.f32 %v2013, %v2006
    %s2017 = sadd.s32 %s507, 2561
    %v2018 = vstv %s2017
    %v2019 = vadd.s32 %v2018, %v739
    %v2020 = vadd.s32 %v2018, %v740
    %v2021 = vcvt.s32.f32 %v2019
    %v2022 = vcvt.s32.f32 %v2020
    %v2023 = vsub.f32 %v2021, %v2015
    %v2024 = vsub.f32 %v2022, %v2016
    %v2025 = vsub.f32 %v751, %v2015
    %v2026 = vsub.f32 %v751, %v2016
    %v2027 = vadd.f32 %v751, %v2023
    %v2028 = vadd.f32 %v751, %v2024
    %v2030 = vcombine.high %v1950, %v1950
    %v2032 = vadd.f32 %v2025, %v1950
    %v2033 = vadd.f32 %v2026, %v2030
    %v2034 = vsub.f32 1.0, %v1950
    %v2036 = vcombine.high %v2034, %v2034
    %v2038 = vsub.f32 %v2027, %v2034
    %v2039 = vsub.f32 %v2028, %v2036
    %v2040 = vmul.f32 %v2032, %v2027
    %v2041 = vmul.f32 %v2033, %v2028
    %v2042 = vmul.f32 %v2025, %v2038
    %v2043 = vmul.f32 %v2026, %v2039
    %v2044 = vsub.f32 %v2040, %v2042
    %v2045 = vsub.f32 %v2041, %v2043
    %v2046 = vmul.f32 %v2027, %v2038
    %v2047 = vmul.f32 %v2028, %v2039
    %v2048 = vmax.f32 %v2046, 1.0
    %v2049 = vmax.f32 %v2047, 1.0
    %v2050 = vrcp.pop %v2048
    %v2051 = vmul.f32 %v2044, %v2050
    %v2052 = vrcp.pop %v2049
    %v2053 = vmul.f32 %v2045, %v2052
    %v2054 = vld [vmem:[#allocation4] sm:$0xf]
    %v2057 = vcombine.low %v2051, %v2053
    %v2059 = vmul.f32 %v1952, %v2057
    %v2061 = vcombine.high %v2059, %v2059
    %v2063 = vsel %vm791, %v2059, 0.0
    %v2064 = vsel %vm791, %v2061, 0.0
    %v2065 = vadd.f32 %v2063, %v2064
    %2066 = vadd.xlane.f32.xlu0 %v2065
    %v2067 = vpop.xlane.xlu0 %2066
    %v2068 = vadd.f32 %v2054, %v2067
    %2069 = vst.msk [vmem:[#allocation4] sm:$0xf] %vm798, %v2068
    %2071 = vrot.lane.b32.xlu0 %v2016, 1
    %v2072 = vpop.permute.xlu0 %2071
    %2074 = vst.msk [vmem:[#allocation3] sm:$0xf] %vm798, %v2072
    %v2075 = vld [vmem:[%s2 + $0x16] sm:$0x3]
    %v2076 = vunpack.c.0.s8 %v2075
    %v2077 = vcvt.s32.f32 %v2076
    %v2078 = vld [vmem:[%s1 + $0x58] sm:$0xff]
    %v2079 = vsub.f32 0.0, %v2078
    %v2080 = vld [vmem:[#allocation3] sm:$0xf]
    %v2082 = vunpack.c.l.s4 1935823168
    %v2083 = vunpack.c.0.s8 %v2082
    %v2084 = vlaneseq
    %v2085 = vshrl.u32 %v2084, 7
    %v2086 = vsub.s32 %v2083, %v2085
    %v2087 = vrot.slane %v2075, %v2086
    %v2088 = vunpack.c.l.s8.bf16 %v2087
    %v2090 = vunpack.c.l.b16 %v2088
    %v2091 = vunpack.c.h.b16 %v2088
    %v2092 = vpack.c.b16 %v2090, %v2090
    %v2093 = vpack.c.b16 %v2091, %v2091
    %2096 = vmatprep.subr.bf16.mxu0 %v640
    %2097 = vmatpush1.bf16.msra.mxu0 %v639
    %2098 = vmatprep.subr.bf16.mxu0 %v638
    %2099 = vmatpush1.bf16.msra.mxu0 %v637
    %2100 = vmatprep.subr.bf16.mxu0 %v636
    %2101 = vmatpush1.bf16.msra.mxu0 %v635
    %2102 = vmatprep.subr.bf16.mxu0 %v634
    %2103 = vmatpush1.bf16.msra.mxu0 %v633
    %2104 = vmatprep.subr.bf16.mxu0 %v632
    %2105 = vmatpush1.bf16.msra.mxu0 %v631
    %2106 = vmatprep.subr.bf16.mxu0 %v630
    %2107 = vmatpush1.bf16.msra.mxu0 %v629
    %2108 = vmatprep.subr.bf16.mxu0 %v628
    %2109 = vmatpush1.bf16.msra.mxu0 %v627
    %2110 = vmatprep.subr.bf16.mxu0 %v626
    %2111 = vmatpush1.bf16.msra.mxu0 %v625
    %2112 = vmatprep.subr.bf16.mxu0 %v656
    %2113 = vmatpush2.bf16.msra.mxu0 %v655
    %2114 = vmatprep.subr.bf16.mxu0 %v654
    %2115 = vmatpush2.bf16.msra.mxu0 %v653
    %2116 = vmatprep.subr.bf16.mxu0 %v652
    %2117 = vmatpush2.bf16.msra.mxu0 %v651
    %2118 = vmatprep.subr.bf16.mxu0 %v650
    %2119 = vmatpush2.bf16.msra.mxu0 %v649
    %2120 = vmatprep.subr.bf16.mxu0 %v648
    %2121 = vmatpush2.bf16.msra.mxu0 %v647
    %2122 = vmatprep.subr.bf16.mxu0 %v646
    %2123 = vmatpush2.bf16.msra.mxu0 %v645
    %2124 = vmatprep.subr.bf16.mxu0 %v644
    %2125 = vmatpush2.bf16.msra.mxu0 %v643
    %2126 = vmatprep.subr.bf16.mxu0 %v642
    %2127 = vmatpush2.bf16.msra.mxu0 %v641
    %2128 = vmatprep.mubr.bf16.mxu0 %v2093
    %2129 = vmatmul.mubr.bf16.gmra.mxu0 %v2092
    %v2130 = vpop.f32.mrf.mxu0
    %v2131 = vadd.f32 0.0, %v2130
    %v2132 = vpop.f32.mrf.mxu0
    %v2133 = vadd.f32 0.0, %v2132
    %v2134 = vpop.f32.mrf.mxu0
    %v2135 = vpop.f32.mrf.mxu0
    %2136 = vdwg.mxu0
    %2138 = vset.pattern.permute.xlu0 0
    %2139 = vperm.xlu0 %2138, %v2080
    %v2140 = vpop.permute.xlu0 %2139
    %v2142 = vadd.f32 %v2140, %v2131
    %v2143 = vadd.f32 %v2140, %v2133
    %s2144 = sadd.s32 %s507, 2817
    %v2145 = vstv %s2144
    %v2146 = vadd.s32 %v2145, %v739
    %v2147 = vadd.s32 %v2145, %v740
    %v2148 = vcvt.s32.f32 %v2146
    %v2149 = vcvt.s32.f32 %v2147
    %v2150 = vsub.f32 %v2148, %v2142
    %v2151 = vsub.f32 %v2149, %v2143
    %v2152 = vsub.f32 %v751, %v2142
    %v2153 = vsub.f32 %v751, %v2143
    %v2154 = vadd.f32 %v751, %v2150
    %v2155 = vadd.f32 %v751, %v2151
    %v2157 = vcombine.high %v2077, %v2077
    %v2159 = vadd.f32 %v2152, %v2077
    %v2160 = vadd.f32 %v2153, %v2157
    %v2161 = vsub.f32 1.0, %v2077
    %v2163 = vcombine.high %v2161, %v2161
    %v2165 = vsub.f32 %v2154, %v2161
    %v2166 = vsub.f32 %v2155, %v2163
    %v2167 = vmul.f32 %v2159, %v2154
    %v2168 = vmul.f32 %v2160, %v2155
    %v2169 = vmul.f32 %v2152, %v2165
    %v2170 = vmul.f32 %v2153, %v2166
    %v2171 = vsub.f32 %v2167, %v2169
    %v2172 = vsub.f32 %v2168, %v2170
    %v2173 = vmul.f32 %v2154, %v2165
    %v2174 = vmul.f32 %v2155, %v2166
    %v2175 = vmax.f32 %v2173, 1.0
    %v2176 = vmax.f32 %v2174, 1.0
    %v2177 = vrcp.pop %v2175
    %v2178 = vmul.f32 %v2171, %v2177
    %v2179 = vrcp.pop %v2176
    %v2180 = vmul.f32 %v2172, %v2179
    %v2181 = vld [vmem:[#allocation4] sm:$0xf]
    %v2184 = vcombine.low %v2178, %v2180
    %v2186 = vmul.f32 %v2079, %v2184
    %v2188 = vcombine.high %v2186, %v2186
    %v2190 = vsel %vm791, %v2186, 0.0
    %v2191 = vsel %vm791, %v2188, 0.0
    %v2192 = vadd.f32 %v2190, %v2191
    %2193 = vadd.xlane.f32.xlu0 %v2192
    %v2194 = vpop.xlane.xlu0 %2193
    %v2195 = vadd.f32 %v2181, %v2194
    %2196 = vst.msk [vmem:[#allocation4] sm:$0xf] %vm798, %v2195
    %2198 = vrot.lane.b32.xlu0 %v2143, 1
    %v2199 = vpop.permute.xlu0 %2198
    %2201 = vst.msk [vmem:[#allocation3] sm:$0xf] %vm798, %v2199
    %v2202 = vld [vmem:[%s2 + $0x18] sm:$0x3]
    %v2203 = vunpack.c.0.s8 %v2202
    %v2204 = vcvt.s32.f32 %v2203
    %v2205 = vld [vmem:[%s1 + $0x60] sm:$0xff]
    %v2206 = vsub.f32 0.0, %v2205
    %v2207 = vld [vmem:[#allocation3] sm:$0xf]
    %v2209 = vunpack.c.l.s4 1935823168
    %v2210 = vunpack.c.0.s8 %v2209
    %v2211 = vlaneseq
    %v2212 = vshrl.u32 %v2211, 7
    %v2213 = vsub.s32 %v2210, %v2212
    %v2214 = vrot.slane %v2202, %v2213
    %v2215 = vunpack.c.l.s8.bf16 %v2214
    %v2217 = vunpack.c.l.b16 %v2215
    %v2218 = vunpack.c.h.b16 %v2215
    %v2219 = vpack.c.b16 %v2217, %v2217
    %v2220 = vpack.c.b16 %v2218, %v2218
    %2223 = vmatprep.subr.bf16.mxu0 %v640
    %2224 = vmatpush1.bf16.msra.mxu0 %v639
    %2225 = vmatprep.subr.bf16.mxu0 %v638
    %2226 = vmatpush1.bf16.msra.mxu0 %v637
    %2227 = vmatprep.subr.bf16.mxu0 %v636
    %2228 = vmatpush1.bf16.msra.mxu0 %v635
    %2229 = vmatprep.subr.bf16.mxu0 %v634
    %2230 = vmatpush1.bf16.msra.mxu0 %v633
    %2231 = vmatprep.subr.bf16.mxu0 %v632
    %2232 = vmatpush1.bf16.msra.mxu0 %v631
    %2233 = vmatprep.subr.bf16.mxu0 %v630
    %2234 = vmatpush1.bf16.msra.mxu0 %v629
    %2235 = vmatprep.subr.bf16.mxu0 %v628
    %2236 = vmatpush1.bf16.msra.mxu0 %v627
    %2237 = vmatprep.subr.bf16.mxu0 %v626
    %2238 = vmatpush1.bf16.msra.mxu0 %v625
    %2239 = vmatprep.subr.bf16.mxu0 %v656
    %2240 = vmatpush2.bf16.msra.mxu0 %v655
    %2241 = vmatprep.subr.bf16.mxu0 %v654
    %2242 = vmatpush2.bf16.msra.mxu0 %v653
    %2243 = vmatprep.subr.bf16.mxu0 %v652
    %2244 = vmatpush2.bf16.msra.mxu0 %v651
    %2245 = vmatprep.subr.bf16.mxu0 %v650
    %2246 = vmatpush2.bf16.msra.mxu0 %v649
    %2247 = vmatprep.subr.bf16.mxu0 %v648
    %2248 = vmatpush2.bf16.msra.mxu0 %v647
    %2249 = vmatprep.subr.bf16.mxu0 %v646
    %2250 = vmatpush2.bf16.msra.mxu0 %v645
    %2251 = vmatprep.subr.bf16.mxu0 %v644
    %2252 = vmatpush2.bf16.msra.mxu0 %v643
    %2253 = vmatprep.subr.bf16.mxu0 %v642
    %2254 = vmatpush2.bf16.msra.mxu0 %v641
    %2255 = vmatprep.mubr.bf16.mxu0 %v2220
    %2256 = vmatmul.mubr.bf16.gmra.mxu0 %v2219
    %v2257 = vpop.f32.mrf.mxu0
    %v2258 = vadd.f32 0.0, %v2257
    %v2259 = vpop.f32.mrf.mxu0
    %v2260 = vadd.f32 0.0, %v2259
    %v2261 = vpop.f32.mrf.mxu0
    %v2262 = vpop.f32.mrf.mxu0
    %2263 = vdwg.mxu0
    %2265 = vset.pattern.permute.xlu0 0
    %2266 = vperm.xlu0 %2265, %v2207
    %v2267 = vpop.permute.xlu0 %2266
    %v2269 = vadd.f32 %v2267, %v2258
    %v2270 = vadd.f32 %v2267, %v2260
    %s2271 = sadd.s32 %s507, 3073
    %v2272 = vstv %s2271
    %v2273 = vadd.s32 %v2272, %v739
    %v2274 = vadd.s32 %v2272, %v740
    %v2275 = vcvt.s32.f32 %v2273
    %v2276 = vcvt.s32.f32 %v2274
    %v2277 = vsub.f32 %v2275, %v2269
    %v2278 = vsub.f32 %v2276, %v2270
    %v2279 = vsub.f32 %v751, %v2269
    %v2280 = vsub.f32 %v751, %v2270
    %v2281 = vadd.f32 %v751, %v2277
    %v2282 = vadd.f32 %v751, %v2278
    %v2284 = vcombine.high %v2204, %v2204
    %v2286 = vadd.f32 %v2279, %v2204
    %v2287 = vadd.f32 %v2280, %v2284
    %v2288 = vsub.f32 1.0, %v2204
    %v2290 = vcombine.high %v2288, %v2288
    %v2292 = vsub.f32 %v2281, %v2288
    %v2293 = vsub.f32 %v2282, %v2290
    %v2294 = vmul.f32 %v2286, %v2281
    %v2295 = vmul.f32 %v2287, %v2282
    %v2296 = vmul.f32 %v2279, %v2292
    %v2297 = vmul.f32 %v2280, %v2293
    %v2298 = vsub.f32 %v2294, %v2296
    %v2299 = vsub.f32 %v2295, %v2297
    %v2300 = vmul.f32 %v2281, %v2292
    %v2301 = vmul.f32 %v2282, %v2293
    %v2302 = vmax.f32 %v2300, 1.0
    %v2303 = vmax.f32 %v2301, 1.0
    %v2304 = vrcp.pop %v2302
    %v2305 = vmul.f32 %v2298, %v2304
    %v2306 = vrcp.pop %v2303
    %v2307 = vmul.f32 %v2299, %v2306
    %v2308 = vld [vmem:[#allocation4] sm:$0xf]
    %v2311 = vcombine.low %v2305, %v2307
    %v2313 = vmul.f32 %v2206, %v2311
    %v2315 = vcombine.high %v2313, %v2313
    %v2317 = vsel %vm791, %v2313, 0.0
    %v2318 = vsel %vm791, %v2315, 0.0
    %v2319 = vadd.f32 %v2317, %v2318
    %2320 = vadd.xlane.f32.xlu0 %v2319
    %v2321 = vpop.xlane.xlu0 %2320
    %v2322 = vadd.f32 %v2308, %v2321
    %2323 = vst.msk [vmem:[#allocation4] sm:$0xf] %vm798, %v2322
    %2325 = vrot.lane.b32.xlu0 %v2270, 1
    %v2326 = vpop.permute.xlu0 %2325
    %2328 = vst.msk [vmem:[#allocation3] sm:$0xf] %vm798, %v2326
    %v2329 = vld [vmem:[%s2 + $0x1a] sm:$0x3]
    %v2330 = vunpack.c.0.s8 %v2329
    %v2331 = vcvt.s32.f32 %v2330
    %v2332 = vld [vmem:[%s1 + $0x68] sm:$0xff]
    %v2333 = vsub.f32 0.0, %v2332
    %v2334 = vld [vmem:[#allocation3] sm:$0xf]
    %v2336 = vunpack.c.l.s4 1935823168
    %v2337 = vunpack.c.0.s8 %v2336
    %v2338 = vlaneseq
    %v2339 = vshrl.u32 %v2338, 7
    %v2340 = vsub.s32 %v2337, %v2339
    %v2341 = vrot.slane %v2329, %v2340
    %v2342 = vunpack.c.l.s8.bf16 %v2341
    %v2344 = vunpack.c.l.b16 %v2342
    %v2345 = vunpack.c.h.b16 %v2342
    %v2346 = vpack.c.b16 %v2344, %v2344
    %v2347 = vpack.c.b16 %v2345, %v2345
    %2350 = vmatprep.subr.bf16.mxu0 %v640
    %2351 = vmatpush1.bf16.msra.mxu0 %v639
    %2352 = vmatprep.subr.bf16.mxu0 %v638
    %2353 = vmatpush1.bf16.msra.mxu0 %v637
    %2354 = vmatprep.subr.bf16.mxu0 %v636
    %2355 = vmatpush1.bf16.msra.mxu0 %v635
    %2356 = vmatprep.subr.bf16.mxu0 %v634
    %2357 = vmatpush1.bf16.msra.mxu0 %v633
    %2358 = vmatprep.subr.bf16.mxu0 %v632
    %2359 = vmatpush1.bf16.msra.mxu0 %v631
    %2360 = vmatprep.subr.bf16.mxu0 %v630
    %2361 = vmatpush1.bf16.msra.mxu0 %v629
    %2362 = vmatprep.subr.bf16.mxu0 %v628
    %2363 = vmatpush1.bf16.msra.mxu0 %v627
    %2364 = vmatprep.subr.bf16.mxu0 %v626
    %2365 = vmatpush1.bf16.msra.mxu0 %v625
    %2366 = vmatprep.subr.bf16.mxu0 %v656
    %2367 = vmatpush2.bf16.msra.mxu0 %v655
    %2368 = vmatprep.subr.bf16.mxu0 %v654
    %2369 = vmatpush2.bf16.msra.mxu0 %v653
    %2370 = vmatprep.subr.bf16.mxu0 %v652
    %2371 = vmatpush2.bf16.msra.mxu0 %v651
    %2372 = vmatprep.subr.bf16.mxu0 %v650
    %2373 = vmatpush2.bf16.msra.mxu0 %v649
    %2374 = vmatprep.subr.bf16.mxu0 %v648
    %2375 = vmatpush2.bf16.msra.mxu0 %v647
    %2376 = vmatprep.subr.bf16.mxu0 %v646
    %2377 = vmatpush2.bf16.msra.mxu0 %v645
    %2378 = vmatprep.subr.bf16.mxu0 %v644
    %2379 = vmatpush2.bf16.msra.mxu0 %v643
    %2380 = vmatprep.subr.bf16.mxu0 %v642
    %2381 = vmatpush2.bf16.msra.mxu0 %v641
    %2382 = vmatprep.mubr.bf16.mxu0 %v2347
    %2383 = vmatmul.mubr.bf16.gmra.mxu0 %v2346
    %v2384 = vpop.f32.mrf.mxu0
    %v2385 = vadd.f32 0.0, %v2384
    %v2386 = vpop.f32.mrf.mxu0
    %v2387 = vadd.f32 0.0, %v2386
    %v2388 = vpop.f32.mrf.mxu0
    %v2389 = vpop.f32.mrf.mxu0
    %2390 = vdwg.mxu0
    %2392 = vset.pattern.permute.xlu0 0
    %2393 = vperm.xlu0 %2392, %v2334
    %v2394 = vpop.permute.xlu0 %2393
    %v2396 = vadd.f32 %v2394, %v2385
    %v2397 = vadd.f32 %v2394, %v2387
    %s2398 = sadd.s32 %s507, 3329
    %v2399 = vstv %s2398
    %v2400 = vadd.s32 %v2399, %v739
    %v2401 = vadd.s32 %v2399, %v740
    %v2402 = vcvt.s32.f32 %v2400
    %v2403 = vcvt.s32.f32 %v2401
    %v2404 = vsub.f32 %v2402, %v2396
    %v2405 = vsub.f32 %v2403, %v2397
    %v2406 = vsub.f32 %v751, %v2396
    %v2407 = vsub.f32 %v751, %v2397
    %v2408 = vadd.f32 %v751, %v2404
    %v2409 = vadd.f32 %v751, %v2405
    %v2411 = vcombine.high %v2331, %v2331
    %v2413 = vadd.f32 %v2406, %v2331
    %v2414 = vadd.f32 %v2407, %v2411
    %v2415 = vsub.f32 1.0, %v2331
    %v2417 = vcombine.high %v2415, %v2415
    %v2419 = vsub.f32 %v2408, %v2415
    %v2420 = vsub.f32 %v2409, %v2417
    %v2421 = vmul.f32 %v2413, %v2408
    %v2422 = vmul.f32 %v2414, %v2409
    %v2423 = vmul.f32 %v2406, %v2419
    %v2424 = vmul.f32 %v2407, %v2420
    %v2425 = vsub.f32 %v2421, %v2423
    %v2426 = vsub.f32 %v2422, %v2424
    %v2427 = vmul.f32 %v2408, %v2419
    %v2428 = vmul.f32 %v2409, %v2420
    %v2429 = vmax.f32 %v2427, 1.0
    %v2430 = vmax.f32 %v2428, 1.0
    %v2431 = vrcp.pop %v2429
    %v2432 = vmul.f32 %v2425, %v2431
    %v2433 = vrcp.pop %v2430
    %v2434 = vmul.f32 %v2426, %v2433
    %v2435 = vld [vmem:[#allocation4] sm:$0xf]
    %v2438 = vcombine.low %v2432, %v2434
    %v2440 = vmul.f32 %v2333, %v2438
    %v2442 = vcombine.high %v2440, %v2440
    %v2444 = vsel %vm791, %v2440, 0.0
    %v2445 = vsel %vm791, %v2442, 0.0
    %v2446 = vadd.f32 %v2444, %v2445
    %2447 = vadd.xlane.f32.xlu0 %v2446
    %v2448 = vpop.xlane.xlu0 %2447
    %v2449 = vadd.f32 %v2435, %v2448
    %2450 = vst.msk [vmem:[#allocation4] sm:$0xf] %vm798, %v2449
    %2452 = vrot.lane.b32.xlu0 %v2397, 1
    %v2453 = vpop.permute.xlu0 %2452
    %2455 = vst.msk [vmem:[#allocation3] sm:$0xf] %vm798, %v2453
    %v2456 = vld [vmem:[%s2 + $0x1c] sm:$0x3]
    %v2457 = vunpack.c.0.s8 %v2456
    %v2458 = vcvt.s32.f32 %v2457
    %v2459 = vld [vmem:[%s1 + $0x70] sm:$0xff]
    %v2460 = vsub.f32 0.0, %v2459
    %v2461 = vld [vmem:[#allocation3] sm:$0xf]
    %v2463 = vunpack.c.l.s4 1935823168
    %v2464 = vunpack.c.0.s8 %v2463
    %v2465 = vlaneseq
    %v2466 = vshrl.u32 %v2465, 7
    %v2467 = vsub.s32 %v2464, %v2466
    %v2468 = vrot.slane %v2456, %v2467
    %v2469 = vunpack.c.l.s8.bf16 %v2468
    %v2471 = vunpack.c.l.b16 %v2469
    %v2472 = vunpack.c.h.b16 %v2469
    %v2473 = vpack.c.b16 %v2471, %v2471
    %v2474 = vpack.c.b16 %v2472, %v2472
    %2477 = vmatprep.subr.bf16.mxu0 %v640
    %2478 = vmatpush1.bf16.msra.mxu0 %v639
    %2479 = vmatprep.subr.bf16.mxu0 %v638
    %2480 = vmatpush1.bf16.msra.mxu0 %v637
    %2481 = vmatprep.subr.bf16.mxu0 %v636
    %2482 = vmatpush1.bf16.msra.mxu0 %v635
    %2483 = vmatprep.subr.bf16.mxu0 %v634
    %2484 = vmatpush1.bf16.msra.mxu0 %v633
    %2485 = vmatprep.subr.bf16.mxu0 %v632
    %2486 = vmatpush1.bf16.msra.mxu0 %v631
    %2487 = vmatprep.subr.bf16.mxu0 %v630
    %2488 = vmatpush1.bf16.msra.mxu0 %v629
    %2489 = vmatprep.subr.bf16.mxu0 %v628
    %2490 = vmatpush1.bf16.msra.mxu0 %v627
    %2491 = vmatprep.subr.bf16.mxu0 %v626
    %2492 = vmatpush1.bf16.msra.mxu0 %v625
    %2493 = vmatprep.subr.bf16.mxu0 %v656
    %2494 = vmatpush2.bf16.msra.mxu0 %v655
    %2495 = vmatprep.subr.bf16.mxu0 %v654
    %2496 = vmatpush2.bf16.msra.mxu0 %v653
    %2497 = vmatprep.subr.bf16.mxu0 %v652
    %2498 = vmatpush2.bf16.msra.mxu0 %v651
    %2499 = vmatprep.subr.bf16.mxu0 %v650
    %2500 = vmatpush2.bf16.msra.mxu0 %v649
    %2501 = vmatprep.subr.bf16.mxu0 %v648
    %2502 = vmatpush2.bf16.msra.mxu0 %v647
    %2503 = vmatprep.subr.bf16.mxu0 %v646
    %2504 = vmatpush2.bf16.msra.mxu0 %v645
    %2505 = vmatprep.subr.bf16.mxu0 %v644
    %2506 = vmatpush2.bf16.msra.mxu0 %v643
    %2507 = vmatprep.subr.bf16.mxu0 %v642
    %2508 = vmatpush2.bf16.msra.mxu0 %v641
    %2509 = vmatprep.mubr.bf16.mxu0 %v2474
    %2510 = vmatmul.mubr.bf16.gmra.mxu0 %v2473
    %v2511 = vpop.f32.mrf.mxu0
    %v2512 = vadd.f32 0.0, %v2511
    %v2513 = vpop.f32.mrf.mxu0
    %v2514 = vadd.f32 0.0, %v2513
    %v2515 = vpop.f32.mrf.mxu0
    %v2516 = vpop.f32.mrf.mxu0
    %2517 = vdwg.mxu0
    %2519 = vset.pattern.permute.xlu0 0
    %2520 = vperm.xlu0 %2519, %v2461
    %v2521 = vpop.permute.xlu0 %2520
    %v2523 = vadd.f32 %v2521, %v2512
    %v2524 = vadd.f32 %v2521, %v2514
    %s2525 = sadd.s32 %s507, 3585
    %v2526 = vstv %s2525
    %v2527 = vadd.s32 %v2526, %v739
    %v2528 = vadd.s32 %v2526, %v740
    %v2529 = vcvt.s32.f32 %v2527
    %v2530 = vcvt.s32.f32 %v2528
    %v2531 = vsub.f32 %v2529, %v2523
    %v2532 = vsub.f32 %v2530, %v2524
    %v2533 = vsub.f32 %v751, %v2523
    %v2534 = vsub.f32 %v751, %v2524
    %v2535 = vadd.f32 %v751, %v2531
    %v2536 = vadd.f32 %v751, %v2532
    %v2538 = vcombine.high %v2458, %v2458
    %v2540 = vadd.f32 %v2533, %v2458
    %v2541 = vadd.f32 %v2534, %v2538
    %v2542 = vsub.f32 1.0, %v2458
    %v2544 = vcombine.high %v2542, %v2542
    %v2546 = vsub.f32 %v2535, %v2542
    %v2547 = vsub.f32 %v2536, %v2544
    %v2548 = vmul.f32 %v2540, %v2535
    %v2549 = vmul.f32 %v2541, %v2536
    %v2550 = vmul.f32 %v2533, %v2546
    %v2551 = vmul.f32 %v2534, %v2547
    %v2552 = vsub.f32 %v2548, %v2550
    %v2553 = vsub.f32 %v2549, %v2551
    %v2554 = vmul.f32 %v2535, %v2546
    %v2555 = vmul.f32 %v2536, %v2547
    %v2556 = vmax.f32 %v2554, 1.0
    %v2557 = vmax.f32 %v2555, 1.0
    %v2558 = vrcp.pop %v2556
    %v2559 = vmul.f32 %v2552, %v2558
    %v2560 = vrcp.pop %v2557
    %v2561 = vmul.f32 %v2553, %v2560
    %v2562 = vld [vmem:[#allocation4] sm:$0xf]
    %v2565 = vcombine.low %v2559, %v2561
    %v2567 = vmul.f32 %v2460, %v2565
    %v2569 = vcombine.high %v2567, %v2567
    %v2571 = vsel %vm791, %v2567, 0.0
    %v2572 = vsel %vm791, %v2569, 0.0
    %v2573 = vadd.f32 %v2571, %v2572
    %2574 = vadd.xlane.f32.xlu0 %v2573
    %v2575 = vpop.xlane.xlu0 %2574
    %v2576 = vadd.f32 %v2562, %v2575
    %2577 = vst.msk [vmem:[#allocation4] sm:$0xf] %vm798, %v2576
    %2579 = vrot.lane.b32.xlu0 %v2524, 1
    %v2580 = vpop.permute.xlu0 %2579
    %2582 = vst.msk [vmem:[#allocation3] sm:$0xf] %vm798, %v2580
    %v2583 = vld [vmem:[%s2 + $0x1e] sm:$0x3]
    %v2584 = vunpack.c.0.s8 %v2583
    %v2585 = vcvt.s32.f32 %v2584
    %v2586 = vld [vmem:[%s1 + $0x78] sm:$0xff]
    %v2587 = vsub.f32 0.0, %v2586
    %v2588 = vld [vmem:[#allocation3] sm:$0xf]
    %v2590 = vunpack.c.l.s4 1935823168
    %v2591 = vunpack.c.0.s8 %v2590
    %v2592 = vlaneseq
    %v2593 = vshrl.u32 %v2592, 7
    %v2594 = vsub.s32 %v2591, %v2593
    %v2595 = vrot.slane %v2583, %v2594
    %v2596 = vunpack.c.l.s8.bf16 %v2595
    %v2598 = vunpack.c.l.b16 %v2596
    %v2599 = vunpack.c.h.b16 %v2596
    %v2600 = vpack.c.b16 %v2598, %v2598
    %v2601 = vpack.c.b16 %v2599, %v2599
    %2604 = vmatprep.subr.bf16.mxu0 %v640
    %2605 = vmatpush1.bf16.msra.mxu0 %v639
    %2606 = vmatprep.subr.bf16.mxu0 %v638
    %2607 = vmatpush1.bf16.msra.mxu0 %v637
    %2608 = vmatprep.subr.bf16.mxu0 %v636
    %2609 = vmatpush1.bf16.msra.mxu0 %v635
    %2610 = vmatprep.subr.bf16.mxu0 %v634
    %2611 = vmatpush1.bf16.msra.mxu0 %v633
    %2612 = vmatprep.subr.bf16.mxu0 %v632
    %2613 = vmatpush1.bf16.msra.mxu0 %v631
    %2614 = vmatprep.subr.bf16.mxu0 %v630
    %2615 = vmatpush1.bf16.msra.mxu0 %v629
    %2616 = vmatprep.subr.bf16.mxu0 %v628
    %2617 = vmatpush1.bf16.msra.mxu0 %v627
    %2618 = vmatprep.subr.bf16.mxu0 %v626
    %2619 = vmatpush1.bf16.msra.mxu0 %v625
    %2620 = vmatprep.subr.bf16.mxu0 %v656
    %2621 = vmatpush2.bf16.msra.mxu0 %v655
    %2622 = vmatprep.subr.bf16.mxu0 %v654
    %2623 = vmatpush2.bf16.msra.mxu0 %v653
    %2624 = vmatprep.subr.bf16.mxu0 %v652
    %2625 = vmatpush2.bf16.msra.mxu0 %v651
    %2626 = vmatprep.subr.bf16.mxu0 %v650
    %2627 = vmatpush2.bf16.msra.mxu0 %v649
    %2628 = vmatprep.subr.bf16.mxu0 %v648
    %2629 = vmatpush2.bf16.msra.mxu0 %v647
    %2630 = vmatprep.subr.bf16.mxu0 %v646
    %2631 = vmatpush2.bf16.msra.mxu0 %v645
    %2632 = vmatprep.subr.bf16.mxu0 %v644
    %2633 = vmatpush2.bf16.msra.mxu0 %v643
    %2634 = vmatprep.subr.bf16.mxu0 %v642
    %2635 = vmatpush2.bf16.msra.mxu0 %v641
    %2636 = vmatprep.mubr.bf16.mxu0 %v2601
    %2637 = vmatmul.mubr.bf16.gmra.mxu0 %v2600
    %v2638 = vpop.f32.mrf.mxu0
    %v2639 = vadd.f32 0.0, %v2638
    %v2640 = vpop.f32.mrf.mxu0
    %v2641 = vadd.f32 0.0, %v2640
    %v2642 = vpop.f32.mrf.mxu0
    %v2643 = vpop.f32.mrf.mxu0
    %2644 = vdwg.mxu0
    %2646 = vset.pattern.permute.xlu0 0
    %2647 = vperm.xlu0 %2646, %v2588
    %v2648 = vpop.permute.xlu0 %2647
    %v2650 = vadd.f32 %v2648, %v2639
    %v2651 = vadd.f32 %v2648, %v2641
    %s2652 = sadd.s32 %s507, 3841
    %v2653 = vstv %s2652
    %v2654 = vadd.s32 %v2653, %v739
    %v2655 = vadd.s32 %v2653, %v740
    %v2656 = vcvt.s32.f32 %v2654
    %v2657 = vcvt.s32.f32 %v2655
    %v2658 = vsub.f32 %v2656, %v2650
    %v2659 = vsub.f32 %v2657, %v2651
    %v2660 = vsub.f32 %v751, %v2650
    %v2661 = vsub.f32 %v751, %v2651
    %v2662 = vadd.f32 %v751, %v2658
    %v2663 = vadd.f32 %v751, %v2659
    %v2665 = vcombine.high %v2585, %v2585
    %v2667 = vadd.f32 %v2660, %v2585
    %v2668 = vadd.f32 %v2661, %v2665
    %v2669 = vsub.f32 1.0, %v2585
    %v2671 = vcombine.high %v2669, %v2669
    %v2673 = vsub.f32 %v2662, %v2669
    %v2674 = vsub.f32 %v2663, %v2671
    %v2675 = vmul.f32 %v2667, %v2662
    %v2676 = vmul.f32 %v2668, %v2663
    %v2677 = vmul.f32 %v2660, %v2673
    %v2678 = vmul.f32 %v2661, %v2674
    %v2679 = vsub.f32 %v2675, %v2677
    %v2680 = vsub.f32 %v2676, %v2678
    %v2681 = vmul.f32 %v2662, %v2673
    %v2682 = vmul.f32 %v2663, %v2674
    %v2683 = vmax.f32 %v2681, 1.0
    %v2684 = vmax.f32 %v2682, 1.0
    %v2685 = vrcp.pop %v2683
    %v2686 = vmul.f32 %v2679, %v2685
    %v2687 = vrcp.pop %v2684
    %v2688 = vmul.f32 %v2680, %v2687
    %v2689 = vld [vmem:[#allocation4] sm:$0xf]
    %v2692 = vcombine.low %v2686, %v2688
    %v2694 = vmul.f32 %v2587, %v2692
    %v2696 = vcombine.high %v2694, %v2694
    %v2698 = vsel %vm791, %v2694, 0.0
    %v2699 = vsel %vm791, %v2696, 0.0
    %v2700 = vadd.f32 %v2698, %v2699
    %2701 = vadd.xlane.f32.xlu0 %v2700
    %v2702 = vpop.xlane.xlu0 %2701
    %v2703 = vadd.f32 %v2689, %v2702
    %2704 = vst.msk [vmem:[#allocation4] sm:$0xf] %vm798, %v2703
    %2706 = vrot.lane.b32.xlu0 %v2651, 1
    %v2707 = vpop.permute.xlu0 %2706
    %2709 = vst.msk [vmem:[#allocation3] sm:$0xf] %vm798, %v2707
    %v2710 = vld [vmem:[%s2 + $0x20] sm:$0x3]
    %v2711 = vunpack.c.0.s8 %v2710
    %v2712 = vcvt.s32.f32 %v2711
    %v2713 = vld [vmem:[%s1 + $0x80] sm:$0xff]
    %v2714 = vsub.f32 0.0, %v2713
    %v2715 = vld [vmem:[#allocation3] sm:$0xf]
    %v2717 = vunpack.c.l.s4 1935823168
    %v2718 = vunpack.c.0.s8 %v2717
    %v2719 = vlaneseq
    %v2720 = vshrl.u32 %v2719, 7
    %v2721 = vsub.s32 %v2718, %v2720
    %v2722 = vrot.slane %v2710, %v2721
    %v2723 = vunpack.c.l.s8.bf16 %v2722
    %v2725 = vunpack.c.l.b16 %v2723
    %v2726 = vunpack.c.h.b16 %v2723
    %v2727 = vpack.c.b16 %v2725, %v2725
    %v2728 = vpack.c.b16 %v2726, %v2726
    %2731 = vmatprep.subr.bf16.mxu0 %v640
    %2732 = vmatpush1.bf16.msra.mxu0 %v639
    %2733 = vmatprep.subr.bf16.mxu0 %v638
    %2734 = vmatpush1.bf16.msra.mxu0 %v637
    %2735 = vmatprep.subr.bf16.mxu0 %v636
    %2736 = vmatpush1.bf16.msra.mxu0 %v635
    %2737 = vmatprep.subr.bf16.mxu0 %v634
    %2738 = vmatpush1.bf16.msra.mxu0 %v633
    %2739 = vmatprep.subr.bf16.mxu0 %v632
    %2740 = vmatpush1.bf16.msra.mxu0 %v631
    %2741 = vmatprep.subr.bf16.mxu0 %v630
    %2742 = vmatpush1.bf16.msra.mxu0 %v629
    %2743 = vmatprep.subr.bf16.mxu0 %v628
    %2744 = vmatpush1.bf16.msra.mxu0 %v627
    %2745 = vmatprep.subr.bf16.mxu0 %v626
    %2746 = vmatpush1.bf16.msra.mxu0 %v625
    %2747 = vmatprep.subr.bf16.mxu0 %v656
    %2748 = vmatpush2.bf16.msra.mxu0 %v655
    %2749 = vmatprep.subr.bf16.mxu0 %v654
    %2750 = vmatpush2.bf16.msra.mxu0 %v653
    %2751 = vmatprep.subr.bf16.mxu0 %v652
    %2752 = vmatpush2.bf16.msra.mxu0 %v651
    %2753 = vmatprep.subr.bf16.mxu0 %v650
    %2754 = vmatpush2.bf16.msra.mxu0 %v649
    %2755 = vmatprep.subr.bf16.mxu0 %v648
    %2756 = vmatpush2.bf16.msra.mxu0 %v647
    %2757 = vmatprep.subr.bf16.mxu0 %v646
    %2758 = vmatpush2.bf16.msra.mxu0 %v645
    %2759 = vmatprep.subr.bf16.mxu0 %v644
    %2760 = vmatpush2.bf16.msra.mxu0 %v643
    %2761 = vmatprep.subr.bf16.mxu0 %v642
    %2762 = vmatpush2.bf16.msra.mxu0 %v641
    %2763 = vmatprep.mubr.bf16.mxu0 %v2728
    %2764 = vmatmul.mubr.bf16.gmra.mxu0 %v2727
    %v2765 = vpop.f32.mrf.mxu0
    %v2766 = vadd.f32 0.0, %v2765
    %v2767 = vpop.f32.mrf.mxu0
    %v2768 = vadd.f32 0.0, %v2767
    %v2769 = vpop.f32.mrf.mxu0
    %v2770 = vpop.f32.mrf.mxu0
    %2771 = vdwg.mxu0
    %2773 = vset.pattern.permute.xlu0 0
    %2774 = vperm.xlu0 %2773, %v2715
    %v2775 = vpop.permute.xlu0 %2774
    %v2777 = vadd.f32 %v2775, %v2766
    %v2778 = vadd.f32 %v2775, %v2768
    %s2779 = sadd.s32 %s507, 4097
    %v2780 = vstv %s2779
    %v2781 = vadd.s32 %v2780, %v739
    %v2782 = vadd.s32 %v2780, %v740
    %v2783 = vcvt.s32.f32 %v2781
    %v2784 = vcvt.s32.f32 %v2782
    %v2785 = vsub.f32 %v2783, %v2777
    %v2786 = vsub.f32 %v2784, %v2778
    %v2787 = vsub.f32 %v751, %v2777
    %v2788 = vsub.f32 %v751, %v2778
    %v2789 = vadd.f32 %v751, %v2785
    %v2790 = vadd.f32 %v751, %v2786
    %v2792 = vcombine.high %v2712, %v2712
    %v2794 = vadd.f32 %v2787, %v2712
    %v2795 = vadd.f32 %v2788, %v2792
    %v2796 = vsub.f32 1.0, %v2712
    %v2798 = vcombine.high %v2796, %v2796
    %v2800 = vsub.f32 %v2789, %v2796
    %v2801 = vsub.f32 %v2790, %v2798
    %v2802 = vmul.f32 %v2794, %v2789
    %v2803 = vmul.f32 %v2795, %v2790
    %v2804 = vmul.f32 %v2787, %v2800
    %v2805 = vmul.f32 %v2788, %v2801
    %v2806 = vsub.f32 %v2802, %v2804
    %v2807 = vsub.f32 %v2803, %v2805
    %v2808 = vmul.f32 %v2789, %v2800
    %v2809 = vmul.f32 %v2790, %v2801
    %v2810 = vmax.f32 %v2808, 1.0
    %v2811 = vmax.f32 %v2809, 1.0
    %v2812 = vrcp.pop %v2810
    %v2813 = vmul.f32 %v2806, %v2812
    %v2814 = vrcp.pop %v2811
    %v2815 = vmul.f32 %v2807, %v2814
    %v2816 = vld [vmem:[#allocation4] sm:$0xf]
    %v2819 = vcombine.low %v2813, %v2815
    %v2821 = vmul.f32 %v2714, %v2819
    %v2823 = vcombine.high %v2821, %v2821
    %v2825 = vsel %vm791, %v2821, 0.0
    %v2826 = vsel %vm791, %v2823, 0.0
    %v2827 = vadd.f32 %v2825, %v2826
    %2828 = vadd.xlane.f32.xlu0 %v2827
    %v2829 = vpop.xlane.xlu0 %2828
    %v2830 = vadd.f32 %v2816, %v2829
    %2831 = vst.msk [vmem:[#allocation4] sm:$0xf] %vm798, %v2830
    %2833 = vrot.lane.b32.xlu0 %v2778, 1
    %v2834 = vpop.permute.xlu0 %2833
    %2836 = vst.msk [vmem:[#allocation3] sm:$0xf] %vm798, %v2834
    %v2837 = vld [vmem:[%s2 + $0x22] sm:$0x3]
    %v2838 = vunpack.c.0.s8 %v2837
    %v2839 = vcvt.s32.f32 %v2838
    %v2840 = vld [vmem:[%s1 + $0x88] sm:$0xff]
    %v2841 = vsub.f32 0.0, %v2840
    %v2842 = vld [vmem:[#allocation3] sm:$0xf]
    %v2844 = vunpack.c.l.s4 1935823168
    %v2845 = vunpack.c.0.s8 %v2844
    %v2846 = vlaneseq
    %v2847 = vshrl.u32 %v2846, 7
    %v2848 = vsub.s32 %v2845, %v2847
    %v2849 = vrot.slane %v2837, %v2848
    %v2850 = vunpack.c.l.s8.bf16 %v2849
    %v2852 = vunpack.c.l.b16 %v2850
    %v2853 = vunpack.c.h.b16 %v2850
    %v2854 = vpack.c.b16 %v2852, %v2852
    %v2855 = vpack.c.b16 %v2853, %v2853
    %2858 = vmatprep.subr.bf16.mxu0 %v640
    %2859 = vmatpush1.bf16.msra.mxu0 %v639
    %2860 = vmatprep.subr.bf16.mxu0 %v638
    %2861 = vmatpush1.bf16.msra.mxu0 %v637
    %2862 = vmatprep.subr.bf16.mxu0 %v636
    %2863 = vmatpush1.bf16.msra.mxu0 %v635
    %2864 = vmatprep.subr.bf16.mxu0 %v634
    %2865 = vmatpush1.bf16.msra.mxu0 %v633
    %2866 = vmatprep.subr.bf16.mxu0 %v632
    %2867 = vmatpush1.bf16.msra.mxu0 %v631
    %2868 = vmatprep.subr.bf16.mxu0 %v630
    %2869 = vmatpush1.bf16.msra.mxu0 %v629
    %2870 = vmatprep.subr.bf16.mxu0 %v628
    %2871 = vmatpush1.bf16.msra.mxu0 %v627
    %2872 = vmatprep.subr.bf16.mxu0 %v626
    %2873 = vmatpush1.bf16.msra.mxu0 %v625
    %2874 = vmatprep.subr.bf16.mxu0 %v656
    %2875 = vmatpush2.bf16.msra.mxu0 %v655
    %2876 = vmatprep.subr.bf16.mxu0 %v654
    %2877 = vmatpush2.bf16.msra.mxu0 %v653
    %2878 = vmatprep.subr.bf16.mxu0 %v652
    %2879 = vmatpush2.bf16.msra.mxu0 %v651
    %2880 = vmatprep.subr.bf16.mxu0 %v650
    %2881 = vmatpush2.bf16.msra.mxu0 %v649
    %2882 = vmatprep.subr.bf16.mxu0 %v648
    %2883 = vmatpush2.bf16.msra.mxu0 %v647
    %2884 = vmatprep.subr.bf16.mxu0 %v646
    %2885 = vmatpush2.bf16.msra.mxu0 %v645
    %2886 = vmatprep.subr.bf16.mxu0 %v644
    %2887 = vmatpush2.bf16.msra.mxu0 %v643
    %2888 = vmatprep.subr.bf16.mxu0 %v642
    %2889 = vmatpush2.bf16.msra.mxu0 %v641
    %2890 = vmatprep.mubr.bf16.mxu0 %v2855
    %2891 = vmatmul.mubr.bf16.gmra.mxu0 %v2854
    %v2892 = vpop.f32.mrf.mxu0
    %v2893 = vadd.f32 0.0, %v2892
    %v2894 = vpop.f32.mrf.mxu0
    %v2895 = vadd.f32 0.0, %v2894
    %v2896 = vpop.f32.mrf.mxu0
    %v2897 = vpop.f32.mrf.mxu0
    %2898 = vdwg.mxu0
    %2900 = vset.pattern.permute.xlu0 0
    %2901 = vperm.xlu0 %2900, %v2842
    %v2902 = vpop.permute.xlu0 %2901
    %v2904 = vadd.f32 %v2902, %v2893
    %v2905 = vadd.f32 %v2902, %v2895
    %s2906 = sadd.s32 %s507, 4353
    %v2907 = vstv %s2906
    %v2908 = vadd.s32 %v2907, %v739
    %v2909 = vadd.s32 %v2907, %v740
    %v2910 = vcvt.s32.f32 %v2908
    %v2911 = vcvt.s32.f32 %v2909
    %v2912 = vsub.f32 %v2910, %v2904
    %v2913 = vsub.f32 %v2911, %v2905
    %v2914 = vsub.f32 %v751, %v2904
    %v2915 = vsub.f32 %v751, %v2905
    %v2916 = vadd.f32 %v751, %v2912
    %v2917 = vadd.f32 %v751, %v2913
    %v2919 = vcombine.high %v2839, %v2839
    %v2921 = vadd.f32 %v2914, %v2839
    %v2922 = vadd.f32 %v2915, %v2919
    %v2923 = vsub.f32 1.0, %v2839
    %v2925 = vcombine.high %v2923, %v2923
    %v2927 = vsub.f32 %v2916, %v2923
    %v2928 = vsub.f32 %v2917, %v2925
    %v2929 = vmul.f32 %v2921, %v2916
    %v2930 = vmul.f32 %v2922, %v2917
    %v2931 = vmul.f32 %v2914, %v2927
    %v2932 = vmul.f32 %v2915, %v2928
    %v2933 = vsub.f32 %v2929, %v2931
    %v2934 = vsub.f32 %v2930, %v2932
    %v2935 = vmul.f32 %v2916, %v2927
    %v2936 = vmul.f32 %v2917, %v2928
    %v2937 = vmax.f32 %v2935, 1.0
    %v2938 = vmax.f32 %v2936, 1.0
    %v2939 = vrcp.pop %v2937
    %v2940 = vmul.f32 %v2933, %v2939
    %v2941 = vrcp.pop %v2938
    %v2942 = vmul.f32 %v2934, %v2941
    %v2943 = vld [vmem:[#allocation4] sm:$0xf]
    %v2946 = vcombine.low %v2940, %v2942
    %v2948 = vmul.f32 %v2841, %v2946
    %v2950 = vcombine.high %v2948, %v2948
    %v2952 = vsel %vm791, %v2948, 0.0
    %v2953 = vsel %vm791, %v2950, 0.0
    %v2954 = vadd.f32 %v2952, %v2953
    %2955 = vadd.xlane.f32.xlu0 %v2954
    %v2956 = vpop.xlane.xlu0 %2955
    %v2957 = vadd.f32 %v2943, %v2956
    %2958 = vst.msk [vmem:[#allocation4] sm:$0xf] %vm798, %v2957
    %2960 = vrot.lane.b32.xlu0 %v2905, 1
    %v2961 = vpop.permute.xlu0 %2960
    %2963 = vst.msk [vmem:[#allocation3] sm:$0xf] %vm798, %v2961
    %v2964 = vld [vmem:[%s2 + $0x24] sm:$0x3]
    %v2965 = vunpack.c.0.s8 %v2964
    %v2966 = vcvt.s32.f32 %v2965
    %v2967 = vld [vmem:[%s1 + $0x90] sm:$0xff]
    %v2968 = vsub.f32 0.0, %v2967
    %v2969 = vld [vmem:[#allocation3] sm:$0xf]
    %v2971 = vunpack.c.l.s4 1935823168
    %v2972 = vunpack.c.0.s8 %v2971
    %v2973 = vlaneseq
    %v2974 = vshrl.u32 %v2973, 7
    %v2975 = vsub.s32 %v2972, %v2974
    %v2976 = vrot.slane %v2964, %v2975
    %v2977 = vunpack.c.l.s8.bf16 %v2976
    %v2979 = vunpack.c.l.b16 %v2977
    %v2980 = vunpack.c.h.b16 %v2977
    %v2981 = vpack.c.b16 %v2979, %v2979
    %v2982 = vpack.c.b16 %v2980, %v2980
    %2985 = vmatprep.subr.bf16.mxu0 %v640
    %2986 = vmatpush1.bf16.msra.mxu0 %v639
    %2987 = vmatprep.subr.bf16.mxu0 %v638
    %2988 = vmatpush1.bf16.msra.mxu0 %v637
    %2989 = vmatprep.subr.bf16.mxu0 %v636
    %2990 = vmatpush1.bf16.msra.mxu0 %v635
    %2991 = vmatprep.subr.bf16.mxu0 %v634
    %2992 = vmatpush1.bf16.msra.mxu0 %v633
    %2993 = vmatprep.subr.bf16.mxu0 %v632
    %2994 = vmatpush1.bf16.msra.mxu0 %v631
    %2995 = vmatprep.subr.bf16.mxu0 %v630
    %2996 = vmatpush1.bf16.msra.mxu0 %v629
    %2997 = vmatprep.subr.bf16.mxu0 %v628
    %2998 = vmatpush1.bf16.msra.mxu0 %v627
    %2999 = vmatprep.subr.bf16.mxu0 %v626
    %3000 = vmatpush1.bf16.msra.mxu0 %v625
    %3001 = vmatprep.subr.bf16.mxu0 %v656
    %3002 = vmatpush2.bf16.msra.mxu0 %v655
    %3003 = vmatprep.subr.bf16.mxu0 %v654
    %3004 = vmatpush2.bf16.msra.mxu0 %v653
    %3005 = vmatprep.subr.bf16.mxu0 %v652
    %3006 = vmatpush2.bf16.msra.mxu0 %v651
    %3007 = vmatprep.subr.bf16.mxu0 %v650
    %3008 = vmatpush2.bf16.msra.mxu0 %v649
    %3009 = vmatprep.subr.bf16.mxu0 %v648
    %3010 = vmatpush2.bf16.msra.mxu0 %v647
    %3011 = vmatprep.subr.bf16.mxu0 %v646
    %3012 = vmatpush2.bf16.msra.mxu0 %v645
    %3013 = vmatprep.subr.bf16.mxu0 %v644
    %3014 = vmatpush2.bf16.msra.mxu0 %v643
    %3015 = vmatprep.subr.bf16.mxu0 %v642
    %3016 = vmatpush2.bf16.msra.mxu0 %v641
    %3017 = vmatprep.mubr.bf16.mxu0 %v2982
    %3018 = vmatmul.mubr.bf16.gmra.mxu0 %v2981
    %v3019 = vpop.f32.mrf.mxu0
    %v3020 = vadd.f32 0.0, %v3019
    %v3021 = vpop.f32.mrf.mxu0
    %v3022 = vadd.f32 0.0, %v3021
    %v3023 = vpop.f32.mrf.mxu0
    %v3024 = vpop.f32.mrf.mxu0
    %3025 = vdwg.mxu0
    %3027 = vset.pattern.permute.xlu0 0
    %3028 = vperm.xlu0 %3027, %v2969
    %v3029 = vpop.permute.xlu0 %3028
    %v3031 = vadd.f32 %v3029, %v3020
    %v3032 = vadd.f32 %v3029, %v3022
    %s3033 = sadd.s32 %s507, 4609
    %v3034 = vstv %s3033
    %v3035 = vadd.s32 %v3034, %v739
    %v3036 = vadd.s32 %v3034, %v740
    %v3037 = vcvt.s32.f32 %v3035
    %v3038 = vcvt.s32.f32 %v3036
    %v3039 = vsub.f32 %v3037, %v3031
    %v3040 = vsub.f32 %v3038, %v3032
    %v3041 = vsub.f32 %v751, %v3031
    %v3042 = vsub.f32 %v751, %v3032
    %v3043 = vadd.f32 %v751, %v3039
    %v3044 = vadd.f32 %v751, %v3040
    %v3046 = vcombine.high %v2966, %v2966
    %v3048 = vadd.f32 %v3041, %v2966
    %v3049 = vadd.f32 %v3042, %v3046
    %v3050 = vsub.f32 1.0, %v2966
    %v3052 = vcombine.high %v3050, %v3050
    %v3054 = vsub.f32 %v3043, %v3050
    %v3055 = vsub.f32 %v3044, %v3052
    %v3056 = vmul.f32 %v3048, %v3043
    %v3057 = vmul.f32 %v3049, %v3044
    %v3058 = vmul.f32 %v3041, %v3054
    %v3059 = vmul.f32 %v3042, %v3055
    %v3060 = vsub.f32 %v3056, %v3058
    %v3061 = vsub.f32 %v3057, %v3059
    %v3062 = vmul.f32 %v3043, %v3054
    %v3063 = vmul.f32 %v3044, %v3055
    %v3064 = vmax.f32 %v3062, 1.0
    %v3065 = vmax.f32 %v3063, 1.0
    %v3066 = vrcp.pop %v3064
    %v3067 = vmul.f32 %v3060, %v3066
    %v3068 = vrcp.pop %v3065
    %v3069 = vmul.f32 %v3061, %v3068
    %v3070 = vld [vmem:[#allocation4] sm:$0xf]
    %v3073 = vcombine.low %v3067, %v3069
    %v3075 = vmul.f32 %v2968, %v3073
    %v3077 = vcombine.high %v3075, %v3075
    %v3079 = vsel %vm791, %v3075, 0.0
    %v3080 = vsel %vm791, %v3077, 0.0
    %v3081 = vadd.f32 %v3079, %v3080
    %3082 = vadd.xlane.f32.xlu0 %v3081
    %v3083 = vpop.xlane.xlu0 %3082
    %v3084 = vadd.f32 %v3070, %v3083
    %3085 = vst.msk [vmem:[#allocation4] sm:$0xf] %vm798, %v3084
    %3087 = vrot.lane.b32.xlu0 %v3032, 1
    %v3088 = vpop.permute.xlu0 %3087
    %3090 = vst.msk [vmem:[#allocation3] sm:$0xf] %vm798, %v3088
    %v3091 = vld [vmem:[%s2 + $0x26] sm:$0x3]
    %v3092 = vunpack.c.0.s8 %v3091
    %v3093 = vcvt.s32.f32 %v3092
    %v3094 = vld [vmem:[%s1 + $0x98] sm:$0xff]
    %v3095 = vsub.f32 0.0, %v3094
    %v3096 = vld [vmem:[#allocation3] sm:$0xf]
    %v3098 = vunpack.c.l.s4 1935823168
    %v3099 = vunpack.c.0.s8 %v3098
    %v3100 = vlaneseq
    %v3101 = vshrl.u32 %v3100, 7
    %v3102 = vsub.s32 %v3099, %v3101
    %v3103 = vrot.slane %v3091, %v3102
    %v3104 = vunpack.c.l.s8.bf16 %v3103
    %v3106 = vunpack.c.l.b16 %v3104
    %v3107 = vunpack.c.h.b16 %v3104
    %v3108 = vpack.c.b16 %v3106, %v3106
    %v3109 = vpack.c.b16 %v3107, %v3107
    %3112 = vmatprep.subr.bf16.mxu0 %v640
    %3113 = vmatpush1.bf16.msra.mxu0 %v639
    %3114 = vmatprep.subr.bf16.mxu0 %v638
    %3115 = vmatpush1.bf16.msra.mxu0 %v637
    %3116 = vmatprep.subr.bf16.mxu0 %v636
    %3117 = vmatpush1.bf16.msra.mxu0 %v635
    %3118 = vmatprep.subr.bf16.mxu0 %v634
    %3119 = vmatpush1.bf16.msra.mxu0 %v633
    %3120 = vmatprep.subr.bf16.mxu0 %v632
    %3121 = vmatpush1.bf16.msra.mxu0 %v631
    %3122 = vmatprep.subr.bf16.mxu0 %v630
    %3123 = vmatpush1.bf16.msra.mxu0 %v629
    %3124 = vmatprep.subr.bf16.mxu0 %v628
    %3125 = vmatpush1.bf16.msra.mxu0 %v627
    %3126 = vmatprep.subr.bf16.mxu0 %v626
    %3127 = vmatpush1.bf16.msra.mxu0 %v625
    %3128 = vmatprep.subr.bf16.mxu0 %v656
    %3129 = vmatpush2.bf16.msra.mxu0 %v655
    %3130 = vmatprep.subr.bf16.mxu0 %v654
    %3131 = vmatpush2.bf16.msra.mxu0 %v653
    %3132 = vmatprep.subr.bf16.mxu0 %v652
    %3133 = vmatpush2.bf16.msra.mxu0 %v651
    %3134 = vmatprep.subr.bf16.mxu0 %v650
    %3135 = vmatpush2.bf16.msra.mxu0 %v649
    %3136 = vmatprep.subr.bf16.mxu0 %v648
    %3137 = vmatpush2.bf16.msra.mxu0 %v647
    %3138 = vmatprep.subr.bf16.mxu0 %v646
    %3139 = vmatpush2.bf16.msra.mxu0 %v645
    %3140 = vmatprep.subr.bf16.mxu0 %v644
    %3141 = vmatpush2.bf16.msra.mxu0 %v643
    %3142 = vmatprep.subr.bf16.mxu0 %v642
    %3143 = vmatpush2.bf16.msra.mxu0 %v641
    %3144 = vmatprep.mubr.bf16.mxu0 %v3109
    %3145 = vmatmul.mubr.bf16.gmra.mxu0 %v3108
    %v3146 = vpop.f32.mrf.mxu0
    %v3147 = vadd.f32 0.0, %v3146
    %v3148 = vpop.f32.mrf.mxu0
    %v3149 = vadd.f32 0.0, %v3148
    %v3150 = vpop.f32.mrf.mxu0
    %v3151 = vpop.f32.mrf.mxu0
    %3152 = vdwg.mxu0
    %3154 = vset.pattern.permute.xlu0 0
    %3155 = vperm.xlu0 %3154, %v3096
    %v3156 = vpop.permute.xlu0 %3155
    %v3158 = vadd.f32 %v3156, %v3147
    %v3159 = vadd.f32 %v3156, %v3149
    %s3160 = sadd.s32 %s507, 4865
    %v3161 = vstv %s3160
    %v3162 = vadd.s32 %v3161, %v739
    %v3163 = vadd.s32 %v3161, %v740
    %v3164 = vcvt.s32.f32 %v3162
    %v3165 = vcvt.s32.f32 %v3163
    %v3166 = vsub.f32 %v3164, %v3158
    %v3167 = vsub.f32 %v3165, %v3159
    %v3168 = vsub.f32 %v751, %v3158
    %v3169 = vsub.f32 %v751, %v3159
    %v3170 = vadd.f32 %v751, %v3166
    %v3171 = vadd.f32 %v751, %v3167
    %v3173 = vcombine.high %v3093, %v3093
    %v3175 = vadd.f32 %v3168, %v3093
    %v3176 = vadd.f32 %v3169, %v3173
    %v3177 = vsub.f32 1.0, %v3093
    %v3179 = vcombine.high %v3177, %v3177
    %v3181 = vsub.f32 %v3170, %v3177
    %v3182 = vsub.f32 %v3171, %v3179
    %v3183 = vmul.f32 %v3175, %v3170
    %v3184 = vmul.f32 %v3176, %v3171
    %v3185 = vmul.f32 %v3168, %v3181
    %v3186 = vmul.f32 %v3169, %v3182
    %v3187 = vsub.f32 %v3183, %v3185
    %v3188 = vsub.f32 %v3184, %v3186
    %v3189 = vmul.f32 %v3170, %v3181
    %v3190 = vmul.f32 %v3171, %v3182
    %v3191 = vmax.f32 %v3189, 1.0
    %v3192 = vmax.f32 %v3190, 1.0
    %v3193 = vrcp.pop %v3191
    %v3194 = vmul.f32 %v3187, %v3193
    %v3195 = vrcp.pop %v3192
    %v3196 = vmul.f32 %v3188, %v3195
    %v3197 = vld [vmem:[#allocation4] sm:$0xf]
    %v3200 = vcombine.low %v3194, %v3196
    %v3202 = vmul.f32 %v3095, %v3200
    %v3204 = vcombine.high %v3202, %v3202
    %v3206 = vsel %vm791, %v3202, 0.0
    %v3207 = vsel %vm791, %v3204, 0.0
    %v3208 = vadd.f32 %v3206, %v3207
    %3209 = vadd.xlane.f32.xlu0 %v3208
    %v3210 = vpop.xlane.xlu0 %3209
    %v3211 = vadd.f32 %v3197, %v3210
    %3212 = vst.msk [vmem:[#allocation4] sm:$0xf] %vm798, %v3211
    %3214 = vrot.lane.b32.xlu0 %v3159, 1
    %v3215 = vpop.permute.xlu0 %3214
    %3217 = vst.msk [vmem:[#allocation3] sm:$0xf] %vm798, %v3215
    %v3218 = vld [vmem:[%s2 + $0x28] sm:$0x3]
    %v3219 = vunpack.c.0.s8 %v3218
    %v3220 = vcvt.s32.f32 %v3219
    %v3221 = vld [vmem:[%s1 + $0xa0] sm:$0xff]
    %v3222 = vsub.f32 0.0, %v3221
    %v3223 = vld [vmem:[#allocation3] sm:$0xf]
    %v3225 = vunpack.c.l.s4 1935823168
    %v3226 = vunpack.c.0.s8 %v3225
    %v3227 = vlaneseq
    %v3228 = vshrl.u32 %v3227, 7
    %v3229 = vsub.s32 %v3226, %v3228
    %v3230 = vrot.slane %v3218, %v3229
    %v3231 = vunpack.c.l.s8.bf16 %v3230
    %v3233 = vunpack.c.l.b16 %v3231
    %v3234 = vunpack.c.h.b16 %v3231
    %v3235 = vpack.c.b16 %v3233, %v3233
    %v3236 = vpack.c.b16 %v3234, %v3234
    %3239 = vmatprep.subr.bf16.mxu0 %v640
    %3240 = vmatpush1.bf16.msra.mxu0 %v639
    %3241 = vmatprep.subr.bf16.mxu0 %v638
    %3242 = vmatpush1.bf16.msra.mxu0 %v637
    %3243 = vmatprep.subr.bf16.mxu0 %v636
    %3244 = vmatpush1.bf16.msra.mxu0 %v635
    %3245 = vmatprep.subr.bf16.mxu0 %v634
    %3246 = vmatpush1.bf16.msra.mxu0 %v633
    %3247 = vmatprep.subr.bf16.mxu0 %v632
    %3248 = vmatpush1.bf16.msra.mxu0 %v631
    %3249 = vmatprep.subr.bf16.mxu0 %v630
    %3250 = vmatpush1.bf16.msra.mxu0 %v629
    %3251 = vmatprep.subr.bf16.mxu0 %v628
    %3252 = vmatpush1.bf16.msra.mxu0 %v627
    %3253 = vmatprep.subr.bf16.mxu0 %v626
    %3254 = vmatpush1.bf16.msra.mxu0 %v625
    %3255 = vmatprep.subr.bf16.mxu0 %v656
    %3256 = vmatpush2.bf16.msra.mxu0 %v655
    %3257 = vmatprep.subr.bf16.mxu0 %v654
    %3258 = vmatpush2.bf16.msra.mxu0 %v653
    %3259 = vmatprep.subr.bf16.mxu0 %v652
    %3260 = vmatpush2.bf16.msra.mxu0 %v651
    %3261 = vmatprep.subr.bf16.mxu0 %v650
    %3262 = vmatpush2.bf16.msra.mxu0 %v649
    %3263 = vmatprep.subr.bf16.mxu0 %v648
    %3264 = vmatpush2.bf16.msra.mxu0 %v647
    %3265 = vmatprep.subr.bf16.mxu0 %v646
    %3266 = vmatpush2.bf16.msra.mxu0 %v645
    %3267 = vmatprep.subr.bf16.mxu0 %v644
    %3268 = vmatpush2.bf16.msra.mxu0 %v643
    %3269 = vmatprep.subr.bf16.mxu0 %v642
    %3270 = vmatpush2.bf16.msra.mxu0 %v641
    %3271 = vmatprep.mubr.bf16.mxu0 %v3236
    %3272 = vmatmul.mubr.bf16.gmra.mxu0 %v3235
    %v3273 = vpop.f32.mrf.mxu0
    %v3274 = vadd.f32 0.0, %v3273
    %v3275 = vpop.f32.mrf.mxu0
    %v3276 = vadd.f32 0.0, %v3275
    %v3277 = vpop.f32.mrf.mxu0
    %v3278 = vpop.f32.mrf.mxu0
    %3279 = vdwg.mxu0
    %3281 = vset.pattern.permute.xlu0 0
    %3282 = vperm.xlu0 %3281, %v3223
    %v3283 = vpop.permute.xlu0 %3282
    %v3285 = vadd.f32 %v3283, %v3274
    %v3286 = vadd.f32 %v3283, %v3276
    %s3287 = sadd.s32 %s507, 5121
    %v3288 = vstv %s3287
    %v3289 = vadd.s32 %v3288, %v739
    %v3290 = vadd.s32 %v3288, %v740
    %v3291 = vcvt.s32.f32 %v3289
    %v3292 = vcvt.s32.f32 %v3290
    %v3293 = vsub.f32 %v3291, %v3285
    %v3294 = vsub.f32 %v3292, %v3286
    %v3295 = vsub.f32 %v751, %v3285
    %v3296 = vsub.f32 %v751, %v3286
    %v3297 = vadd.f32 %v751, %v3293
    %v3298 = vadd.f32 %v751, %v3294
    %v3300 = vcombine.high %v3220, %v3220
    %v3302 = vadd.f32 %v3295, %v3220
    %v3303 = vadd.f32 %v3296, %v3300
    %v3304 = vsub.f32 1.0, %v3220
    %v3306 = vcombine.high %v3304, %v3304
    %v3308 = vsub.f32 %v3297, %v3304
    %v3309 = vsub.f32 %v3298, %v3306
    %v3310 = vmul.f32 %v3302, %v3297
    %v3311 = vmul.f32 %v3303, %v3298
    %v3312 = vmul.f32 %v3295, %v3308
    %v3313 = vmul.f32 %v3296, %v3309
    %v3314 = vsub.f32 %v3310, %v3312
    %v3315 = vsub.f32 %v3311, %v3313
    %v3316 = vmul.f32 %v3297, %v3308
    %v3317 = vmul.f32 %v3298, %v3309
    %v3318 = vmax.f32 %v3316, 1.0
    %v3319 = vmax.f32 %v3317, 1.0
    %v3320 = vrcp.pop %v3318
    %v3321 = vmul.f32 %v3314, %v3320
    %v3322 = vrcp.pop %v3319
    %v3323 = vmul.f32 %v3315, %v3322
    %v3324 = vld [vmem:[#allocation4] sm:$0xf]
    %v3327 = vcombine.low %v3321, %v3323
    %v3329 = vmul.f32 %v3222, %v3327
    %v3331 = vcombine.high %v3329, %v3329
    %v3333 = vsel %vm791, %v3329, 0.0
    %v3334 = vsel %vm791, %v3331, 0.0
    %v3335 = vadd.f32 %v3333, %v3334
    %3336 = vadd.xlane.f32.xlu0 %v3335
    %v3337 = vpop.xlane.xlu0 %3336
    %v3338 = vadd.f32 %v3324, %v3337
    %3339 = vst.msk [vmem:[#allocation4] sm:$0xf] %vm798, %v3338
    %3341 = vrot.lane.b32.xlu0 %v3286, 1
    %v3342 = vpop.permute.xlu0 %3341
    %3344 = vst.msk [vmem:[#allocation3] sm:$0xf] %vm798, %v3342
    %v3345 = vld [vmem:[%s2 + $0x2a] sm:$0x3]
    %v3346 = vunpack.c.0.s8 %v3345
    %v3347 = vcvt.s32.f32 %v3346
    %v3348 = vld [vmem:[%s1 + $0xa8] sm:$0xff]
    %v3349 = vsub.f32 0.0, %v3348
    %v3350 = vld [vmem:[#allocation3] sm:$0xf]
    %v3352 = vunpack.c.l.s4 1935823168
    %v3353 = vunpack.c.0.s8 %v3352
    %v3354 = vlaneseq
    %v3355 = vshrl.u32 %v3354, 7
    %v3356 = vsub.s32 %v3353, %v3355
    %v3357 = vrot.slane %v3345, %v3356
    %v3358 = vunpack.c.l.s8.bf16 %v3357
    %v3360 = vunpack.c.l.b16 %v3358
    %v3361 = vunpack.c.h.b16 %v3358
    %v3362 = vpack.c.b16 %v3360, %v3360
    %v3363 = vpack.c.b16 %v3361, %v3361
    %3366 = vmatprep.subr.bf16.mxu0 %v640
    %3367 = vmatpush1.bf16.msra.mxu0 %v639
    %3368 = vmatprep.subr.bf16.mxu0 %v638
    %3369 = vmatpush1.bf16.msra.mxu0 %v637
    %3370 = vmatprep.subr.bf16.mxu0 %v636
    %3371 = vmatpush1.bf16.msra.mxu0 %v635
    %3372 = vmatprep.subr.bf16.mxu0 %v634
    %3373 = vmatpush1.bf16.msra.mxu0 %v633
    %3374 = vmatprep.subr.bf16.mxu0 %v632
    %3375 = vmatpush1.bf16.msra.mxu0 %v631
    %3376 = vmatprep.subr.bf16.mxu0 %v630
    %3377 = vmatpush1.bf16.msra.mxu0 %v629
    %3378 = vmatprep.subr.bf16.mxu0 %v628
    %3379 = vmatpush1.bf16.msra.mxu0 %v627
    %3380 = vmatprep.subr.bf16.mxu0 %v626
    %3381 = vmatpush1.bf16.msra.mxu0 %v625
    %3382 = vmatprep.subr.bf16.mxu0 %v656
    %3383 = vmatpush2.bf16.msra.mxu0 %v655
    %3384 = vmatprep.subr.bf16.mxu0 %v654
    %3385 = vmatpush2.bf16.msra.mxu0 %v653
    %3386 = vmatprep.subr.bf16.mxu0 %v652
    %3387 = vmatpush2.bf16.msra.mxu0 %v651
    %3388 = vmatprep.subr.bf16.mxu0 %v650
    %3389 = vmatpush2.bf16.msra.mxu0 %v649
    %3390 = vmatprep.subr.bf16.mxu0 %v648
    %3391 = vmatpush2.bf16.msra.mxu0 %v647
    %3392 = vmatprep.subr.bf16.mxu0 %v646
    %3393 = vmatpush2.bf16.msra.mxu0 %v645
    %3394 = vmatprep.subr.bf16.mxu0 %v644
    %3395 = vmatpush2.bf16.msra.mxu0 %v643
    %3396 = vmatprep.subr.bf16.mxu0 %v642
    %3397 = vmatpush2.bf16.msra.mxu0 %v641
    %3398 = vmatprep.mubr.bf16.mxu0 %v3363
    %3399 = vmatmul.mubr.bf16.gmra.mxu0 %v3362
    %v3400 = vpop.f32.mrf.mxu0
    %v3401 = vadd.f32 0.0, %v3400
    %v3402 = vpop.f32.mrf.mxu0
    %v3403 = vadd.f32 0.0, %v3402
    %v3404 = vpop.f32.mrf.mxu0
    %v3405 = vpop.f32.mrf.mxu0
    %3406 = vdwg.mxu0
    %3408 = vset.pattern.permute.xlu0 0
    %3409 = vperm.xlu0 %3408, %v3350
    %v3410 = vpop.permute.xlu0 %3409
    %v3412 = vadd.f32 %v3410, %v3401
    %v3413 = vadd.f32 %v3410, %v3403
    %s3414 = sadd.s32 %s507, 5377
    %v3415 = vstv %s3414
    %v3416 = vadd.s32 %v3415, %v739
    %v3417 = vadd.s32 %v3415, %v740
    %v3418 = vcvt.s32.f32 %v3416
    %v3419 = vcvt.s32.f32 %v3417
    %v3420 = vsub.f32 %v3418, %v3412
    %v3421 = vsub.f32 %v3419, %v3413
    %v3422 = vsub.f32 %v751, %v3412
    %v3423 = vsub.f32 %v751, %v3413
    %v3424 = vadd.f32 %v751, %v3420
    %v3425 = vadd.f32 %v751, %v3421
    %v3427 = vcombine.high %v3347, %v3347
    %v3429 = vadd.f32 %v3422, %v3347
    %v3430 = vadd.f32 %v3423, %v3427
    %v3431 = vsub.f32 1.0, %v3347
    %v3433 = vcombine.high %v3431, %v3431
    %v3435 = vsub.f32 %v3424, %v3431
    %v3436 = vsub.f32 %v3425, %v3433
    %v3437 = vmul.f32 %v3429, %v3424
    %v3438 = vmul.f32 %v3430, %v3425
    %v3439 = vmul.f32 %v3422, %v3435
    %v3440 = vmul.f32 %v3423, %v3436
    %v3441 = vsub.f32 %v3437, %v3439
    %v3442 = vsub.f32 %v3438, %v3440
    %v3443 = vmul.f32 %v3424, %v3435
    %v3444 = vmul.f32 %v3425, %v3436
    %v3445 = vmax.f32 %v3443, 1.0
    %v3446 = vmax.f32 %v3444, 1.0
    %v3447 = vrcp.pop %v3445
    %v3448 = vmul.f32 %v3441, %v3447
    %v3449 = vrcp.pop %v3446
    %v3450 = vmul.f32 %v3442, %v3449
    %v3451 = vld [vmem:[#allocation4] sm:$0xf]
    %v3454 = vcombine.low %v3448, %v3450
    %v3456 = vmul.f32 %v3349, %v3454
    %v3458 = vcombine.high %v3456, %v3456
    %v3460 = vsel %vm791, %v3456, 0.0
    %v3461 = vsel %vm791, %v3458, 0.0
    %v3462 = vadd.f32 %v3460, %v3461
    %3463 = vadd.xlane.f32.xlu0 %v3462
    %v3464 = vpop.xlane.xlu0 %3463
    %v3465 = vadd.f32 %v3451, %v3464
    %3466 = vst.msk [vmem:[#allocation4] sm:$0xf] %vm798, %v3465
    %3468 = vrot.lane.b32.xlu0 %v3413, 1
    %v3469 = vpop.permute.xlu0 %3468
    %3471 = vst.msk [vmem:[#allocation3] sm:$0xf] %vm798, %v3469
    %v3472 = vld [vmem:[%s2 + $0x2c] sm:$0x3]
    %v3473 = vunpack.c.0.s8 %v3472
    %v3474 = vcvt.s32.f32 %v3473
    %v3475 = vld [vmem:[%s1 + $0xb0] sm:$0xff]
    %v3476 = vsub.f32 0.0, %v3475
    %v3477 = vld [vmem:[#allocation3] sm:$0xf]
    %v3479 = vunpack.c.l.s4 1935823168
    %v3480 = vunpack.c.0.s8 %v3479
    %v3481 = vlaneseq
    %v3482 = vshrl.u32 %v3481, 7
    %v3483 = vsub.s32 %v3480, %v3482
    %v3484 = vrot.slane %v3472, %v3483
    %v3485 = vunpack.c.l.s8.bf16 %v3484
    %v3487 = vunpack.c.l.b16 %v3485
    %v3488 = vunpack.c.h.b16 %v3485
    %v3489 = vpack.c.b16 %v3487, %v3487
    %v3490 = vpack.c.b16 %v3488, %v3488
    %3493 = vmatprep.subr.bf16.mxu0 %v640
    %3494 = vmatpush1.bf16.msra.mxu0 %v639
    %3495 = vmatprep.subr.bf16.mxu0 %v638
    %3496 = vmatpush1.bf16.msra.mxu0 %v637
    %3497 = vmatprep.subr.bf16.mxu0 %v636
    %3498 = vmatpush1.bf16.msra.mxu0 %v635
    %3499 = vmatprep.subr.bf16.mxu0 %v634
    %3500 = vmatpush1.bf16.msra.mxu0 %v633
    %3501 = vmatprep.subr.bf16.mxu0 %v632
    %3502 = vmatpush1.bf16.msra.mxu0 %v631
    %3503 = vmatprep.subr.bf16.mxu0 %v630
    %3504 = vmatpush1.bf16.msra.mxu0 %v629
    %3505 = vmatprep.subr.bf16.mxu0 %v628
    %3506 = vmatpush1.bf16.msra.mxu0 %v627
    %3507 = vmatprep.subr.bf16.mxu0 %v626
    %3508 = vmatpush1.bf16.msra.mxu0 %v625
    %3509 = vmatprep.subr.bf16.mxu0 %v656
    %3510 = vmatpush2.bf16.msra.mxu0 %v655
    %3511 = vmatprep.subr.bf16.mxu0 %v654
    %3512 = vmatpush2.bf16.msra.mxu0 %v653
    %3513 = vmatprep.subr.bf16.mxu0 %v652
    %3514 = vmatpush2.bf16.msra.mxu0 %v651
    %3515 = vmatprep.subr.bf16.mxu0 %v650
    %3516 = vmatpush2.bf16.msra.mxu0 %v649
    %3517 = vmatprep.subr.bf16.mxu0 %v648
    %3518 = vmatpush2.bf16.msra.mxu0 %v647
    %3519 = vmatprep.subr.bf16.mxu0 %v646
    %3520 = vmatpush2.bf16.msra.mxu0 %v645
    %3521 = vmatprep.subr.bf16.mxu0 %v644
    %3522 = vmatpush2.bf16.msra.mxu0 %v643
    %3523 = vmatprep.subr.bf16.mxu0 %v642
    %3524 = vmatpush2.bf16.msra.mxu0 %v641
    %3525 = vmatprep.mubr.bf16.mxu0 %v3490
    %3526 = vmatmul.mubr.bf16.gmra.mxu0 %v3489
    %v3527 = vpop.f32.mrf.mxu0
    %v3528 = vadd.f32 0.0, %v3527
    %v3529 = vpop.f32.mrf.mxu0
    %v3530 = vadd.f32 0.0, %v3529
    %v3531 = vpop.f32.mrf.mxu0
    %v3532 = vpop.f32.mrf.mxu0
    %3533 = vdwg.mxu0
    %3535 = vset.pattern.permute.xlu0 0
    %3536 = vperm.xlu0 %3535, %v3477
    %v3537 = vpop.permute.xlu0 %3536
    %v3539 = vadd.f32 %v3537, %v3528
    %v3540 = vadd.f32 %v3537, %v3530
    %s3541 = sadd.s32 %s507, 5633
    %v3542 = vstv %s3541
    %v3543 = vadd.s32 %v3542, %v739
    %v3544 = vadd.s32 %v3542, %v740
    %v3545 = vcvt.s32.f32 %v3543
    %v3546 = vcvt.s32.f32 %v3544
    %v3547 = vsub.f32 %v3545, %v3539
    %v3548 = vsub.f32 %v3546, %v3540
    %v3549 = vsub.f32 %v751, %v3539
    %v3550 = vsub.f32 %v751, %v3540
    %v3551 = vadd.f32 %v751, %v3547
    %v3552 = vadd.f32 %v751, %v3548
    %v3554 = vcombine.high %v3474, %v3474
    %v3556 = vadd.f32 %v3549, %v3474
    %v3557 = vadd.f32 %v3550, %v3554
    %v3558 = vsub.f32 1.0, %v3474
    %v3560 = vcombine.high %v3558, %v3558
    %v3562 = vsub.f32 %v3551, %v3558
    %v3563 = vsub.f32 %v3552, %v3560
    %v3564 = vmul.f32 %v3556, %v3551
    %v3565 = vmul.f32 %v3557, %v3552
    %v3566 = vmul.f32 %v3549, %v3562
    %v3567 = vmul.f32 %v3550, %v3563
    %v3568 = vsub.f32 %v3564, %v3566
    %v3569 = vsub.f32 %v3565, %v3567
    %v3570 = vmul.f32 %v3551, %v3562
    %v3571 = vmul.f32 %v3552, %v3563
    %v3572 = vmax.f32 %v3570, 1.0
    %v3573 = vmax.f32 %v3571, 1.0
    %v3574 = vrcp.pop %v3572
    %v3575 = vmul.f32 %v3568, %v3574
    %v3576 = vrcp.pop %v3573
    %v3577 = vmul.f32 %v3569, %v3576
    %v3578 = vld [vmem:[#allocation4] sm:$0xf]
    %v3581 = vcombine.low %v3575, %v3577
    %v3583 = vmul.f32 %v3476, %v3581
    %v3585 = vcombine.high %v3583, %v3583
    %v3587 = vsel %vm791, %v3583, 0.0
    %v3588 = vsel %vm791, %v3585, 0.0
    %v3589 = vadd.f32 %v3587, %v3588
    %3590 = vadd.xlane.f32.xlu0 %v3589
    %v3591 = vpop.xlane.xlu0 %3590
    %v3592 = vadd.f32 %v3578, %v3591
    %3593 = vst.msk [vmem:[#allocation4] sm:$0xf] %vm798, %v3592
    %3595 = vrot.lane.b32.xlu0 %v3540, 1
    %v3596 = vpop.permute.xlu0 %3595
    %3598 = vst.msk [vmem:[#allocation3] sm:$0xf] %vm798, %v3596
    %v3599 = vld [vmem:[%s2 + $0x2e] sm:$0x3]
    %v3600 = vunpack.c.0.s8 %v3599
    %v3601 = vcvt.s32.f32 %v3600
    %v3602 = vld [vmem:[%s1 + $0xb8] sm:$0xff]
    %v3603 = vsub.f32 0.0, %v3602
    %v3604 = vld [vmem:[#allocation3] sm:$0xf]
    %v3606 = vunpack.c.l.s4 1935823168
    %v3607 = vunpack.c.0.s8 %v3606
    %v3608 = vlaneseq
    %v3609 = vshrl.u32 %v3608, 7
    %v3610 = vsub.s32 %v3607, %v3609
    %v3611 = vrot.slane %v3599, %v3610
    %v3612 = vunpack.c.l.s8.bf16 %v3611
    %v3614 = vunpack.c.l.b16 %v3612
    %v3615 = vunpack.c.h.b16 %v3612
    %v3616 = vpack.c.b16 %v3614, %v3614
    %v3617 = vpack.c.b16 %v3615, %v3615
    %3620 = vmatprep.subr.bf16.mxu0 %v640
    %3621 = vmatpush1.bf16.msra.mxu0 %v639
    %3622 = vmatprep.subr.bf16.mxu0 %v638
    %3623 = vmatpush1.bf16.msra.mxu0 %v637
    %3624 = vmatprep.subr.bf16.mxu0 %v636
    %3625 = vmatpush1.bf16.msra.mxu0 %v635
    %3626 = vmatprep.subr.bf16.mxu0 %v634
    %3627 = vmatpush1.bf16.msra.mxu0 %v633
    %3628 = vmatprep.subr.bf16.mxu0 %v632
    %3629 = vmatpush1.bf16.msra.mxu0 %v631
    %3630 = vmatprep.subr.bf16.mxu0 %v630
    %3631 = vmatpush1.bf16.msra.mxu0 %v629
    %3632 = vmatprep.subr.bf16.mxu0 %v628
    %3633 = vmatpush1.bf16.msra.mxu0 %v627
    %3634 = vmatprep.subr.bf16.mxu0 %v626
    %3635 = vmatpush1.bf16.msra.mxu0 %v625
    %3636 = vmatprep.subr.bf16.mxu0 %v656
    %3637 = vmatpush2.bf16.msra.mxu0 %v655
    %3638 = vmatprep.subr.bf16.mxu0 %v654
    %3639 = vmatpush2.bf16.msra.mxu0 %v653
    %3640 = vmatprep.subr.bf16.mxu0 %v652
    %3641 = vmatpush2.bf16.msra.mxu0 %v651
    %3642 = vmatprep.subr.bf16.mxu0 %v650
    %3643 = vmatpush2.bf16.msra.mxu0 %v649
    %3644 = vmatprep.subr.bf16.mxu0 %v648
    %3645 = vmatpush2.bf16.msra.mxu0 %v647
    %3646 = vmatprep.subr.bf16.mxu0 %v646
    %3647 = vmatpush2.bf16.msra.mxu0 %v645
    %3648 = vmatprep.subr.bf16.mxu0 %v644
    %3649 = vmatpush2.bf16.msra.mxu0 %v643
    %3650 = vmatprep.subr.bf16.mxu0 %v642
    %3651 = vmatpush2.bf16.msra.mxu0 %v641
    %3652 = vmatprep.mubr.bf16.mxu0 %v3617
    %3653 = vmatmul.mubr.bf16.gmra.mxu0 %v3616
    %v3654 = vpop.f32.mrf.mxu0
    %v3655 = vadd.f32 0.0, %v3654
    %v3656 = vpop.f32.mrf.mxu0
    %v3657 = vadd.f32 0.0, %v3656
    %v3658 = vpop.f32.mrf.mxu0
    %v3659 = vpop.f32.mrf.mxu0
    %3660 = vdwg.mxu0
    %3662 = vset.pattern.permute.xlu0 0
    %3663 = vperm.xlu0 %3662, %v3604
    %v3664 = vpop.permute.xlu0 %3663
    %v3666 = vadd.f32 %v3664, %v3655
    %v3667 = vadd.f32 %v3664, %v3657
    %s3668 = sadd.s32 %s507, 5889
    %v3669 = vstv %s3668
    %v3670 = vadd.s32 %v3669, %v739
    %v3671 = vadd.s32 %v3669, %v740
    %v3672 = vcvt.s32.f32 %v3670
    %v3673 = vcvt.s32.f32 %v3671
    %v3674 = vsub.f32 %v3672, %v3666
    %v3675 = vsub.f32 %v3673, %v3667
    %v3676 = vsub.f32 %v751, %v3666
    %v3677 = vsub.f32 %v751, %v3667
    %v3678 = vadd.f32 %v751, %v3674
    %v3679 = vadd.f32 %v751, %v3675
    %v3681 = vcombine.high %v3601, %v3601
    %v3683 = vadd.f32 %v3676, %v3601
    %v3684 = vadd.f32 %v3677, %v3681
    %v3685 = vsub.f32 1.0, %v3601
    %v3687 = vcombine.high %v3685, %v3685
    %v3689 = vsub.f32 %v3678, %v3685
    %v3690 = vsub.f32 %v3679, %v3687
    %v3691 = vmul.f32 %v3683, %v3678
    %v3692 = vmul.f32 %v3684, %v3679
    %v3693 = vmul.f32 %v3676, %v3689
    %v3694 = vmul.f32 %v3677, %v3690
    %v3695 = vsub.f32 %v3691, %v3693
    %v3696 = vsub.f32 %v3692, %v3694
    %v3697 = vmul.f32 %v3678, %v3689
    %v3698 = vmul.f32 %v3679, %v3690
    %v3699 = vmax.f32 %v3697, 1.0
    %v3700 = vmax.f32 %v3698, 1.0
    %v3701 = vrcp.pop %v3699
    %v3702 = vmul.f32 %v3695, %v3701
    %v3703 = vrcp.pop %v3700
    %v3704 = vmul.f32 %v3696, %v3703
    %v3705 = vld [vmem:[#allocation4] sm:$0xf]
    %v3708 = vcombine.low %v3702, %v3704
    %v3710 = vmul.f32 %v3603, %v3708
    %v3712 = vcombine.high %v3710, %v3710
    %v3714 = vsel %vm791, %v3710, 0.0
    %v3715 = vsel %vm791, %v3712, 0.0
    %v3716 = vadd.f32 %v3714, %v3715
    %3717 = vadd.xlane.f32.xlu0 %v3716
    %v3718 = vpop.xlane.xlu0 %3717
    %v3719 = vadd.f32 %v3705, %v3718
    %3720 = vst.msk [vmem:[#allocation4] sm:$0xf] %vm798, %v3719
    %3722 = vrot.lane.b32.xlu0 %v3667, 1
    %v3723 = vpop.permute.xlu0 %3722
    %3725 = vst.msk [vmem:[#allocation3] sm:$0xf] %vm798, %v3723
    %v3726 = vld [vmem:[%s2 + $0x30] sm:$0x3]
    %v3727 = vunpack.c.0.s8 %v3726
    %v3728 = vcvt.s32.f32 %v3727
    %v3729 = vld [vmem:[%s1 + $0xc0] sm:$0xff]
    %v3730 = vsub.f32 0.0, %v3729
    %v3731 = vld [vmem:[#allocation3] sm:$0xf]
    %v3733 = vunpack.c.l.s4 1935823168
    %v3734 = vunpack.c.0.s8 %v3733
    %v3735 = vlaneseq
    %v3736 = vshrl.u32 %v3735, 7
    %v3737 = vsub.s32 %v3734, %v3736
    %v3738 = vrot.slane %v3726, %v3737
    %v3739 = vunpack.c.l.s8.bf16 %v3738
    %v3741 = vunpack.c.l.b16 %v3739
    %v3742 = vunpack.c.h.b16 %v3739
    %v3743 = vpack.c.b16 %v3741, %v3741
    %v3744 = vpack.c.b16 %v3742, %v3742
    %3747 = vmatprep.subr.bf16.mxu0 %v640
    %3748 = vmatpush1.bf16.msra.mxu0 %v639
    %3749 = vmatprep.subr.bf16.mxu0 %v638
    %3750 = vmatpush1.bf16.msra.mxu0 %v637
    %3751 = vmatprep.subr.bf16.mxu0 %v636
    %3752 = vmatpush1.bf16.msra.mxu0 %v635
    %3753 = vmatprep.subr.bf16.mxu0 %v634
    %3754 = vmatpush1.bf16.msra.mxu0 %v633
    %3755 = vmatprep.subr.bf16.mxu0 %v632
    %3756 = vmatpush1.bf16.msra.mxu0 %v631
    %3757 = vmatprep.subr.bf16.mxu0 %v630
    %3758 = vmatpush1.bf16.msra.mxu0 %v629
    %3759 = vmatprep.subr.bf16.mxu0 %v628
    %3760 = vmatpush1.bf16.msra.mxu0 %v627
    %3761 = vmatprep.subr.bf16.mxu0 %v626
    %3762 = vmatpush1.bf16.msra.mxu0 %v625
    %3763 = vmatprep.subr.bf16.mxu0 %v656
    %3764 = vmatpush2.bf16.msra.mxu0 %v655
    %3765 = vmatprep.subr.bf16.mxu0 %v654
    %3766 = vmatpush2.bf16.msra.mxu0 %v653
    %3767 = vmatprep.subr.bf16.mxu0 %v652
    %3768 = vmatpush2.bf16.msra.mxu0 %v651
    %3769 = vmatprep.subr.bf16.mxu0 %v650
    %3770 = vmatpush2.bf16.msra.mxu0 %v649
    %3771 = vmatprep.subr.bf16.mxu0 %v648
    %3772 = vmatpush2.bf16.msra.mxu0 %v647
    %3773 = vmatprep.subr.bf16.mxu0 %v646
    %3774 = vmatpush2.bf16.msra.mxu0 %v645
    %3775 = vmatprep.subr.bf16.mxu0 %v644
    %3776 = vmatpush2.bf16.msra.mxu0 %v643
    %3777 = vmatprep.subr.bf16.mxu0 %v642
    %3778 = vmatpush2.bf16.msra.mxu0 %v641
    %3779 = vmatprep.mubr.bf16.mxu0 %v3744
    %3780 = vmatmul.mubr.bf16.gmra.mxu0 %v3743
    %v3781 = vpop.f32.mrf.mxu0
    %v3782 = vadd.f32 0.0, %v3781
    %v3783 = vpop.f32.mrf.mxu0
    %v3784 = vadd.f32 0.0, %v3783
    %v3785 = vpop.f32.mrf.mxu0
    %v3786 = vpop.f32.mrf.mxu0
    %3787 = vdwg.mxu0
    %3789 = vset.pattern.permute.xlu0 0
    %3790 = vperm.xlu0 %3789, %v3731
    %v3791 = vpop.permute.xlu0 %3790
    %v3793 = vadd.f32 %v3791, %v3782
    %v3794 = vadd.f32 %v3791, %v3784
    %s3795 = sadd.s32 %s507, 6145
    %v3796 = vstv %s3795
    %v3797 = vadd.s32 %v3796, %v739
    %v3798 = vadd.s32 %v3796, %v740
    %v3799 = vcvt.s32.f32 %v3797
    %v3800 = vcvt.s32.f32 %v3798
    %v3801 = vsub.f32 %v3799, %v3793
    %v3802 = vsub.f32 %v3800, %v3794
    %v3803 = vsub.f32 %v751, %v3793
    %v3804 = vsub.f32 %v751, %v3794
    %v3805 = vadd.f32 %v751, %v3801
    %v3806 = vadd.f32 %v751, %v3802
    %v3808 = vcombine.high %v3728, %v3728
    %v3810 = vadd.f32 %v3803, %v3728
    %v3811 = vadd.f32 %v3804, %v3808
    %v3812 = vsub.f32 1.0, %v3728
    %v3814 = vcombine.high %v3812, %v3812
    %v3816 = vsub.f32 %v3805, %v3812
    %v3817 = vsub.f32 %v3806, %v3814
    %v3818 = vmul.f32 %v3810, %v3805
    %v3819 = vmul.f32 %v3811, %v3806
    %v3820 = vmul.f32 %v3803, %v3816
    %v3821 = vmul.f32 %v3804, %v3817
    %v3822 = vsub.f32 %v3818, %v3820
    %v3823 = vsub.f32 %v3819, %v3821
    %v3824 = vmul.f32 %v3805, %v3816
    %v3825 = vmul.f32 %v3806, %v3817
    %v3826 = vmax.f32 %v3824, 1.0
    %v3827 = vmax.f32 %v3825, 1.0
    %v3828 = vrcp.pop %v3826
    %v3829 = vmul.f32 %v3822, %v3828
    %v3830 = vrcp.pop %v3827
    %v3831 = vmul.f32 %v3823, %v3830
    %v3832 = vld [vmem:[#allocation4] sm:$0xf]
    %v3835 = vcombine.low %v3829, %v3831
    %v3837 = vmul.f32 %v3730, %v3835
    %v3839 = vcombine.high %v3837, %v3837
    %v3841 = vsel %vm791, %v3837, 0.0
    %v3842 = vsel %vm791, %v3839, 0.0
    %v3843 = vadd.f32 %v3841, %v3842
    %3844 = vadd.xlane.f32.xlu0 %v3843
    %v3845 = vpop.xlane.xlu0 %3844
    %v3846 = vadd.f32 %v3832, %v3845
    %3847 = vst.msk [vmem:[#allocation4] sm:$0xf] %vm798, %v3846
    %3849 = vrot.lane.b32.xlu0 %v3794, 1
    %v3850 = vpop.permute.xlu0 %3849
    %3852 = vst.msk [vmem:[#allocation3] sm:$0xf] %vm798, %v3850
    %v3853 = vld [vmem:[%s2 + $0x32] sm:$0x3]
    %v3854 = vunpack.c.0.s8 %v3853
    %v3855 = vcvt.s32.f32 %v3854
    %v3856 = vld [vmem:[%s1 + $0xc8] sm:$0xff]
    %v3857 = vsub.f32 0.0, %v3856
    %v3858 = vld [vmem:[#allocation3] sm:$0xf]
    %v3860 = vunpack.c.l.s4 1935823168
    %v3861 = vunpack.c.0.s8 %v3860
    %v3862 = vlaneseq
    %v3863 = vshrl.u32 %v3862, 7
    %v3864 = vsub.s32 %v3861, %v3863
    %v3865 = vrot.slane %v3853, %v3864
    %v3866 = vunpack.c.l.s8.bf16 %v3865
    %v3868 = vunpack.c.l.b16 %v3866
    %v3869 = vunpack.c.h.b16 %v3866
    %v3870 = vpack.c.b16 %v3868, %v3868
    %v3871 = vpack.c.b16 %v3869, %v3869
    %3874 = vmatprep.subr.bf16.mxu0 %v640
    %3875 = vmatpush1.bf16.msra.mxu0 %v639
    %3876 = vmatprep.subr.bf16.mxu0 %v638
    %3877 = vmatpush1.bf16.msra.mxu0 %v637
    %3878 = vmatprep.subr.bf16.mxu0 %v636
    %3879 = vmatpush1.bf16.msra.mxu0 %v635
    %3880 = vmatprep.subr.bf16.mxu0 %v634
    %3881 = vmatpush1.bf16.msra.mxu0 %v633
    %3882 = vmatprep.subr.bf16.mxu0 %v632
    %3883 = vmatpush1.bf16.msra.mxu0 %v631
    %3884 = vmatprep.subr.bf16.mxu0 %v630
    %3885 = vmatpush1.bf16.msra.mxu0 %v629
    %3886 = vmatprep.subr.bf16.mxu0 %v628
    %3887 = vmatpush1.bf16.msra.mxu0 %v627
    %3888 = vmatprep.subr.bf16.mxu0 %v626
    %3889 = vmatpush1.bf16.msra.mxu0 %v625
    %3890 = vmatprep.subr.bf16.mxu0 %v656
    %3891 = vmatpush2.bf16.msra.mxu0 %v655
    %3892 = vmatprep.subr.bf16.mxu0 %v654
    %3893 = vmatpush2.bf16.msra.mxu0 %v653
    %3894 = vmatprep.subr.bf16.mxu0 %v652
    %3895 = vmatpush2.bf16.msra.mxu0 %v651
    %3896 = vmatprep.subr.bf16.mxu0 %v650
    %3897 = vmatpush2.bf16.msra.mxu0 %v649
    %3898 = vmatprep.subr.bf16.mxu0 %v648
    %3899 = vmatpush2.bf16.msra.mxu0 %v647
    %3900 = vmatprep.subr.bf16.mxu0 %v646
    %3901 = vmatpush2.bf16.msra.mxu0 %v645
    %3902 = vmatprep.subr.bf16.mxu0 %v644
    %3903 = vmatpush2.bf16.msra.mxu0 %v643
    %3904 = vmatprep.subr.bf16.mxu0 %v642
    %3905 = vmatpush2.bf16.msra.mxu0 %v641
    %3906 = vmatprep.mubr.bf16.mxu0 %v3871
    %3907 = vmatmul.mubr.bf16.gmra.mxu0 %v3870
    %v3908 = vpop.f32.mrf.mxu0
    %v3909 = vadd.f32 0.0, %v3908
    %v3910 = vpop.f32.mrf.mxu0
    %v3911 = vadd.f32 0.0, %v3910
    %v3912 = vpop.f32.mrf.mxu0
    %v3913 = vpop.f32.mrf.mxu0
    %3914 = vdwg.mxu0
    %3916 = vset.pattern.permute.xlu0 0
    %3917 = vperm.xlu0 %3916, %v3858
    %v3918 = vpop.permute.xlu0 %3917
    %v3920 = vadd.f32 %v3918, %v3909
    %v3921 = vadd.f32 %v3918, %v3911
    %s3922 = sadd.s32 %s507, 6401
    %v3923 = vstv %s3922
    %v3924 = vadd.s32 %v3923, %v739
    %v3925 = vadd.s32 %v3923, %v740
    %v3926 = vcvt.s32.f32 %v3924
    %v3927 = vcvt.s32.f32 %v3925
    %v3928 = vsub.f32 %v3926, %v3920
    %v3929 = vsub.f32 %v3927, %v3921
    %v3930 = vsub.f32 %v751, %v3920
    %v3931 = vsub.f32 %v751, %v3921
    %v3932 = vadd.f32 %v751, %v3928
    %v3933 = vadd.f32 %v751, %v3929
    %v3935 = vcombine.high %v3855, %v3855
    %v3937 = vadd.f32 %v3930, %v3855
    %v3938 = vadd.f32 %v3931, %v3935
    %v3939 = vsub.f32 1.0, %v3855
    %v3941 = vcombine.high %v3939, %v3939
    %v3943 = vsub.f32 %v3932, %v3939
    %v3944 = vsub.f32 %v3933, %v3941
    %v3945 = vmul.f32 %v3937, %v3932
    %v3946 = vmul.f32 %v3938, %v3933
    %v3947 = vmul.f32 %v3930, %v3943
    %v3948 = vmul.f32 %v3931, %v3944
    %v3949 = vsub.f32 %v3945, %v3947
    %v3950 = vsub.f32 %v3946, %v3948
    %v3951 = vmul.f32 %v3932, %v3943
    %v3952 = vmul.f32 %v3933, %v3944
    %v3953 = vmax.f32 %v3951, 1.0
    %v3954 = vmax.f32 %v3952, 1.0
    %v3955 = vrcp.pop %v3953
    %v3956 = vmul.f32 %v3949, %v3955
    %v3957 = vrcp.pop %v3954
    %v3958 = vmul.f32 %v3950, %v3957
    %v3959 = vld [vmem:[#allocation4] sm:$0xf]
    %v3962 = vcombine.low %v3956, %v3958
    %v3964 = vmul.f32 %v3857, %v3962
    %v3966 = vcombine.high %v3964, %v3964
    %v3968 = vsel %vm791, %v3964, 0.0
    %v3969 = vsel %vm791, %v3966, 0.0
    %v3970 = vadd.f32 %v3968, %v3969
    %3971 = vadd.xlane.f32.xlu0 %v3970
    %v3972 = vpop.xlane.xlu0 %3971
    %v3973 = vadd.f32 %v3959, %v3972
    %3974 = vst.msk [vmem:[#allocation4] sm:$0xf] %vm798, %v3973
    %3976 = vrot.lane.b32.xlu0 %v3921, 1
    %v3977 = vpop.permute.xlu0 %3976
    %3979 = vst.msk [vmem:[#allocation3] sm:$0xf] %vm798, %v3977
    %v3980 = vld [vmem:[%s2 + $0x34] sm:$0x3]
    %v3981 = vunpack.c.0.s8 %v3980
    %v3982 = vcvt.s32.f32 %v3981
    %v3983 = vld [vmem:[%s1 + $0xd0] sm:$0xff]
    %v3984 = vsub.f32 0.0, %v3983
    %v3985 = vld [vmem:[#allocation3] sm:$0xf]
    %v3987 = vunpack.c.l.s4 1935823168
    %v3988 = vunpack.c.0.s8 %v3987
    %v3989 = vlaneseq
    %v3990 = vshrl.u32 %v3989, 7
    %v3991 = vsub.s32 %v3988, %v3990
    %v3992 = vrot.slane %v3980, %v3991
    %v3993 = vunpack.c.l.s8.bf16 %v3992
    %v3995 = vunpack.c.l.b16 %v3993
    %v3996 = vunpack.c.h.b16 %v3993
    %v3997 = vpack.c.b16 %v3995, %v3995
    %v3998 = vpack.c.b16 %v3996, %v3996
    %4001 = vmatprep.subr.bf16.mxu0 %v640
    %4002 = vmatpush1.bf16.msra.mxu0 %v639
    %4003 = vmatprep.subr.bf16.mxu0 %v638
    %4004 = vmatpush1.bf16.msra.mxu0 %v637
    %4005 = vmatprep.subr.bf16.mxu0 %v636
    %4006 = vmatpush1.bf16.msra.mxu0 %v635
    %4007 = vmatprep.subr.bf16.mxu0 %v634
    %4008 = vmatpush1.bf16.msra.mxu0 %v633
    %4009 = vmatprep.subr.bf16.mxu0 %v632
    %4010 = vmatpush1.bf16.msra.mxu0 %v631
    %4011 = vmatprep.subr.bf16.mxu0 %v630
    %4012 = vmatpush1.bf16.msra.mxu0 %v629
    %4013 = vmatprep.subr.bf16.mxu0 %v628
    %4014 = vmatpush1.bf16.msra.mxu0 %v627
    %4015 = vmatprep.subr.bf16.mxu0 %v626
    %4016 = vmatpush1.bf16.msra.mxu0 %v625
    %4017 = vmatprep.subr.bf16.mxu0 %v656
    %4018 = vmatpush2.bf16.msra.mxu0 %v655
    %4019 = vmatprep.subr.bf16.mxu0 %v654
    %4020 = vmatpush2.bf16.msra.mxu0 %v653
    %4021 = vmatprep.subr.bf16.mxu0 %v652
    %4022 = vmatpush2.bf16.msra.mxu0 %v651
    %4023 = vmatprep.subr.bf16.mxu0 %v650
    %4024 = vmatpush2.bf16.msra.mxu0 %v649
    %4025 = vmatprep.subr.bf16.mxu0 %v648
    %4026 = vmatpush2.bf16.msra.mxu0 %v647
    %4027 = vmatprep.subr.bf16.mxu0 %v646
    %4028 = vmatpush2.bf16.msra.mxu0 %v645
    %4029 = vmatprep.subr.bf16.mxu0 %v644
    %4030 = vmatpush2.bf16.msra.mxu0 %v643
    %4031 = vmatprep.subr.bf16.mxu0 %v642
    %4032 = vmatpush2.bf16.msra.mxu0 %v641
    %4033 = vmatprep.mubr.bf16.mxu0 %v3998
    %4034 = vmatmul.mubr.bf16.gmra.mxu0 %v3997
    %v4035 = vpop.f32.mrf.mxu0
    %v4036 = vadd.f32 0.0, %v4035
    %v4037 = vpop.f32.mrf.mxu0
    %v4038 = vadd.f32 0.0, %v4037
    %v4039 = vpop.f32.mrf.mxu0
    %v4040 = vpop.f32.mrf.mxu0
    %4041 = vdwg.mxu0
    %4043 = vset.pattern.permute.xlu0 0
    %4044 = vperm.xlu0 %4043, %v3985
    %v4045 = vpop.permute.xlu0 %4044
    %v4047 = vadd.f32 %v4045, %v4036
    %v4048 = vadd.f32 %v4045, %v4038
    %s4049 = sadd.s32 %s507, 6657
    %v4050 = vstv %s4049
    %v4051 = vadd.s32 %v4050, %v739
    %v4052 = vadd.s32 %v4050, %v740
    %v4053 = vcvt.s32.f32 %v4051
    %v4054 = vcvt.s32.f32 %v4052
    %v4055 = vsub.f32 %v4053, %v4047
    %v4056 = vsub.f32 %v4054, %v4048
    %v4057 = vsub.f32 %v751, %v4047
    %v4058 = vsub.f32 %v751, %v4048
    %v4059 = vadd.f32 %v751, %v4055
    %v4060 = vadd.f32 %v751, %v4056
    %v4062 = vcombine.high %v3982, %v3982
    %v4064 = vadd.f32 %v4057, %v3982
    %v4065 = vadd.f32 %v4058, %v4062
    %v4066 = vsub.f32 1.0, %v3982
    %v4068 = vcombine.high %v4066, %v4066
    %v4070 = vsub.f32 %v4059, %v4066
    %v4071 = vsub.f32 %v4060, %v4068
    %v4072 = vmul.f32 %v4064, %v4059
    %v4073 = vmul.f32 %v4065, %v4060
    %v4074 = vmul.f32 %v4057, %v4070
    %v4075 = vmul.f32 %v4058, %v4071
    %v4076 = vsub.f32 %v4072, %v4074
    %v4077 = vsub.f32 %v4073, %v4075
    %v4078 = vmul.f32 %v4059, %v4070
    %v4079 = vmul.f32 %v4060, %v4071
    %v4080 = vmax.f32 %v4078, 1.0
    %v4081 = vmax.f32 %v4079, 1.0
    %v4082 = vrcp.pop %v4080
    %v4083 = vmul.f32 %v4076, %v4082
    %v4084 = vrcp.pop %v4081
    %v4085 = vmul.f32 %v4077, %v4084
    %v4086 = vld [vmem:[#allocation4] sm:$0xf]
    %v4089 = vcombine.low %v4083, %v4085
    %v4091 = vmul.f32 %v3984, %v4089
    %v4093 = vcombine.high %v4091, %v4091
    %v4095 = vsel %vm791, %v4091, 0.0
    %v4096 = vsel %vm791, %v4093, 0.0
    %v4097 = vadd.f32 %v4095, %v4096
    %4098 = vadd.xlane.f32.xlu0 %v4097
    %v4099 = vpop.xlane.xlu0 %4098
    %v4100 = vadd.f32 %v4086, %v4099
    %4101 = vst.msk [vmem:[#allocation4] sm:$0xf] %vm798, %v4100
    %4103 = vrot.lane.b32.xlu0 %v4048, 1
    %v4104 = vpop.permute.xlu0 %4103
    %4106 = vst.msk [vmem:[#allocation3] sm:$0xf] %vm798, %v4104
    %v4107 = vld [vmem:[%s2 + $0x36] sm:$0x3]
    %v4108 = vunpack.c.0.s8 %v4107
    %v4109 = vcvt.s32.f32 %v4108
    %v4110 = vld [vmem:[%s1 + $0xd8] sm:$0xff]
    %v4111 = vsub.f32 0.0, %v4110
    %v4112 = vld [vmem:[#allocation3] sm:$0xf]
    %v4114 = vunpack.c.l.s4 1935823168
    %v4115 = vunpack.c.0.s8 %v4114
    %v4116 = vlaneseq
    %v4117 = vshrl.u32 %v4116, 7
    %v4118 = vsub.s32 %v4115, %v4117
    %v4119 = vrot.slane %v4107, %v4118
    %v4120 = vunpack.c.l.s8.bf16 %v4119
    %v4122 = vunpack.c.l.b16 %v4120
    %v4123 = vunpack.c.h.b16 %v4120
    %v4124 = vpack.c.b16 %v4122, %v4122
    %v4125 = vpack.c.b16 %v4123, %v4123
    %4128 = vmatprep.subr.bf16.mxu0 %v640
    %4129 = vmatpush1.bf16.msra.mxu0 %v639
    %4130 = vmatprep.subr.bf16.mxu0 %v638
    %4131 = vmatpush1.bf16.msra.mxu0 %v637
    %4132 = vmatprep.subr.bf16.mxu0 %v636
    %4133 = vmatpush1.bf16.msra.mxu0 %v635
    %4134 = vmatprep.subr.bf16.mxu0 %v634
    %4135 = vmatpush1.bf16.msra.mxu0 %v633
    %4136 = vmatprep.subr.bf16.mxu0 %v632
    %4137 = vmatpush1.bf16.msra.mxu0 %v631
    %4138 = vmatprep.subr.bf16.mxu0 %v630
    %4139 = vmatpush1.bf16.msra.mxu0 %v629
    %4140 = vmatprep.subr.bf16.mxu0 %v628
    %4141 = vmatpush1.bf16.msra.mxu0 %v627
    %4142 = vmatprep.subr.bf16.mxu0 %v626
    %4143 = vmatpush1.bf16.msra.mxu0 %v625
    %4144 = vmatprep.subr.bf16.mxu0 %v656
    %4145 = vmatpush2.bf16.msra.mxu0 %v655
    %4146 = vmatprep.subr.bf16.mxu0 %v654
    %4147 = vmatpush2.bf16.msra.mxu0 %v653
    %4148 = vmatprep.subr.bf16.mxu0 %v652
    %4149 = vmatpush2.bf16.msra.mxu0 %v651
    %4150 = vmatprep.subr.bf16.mxu0 %v650
    %4151 = vmatpush2.bf16.msra.mxu0 %v649
    %4152 = vmatprep.subr.bf16.mxu0 %v648
    %4153 = vmatpush2.bf16.msra.mxu0 %v647
    %4154 = vmatprep.subr.bf16.mxu0 %v646
    %4155 = vmatpush2.bf16.msra.mxu0 %v645
    %4156 = vmatprep.subr.bf16.mxu0 %v644
    %4157 = vmatpush2.bf16.msra.mxu0 %v643
    %4158 = vmatprep.subr.bf16.mxu0 %v642
    %4159 = vmatpush2.bf16.msra.mxu0 %v641
    %4160 = vmatprep.mubr.bf16.mxu0 %v4125
    %4161 = vmatmul.mubr.bf16.gmra.mxu0 %v4124
    %v4162 = vpop.f32.mrf.mxu0
    %v4163 = vadd.f32 0.0, %v4162
    %v4164 = vpop.f32.mrf.mxu0
    %v4165 = vadd.f32 0.0, %v4164
    %v4166 = vpop.f32.mrf.mxu0
    %v4167 = vpop.f32.mrf.mxu0
    %4168 = vdwg.mxu0
    %4170 = vset.pattern.permute.xlu0 0
    %4171 = vperm.xlu0 %4170, %v4112
    %v4172 = vpop.permute.xlu0 %4171
    %v4174 = vadd.f32 %v4172, %v4163
    %v4175 = vadd.f32 %v4172, %v4165
    %s4176 = sadd.s32 %s507, 6913
    %v4177 = vstv %s4176
    %v4178 = vadd.s32 %v4177, %v739
    %v4179 = vadd.s32 %v4177, %v740
    %v4180 = vcvt.s32.f32 %v4178
    %v4181 = vcvt.s32.f32 %v4179
    %v4182 = vsub.f32 %v4180, %v4174
    %v4183 = vsub.f32 %v4181, %v4175
    %v4184 = vsub.f32 %v751, %v4174
    %v4185 = vsub.f32 %v751, %v4175
    %v4186 = vadd.f32 %v751, %v4182
    %v4187 = vadd.f32 %v751, %v4183
    %v4189 = vcombine.high %v4109, %v4109
    %v4191 = vadd.f32 %v4184, %v4109
    %v4192 = vadd.f32 %v4185, %v4189
    %v4193 = vsub.f32 1.0, %v4109
    %v4195 = vcombine.high %v4193, %v4193
    %v4197 = vsub.f32 %v4186, %v4193
    %v4198 = vsub.f32 %v4187, %v4195
    %v4199 = vmul.f32 %v4191, %v4186
    %v4200 = vmul.f32 %v4192, %v4187
    %v4201 = vmul.f32 %v4184, %v4197
    %v4202 = vmul.f32 %v4185, %v4198
    %v4203 = vsub.f32 %v4199, %v4201
    %v4204 = vsub.f32 %v4200, %v4202
    %v4205 = vmul.f32 %v4186, %v4197
    %v4206 = vmul.f32 %v4187, %v4198
    %v4207 = vmax.f32 %v4205, 1.0
    %v4208 = vmax.f32 %v4206, 1.0
    %v4209 = vrcp.pop %v4207
    %v4210 = vmul.f32 %v4203, %v4209
    %v4211 = vrcp.pop %v4208
    %v4212 = vmul.f32 %v4204, %v4211
    %v4213 = vld [vmem:[#allocation4] sm:$0xf]
    %v4216 = vcombine.low %v4210, %v4212
    %v4218 = vmul.f32 %v4111, %v4216
    %v4220 = vcombine.high %v4218, %v4218
    %v4222 = vsel %vm791, %v4218, 0.0
    %v4223 = vsel %vm791, %v4220, 0.0
    %v4224 = vadd.f32 %v4222, %v4223
    %4225 = vadd.xlane.f32.xlu0 %v4224
    %v4226 = vpop.xlane.xlu0 %4225
    %v4227 = vadd.f32 %v4213, %v4226
    %4228 = vst.msk [vmem:[#allocation4] sm:$0xf] %vm798, %v4227
    %4230 = vrot.lane.b32.xlu0 %v4175, 1
    %v4231 = vpop.permute.xlu0 %4230
    %4233 = vst.msk [vmem:[#allocation3] sm:$0xf] %vm798, %v4231
    %v4234 = vld [vmem:[%s2 + $0x38] sm:$0x3]
    %v4235 = vunpack.c.0.s8 %v4234
    %v4236 = vcvt.s32.f32 %v4235
    %v4237 = vld [vmem:[%s1 + $0xe0] sm:$0xff]
    %v4238 = vsub.f32 0.0, %v4237
    %v4239 = vld [vmem:[#allocation3] sm:$0xf]
    %v4241 = vunpack.c.l.s4 1935823168
    %v4242 = vunpack.c.0.s8 %v4241
    %v4243 = vlaneseq
    %v4244 = vshrl.u32 %v4243, 7
    %v4245 = vsub.s32 %v4242, %v4244
    %v4246 = vrot.slane %v4234, %v4245
    %v4247 = vunpack.c.l.s8.bf16 %v4246
    %v4249 = vunpack.c.l.b16 %v4247
    %v4250 = vunpack.c.h.b16 %v4247
    %v4251 = vpack.c.b16 %v4249, %v4249
    %v4252 = vpack.c.b16 %v4250, %v4250
    %4255 = vmatprep.subr.bf16.mxu0 %v640
    %4256 = vmatpush1.bf16.msra.mxu0 %v639
    %4257 = vmatprep.subr.bf16.mxu0 %v638
    %4258 = vmatpush1.bf16.msra.mxu0 %v637
    %4259 = vmatprep.subr.bf16.mxu0 %v636
    %4260 = vmatpush1.bf16.msra.mxu0 %v635
    %4261 = vmatprep.subr.bf16.mxu0 %v634
    %4262 = vmatpush1.bf16.msra.mxu0 %v633
    %4263 = vmatprep.subr.bf16.mxu0 %v632
    %4264 = vmatpush1.bf16.msra.mxu0 %v631
    %4265 = vmatprep.subr.bf16.mxu0 %v630
    %4266 = vmatpush1.bf16.msra.mxu0 %v629
    %4267 = vmatprep.subr.bf16.mxu0 %v628
    %4268 = vmatpush1.bf16.msra.mxu0 %v627
    %4269 = vmatprep.subr.bf16.mxu0 %v626
    %4270 = vmatpush1.bf16.msra.mxu0 %v625
    %4271 = vmatprep.subr.bf16.mxu0 %v656
    %4272 = vmatpush2.bf16.msra.mxu0 %v655
    %4273 = vmatprep.subr.bf16.mxu0 %v654
    %4274 = vmatpush2.bf16.msra.mxu0 %v653
    %4275 = vmatprep.subr.bf16.mxu0 %v652
    %4276 = vmatpush2.bf16.msra.mxu0 %v651
    %4277 = vmatprep.subr.bf16.mxu0 %v650
    %4278 = vmatpush2.bf16.msra.mxu0 %v649
    %4279 = vmatprep.subr.bf16.mxu0 %v648
    %4280 = vmatpush2.bf16.msra.mxu0 %v647
    %4281 = vmatprep.subr.bf16.mxu0 %v646
    %4282 = vmatpush2.bf16.msra.mxu0 %v645
    %4283 = vmatprep.subr.bf16.mxu0 %v644
    %4284 = vmatpush2.bf16.msra.mxu0 %v643
    %4285 = vmatprep.subr.bf16.mxu0 %v642
    %4286 = vmatpush2.bf16.msra.mxu0 %v641
    %4287 = vmatprep.mubr.bf16.mxu0 %v4252
    %4288 = vmatmul.mubr.bf16.gmra.mxu0 %v4251
    %v4289 = vpop.f32.mrf.mxu0
    %v4290 = vadd.f32 0.0, %v4289
    %v4291 = vpop.f32.mrf.mxu0
    %v4292 = vadd.f32 0.0, %v4291
    %v4293 = vpop.f32.mrf.mxu0
    %v4294 = vpop.f32.mrf.mxu0
    %4295 = vdwg.mxu0
    %4297 = vset.pattern.permute.xlu0 0
    %4298 = vperm.xlu0 %4297, %v4239
    %v4299 = vpop.permute.xlu0 %4298
    %v4301 = vadd.f32 %v4299, %v4290
    %v4302 = vadd.f32 %v4299, %v4292
    %s4303 = sadd.s32 %s507, 7169
    %v4304 = vstv %s4303
    %v4305 = vadd.s32 %v4304, %v739
    %v4306 = vadd.s32 %v4304, %v740
    %v4307 = vcvt.s32.f32 %v4305
    %v4308 = vcvt.s32.f32 %v4306
    %v4309 = vsub.f32 %v4307, %v4301
    %v4310 = vsub.f32 %v4308, %v4302
    %v4311 = vsub.f32 %v751, %v4301
    %v4312 = vsub.f32 %v751, %v4302
    %v4313 = vadd.f32 %v751, %v4309
    %v4314 = vadd.f32 %v751, %v4310
    %v4316 = vcombine.high %v4236, %v4236
    %v4318 = vadd.f32 %v4311, %v4236
    %v4319 = vadd.f32 %v4312, %v4316
    %v4320 = vsub.f32 1.0, %v4236
    %v4322 = vcombine.high %v4320, %v4320
    %v4324 = vsub.f32 %v4313, %v4320
    %v4325 = vsub.f32 %v4314, %v4322
    %v4326 = vmul.f32 %v4318, %v4313
    %v4327 = vmul.f32 %v4319, %v4314
    %v4328 = vmul.f32 %v4311, %v4324
    %v4329 = vmul.f32 %v4312, %v4325
    %v4330 = vsub.f32 %v4326, %v4328
    %v4331 = vsub.f32 %v4327, %v4329
    %v4332 = vmul.f32 %v4313, %v4324
    %v4333 = vmul.f32 %v4314, %v4325
    %v4334 = vmax.f32 %v4332, 1.0
    %v4335 = vmax.f32 %v4333, 1.0
    %v4336 = vrcp.pop %v4334
    %v4337 = vmul.f32 %v4330, %v4336
    %v4338 = vrcp.pop %v4335
    %v4339 = vmul.f32 %v4331, %v4338
    %v4340 = vld [vmem:[#allocation4] sm:$0xf]
    %v4343 = vcombine.low %v4337, %v4339
    %v4345 = vmul.f32 %v4238, %v4343
    %v4347 = vcombine.high %v4345, %v4345
    %v4349 = vsel %vm791, %v4345, 0.0
    %v4350 = vsel %vm791, %v4347, 0.0
    %v4351 = vadd.f32 %v4349, %v4350
    %4352 = vadd.xlane.f32.xlu0 %v4351
    %v4353 = vpop.xlane.xlu0 %4352
    %v4354 = vadd.f32 %v4340, %v4353
    %4355 = vst.msk [vmem:[#allocation4] sm:$0xf] %vm798, %v4354
    %4357 = vrot.lane.b32.xlu0 %v4302, 1
    %v4358 = vpop.permute.xlu0 %4357
    %4360 = vst.msk [vmem:[#allocation3] sm:$0xf] %vm798, %v4358
    %v4361 = vld [vmem:[%s2 + $0x3a] sm:$0x3]
    %v4362 = vunpack.c.0.s8 %v4361
    %v4363 = vcvt.s32.f32 %v4362
    %v4364 = vld [vmem:[%s1 + $0xe8] sm:$0xff]
    %v4365 = vsub.f32 0.0, %v4364
    %v4366 = vld [vmem:[#allocation3] sm:$0xf]
    %v4368 = vunpack.c.l.s4 1935823168
    %v4369 = vunpack.c.0.s8 %v4368
    %v4370 = vlaneseq
    %v4371 = vshrl.u32 %v4370, 7
    %v4372 = vsub.s32 %v4369, %v4371
    %v4373 = vrot.slane %v4361, %v4372
    %v4374 = vunpack.c.l.s8.bf16 %v4373
    %v4376 = vunpack.c.l.b16 %v4374
    %v4377 = vunpack.c.h.b16 %v4374
    %v4378 = vpack.c.b16 %v4376, %v4376
    %v4379 = vpack.c.b16 %v4377, %v4377
    %4382 = vmatprep.subr.bf16.mxu0 %v640
    %4383 = vmatpush1.bf16.msra.mxu0 %v639
    %4384 = vmatprep.subr.bf16.mxu0 %v638
    %4385 = vmatpush1.bf16.msra.mxu0 %v637
    %4386 = vmatprep.subr.bf16.mxu0 %v636
    %4387 = vmatpush1.bf16.msra.mxu0 %v635
    %4388 = vmatprep.subr.bf16.mxu0 %v634
    %4389 = vmatpush1.bf16.msra.mxu0 %v633
    %4390 = vmatprep.subr.bf16.mxu0 %v632
    %4391 = vmatpush1.bf16.msra.mxu0 %v631
    %4392 = vmatprep.subr.bf16.mxu0 %v630
    %4393 = vmatpush1.bf16.msra.mxu0 %v629
    %4394 = vmatprep.subr.bf16.mxu0 %v628
    %4395 = vmatpush1.bf16.msra.mxu0 %v627
    %4396 = vmatprep.subr.bf16.mxu0 %v626
    %4397 = vmatpush1.bf16.msra.mxu0 %v625
    %4398 = vmatprep.subr.bf16.mxu0 %v656
    %4399 = vmatpush2.bf16.msra.mxu0 %v655
    %4400 = vmatprep.subr.bf16.mxu0 %v654
    %4401 = vmatpush2.bf16.msra.mxu0 %v653
    %4402 = vmatprep.subr.bf16.mxu0 %v652
    %4403 = vmatpush2.bf16.msra.mxu0 %v651
    %4404 = vmatprep.subr.bf16.mxu0 %v650
    %4405 = vmatpush2.bf16.msra.mxu0 %v649
    %4406 = vmatprep.subr.bf16.mxu0 %v648
    %4407 = vmatpush2.bf16.msra.mxu0 %v647
    %4408 = vmatprep.subr.bf16.mxu0 %v646
    %4409 = vmatpush2.bf16.msra.mxu0 %v645
    %4410 = vmatprep.subr.bf16.mxu0 %v644
    %4411 = vmatpush2.bf16.msra.mxu0 %v643
    %4412 = vmatprep.subr.bf16.mxu0 %v642
    %4413 = vmatpush2.bf16.msra.mxu0 %v641
    %4414 = vmatprep.mubr.bf16.mxu0 %v4379
    %4415 = vmatmul.mubr.bf16.gmra.mxu0 %v4378
    %v4416 = vpop.f32.mrf.mxu0
    %v4417 = vadd.f32 0.0, %v4416
    %v4418 = vpop.f32.mrf.mxu0
    %v4419 = vadd.f32 0.0, %v4418
    %v4420 = vpop.f32.mrf.mxu0
    %v4421 = vpop.f32.mrf.mxu0
    %4422 = vdwg.mxu0
    %4424 = vset.pattern.permute.xlu0 0
    %4425 = vperm.xlu0 %4424, %v4366
    %v4426 = vpop.permute.xlu0 %4425
    %v4428 = vadd.f32 %v4426, %v4417
    %v4429 = vadd.f32 %v4426, %v4419
    %s4430 = sadd.s32 %s507, 7425
    %v4431 = vstv %s4430
    %v4432 = vadd.s32 %v4431, %v739
    %v4433 = vadd.s32 %v4431, %v740
    %v4434 = vcvt.s32.f32 %v4432
    %v4435 = vcvt.s32.f32 %v4433
    %v4436 = vsub.f32 %v4434, %v4428
    %v4437 = vsub.f32 %v4435, %v4429
    %v4438 = vsub.f32 %v751, %v4428
    %v4439 = vsub.f32 %v751, %v4429
    %v4440 = vadd.f32 %v751, %v4436
    %v4441 = vadd.f32 %v751, %v4437
    %v4443 = vcombine.high %v4363, %v4363
    %v4445 = vadd.f32 %v4438, %v4363
    %v4446 = vadd.f32 %v4439, %v4443
    %v4447 = vsub.f32 1.0, %v4363
    %v4449 = vcombine.high %v4447, %v4447
    %v4451 = vsub.f32 %v4440, %v4447
    %v4452 = vsub.f32 %v4441, %v4449
    %v4453 = vmul.f32 %v4445, %v4440
    %v4454 = vmul.f32 %v4446, %v4441
    %v4455 = vmul.f32 %v4438, %v4451
    %v4456 = vmul.f32 %v4439, %v4452
    %v4457 = vsub.f32 %v4453, %v4455
    %v4458 = vsub.f32 %v4454, %v4456
    %v4459 = vmul.f32 %v4440, %v4451
    %v4460 = vmul.f32 %v4441, %v4452
    %v4461 = vmax.f32 %v4459, 1.0
    %v4462 = vmax.f32 %v4460, 1.0
    %v4463 = vrcp.pop %v4461
    %v4464 = vmul.f32 %v4457, %v4463
    %v4465 = vrcp.pop %v4462
    %v4466 = vmul.f32 %v4458, %v4465
    %v4467 = vld [vmem:[#allocation4] sm:$0xf]
    %v4470 = vcombine.low %v4464, %v4466
    %v4472 = vmul.f32 %v4365, %v4470
    %v4474 = vcombine.high %v4472, %v4472
    %v4476 = vsel %vm791, %v4472, 0.0
    %v4477 = vsel %vm791, %v4474, 0.0
    %v4478 = vadd.f32 %v4476, %v4477
    %4479 = vadd.xlane.f32.xlu0 %v4478
    %v4480 = vpop.xlane.xlu0 %4479
    %v4481 = vadd.f32 %v4467, %v4480
    %4482 = vst.msk [vmem:[#allocation4] sm:$0xf] %vm798, %v4481
    %4484 = vrot.lane.b32.xlu0 %v4429, 1
    %v4485 = vpop.permute.xlu0 %4484
    %4487 = vst.msk [vmem:[#allocation3] sm:$0xf] %vm798, %v4485
    %v4488 = vld [vmem:[%s2 + $0x3c] sm:$0x3]
    %v4489 = vunpack.c.0.s8 %v4488
    %v4490 = vcvt.s32.f32 %v4489
    %v4491 = vld [vmem:[%s1 + $0xf0] sm:$0xff]
    %v4492 = vsub.f32 0.0, %v4491
    %v4493 = vld [vmem:[#allocation3] sm:$0xf]
    %v4495 = vunpack.c.l.s4 1935823168
    %v4496 = vunpack.c.0.s8 %v4495
    %v4497 = vlaneseq
    %v4498 = vshrl.u32 %v4497, 7
    %v4499 = vsub.s32 %v4496, %v4498
    %v4500 = vrot.slane %v4488, %v4499
    %v4501 = vunpack.c.l.s8.bf16 %v4500
    %v4503 = vunpack.c.l.b16 %v4501
    %v4504 = vunpack.c.h.b16 %v4501
    %v4505 = vpack.c.b16 %v4503, %v4503
    %v4506 = vpack.c.b16 %v4504, %v4504
    %4509 = vmatprep.subr.bf16.mxu0 %v640
    %4510 = vmatpush1.bf16.msra.mxu0 %v639
    %4511 = vmatprep.subr.bf16.mxu0 %v638
    %4512 = vmatpush1.bf16.msra.mxu0 %v637
    %4513 = vmatprep.subr.bf16.mxu0 %v636
    %4514 = vmatpush1.bf16.msra.mxu0 %v635
    %4515 = vmatprep.subr.bf16.mxu0 %v634
    %4516 = vmatpush1.bf16.msra.mxu0 %v633
    %4517 = vmatprep.subr.bf16.mxu0 %v632
    %4518 = vmatpush1.bf16.msra.mxu0 %v631
    %4519 = vmatprep.subr.bf16.mxu0 %v630
    %4520 = vmatpush1.bf16.msra.mxu0 %v629
    %4521 = vmatprep.subr.bf16.mxu0 %v628
    %4522 = vmatpush1.bf16.msra.mxu0 %v627
    %4523 = vmatprep.subr.bf16.mxu0 %v626
    %4524 = vmatpush1.bf16.msra.mxu0 %v625
    %4525 = vmatprep.subr.bf16.mxu0 %v656
    %4526 = vmatpush2.bf16.msra.mxu0 %v655
    %4527 = vmatprep.subr.bf16.mxu0 %v654
    %4528 = vmatpush2.bf16.msra.mxu0 %v653
    %4529 = vmatprep.subr.bf16.mxu0 %v652
    %4530 = vmatpush2.bf16.msra.mxu0 %v651
    %4531 = vmatprep.subr.bf16.mxu0 %v650
    %4532 = vmatpush2.bf16.msra.mxu0 %v649
    %4533 = vmatprep.subr.bf16.mxu0 %v648
    %4534 = vmatpush2.bf16.msra.mxu0 %v647
    %4535 = vmatprep.subr.bf16.mxu0 %v646
    %4536 = vmatpush2.bf16.msra.mxu0 %v645
    %4537 = vmatprep.subr.bf16.mxu0 %v644
    %4538 = vmatpush2.bf16.msra.mxu0 %v643
    %4539 = vmatprep.subr.bf16.mxu0 %v642
    %4540 = vmatpush2.bf16.msra.mxu0 %v641
    %4541 = vmatprep.mubr.bf16.mxu0 %v4506
    %4542 = vmatmul.mubr.bf16.gmra.mxu0 %v4505
    %v4543 = vpop.f32.mrf.mxu0
    %v4544 = vadd.f32 0.0, %v4543
    %v4545 = vpop.f32.mrf.mxu0
    %v4546 = vadd.f32 0.0, %v4545
    %v4547 = vpop.f32.mrf.mxu0
    %v4548 = vpop.f32.mrf.mxu0
    %4549 = vdwg.mxu0
    %4551 = vset.pattern.permute.xlu0 0
    %4552 = vperm.xlu0 %4551, %v4493
    %v4553 = vpop.permute.xlu0 %4552
    %v4555 = vadd.f32 %v4553, %v4544
    %v4556 = vadd.f32 %v4553, %v4546
    %s4557 = sadd.s32 %s507, 7681
    %v4558 = vstv %s4557
    %v4559 = vadd.s32 %v4558, %v739
    %v4560 = vadd.s32 %v4558, %v740
    %v4561 = vcvt.s32.f32 %v4559
    %v4562 = vcvt.s32.f32 %v4560
    %v4563 = vsub.f32 %v4561, %v4555
    %v4564 = vsub.f32 %v4562, %v4556
    %v4565 = vsub.f32 %v751, %v4555
    %v4566 = vsub.f32 %v751, %v4556
    %v4567 = vadd.f32 %v751, %v4563
    %v4568 = vadd.f32 %v751, %v4564
    %v4570 = vcombine.high %v4490, %v4490
    %v4572 = vadd.f32 %v4565, %v4490
    %v4573 = vadd.f32 %v4566, %v4570
    %v4574 = vsub.f32 1.0, %v4490
    %v4576 = vcombine.high %v4574, %v4574
    %v4578 = vsub.f32 %v4567, %v4574
    %v4579 = vsub.f32 %v4568, %v4576
    %v4580 = vmul.f32 %v4572, %v4567
    %v4581 = vmul.f32 %v4573, %v4568
    %v4582 = vmul.f32 %v4565, %v4578
    %v4583 = vmul.f32 %v4566, %v4579
    %v4584 = vsub.f32 %v4580, %v4582
    %v4585 = vsub.f32 %v4581, %v4583
    %v4586 = vmul.f32 %v4567, %v4578
    %v4587 = vmul.f32 %v4568, %v4579
    %v4588 = vmax.f32 %v4586, 1.0
    %v4589 = vmax.f32 %v4587, 1.0
    %v4590 = vrcp.pop %v4588
    %v4591 = vmul.f32 %v4584, %v4590
    %v4592 = vrcp.pop %v4589
    %v4593 = vmul.f32 %v4585, %v4592
    %v4594 = vld [vmem:[#allocation4] sm:$0xf]
    %v4597 = vcombine.low %v4591, %v4593
    %v4599 = vmul.f32 %v4492, %v4597
    %v4601 = vcombine.high %v4599, %v4599
    %v4603 = vsel %vm791, %v4599, 0.0
    %v4604 = vsel %vm791, %v4601, 0.0
    %v4605 = vadd.f32 %v4603, %v4604
    %4606 = vadd.xlane.f32.xlu0 %v4605
    %v4607 = vpop.xlane.xlu0 %4606
    %v4608 = vadd.f32 %v4594, %v4607
    %4609 = vst.msk [vmem:[#allocation4] sm:$0xf] %vm798, %v4608
    %4611 = vrot.lane.b32.xlu0 %v4556, 1
    %v4612 = vpop.permute.xlu0 %4611
    %4614 = vst.msk [vmem:[#allocation3] sm:$0xf] %vm798, %v4612
    %v4615 = vld [vmem:[%s2 + $0x3e] sm:$0x3]
    %v4616 = vunpack.c.0.s8 %v4615
    %v4617 = vcvt.s32.f32 %v4616
    %v4618 = vld [vmem:[%s1 + $0xf8] sm:$0xff]
    %v4619 = vsub.f32 0.0, %v4618
    %v4620 = vld [vmem:[#allocation3] sm:$0xf]
    %v4622 = vunpack.c.l.s4 1935823168
    %v4623 = vunpack.c.0.s8 %v4622
    %v4624 = vlaneseq
    %v4625 = vshrl.u32 %v4624, 7
    %v4626 = vsub.s32 %v4623, %v4625
    %v4627 = vrot.slane %v4615, %v4626
    %v4628 = vunpack.c.l.s8.bf16 %v4627
    %v4630 = vunpack.c.l.b16 %v4628
    %v4631 = vunpack.c.h.b16 %v4628
    %v4632 = vpack.c.b16 %v4630, %v4630
    %v4633 = vpack.c.b16 %v4631, %v4631
    %4636 = vmatprep.subr.bf16.mxu0 %v640
    %4637 = vmatpush1.bf16.msra.mxu0 %v639
    %4638 = vmatprep.subr.bf16.mxu0 %v638
    %4639 = vmatpush1.bf16.msra.mxu0 %v637
    %4640 = vmatprep.subr.bf16.mxu0 %v636
    %4641 = vmatpush1.bf16.msra.mxu0 %v635
    %4642 = vmatprep.subr.bf16.mxu0 %v634
    %4643 = vmatpush1.bf16.msra.mxu0 %v633
    %4644 = vmatprep.subr.bf16.mxu0 %v632
    %4645 = vmatpush1.bf16.msra.mxu0 %v631
    %4646 = vmatprep.subr.bf16.mxu0 %v630
    %4647 = vmatpush1.bf16.msra.mxu0 %v629
    %4648 = vmatprep.subr.bf16.mxu0 %v628
    %4649 = vmatpush1.bf16.msra.mxu0 %v627
    %4650 = vmatprep.subr.bf16.mxu0 %v626
    %4651 = vmatpush1.bf16.msra.mxu0 %v625
    %4652 = vmatprep.subr.bf16.mxu0 %v656
    %4653 = vmatpush2.bf16.msra.mxu0 %v655
    %4654 = vmatprep.subr.bf16.mxu0 %v654
    %4655 = vmatpush2.bf16.msra.mxu0 %v653
    %4656 = vmatprep.subr.bf16.mxu0 %v652
    %4657 = vmatpush2.bf16.msra.mxu0 %v651
    %4658 = vmatprep.subr.bf16.mxu0 %v650
    %4659 = vmatpush2.bf16.msra.mxu0 %v649
    %4660 = vmatprep.subr.bf16.mxu0 %v648
    %4661 = vmatpush2.bf16.msra.mxu0 %v647
    %4662 = vmatprep.subr.bf16.mxu0 %v646
    %4663 = vmatpush2.bf16.msra.mxu0 %v645
    %4664 = vmatprep.subr.bf16.mxu0 %v644
    %4665 = vmatpush2.bf16.msra.mxu0 %v643
    %4666 = vmatprep.subr.bf16.mxu0 %v642
    %4667 = vmatpush2.bf16.msra.mxu0 %v641
    %4668 = vmatprep.mubr.bf16.mxu0 %v4633
    %4669 = vmatmul.mubr.bf16.gmra.mxu0 %v4632
    %v4670 = vpop.f32.mrf.mxu0
    %v4671 = vadd.f32 0.0, %v4670
    %v4672 = vpop.f32.mrf.mxu0
    %v4673 = vadd.f32 0.0, %v4672
    %v4674 = vpop.f32.mrf.mxu0
    %v4675 = vpop.f32.mrf.mxu0
    %4676 = vdwg.mxu0
    %4678 = vset.pattern.permute.xlu0 0
    %4679 = vperm.xlu0 %4678, %v4620
    %v4680 = vpop.permute.xlu0 %4679
    %v4682 = vadd.f32 %v4680, %v4671
    %v4683 = vadd.f32 %v4680, %v4673
    %s4684 = sadd.s32 %s507, 7937
    %v4685 = vstv %s4684
    %v4686 = vadd.s32 %v4685, %v739
    %v4687 = vadd.s32 %v4685, %v740
    %v4688 = vcvt.s32.f32 %v4686
    %v4689 = vcvt.s32.f32 %v4687
    %v4690 = vsub.f32 %v4688, %v4682
    %v4691 = vsub.f32 %v4689, %v4683
    %v4692 = vsub.f32 %v751, %v4682
    %v4693 = vsub.f32 %v751, %v4683
    %v4694 = vadd.f32 %v751, %v4690
    %v4695 = vadd.f32 %v751, %v4691
    %v4697 = vcombine.high %v4617, %v4617
    %v4699 = vadd.f32 %v4692, %v4617
    %v4700 = vadd.f32 %v4693, %v4697
    %v4701 = vsub.f32 1.0, %v4617
    %v4703 = vcombine.high %v4701, %v4701
    %v4705 = vsub.f32 %v4694, %v4701
    %v4706 = vsub.f32 %v4695, %v4703
    %v4707 = vmul.f32 %v4699, %v4694
    %v4708 = vmul.f32 %v4700, %v4695
    %v4709 = vmul.f32 %v4692, %v4705
    %v4710 = vmul.f32 %v4693, %v4706
    %v4711 = vsub.f32 %v4707, %v4709
    %v4712 = vsub.f32 %v4708, %v4710
    %v4713 = vmul.f32 %v4694, %v4705
    %v4714 = vmul.f32 %v4695, %v4706
    %v4715 = vmax.f32 %v4713, 1.0
    %v4716 = vmax.f32 %v4714, 1.0
    %v4717 = vrcp.pop %v4715
    %v4718 = vmul.f32 %v4711, %v4717
    %v4719 = vrcp.pop %v4716
    %v4720 = vmul.f32 %v4712, %v4719
    %v4721 = vld [vmem:[#allocation4] sm:$0xf]
    %v4724 = vcombine.low %v4718, %v4720
    %v4726 = vmul.f32 %v4619, %v4724
    %v4728 = vcombine.high %v4726, %v4726
    %v4730 = vsel %vm791, %v4726, 0.0
    %v4731 = vsel %vm791, %v4728, 0.0
    %v4732 = vadd.f32 %v4730, %v4731
    %4733 = vadd.xlane.f32.xlu0 %v4732
    %v4734 = vpop.xlane.xlu0 %4733
    %v4735 = vadd.f32 %v4721, %v4734
    %4736 = vst.msk [vmem:[#allocation4] sm:$0xf] %vm798, %v4735
    %4738 = vrot.lane.b32.xlu0 %v4683, 1
    %v4739 = vpop.permute.xlu0 %4738
    %4741 = vst.msk [vmem:[#allocation3] sm:$0xf] %vm798, %v4739
    // Predicated region
    $region18: #{lovasz_softmax_with_logit.3} parent=1 // pred_check
      %p4742 = pneg %p15
    $region19: #{lovasz_softmax_with_logit.3} parent=1 // pred_check_branch
      %4744 = sbr.rel (%p4742) target = $region21
    $region20: #{lovasz_softmax_with_logit.3} parent=1 // pred_region
      %vm4745 = vcmp.gt.f32.partialorder %v474, 0.0
      %v4746 = vsel %vm4745, 1, 0
      %v4747 = vcvt.s32.f32 %v4746
      %v4748 = vld [vmem:[#allocation4] sm:$0xf]
      %v4749 = vmul.f32 %v4748, %v4747
      %v4750 = vsel %vm798, %v4749, 0.0
      %v4751 = vrot.slane %v4750, 4
      %v4752 = vadd.f32 %v4750, %v4751
      %v4753 = vrot.slane %v4752, 2
      %v4754 = vadd.f32 %v4752, %v4753
      %v4755 = vrot.slane %v4754, 1
      %v4756 = vadd.f32 %v4754, %v4755
      %v4757 = vsel %vm798, %v4747, 0.0
      %v4758 = vrot.slane %v4757, 4
      %v4759 = vadd.f32 %v4757, %v4758
      %v4760 = vrot.slane %v4759, 2
      %v4761 = vadd.f32 %v4759, %v4760
      %v4762 = vrot.slane %v4761, 1
      %v4763 = vadd.f32 %v4761, %v4762
      %v4764 = vmax.f32 %v4763, 1.0
      %v4765 = vrcp.pop %v4764
      %v4766 = vmul.f32 %v4756, %v4765
      %vm4767 = vcmask 0
      %4768 = vst.msk [vmem:[#allocation5] sm:$0x1] %vm4767, %v4766
    $region21: #{lovasz_softmax_with_logit.3} parent=1 // pred_fallthru
      _
    // Predicated region
    $region22: #{lovasz_softmax_with_logit.3} parent=1 // pred_check
      _
    $region23: #{lovasz_softmax_with_logit.3} parent=1 // pred_check_branch
      %4770 = sbr.rel (0) target = $region25
    $region24: #{lovasz_softmax_with_logit.3} parent=1 // pred_region
      %s4772 = ssub.s32 16, 16
      %4773 = vsyncadd [#allocation6], %s4772
      %s4775 = sshll.u32 [#allocation5], 4
      %s4776 = int_to_ptr.vmem [resolvable:$true] %s4775
      %4778 = dma.vmem_to_hbm [thread:$0]  %s4776, 16, %s3, [#allocation6]
    $region25: #{lovasz_softmax_with_logit.3} parent=1 // pred_fallthru
      _
    // Predicated region
    $region26: #{lovasz_softmax_with_logit.3} parent=1 // pred_check
      _
    $region27: #{lovasz_softmax_with_logit.3} parent=1 // pred_check_branch
      %4780 = sbr.rel (0) target = $region29
    $region28: #{lovasz_softmax_with_logit.3} parent=1 // pred_region
      %4781 = dma.done [#allocation6], 16
    $region29: #{lovasz_softmax_with_logit.3} parent=1 // pred_fallthru
      _
    %4782 = vsyncpa [#allocation6], 1

</llo_original>
